<compile_context>
chip_gen: v5e
topology: v5e:2x2
jax: 0.10.0
libtpu: 0.0.40
codegen_flags: <defaults>
</compile_context>

<pallas_src>
import functools

import jax
import jax.numpy as jnp
from jax.experimental import pallas as pl
from jax.experimental.pallas import tpu as pltpu


def _round_up(n, m):
    return ((n + m - 1) // m) * m


def _full_spec(shape):
    n = len(shape)
    return pl.BlockSpec(shape, lambda b, _n=n: (0,) * _n)


# ----------------------------------------------------------------------------
# In-kernel helpers (operate on (S, C) f32 token values).
# ----------------------------------------------------------------------------
def _group_norm_tokens(x, gamma, beta, ind, inv_n, eps):
    """Single-pass group norm. ind: (C, G) one-hot group indicator."""
    s1 = jnp.sum(x, axis=0, keepdims=True)            # (1, C)
    s2 = jnp.sum(x * x, axis=0, keepdims=True)        # (1, C)
    gmean = jnp.dot(s1, ind, preferred_element_type=jnp.float32) * inv_n   # (1, G)
    gex2 = jnp.dot(s2, ind, preferred_element_type=jnp.float32) * inv_n    # (1, G)
    gvar = gex2 - gmean * gmean
    grstd = jax.lax.rsqrt(gvar + eps)
    # Broadcast group stats back to channels (contract the G axes, no transpose).
    dn = (((1,), (1,)), ((), ()))
    mean_c = jax.lax.dot_general(gmean, ind, dn, preferred_element_type=jnp.float32)  # (1, C)
    rstd_c = jax.lax.dot_general(grstd, ind, dn, preferred_element_type=jnp.float32)  # (1, C)
    return (x - mean_c) * (rstd_c * gamma) + beta


def _conv3x3_tokens(h, w_ref, bias, mneg, mpos, H, W):
    """3x3 'same' conv on (S=H*W, C) tokens as 9 shifted matmuls."""
    S, C = h.shape
    cout = w_ref.shape[2]
    pad_rows = _round_up(W + 1, 8)                     # keep concat pieces 8-aligned
    zpad = jnp.zeros((pad_rows, C), jnp.float32)
    hp = jnp.concatenate([zpad, h, zpad], axis=0)      # (S + 2*pad_rows, C)
    acc = jnp.zeros((S, cout), jnp.float32)
    for kh in range(3):
        for kw in range(3):
            start = pad_rows + (kh - 1) * W + (kw - 1)
            patch = hp[start:start + S, :]             # (S, C)
            if kw == 0:
                patch = patch * mneg                   # source column w-1 invalid at w==0
            elif kw == 2:
                patch = patch * mpos                   # source column w+1 invalid at w==W-1
            acc = acc + jnp.dot(patch, w_ref[kh * 3 + kw],
                                preferred_element_type=jnp.float32)
    return acc + bias


# ----------------------------------------------------------------------------
# Fused ResnetBlock2D kernel (per batch): GN -> SiLU -> conv -> +temb -> GN ->
# SiLU -> conv -> residual.
# ----------------------------------------------------------------------------
def _resnet_kernel(x_ref, tadd_ref, masks_ref, ind_ref,
                   g1_ref, b1_ref, w1_ref, cb1_ref,
                   g2_ref, b2_ref, w2_ref, cb2_ref,
                   o_ref, *, H, W, inv_n, eps):
    x = x_ref[0]                                       # (S, C), also the residual
    ind = ind_ref[...]
    mneg = masks_ref[0]                                # (S, 1)
    mpos = masks_ref[1]                                # (S, 1)

    h = _group_norm_tokens(x, g1_ref[...], b1_ref[...], ind, inv_n, eps)
    h = h * jax.nn.sigmoid(h)                          # SiLU (sigmoid on EUP)
    h = _conv3x3_tokens(h, w1_ref, cb1_ref[...], mneg, mpos, H, W)
    h = h + tadd_ref[0]                                # time embedding, (1, C) broadcast
    h = _group_norm_tokens(h, g2_ref[...], b2_ref[...], ind, inv_n, eps)
    h = h * jax.nn.sigmoid(h)
    h = _conv3x3_tokens(h, w2_ref, cb2_ref[...], mneg, mpos, H, W)
    o_ref[0] = x + h                                   # output_scale_factor == 1.0


def resnet_block(x3, t_add, p, masks, ind, *, H, W, num_groups, eps):
    """x3: (B, S, C); t_add: (B, 1, C) already-projected time embedding."""
    B, S, C = x3.shape
    G = num_groups
    inv_n = 1.0 / float(S * (C // G))
    kernel = functools.partial(_resnet_kernel, H=H, W=W, inv_n=inv_n, eps=eps)
    w1 = p["conv1_w"].reshape(9, C, C)
    w2 = p["conv2_w"].reshape(9, C, C)
    return pl.pallas_call(
        kernel,
        out_shape=jax.ShapeDtypeStruct((B, S, C), jnp.float32),
        grid=(B,),
        in_specs=[
            pl.BlockSpec((1, S, C), lambda b: (b, 0, 0)),   # activation / residual
            pl.BlockSpec((1, 1, C), lambda b: (b, 0, 0)),   # projected temb
            _full_spec((2, S, 1)),                          # conv boundary masks
            _full_spec((C, G)),                             # group indicator
            _full_spec((1, C)), _full_spec((1, C)),         # norm1 gamma/beta
            _full_spec((9, C, C)), _full_spec((1, C)),      # conv1 w/b
            _full_spec((1, C)), _full_spec((1, C)),         # norm2 gamma/beta
            _full_spec((9, C, C)), _full_spec((1, C)),      # conv2 w/b
        ],
        out_specs=pl.BlockSpec((1, S, C), lambda b: (b, 0, 0)),
        compiler_params=pltpu.CompilerParams(dimension_semantics=("parallel",)),
    )(x3, t_add, masks, ind,
      p["gn1_w"], p["gn1_b"], w1, p["conv1_b"],
      p["gn2_w"], p["gn2_b"], w2, p["conv2_b"])


# ----------------------------------------------------------------------------
# Fused AttentionBlock kernel (per batch): GN -> QKV -> per-head softmax(QK^T)V
# -> single output projection -> residual.
# ----------------------------------------------------------------------------
def _attn_kernel(x_ref, ind_ref, g_ref, b_ref,
                 wq_ref, bq_ref, wk_ref, bk_ref, wv_ref, bv_ref,
                 wo_ref, bo_ref, o_ref, o_scr,
                 *, num_heads, head_dim, inv_n, eps):
    x = x_ref[0]                                       # (S, C), residual
    n = _group_norm_tokens(x, g_ref[...], b_ref[...], ind_ref[...], inv_n, eps)

    scale = float(head_dim) ** -0.5                    # = 1/sqrt(C/num_heads)
    # Fold the softmax scale into q once (instead of scaling every (S,S) score).
    q = (jnp.dot(n, wq_ref[...], preferred_element_type=jnp.float32) + bq_ref[...]) * scale
    k = jnp.dot(n, wk_ref[...], preferred_element_type=jnp.float32) + bk_ref[...]
    v = jnp.dot(n, wv_ref[...], preferred_element_type=jnp.float32) + bv_ref[...]

    dn = (((1,), (1,)), ((), ()))                      # contract last dims (QK^T, no transpose)
    # TODO: for large S this full (S,S) score matrix should become a
    # flash-style online-softmax loop over KV tiles with a query-tile grid axis.
    for hh in range(num_heads):                        # static unroll (small head count)
        lo = hh * head_dim
        hi = lo + head_dim
        qh = q[:, lo:hi]
        kh = k[:, lo:hi]
        vh = v[:, lo:hi]
        s = jax.lax.dot_general(qh, kh, dn, preferred_element_type=jnp.float32)  # (S, S)
        s = s - jnp.max(s, axis=-1, keepdims=True)
        ps = jnp.exp(s)
        ps = ps * pl.reciprocal(jnp.sum(ps, axis=-1, keepdims=True), approx=True)
        o_scr[:, lo:hi] = jnp.dot(ps, vh, preferred_element_type=jnp.float32)

    # Single (S, C) x (C, C) output projection instead of per-head K=head_dim matmuls.
    out = jnp.dot(o_scr[...], wo_ref[...], preferred_element_type=jnp.float32) + bo_ref[...]
    o_ref[0] = x + out                                 # rescale_output_factor == 1.0


def attention_block(x3, p, ind, *, num_head_channels, num_groups, eps):
    B, S, C = x3.shape
    heads = C // num_head_channels
    head_dim = num_head_channels
    G = num_groups
    inv_n = 1.0 / float(S * (C // G))
    kernel = functools.partial(_attn_kernel, num_heads=heads, head_dim=head_dim,
                               inv_n=inv_n, eps=eps)
    return pl.pallas_call(
        kernel,
        out_shape=jax.ShapeDtypeStruct((B, S, C), jnp.float32),
        grid=(B,),
        in_specs=[
            pl.BlockSpec((1, S, C), lambda b: (b, 0, 0)),   # activation / residual
            _full_spec((C, G)),                             # group indicator
            _full_spec((1, C)), _full_spec((1, C)),         # group_norm gamma/beta
            _full_spec((C, C)), _full_spec((1, C)),         # query w/b
            _full_spec((C, C)), _full_spec((1, C)),         # key w/b
            _full_spec((C, C)), _full_spec((1, C)),         # value w/b
            _full_spec((C, C)), _full_spec((1, C)),         # proj_attn w/b
        ],
        out_specs=pl.BlockSpec((1, S, C), lambda b: (b, 0, 0)),
        scratch_shapes=[pltpu.VMEM((S, C), jnp.float32)],
        compiler_params=pltpu.CompilerParams(dimension_semantics=("parallel",)),
    )(x3, ind, p["gn_w"], p["gn_b"], p["wq"], p["bq"], p["wk"], p["bk"],
      p["wv"], p["bv"], p["wo"], p["bo"])


# ----------------------------------------------------------------------------
# UNetMidBlock2D forward: resnet0 -> attention -> resnet1.
# ----------------------------------------------------------------------------
def unet_mid_block_2d_forward(x_nchw, temb, params, *, num_groups,
                              num_head_channels, eps=1e-6):
    B, C, H, W = x_nchw.shape
    S = H * W
    G = num_groups
    x3 = jnp.transpose(x_nchw, (0, 2, 3, 1)).reshape(B, S, C)   # NCHW -> (B, S, C)

    # Constants shared by the kernels.
    ind = (jnp.arange(C)[:, None] // (C // G) == jnp.arange(G)[None, :]).astype(jnp.float32)
    col = jnp.arange(S, dtype=jnp.int32) % W
    masks = jnp.stack([col > 0, col < W - 1]).astype(jnp.float32)[:, :, None]  # (2, S, 1)

    def silu(z):
        return z * jax.nn.sigmoid(z)

    def run_resnet(h3, p):
        # Tiny glue matmul: time_emb_proj(silu(temb)) -> (B, 1, C).
        t_add = (silu(temb) @ p["time_w"] + p["time_b"]).reshape(B, 1, C)
        return resnet_block(h3, t_add, p, masks, ind, H=H, W=W,
                            num_groups=G, eps=eps)

    h3 = run_resnet(x3, params["resnet0"])
    h3 = attention_block(h3, params["attn"], ind,
                         num_head_channels=num_head_channels,
                         num_groups=G, eps=eps)
    h3 = run_resnet(h3, params["resnet1"])

    return jnp.transpose(h3.reshape(B, H, W, C), (0, 3, 1, 2))  # back to NCHW


# ----------------------------------------------------------------------------
# Pure-JAX reference (correctness check only).
# ----------------------------------------------------------------------------
def _ref_forward(x_nchw, temb, params, *, num_groups, num_head_channels, eps):
    B, C, H, W = x_nchw.shape
    x = jnp.transpose(x_nchw, (0, 2, 3, 1))            # NHWC

    def gn(z, w, b):
        Bx, Hx, Wx, Cx = z.shape
        g = num_groups
        zg = z.reshape(Bx, Hx * Wx, g, Cx // g)
        mean = zg.mean(axis=(1, 3), keepdims=True)
        var = zg.var(axis=(1, 3), keepdims=True)
        zn = ((zg - mean) / jnp.sqrt(var + eps)).reshape(Bx, Hx, Wx, Cx)
        return zn * w + b

    def silu(z):
        return z * jax.nn.sigmoid(z)

    def conv(z, w_hwio, b):
        y = jax.lax.conv_general_dilated(z, w_hwio, (1, 1), "SAME",
                                         dimension_numbers=("NHWC", "HWIO", "NHWC"))
        return y + b

    def resnet(z, p):
        h = conv(silu(gn(z, p["gn1_w"], p["gn1_b"])), p["conv1_w"], p["conv1_b"])
        t = silu(temb) @ p["time_w"] + p["time_b"]
        h = h + t[:, None, None, :]
        h = conv(silu(gn(h, p["gn2_w"], p["gn2_b"])), p["conv2_w"], p["conv2_b"])
        return z + h

    def attn(z, p):
        Bx, Hx, Wx, Cx = z.shape
        S = Hx * Wx
        heads = Cx // num_head_channels
        hd = num_head_channels
        n = gn(z, p["gn_w"], p["gn_b"]).reshape(Bx, S, Cx)
        q = n @ p["wq"] + p["bq"]
        k = n @ p["wk"] + p["bk"]
        v = n @ p["wv"] + p["bv"]
        qh = q.reshape(Bx, S, heads, hd).transpose(0, 2, 1, 3)
        kh = k.reshape(Bx, S, heads, hd).transpose(0, 2, 1, 3)
        vh = v.reshape(Bx, S, heads, hd).transpose(0, 2, 1, 3)
        s = jnp.einsum("bhqd,bhkd->bhqk", qh, kh) * (hd ** -0.5)
        pr = jax.nn.softmax(s, axis=-1)
        o = jnp.einsum("bhqk,bhkd->bhqd", pr, vh)
        o = o.transpose(0, 2, 1, 3).reshape(Bx, S, Cx)
        o = o @ p["wo"] + p["bo"]
        return z + o.reshape(Bx, Hx, Wx, Cx)

    x = resnet(x, params["resnet0"])
    x = attn(x, params["attn"])
    x = resnet(x, params["resnet1"])
    return jnp.transpose(x, (0, 3, 1, 2))


if __name__ == "__main__":
    # Small shapes consistent with UNetMidBlock2D defaults:
    #   in_channels=64, temb_channels=32, resnet_groups=32, eps=1e-6,
    #   attn_num_head_channels=32 -> 2 heads, num_layers=1.
    in_channels = 64
    temb_channels = 32
    resnet_groups = 32
    attn_num_head_channels = 32
    eps = 1e-6
    B, H, W = 2, 16, 16
    C = in_channels

    key = jax.random.PRNGKey(0)
    keys = iter(jax.random.split(key, 64))

    def nrm(shape, s=0.05):
        return jax.random.normal(next(keys), shape, jnp.float32) * s

    def resnet_params():
        return {
            "gn1_w": 1.0 + nrm((1, C)), "gn1_b": nrm((1, C)),
            "conv1_w": nrm((3, 3, C, C)), "conv1_b": nrm((1, C)),
            "time_w": nrm((temb_channels, C)), "time_b": nrm((1, C)),
            "gn2_w": 1.0 + nrm((1, C)), "gn2_b": nrm((1, C)),
            "conv2_w": nrm((3, 3, C, C)), "conv2_b": nrm((1, C)),
        }

    params = {
        "resnet0": resnet_params(),
        "attn": {
            "gn_w": 1.0 + nrm((1, C)), "gn_b": nrm((1, C)),
            "wq": nrm((C, C)), "bq": nrm((1, C)),
            "wk": nrm((C, C)), "bk": nrm((1, C)),
            "wv": nrm((C, C)), "bv": nrm((1, C)),
            "wo": nrm((C, C)), "bo": nrm((1, C)),
        },
        "resnet1": resnet_params(),
    }

    x = jax.random.normal(next(keys), (B, C, H, W), jnp.float32)      # NCHW
    temb = jax.random.normal(next(keys), (B, temb_channels), jnp.float32)

    out = unet_mid_block_2d_forward(
        x, temb, params, num_groups=resnet_groups,
        num_head_channels=attn_num_head_channels, eps=eps)
    out = jax.block_until_ready(out)

    ref = _ref_forward(x, temb, params, num_groups=resnet_groups,
                       num_head_channels=attn_num_head_channels, eps=eps)
    ref = jax.block_until_ready(ref)

    assert out.shape == (B, C, H, W)
    max_err = float(jnp.max(jnp.abs(out - ref)))
    # Tolerance loosened slightly vs strict f32 because of pl.reciprocal(approx=True).
    assert jnp.allclose(out, ref, rtol=5e-3, atol=5e-3), max_err
    print("KERNEL_OK")
</pallas_src>

<mosaic_0001>
module attributes {stable_mosaic.version = 11 : i64} {
  func.func @_resnet_kernel(%arg0: i32, %arg1: memref<1x256x64xf32, #tpu.memory_space<vmem>>, %arg2: memref<1x1x64xf32, #tpu.memory_space<vmem>>, %arg3: memref<2x256x1xf32, #tpu.memory_space<vmem>>, %arg4: memref<64x32xf32, #tpu.memory_space<vmem>>, %arg5: memref<1x64xf32, #tpu.memory_space<vmem>>, %arg6: memref<1x64xf32, #tpu.memory_space<vmem>>, %arg7: memref<9x64x64xf32, #tpu.memory_space<vmem>>, %arg8: memref<1x64xf32, #tpu.memory_space<vmem>>, %arg9: memref<1x64xf32, #tpu.memory_space<vmem>>, %arg10: memref<1x64xf32, #tpu.memory_space<vmem>>, %arg11: memref<9x64x64xf32, #tpu.memory_space<vmem>>, %arg12: memref<1x64xf32, #tpu.memory_space<vmem>>, %arg13: memref<1x256x64xf32, #tpu.memory_space<vmem>>) attributes {dimension_semantics = [#tpu.dimension_semantics<parallel>], iteration_bounds = array<i64: 2>, scalar_prefetch = 0 : i64, scratch_operands = 0 : i64, tpu.core_type = #tpu.core_type<tc>, window_params = [{transform_indices = @transform_0, window_bounds = array<i64: 1, 256, 64>}, {transform_indices = @transform_1, window_bounds = array<i64: 1, 1, 64>}, {pipeline_mode = #tpu.pipeline_mode<synchronous>, transform_indices = @transform_2, window_bounds = array<i64: 2, 256, 1>}, {pipeline_mode = #tpu.pipeline_mode<synchronous>, transform_indices = @transform_3, window_bounds = array<i64: 64, 32>}, {pipeline_mode = #tpu.pipeline_mode<synchronous>, transform_indices = @transform_4, window_bounds = array<i64: 1, 64>}, {pipeline_mode = #tpu.pipeline_mode<synchronous>, transform_indices = @transform_5, window_bounds = array<i64: 1, 64>}, {pipeline_mode = #tpu.pipeline_mode<synchronous>, transform_indices = @transform_6, window_bounds = array<i64: 9, 64, 64>}, {pipeline_mode = #tpu.pipeline_mode<synchronous>, transform_indices = @transform_7, window_bounds = array<i64: 1, 64>}, {pipeline_mode = #tpu.pipeline_mode<synchronous>, transform_indices = @transform_8, window_bounds = array<i64: 1, 64>}, {pipeline_mode = #tpu.pipeline_mode<synchronous>, transform_indices = @transform_9, window_bounds = array<i64: 1, 64>}, {pipeline_mode = #tpu.pipeline_mode<synchronous>, transform_indices = @transform_10, window_bounds = array<i64: 9, 64, 64>}, {pipeline_mode = #tpu.pipeline_mode<synchronous>, transform_indices = @transform_11, window_bounds = array<i64: 1, 64>}, {transform_indices = @transform_12, window_bounds = array<i64: 1, 256, 64>}]} {
    %c0 = arith.constant 0 : index
    %c0_0 = arith.constant 0 : index
    %c0_1 = arith.constant 0 : index
    %0 = vector.load %arg1[%c0, %c0_0, %c0_1] : memref<1x256x64xf32, #tpu.memory_space<vmem>>, vector<1x256x64xf32>
    %1 = vector.shape_cast %0 : vector<1x256x64xf32> to vector<256x64xf32>
    %c0_2 = arith.constant 0 : index
    %c0_3 = arith.constant 0 : index
    %2 = vector.load %arg4[%c0_2, %c0_3] : memref<64x32xf32, #tpu.memory_space<vmem>>, vector<64x32xf32>
    %c0_4 = arith.constant 0 : index
    %c0_5 = arith.constant 0 : index
    %c0_6 = arith.constant 0 : index
    %3 = vector.load %arg3[%c0_4, %c0_5, %c0_6] : memref<2x256x1xf32, #tpu.memory_space<vmem>>, vector<1x256x1xf32>
    %4 = vector.shape_cast %3 : vector<1x256x1xf32> to vector<256x1xf32>
    %c1 = arith.constant 1 : index
    %c0_7 = arith.constant 0 : index
    %c0_8 = arith.constant 0 : index
    %5 = vector.load %arg3[%c1, %c0_7, %c0_8] : memref<2x256x1xf32, #tpu.memory_space<vmem>>, vector<1x256x1xf32>
    %6 = vector.shape_cast %5 : vector<1x256x1xf32> to vector<256x1xf32>
    %c0_9 = arith.constant 0 : index
    %c0_10 = arith.constant 0 : index
    %7 = vector.load %arg5[%c0_9, %c0_10] : memref<1x64xf32, #tpu.memory_space<vmem>>, vector<1x64xf32>
    %c0_11 = arith.constant 0 : index
    %c0_12 = arith.constant 0 : index
    %8 = vector.load %arg6[%c0_11, %c0_12] : memref<1x64xf32, #tpu.memory_space<vmem>>, vector<1x64xf32>
    %cst = arith.constant dense<0.000000e+00> : vector<64xf32>
    %9 = vector.multi_reduction <add>, %1, %cst [0] : vector<256x64xf32> to vector<64xf32>
    %10 = vector.shape_cast %9 : vector<64xf32> to vector<1x64xf32>
    %11 = arith.mulf %1, %1 : vector<256x64xf32>
    %cst_13 = arith.constant dense<0.000000e+00> : vector<64xf32>
    %12 = vector.multi_reduction <add>, %11, %cst_13 [0] : vector<256x64xf32> to vector<64xf32>
    %13 = vector.shape_cast %12 : vector<64xf32> to vector<1x64xf32>
    %cst_14 = arith.constant dense<0.000000e+00> : vector<1x32xf32>
    %14 = tpu.matmul %10, %2, %cst_14 {dimension_numbers = #tpu.dot_dimension_numbers<[1], [0], [0], [1], [0, 0, 1, 1], [], []>} : vector<1x64xf32>, vector<64x32xf32>, vector<1x32xf32> -> vector<1x32xf32>
    %cst_15 = arith.constant 0.001953125 : f32
    %15 = vector.broadcast %cst_15 : f32 to vector<1x32xf32>
    %16 = arith.mulf %14, %15 : vector<1x32xf32>
    %cst_16 = arith.constant dense<0.000000e+00> : vector<1x32xf32>
    %17 = tpu.matmul %13, %2, %cst_16 {dimension_numbers = #tpu.dot_dimension_numbers<[1], [0], [0], [1], [0, 0, 1, 1], [], []>} : vector<1x64xf32>, vector<64x32xf32>, vector<1x32xf32> -> vector<1x32xf32>
    %cst_17 = arith.constant 0.001953125 : f32
    %18 = vector.broadcast %cst_17 : f32 to vector<1x32xf32>
    %19 = arith.mulf %17, %18 : vector<1x32xf32>
    %20 = arith.mulf %16, %16 : vector<1x32xf32>
    %21 = arith.subf %19, %20 : vector<1x32xf32>
    %cst_18 = arith.constant 9.99999997E-7 : f32
    %22 = vector.broadcast %cst_18 : f32 to vector<1x32xf32>
    %23 = arith.addf %21, %22 : vector<1x32xf32>
    %24 = math.rsqrt %23 : vector<1x32xf32>
    %cst_19 = arith.constant dense<0.000000e+00> : vector<1x64xf32>
    %25 = tpu.matmul %16, %2, %cst_19 {dimension_numbers = #tpu.dot_dimension_numbers<[1], [1], [0], [0], [0, 0, 1, 0], [], []>} : vector<1x32xf32>, vector<64x32xf32>, vector<1x64xf32> -> vector<1x64xf32>
    %cst_20 = arith.constant dense<0.000000e+00> : vector<1x64xf32>
    %26 = tpu.matmul %24, %2, %cst_20 {dimension_numbers = #tpu.dot_dimension_numbers<[1], [1], [0], [0], [0, 0, 1, 0], [], []>} : vector<1x32xf32>, vector<64x32xf32>, vector<1x64xf32> -> vector<1x64xf32>
    %27 = vector.broadcast %25 : vector<1x64xf32> to vector<256x64xf32>
    %28 = arith.subf %1, %27 : vector<256x64xf32>
    %29 = arith.mulf %26, %7 : vector<1x64xf32>
    %30 = vector.broadcast %29 : vector<1x64xf32> to vector<256x64xf32>
    %31 = arith.mulf %28, %30 : vector<256x64xf32>
    %32 = vector.broadcast %8 : vector<1x64xf32> to vector<256x64xf32>
    %33 = arith.addf %31, %32 : vector<256x64xf32>
    %34 = arith.negf %33 : vector<256x64xf32>
    %35 = math.exp %34 : vector<256x64xf32>
    %cst_21 = arith.constant 1.000000e+00 : f32
    %36 = vector.broadcast %cst_21 : f32 to vector<256x64xf32>
    %37 = arith.addf %36, %35 : vector<256x64xf32>
    %38 = arith.divf %36, %37 : vector<256x64xf32>
    %39 = arith.mulf %33, %38 : vector<256x64xf32>
    %c0_22 = arith.constant 0 : index
    %c0_23 = arith.constant 0 : index
    %40 = vector.load %arg8[%c0_22, %c0_23] : memref<1x64xf32, #tpu.memory_space<vmem>>, vector<1x64xf32>
    %cst_24 = arith.constant 0.000000e+00 : f32
    %41 = vector.broadcast %cst_24 : f32 to vector<24x64xf32>
    %42 = tpu.concatenate %41, %39, %41 in 0 : vector<24x64xf32>, vector<256x64xf32>, vector<24x64xf32> -> vector<304x64xf32>
    %cst_25 = arith.constant 0.000000e+00 : f32
    %43 = vector.broadcast %cst_25 : f32 to vector<256x64xf32>
    %44 = vector.extract_strided_slice %42 {offsets = [7, 0], sizes = [256, 64], strides = [1, 1]} : vector<304x64xf32> to vector<256x64xf32>
    %45 = vector.broadcast %4 : vector<256x1xf32> to vector<256x64xf32>
    %46 = arith.mulf %44, %45 : vector<256x64xf32>
    %c0_26 = arith.constant 0 : index
    %c0_27 = arith.constant 0 : index
    %c0_28 = arith.constant 0 : index
    %47 = vector.load %arg7[%c0_26, %c0_27, %c0_28] : memref<9x64x64xf32, #tpu.memory_space<vmem>>, vector<1x64x64xf32>
    %48 = vector.shape_cast %47 : vector<1x64x64xf32> to vector<64x64xf32>
    %cst_29 = arith.constant dense<0.000000e+00> : vector<256x64xf32>
    %49 = tpu.matmul %46, %48, %cst_29 {dimension_numbers = #tpu.dot_dimension_numbers<[1], [0], [0], [1], [0, 0, 1, 1], [], []>} : vector<256x64xf32>, vector<64x64xf32>, vector<256x64xf32> -> vector<256x64xf32>
    %50 = arith.addf %43, %49 : vector<256x64xf32>
    %51 = vector.extract_strided_slice %42 {offsets = [8, 0], sizes = [256, 64], strides = [1, 1]} : vector<304x64xf32> to vector<256x64xf32>
    %c1_30 = arith.constant 1 : index
    %c0_31 = arith.constant 0 : index
    %c0_32 = arith.constant 0 : index
    %52 = vector.load %arg7[%c1_30, %c0_31, %c0_32] : memref<9x64x64xf32, #tpu.memory_space<vmem>>, vector<1x64x64xf32>
    %53 = vector.shape_cast %52 : vector<1x64x64xf32> to vector<64x64xf32>
    %cst_33 = arith.constant dense<0.000000e+00> : vector<256x64xf32>
    %54 = tpu.matmul %51, %53, %cst_33 {dimension_numbers = #tpu.dot_dimension_numbers<[1], [0], [0], [1], [0, 0, 1, 1], [], []>} : vector<256x64xf32>, vector<64x64xf32>, vector<256x64xf32> -> vector<256x64xf32>
    %55 = arith.addf %50, %54 : vector<256x64xf32>
    %56 = vector.extract_strided_slice %42 {offsets = [9, 0], sizes = [256, 64], strides = [1, 1]} : vector<304x64xf32> to vector<256x64xf32>
    %57 = vector.broadcast %6 : vector<256x1xf32> to vector<256x64xf32>
    %58 = arith.mulf %56, %57 : vector<256x64xf32>
    %c2 = arith.constant 2 : index
    %c0_34 = arith.constant 0 : index
    %c0_35 = arith.constant 0 : index
    %59 = vector.load %arg7[%c2, %c0_34, %c0_35] : memref<9x64x64xf32, #tpu.memory_space<vmem>>, vector<1x64x64xf32>
    %60 = vector.shape_cast %59 : vector<1x64x64xf32> to vector<64x64xf32>
    %cst_36 = arith.constant dense<0.000000e+00> : vector<256x64xf32>
    %61 = tpu.matmul %58, %60, %cst_36 {dimension_numbers = #tpu.dot_dimension_numbers<[1], [0], [0], [1], [0, 0, 1, 1], [], []>} : vector<256x64xf32>, vector<64x64xf32>, vector<256x64xf32> -> vector<256x64xf32>
    %62 = arith.addf %55, %61 : vector<256x64xf32>
    %63 = vector.extract_strided_slice %42 {offsets = [23, 0], sizes = [256, 64], strides = [1, 1]} : vector<304x64xf32> to vector<256x64xf32>
    %64 = vector.broadcast %4 : vector<256x1xf32> to vector<256x64xf32>
    %65 = arith.mulf %63, %64 : vector<256x64xf32>
    %c3 = arith.constant 3 : index
    %c0_37 = arith.constant 0 : index
    %c0_38 = arith.constant 0 : index
    %66 = vector.load %arg7[%c3, %c0_37, %c0_38] : memref<9x64x64xf32, #tpu.memory_space<vmem>>, vector<1x64x64xf32>
    %67 = vector.shape_cast %66 : vector<1x64x64xf32> to vector<64x64xf32>
    %cst_39 = arith.constant dense<0.000000e+00> : vector<256x64xf32>
    %68 = tpu.matmul %65, %67, %cst_39 {dimension_numbers = #tpu.dot_dimension_numbers<[1], [0], [0], [1], [0, 0, 1, 1], [], []>} : vector<256x64xf32>, vector<64x64xf32>, vector<256x64xf32> -> vector<256x64xf32>
    %69 = arith.addf %62, %68 : vector<256x64xf32>
    %70 = vector.extract_strided_slice %42 {offsets = [24, 0], sizes = [256, 64], strides = [1, 1]} : vector<304x64xf32> to vector<256x64xf32>
    %c4 = arith.constant 4 : index
    %c0_40 = arith.constant 0 : index
    %c0_41 = arith.constant 0 : index
    %71 = vector.load %arg7[%c4, %c0_40, %c0_41] : memref<9x64x64xf32, #tpu.memory_space<vmem>>, vector<1x64x64xf32>
    %72 = vector.shape_cast %71 : vector<1x64x64xf32> to vector<64x64xf32>
    %cst_42 = arith.constant dense<0.000000e+00> : vector<256x64xf32>
    %73 = tpu.matmul %70, %72, %cst_42 {dimension_numbers = #tpu.dot_dimension_numbers<[1], [0], [0], [1], [0, 0, 1, 1], [], []>} : vector<256x64xf32>, vector<64x64xf32>, vector<256x64xf32> -> vector<256x64xf32>
    %74 = arith.addf %69, %73 : vector<256x64xf32>
    %75 = vector.extract_strided_slice %42 {offsets = [25, 0], sizes = [256, 64], strides = [1, 1]} : vector<304x64xf32> to vector<256x64xf32>
    %76 = vector.broadcast %6 : vector<256x1xf32> to vector<256x64xf32>
    %77 = arith.mulf %75, %76 : vector<256x64xf32>
    %c5 = arith.constant 5 : index
    %c0_43 = arith.constant 0 : index
    %c0_44 = arith.constant 0 : index
    %78 = vector.load %arg7[%c5, %c0_43, %c0_44] : memref<9x64x64xf32, #tpu.memory_space<vmem>>, vector<1x64x64xf32>
    %79 = vector.shape_cast %78 : vector<1x64x64xf32> to vector<64x64xf32>
    %cst_45 = arith.constant dense<0.000000e+00> : vector<256x64xf32>
    %80 = tpu.matmul %77, %79, %cst_45 {dimension_numbers = #tpu.dot_dimension_numbers<[1], [0], [0], [1], [0, 0, 1, 1], [], []>} : vector<256x64xf32>, vector<64x64xf32>, vector<256x64xf32> -> vector<256x64xf32>
    %81 = arith.addf %74, %80 : vector<256x64xf32>
    %82 = vector.extract_strided_slice %42 {offsets = [39, 0], sizes = [256, 64], strides = [1, 1]} : vector<304x64xf32> to vector<256x64xf32>
    %83 = vector.broadcast %4 : vector<256x1xf32> to vector<256x64xf32>
    %84 = arith.mulf %82, %83 : vector<256x64xf32>
    %c6 = arith.constant 6 : index
    %c0_46 = arith.constant 0 : index
    %c0_47 = arith.constant 0 : index
    %85 = vector.load %arg7[%c6, %c0_46, %c0_47] : memref<9x64x64xf32, #tpu.memory_space<vmem>>, vector<1x64x64xf32>
    %86 = vector.shape_cast %85 : vector<1x64x64xf32> to vector<64x64xf32>
    %cst_48 = arith.constant dense<0.000000e+00> : vector<256x64xf32>
    %87 = tpu.matmul %84, %86, %cst_48 {dimension_numbers = #tpu.dot_dimension_numbers<[1], [0], [0], [1], [0, 0, 1, 1], [], []>} : vector<256x64xf32>, vector<64x64xf32>, vector<256x64xf32> -> vector<256x64xf32>
    %88 = arith.addf %81, %87 : vector<256x64xf32>
    %89 = vector.extract_strided_slice %42 {offsets = [40, 0], sizes = [256, 64], strides = [1, 1]} : vector<304x64xf32> to vector<256x64xf32>
    %c7 = arith.constant 7 : index
    %c0_49 = arith.constant 0 : index
    %c0_50 = arith.constant 0 : index
    %90 = vector.load %arg7[%c7, %c0_49, %c0_50] : memref<9x64x64xf32, #tpu.memory_space<vmem>>, vector<1x64x64xf32>
    %91 = vector.shape_cast %90 : vector<1x64x64xf32> to vector<64x64xf32>
    %cst_51 = arith.constant dense<0.000000e+00> : vector<256x64xf32>
    %92 = tpu.matmul %89, %91, %cst_51 {dimension_numbers = #tpu.dot_dimension_numbers<[1], [0], [0], [1], [0, 0, 1, 1], [], []>} : vector<256x64xf32>, vector<64x64xf32>, vector<256x64xf32> -> vector<256x64xf32>
    %93 = arith.addf %88, %92 : vector<256x64xf32>
    %94 = vector.extract_strided_slice %42 {offsets = [41, 0], sizes = [256, 64], strides = [1, 1]} : vector<304x64xf32> to vector<256x64xf32>
    %95 = vector.broadcast %6 : vector<256x1xf32> to vector<256x64xf32>
    %96 = arith.mulf %94, %95 : vector<256x64xf32>
    %c8 = arith.constant 8 : index
    %c0_52 = arith.constant 0 : index
    %c0_53 = arith.constant 0 : index
    %97 = vector.load %arg7[%c8, %c0_52, %c0_53] : memref<9x64x64xf32, #tpu.memory_space<vmem>>, vector<1x64x64xf32>
    %98 = vector.shape_cast %97 : vector<1x64x64xf32> to vector<64x64xf32>
    %cst_54 = arith.constant dense<0.000000e+00> : vector<256x64xf32>
    %99 = tpu.matmul %96, %98, %cst_54 {dimension_numbers = #tpu.dot_dimension_numbers<[1], [0], [0], [1], [0, 0, 1, 1], [], []>} : vector<256x64xf32>, vector<64x64xf32>, vector<256x64xf32> -> vector<256x64xf32>
    %100 = arith.addf %93, %99 : vector<256x64xf32>
    %101 = vector.broadcast %40 : vector<1x64xf32> to vector<256x64xf32>
    %102 = arith.addf %100, %101 : vector<256x64xf32>
    %c0_55 = arith.constant 0 : index
    %c0_56 = arith.constant 0 : index
    %c0_57 = arith.constant 0 : index
    %103 = vector.load %arg2[%c0_55, %c0_56, %c0_57] : memref<1x1x64xf32, #tpu.memory_space<vmem>>, vector<1x1x64xf32>
    %104 = vector.shape_cast %103 : vector<1x1x64xf32> to vector<1x64xf32>
    %105 = vector.broadcast %104 : vector<1x64xf32> to vector<256x64xf32>
    %106 = arith.addf %102, %105 : vector<256x64xf32>
    %c0_58 = arith.constant 0 : index
    %c0_59 = arith.constant 0 : index
    %107 = vector.load %arg9[%c0_58, %c0_59] : memref<1x64xf32, #tpu.memory_space<vmem>>, vector<1x64xf32>
    %c0_60 = arith.constant 0 : index
    %c0_61 = arith.constant 0 : index
    %108 = vector.load %arg10[%c0_60, %c0_61] : memref<1x64xf32, #tpu.memory_space<vmem>>, vector<1x64xf32>
    %cst_62 = arith.constant dense<0.000000e+00> : vector<64xf32>
    %109 = vector.multi_reduction <add>, %106, %cst_62 [0] : vector<256x64xf32> to vector<64xf32>
    %110 = vector.shape_cast %109 : vector<64xf32> to vector<1x64xf32>
    %111 = arith.mulf %106, %106 : vector<256x64xf32>
    %cst_63 = arith.constant dense<0.000000e+00> : vector<64xf32>
    %112 = vector.multi_reduction <add>, %111, %cst_63 [0] : vector<256x64xf32> to vector<64xf32>
    %113 = vector.shape_cast %112 : vector<64xf32> to vector<1x64xf32>
    %cst_64 = arith.constant dense<0.000000e+00> : vector<1x32xf32>
    %114 = tpu.matmul %110, %2, %cst_64 {dimension_numbers = #tpu.dot_dimension_numbers<[1], [0], [0], [1], [0, 0, 1, 1], [], []>} : vector<1x64xf32>, vector<64x32xf32>, vector<1x32xf32> -> vector<1x32xf32>
    %cst_65 = arith.constant 0.001953125 : f32
    %115 = vector.broadcast %cst_65 : f32 to vector<1x32xf32>
    %116 = arith.mulf %114, %115 : vector<1x32xf32>
    %cst_66 = arith.constant dense<0.000000e+00> : vector<1x32xf32>
    %117 = tpu.matmul %113, %2, %cst_66 {dimension_numbers = #tpu.dot_dimension_numbers<[1], [0], [0], [1], [0, 0, 1, 1], [], []>} : vector<1x64xf32>, vector<64x32xf32>, vector<1x32xf32> -> vector<1x32xf32>
    %cst_67 = arith.constant 0.001953125 : f32
    %118 = vector.broadcast %cst_67 : f32 to vector<1x32xf32>
    %119 = arith.mulf %117, %118 : vector<1x32xf32>
    %120 = arith.mulf %116, %116 : vector<1x32xf32>
    %121 = arith.subf %119, %120 : vector<1x32xf32>
    %cst_68 = arith.constant 9.99999997E-7 : f32
    %122 = vector.broadcast %cst_68 : f32 to vector<1x32xf32>
    %123 = arith.addf %121, %122 : vector<1x32xf32>
    %124 = math.rsqrt %123 : vector<1x32xf32>
    %cst_69 = arith.constant dense<0.000000e+00> : vector<1x64xf32>
    %125 = tpu.matmul %116, %2, %cst_69 {dimension_numbers = #tpu.dot_dimension_numbers<[1], [1], [0], [0], [0, 0, 1, 0], [], []>} : vector<1x32xf32>, vector<64x32xf32>, vector<1x64xf32> -> vector<1x64xf32>
    %cst_70 = arith.constant dense<0.000000e+00> : vector<1x64xf32>
    %126 = tpu.matmul %124, %2, %cst_70 {dimension_numbers = #tpu.dot_dimension_numbers<[1], [1], [0], [0], [0, 0, 1, 0], [], []>} : vector<1x32xf32>, vector<64x32xf32>, vector<1x64xf32> -> vector<1x64xf32>
    %127 = vector.broadcast %125 : vector<1x64xf32> to vector<256x64xf32>
    %128 = arith.subf %106, %127 : vector<256x64xf32>
    %129 = arith.mulf %126, %107 : vector<1x64xf32>
    %130 = vector.broadcast %129 : vector<1x64xf32> to vector<256x64xf32>
    %131 = arith.mulf %128, %130 : vector<256x64xf32>
    %132 = vector.broadcast %108 : vector<1x64xf32> to vector<256x64xf32>
    %133 = arith.addf %131, %132 : vector<256x64xf32>
    %134 = arith.negf %133 : vector<256x64xf32>
    %135 = math.exp %134 : vector<256x64xf32>
    %cst_71 = arith.constant 1.000000e+00 : f32
    %136 = vector.broadcast %cst_71 : f32 to vector<256x64xf32>
    %137 = arith.addf %136, %135 : vector<256x64xf32>
    %138 = arith.divf %136, %137 : vector<256x64xf32>
    %139 = arith.mulf %133, %138 : vector<256x64xf32>
    %c0_72 = arith.constant 0 : index
    %c0_73 = arith.constant 0 : index
    %140 = vector.load %arg12[%c0_72, %c0_73] : memref<1x64xf32, #tpu.memory_space<vmem>>, vector<1x64xf32>
    %cst_74 = arith.constant 0.000000e+00 : f32
    %141 = vector.broadcast %cst_74 : f32 to vector<24x64xf32>
    %142 = tpu.concatenate %141, %139, %141 in 0 : vector<24x64xf32>, vector<256x64xf32>, vector<24x64xf32> -> vector<304x64xf32>
    %cst_75 = arith.constant 0.000000e+00 : f32
    %143 = vector.broadcast %cst_75 : f32 to vector<256x64xf32>
    %144 = vector.extract_strided_slice %142 {offsets = [7, 0], sizes = [256, 64], strides = [1, 1]} : vector<304x64xf32> to vector<256x64xf32>
    %145 = vector.broadcast %4 : vector<256x1xf32> to vector<256x64xf32>
    %146 = arith.mulf %144, %145 : vector<256x64xf32>
    %c0_76 = arith.constant 0 : index
    %c0_77 = arith.constant 0 : index
    %c0_78 = arith.constant 0 : index
    %147 = vector.load %arg11[%c0_76, %c0_77, %c0_78] : memref<9x64x64xf32, #tpu.memory_space<vmem>>, vector<1x64x64xf32>
    %148 = vector.shape_cast %147 : vector<1x64x64xf32> to vector<64x64xf32>
    %cst_79 = arith.constant dense<0.000000e+00> : vector<256x64xf32>
    %149 = tpu.matmul %146, %148, %cst_79 {dimension_numbers = #tpu.dot_dimension_numbers<[1], [0], [0], [1], [0, 0, 1, 1], [], []>} : vector<256x64xf32>, vector<64x64xf32>, vector<256x64xf32> -> vector<256x64xf32>
    %150 = arith.addf %143, %149 : vector<256x64xf32>
    %151 = vector.extract_strided_slice %142 {offsets = [8, 0], sizes = [256, 64], strides = [1, 1]} : vector<304x64xf32> to vector<256x64xf32>
    %c1_80 = arith.constant 1 : index
    %c0_81 = arith.constant 0 : index
    %c0_82 = arith.constant 0 : index
    %152 = vector.load %arg11[%c1_80, %c0_81, %c0_82] : memref<9x64x64xf32, #tpu.memory_space<vmem>>, vector<1x64x64xf32>
    %153 = vector.shape_cast %152 : vector<1x64x64xf32> to vector<64x64xf32>
    %cst_83 = arith.constant dense<0.000000e+00> : vector<256x64xf32>
    %154 = tpu.matmul %151, %153, %cst_83 {dimension_numbers = #tpu.dot_dimension_numbers<[1], [0], [0], [1], [0, 0, 1, 1], [], []>} : vector<256x64xf32>, vector<64x64xf32>, vector<256x64xf32> -> vector<256x64xf32>
    %155 = arith.addf %150, %154 : vector<256x64xf32>
    %156 = vector.extract_strided_slice %142 {offsets = [9, 0], sizes = [256, 64], strides = [1, 1]} : vector<304x64xf32> to vector<256x64xf32>
    %157 = vector.broadcast %6 : vector<256x1xf32> to vector<256x64xf32>
    %158 = arith.mulf %156, %157 : vector<256x64xf32>
    %c2_84 = arith.constant 2 : index
    %c0_85 = arith.constant 0 : index
    %c0_86 = arith.constant 0 : index
    %159 = vector.load %arg11[%c2_84, %c0_85, %c0_86] : memref<9x64x64xf32, #tpu.memory_space<vmem>>, vector<1x64x64xf32>
    %160 = vector.shape_cast %159 : vector<1x64x64xf32> to vector<64x64xf32>
    %cst_87 = arith.constant dense<0.000000e+00> : vector<256x64xf32>
    %161 = tpu.matmul %158, %160, %cst_87 {dimension_numbers = #tpu.dot_dimension_numbers<[1], [0], [0], [1], [0, 0, 1, 1], [], []>} : vector<256x64xf32>, vector<64x64xf32>, vector<256x64xf32> -> vector<256x64xf32>
    %162 = arith.addf %155, %161 : vector<256x64xf32>
    %163 = vector.extract_strided_slice %142 {offsets = [23, 0], sizes = [256, 64], strides = [1, 1]} : vector<304x64xf32> to vector<256x64xf32>
    %164 = vector.broadcast %4 : vector<256x1xf32> to vector<256x64xf32>
    %165 = arith.mulf %163, %164 : vector<256x64xf32>
    %c3_88 = arith.constant 3 : index
    %c0_89 = arith.constant 0 : index
    %c0_90 = arith.constant 0 : index
    %166 = vector.load %arg11[%c3_88, %c0_89, %c0_90] : memref<9x64x64xf32, #tpu.memory_space<vmem>>, vector<1x64x64xf32>
    %167 = vector.shape_cast %166 : vector<1x64x64xf32> to vector<64x64xf32>
    %cst_91 = arith.constant dense<0.000000e+00> : vector<256x64xf32>
    %168 = tpu.matmul %165, %167, %cst_91 {dimension_numbers = #tpu.dot_dimension_numbers<[1], [0], [0], [1], [0, 0, 1, 1], [], []>} : vector<256x64xf32>, vector<64x64xf32>, vector<256x64xf32> -> vector<256x64xf32>
    %169 = arith.addf %162, %168 : vector<256x64xf32>
    %170 = vector.extract_strided_slice %142 {offsets = [24, 0], sizes = [256, 64], strides = [1, 1]} : vector<304x64xf32> to vector<256x64xf32>
    %c4_92 = arith.constant 4 : index
    %c0_93 = arith.constant 0 : index
    %c0_94 = arith.constant 0 : index
    %171 = vector.load %arg11[%c4_92, %c0_93, %c0_94] : memref<9x64x64xf32, #tpu.memory_space<vmem>>, vector<1x64x64xf32>
    %172 = vector.shape_cast %171 : vector<1x64x64xf32> to vector<64x64xf32>
    %cst_95 = arith.constant dense<0.000000e+00> : vector<256x64xf32>
    %173 = tpu.matmul %170, %172, %cst_95 {dimension_numbers = #tpu.dot_dimension_numbers<[1], [0], [0], [1], [0, 0, 1, 1], [], []>} : vector<256x64xf32>, vector<64x64xf32>, vector<256x64xf32> -> vector<256x64xf32>
    %174 = arith.addf %169, %173 : vector<256x64xf32>
    %175 = vector.extract_strided_slice %142 {offsets = [25, 0], sizes = [256, 64], strides = [1, 1]} : vector<304x64xf32> to vector<256x64xf32>
    %176 = vector.broadcast %6 : vector<256x1xf32> to vector<256x64xf32>
    %177 = arith.mulf %175, %176 : vector<256x64xf32>
    %c5_96 = arith.constant 5 : index
    %c0_97 = arith.constant 0 : index
    %c0_98 = arith.constant 0 : index
    %178 = vector.load %arg11[%c5_96, %c0_97, %c0_98] : memref<9x64x64xf32, #tpu.memory_space<vmem>>, vector<1x64x64xf32>
    %179 = vector.shape_cast %178 : vector<1x64x64xf32> to vector<64x64xf32>
    %cst_99 = arith.constant dense<0.000000e+00> : vector<256x64xf32>
    %180 = tpu.matmul %177, %179, %cst_99 {dimension_numbers = #tpu.dot_dimension_numbers<[1], [0], [0], [1], [0, 0, 1, 1], [], []>} : vector<256x64xf32>, vector<64x64xf32>, vector<256x64xf32> -> vector<256x64xf32>
    %181 = arith.addf %174, %180 : vector<256x64xf32>
    %182 = vector.extract_strided_slice %142 {offsets = [39, 0], sizes = [256, 64], strides = [1, 1]} : vector<304x64xf32> to vector<256x64xf32>
    %183 = vector.broadcast %4 : vector<256x1xf32> to vector<256x64xf32>
    %184 = arith.mulf %182, %183 : vector<256x64xf32>
    %c6_100 = arith.constant 6 : index
    %c0_101 = arith.constant 0 : index
    %c0_102 = arith.constant 0 : index
    %185 = vector.load %arg11[%c6_100, %c0_101, %c0_102] : memref<9x64x64xf32, #tpu.memory_space<vmem>>, vector<1x64x64xf32>
    %186 = vector.shape_cast %185 : vector<1x64x64xf32> to vector<64x64xf32>
    %cst_103 = arith.constant dense<0.000000e+00> : vector<256x64xf32>
    %187 = tpu.matmul %184, %186, %cst_103 {dimension_numbers = #tpu.dot_dimension_numbers<[1], [0], [0], [1], [0, 0, 1, 1], [], []>} : vector<256x64xf32>, vector<64x64xf32>, vector<256x64xf32> -> vector<256x64xf32>
    %188 = arith.addf %181, %187 : vector<256x64xf32>
    %189 = vector.extract_strided_slice %142 {offsets = [40, 0], sizes = [256, 64], strides = [1, 1]} : vector<304x64xf32> to vector<256x64xf32>
    %c7_104 = arith.constant 7 : index
    %c0_105 = arith.constant 0 : index
    %c0_106 = arith.constant 0 : index
    %190 = vector.load %arg11[%c7_104, %c0_105, %c0_106] : memref<9x64x64xf32, #tpu.memory_space<vmem>>, vector<1x64x64xf32>
    %191 = vector.shape_cast %190 : vector<1x64x64xf32> to vector<64x64xf32>
    %cst_107 = arith.constant dense<0.000000e+00> : vector<256x64xf32>
    %192 = tpu.matmul %189, %191, %cst_107 {dimension_numbers = #tpu.dot_dimension_numbers<[1], [0], [0], [1], [0, 0, 1, 1], [], []>} : vector<256x64xf32>, vector<64x64xf32>, vector<256x64xf32> -> vector<256x64xf32>
    %193 = arith.addf %188, %192 : vector<256x64xf32>
    %194 = vector.extract_strided_slice %142 {offsets = [41, 0], sizes = [256, 64], strides = [1, 1]} : vector<304x64xf32> to vector<256x64xf32>
    %195 = vector.broadcast %6 : vector<256x1xf32> to vector<256x64xf32>
    %196 = arith.mulf %194, %195 : vector<256x64xf32>
    %c8_108 = arith.constant 8 : index
    %c0_109 = arith.constant 0 : index
    %c0_110 = arith.constant 0 : index
    %197 = vector.load %arg11[%c8_108, %c0_109, %c0_110] : memref<9x64x64xf32, #tpu.memory_space<vmem>>, vector<1x64x64xf32>
    %198 = vector.shape_cast %197 : vector<1x64x64xf32> to vector<64x64xf32>
    %cst_111 = arith.constant dense<0.000000e+00> : vector<256x64xf32>
    %199 = tpu.matmul %196, %198, %cst_111 {dimension_numbers = #tpu.dot_dimension_numbers<[1], [0], [0], [1], [0, 0, 1, 1], [], []>} : vector<256x64xf32>, vector<64x64xf32>, vector<256x64xf32> -> vector<256x64xf32>
    %200 = arith.addf %193, %199 : vector<256x64xf32>
    %201 = vector.broadcast %140 : vector<1x64xf32> to vector<256x64xf32>
    %202 = arith.addf %200, %201 : vector<256x64xf32>
    %203 = arith.addf %1, %202 : vector<256x64xf32>
    %c0_112 = arith.constant 0 : index
    %c0_113 = arith.constant 0 : index
    %c0_114 = arith.constant 0 : index
    %204 = vector.load %arg13[%c0_112, %c0_113, %c0_114] : memref<1x256x64xf32, #tpu.memory_space<vmem>>, vector<1x256x64xf32>
    %205 = vector.shape_cast %204 : vector<1x256x64xf32> to vector<256x64xf32>
    %206 = vector.shape_cast %203 : vector<256x64xf32> to vector<1x256x64xf32>
    tpu.vector_store %arg13[%c0_112, %c0_113, %c0_114], %206 {strides = array<i32>} : memref<1x256x64xf32, #tpu.memory_space<vmem>>, vector<1x256x64xf32>,
    return
  }
  func.func @transform_0(%arg0: i32) -> (i32, i32, i32) {
    %c0_i32 = arith.constant 0 : i32
    %c0_i32_0 = arith.constant 0 : i32
    %c0_i32_1 = arith.constant 0 : i32
    return %arg0, %c0_i32, %c0_i32_0 : i32, i32, i32
  }
  func.func @transform_1(%arg0: i32) -> (i32, i32, i32) {
    %c0_i32 = arith.constant 0 : i32
    %c0_i32_0 = arith.constant 0 : i32
    %c0_i32_1 = arith.constant 0 : i32
    return %arg0, %c0_i32, %c0_i32_0 : i32, i32, i32
  }
  func.func @transform_2(%arg0: i32) -> (i32, i32, i32) {
    %c0_i32 = arith.constant 0 : i32
    %c0_i32_0 = arith.constant 0 : i32
    %c0_i32_1 = arith.constant 0 : i32
    %c0_i32_2 = arith.constant 0 : i32
    return %c0_i32, %c0_i32_0, %c0_i32_1 : i32, i32, i32
  }
  func.func @transform_3(%arg0: i32) -> (i32, i32) {
    %c0_i32 = arith.constant 0 : i32
    %c0_i32_0 = arith.constant 0 : i32
    %c0_i32_1 = arith.constant 0 : i32
    return %c0_i32, %c0_i32_0 : i32, i32
  }
  func.func @transform_4(%arg0: i32) -> (i32, i32) {
    %c0_i32 = arith.constant 0 : i32
    %c0_i32_0 = arith.constant 0 : i32
    %c0_i32_1 = arith.constant 0 : i32
    return %c0_i32, %c0_i32_0 : i32, i32
  }
  func.func @transform_5(%arg0: i32) -> (i32, i32) {
    %c0_i32 = arith.constant 0 : i32
    %c0_i32_0 = arith.constant 0 : i32
    %c0_i32_1 = arith.constant 0 : i32
    return %c0_i32, %c0_i32_0 : i32, i32
  }
  func.func @transform_6(%arg0: i32) -> (i32, i32, i32) {
    %c0_i32 = arith.constant 0 : i32
    %c0_i32_0 = arith.constant 0 : i32
    %c0_i32_1 = arith.constant 0 : i32
    %c0_i32_2 = arith.constant 0 : i32
    return %c0_i32, %c0_i32_0, %c0_i32_1 : i32, i32, i32
  }
  func.func @transform_7(%arg0: i32) -> (i32, i32) {
    %c0_i32 = arith.constant 0 : i32
    %c0_i32_0 = arith.constant 0 : i32
    %c0_i32_1 = arith.constant 0 : i32
    return %c0_i32, %c0_i32_0 : i32, i32
  }
  func.func @transform_8(%arg0: i32) -> (i32, i32) {
    %c0_i32 = arith.constant 0 : i32
    %c0_i32_0 = arith.constant 0 : i32
    %c0_i32_1 = arith.constant 0 : i32
    return %c0_i32, %c0_i32_0 : i32, i32
  }
  func.func @transform_9(%arg0: i32) -> (i32, i32) {
    %c0_i32 = arith.constant 0 : i32
    %c0_i32_0 = arith.constant 0 : i32
    %c0_i32_1 = arith.constant 0 : i32
    return %c0_i32, %c0_i32_0 : i32, i32
  }
  func.func @transform_10(%arg0: i32) -> (i32, i32, i32) {
    %c0_i32 = arith.constant 0 : i32
    %c0_i32_0 = arith.constant 0 : i32
    %c0_i32_1 = arith.constant 0 : i32
    %c0_i32_2 = arith.constant 0 : i32
    return %c0_i32, %c0_i32_0, %c0_i32_1 : i32, i32, i32
  }
  func.func @transform_11(%arg0: i32) -> (i32, i32) {
    %c0_i32 = arith.constant 0 : i32
    %c0_i32_0 = arith.constant 0 : i32
    %c0_i32_1 = arith.constant 0 : i32
    return %c0_i32, %c0_i32_0 : i32, i32
  }
  func.func @transform_12(%arg0: i32) -> (i32, i32, i32) {
    %c0_i32 = arith.constant 0 : i32
    %c0_i32_0 = arith.constant 0 : i32
    %c0_i32_1 = arith.constant 0 : i32
    return %arg0, %c0_i32, %c0_i32_0 : i32, i32, i32
  }
}

</mosaic_0001>

<llo_original>
// kernel: tpu_custom_call.1
$region0: #{tpu_custom_call.1}
  #allocation0 [shape = 'u32[]', space=smem, size = 0x4, offset = 0x4, fixed_abs, tag = 'smem constant byte address 0x4 - core index']
  #allocation1 [shape = 'u32[72,128]{1,0:T(1,128)}', space=vmem, size = 0x9000, scoped, tag = 'internal scratch']
  %s0 = inlined_call_operand.vmem [shape: f32[2,256,64], index: 0, kind: input, shape index: {}]
  %s1 = inlined_call_operand.vmem [shape: f32[2,1,64], index: 1, kind: input, shape index: {}]
  %s2 = inlined_call_operand.vmem [shape: f32[2,256,1], index: 2, kind: input, shape index: {}]
  %s3 = inlined_call_operand.vmem [shape: f32[64,32], index: 3, kind: input, shape index: {}]
  %s4 = inlined_call_operand.vmem [shape: f32[1,64], index: 4, kind: input, shape index: {}]
  %s5 = inlined_call_operand.vmem [shape: f32[1,64], index: 5, kind: input, shape index: {}]
  %s6 = inlined_call_operand.vmem [shape: f32[9,64,64], index: 6, kind: input, shape index: {}]
  %s7 = inlined_call_operand.vmem [shape: f32[1,64], index: 7, kind: input, shape index: {}]
  %s8 = inlined_call_operand.vmem [shape: f32[1,64], index: 8, kind: input, shape index: {}]
  %s9 = inlined_call_operand.vmem [shape: f32[1,64], index: 9, kind: input, shape index: {}]
  %s10 = inlined_call_operand.vmem [shape: f32[9,64,64], index: 10, kind: input, shape index: {}]
  %s11 = inlined_call_operand.vmem [shape: f32[1,64], index: 11, kind: input, shape index: {}]
  %s12 = inlined_call_operand.vmem [shape: f32[2,256,64], index: 12, kind: output, shape index: {}]
  %s13 = sld [smem:[#allocation0]]
  $region81: #{tpu_custom_call.1} parent=0
    _
  %s15 = ssub.s32 1, %s13
  %s16 = scalar_select 0, %s15, %s13
  loop: start=0, step=1, limit=4
  $region2: #{tpu_custom_call.1} parent=0 // loop_pre_header
    _
  $region3: #{tpu_custom_call.1} parent=0 // loop_header
    %s18 = sphi 0, %s22
    %p19 = scmp.ge.s32.totalorder %s18, 4
    %s28 = sphi 0, %s30
    %s31 = sphi 0, %s28
    %s32 = sphi 0, %s31
    %s48 = sphi 0, %s32
    %s54 = sphi 0, %s56
    %s57 = sphi 0, %s54
    %s58 = sphi 0, %s57
    %s74 = sphi 0, %s58
    %s78 = sphi 0, %s78
    %s80 = sphi 0, %s78
    %s81 = sphi 0, %s80
    %s95 = sphi 0, %s81
    %s99 = sphi 0, %s99
    %s101 = sphi 0, %s99
    %s102 = sphi 0, %s101
    %s116 = sphi 0, %s102
    %s120 = sphi 0, %s120
    %s122 = sphi 0, %s120
    %s123 = sphi 0, %s122
    %s137 = sphi 0, %s123
    %s141 = sphi 0, %s141
    %s143 = sphi 0, %s141
    %s144 = sphi 0, %s143
    %s158 = sphi 0, %s144
    %s162 = sphi 0, %s162
    %s164 = sphi 0, %s162
    %s165 = sphi 0, %s164
    %s179 = sphi 0, %s165
    %s183 = sphi 0, %s183
    %s185 = sphi 0, %s183
    %s186 = sphi 0, %s185
    %s200 = sphi 0, %s186
    %s204 = sphi 0, %s204
    %s206 = sphi 0, %s204
    %s207 = sphi 0, %s206
    %s221 = sphi 0, %s207
    %s225 = sphi 0, %s225
    %s227 = sphi 0, %s225
    %s228 = sphi 0, %s227
    %s242 = sphi 0, %s228
    %s246 = sphi 0, %s246
    %s248 = sphi 0, %s246
    %s249 = sphi 0, %s248
    %s263 = sphi 0, %s249
    %s267 = sphi 0, %s267
    %s269 = sphi 0, %s267
    %s270 = sphi 0, %s269
    %s284 = sphi 0, %s270
    %s290 = sphi 0, %s292
    %s293 = sphi 0, %s290
    %s294 = sphi 0, %s293
    %s310 = sphi 0, %s294
  $region4: #{tpu_custom_call.1} parent=0 // loop_header_branch
    %21 = sbr.rel (%p19) target = $region8
  $region5: #{tpu_custom_call.1} parent=0 // loop_body
    %s23 = ssub.s32 %s18, 1
    %s24 = ssub.s32 %s18, 2
    %s25 = sadd.s32 %s18, 1
    %s26 = ssub.s32 %s18, %s25
    %p27 = scmp.eq.s32.totalorder %s26, 0
    %s29 = sadd.s32 %s28, 1
    %s30 = scalar_select %p27, %s28, %s29
    %p33 = pneg %p27
    %p34 = scmp.eq.s32.totalorder %s18, 1
    %p35 = por %p33, %p34
    %p36 = scmp.ne.s32.totalorder %s28, %s31
    %p37 = scmp.eq.s32.totalorder %s18, 0
    %p38 = por %p36, %p37
    %p39 = scmp.ne.s32.totalorder %s28, %s31
    %p40 = scmp.eq.s32.totalorder %s23, 1
    %p41 = por %p39, %p40
    %p42 = scmp.ne.s32.totalorder %s31, %s32
    %p43 = scmp.eq.s32.totalorder %s23, 0
    %p44 = por %p42, %p43
    %p45 = scmp.ne.s32.totalorder %s31, %s32
    %p46 = scmp.eq.s32.totalorder %s24, 1
    %p47 = por %p45, %p46
    %p49 = scmp.ne.s32.totalorder %s32, %s48
    %p50 = scmp.eq.s32.totalorder %s24, 0
    %p51 = por %p49, %p50
    %s52 = ssub.s32 %s18, %s25
    %p53 = scmp.eq.s32.totalorder %s52, 0
    %s55 = sadd.s32 %s54, 1
    %s56 = scalar_select %p53, %s54, %s55
    %p59 = pneg %p53
    %p60 = scmp.eq.s32.totalorder %s18, 1
    %p61 = por %p59, %p60
    %p62 = scmp.ne.s32.totalorder %s54, %s57
    %p63 = scmp.eq.s32.totalorder %s18, 0
    %p64 = por %p62, %p63
    %p65 = scmp.ne.s32.totalorder %s54, %s57
    %p66 = scmp.eq.s32.totalorder %s23, 1
    %p67 = por %p65, %p66
    %p68 = scmp.ne.s32.totalorder %s57, %s58
    %p69 = scmp.eq.s32.totalorder %s23, 0
    %p70 = por %p68, %p69
    %p71 = scmp.ne.s32.totalorder %s57, %s58
    %p72 = scmp.eq.s32.totalorder %s24, 1
    %p73 = por %p71, %p72
    %p75 = scmp.ne.s32.totalorder %s58, %s74
    %p76 = scmp.eq.s32.totalorder %s24, 0
    %p77 = por %p75, %p76
    %s79 = sadd.s32 %s78, 1
    %p82 = scmp.eq.s32.totalorder %s18, 1
    %p83 = scmp.ne.s32.totalorder %s78, %s80
    %p84 = scmp.eq.s32.totalorder %s18, 0
    %p85 = por %p83, %p84
    %p86 = scmp.ne.s32.totalorder %s78, %s80
    %p87 = scmp.eq.s32.totalorder %s23, 1
    %p88 = por %p86, %p87
    %p89 = scmp.ne.s32.totalorder %s80, %s81
    %p90 = scmp.eq.s32.totalorder %s23, 0
    %p91 = por %p89, %p90
    %p92 = scmp.ne.s32.totalorder %s80, %s81
    %p93 = scmp.eq.s32.totalorder %s24, 1
    %p94 = por %p92, %p93
    %p96 = scmp.ne.s32.totalorder %s81, %s95
    %p97 = scmp.eq.s32.totalorder %s24, 0
    %p98 = por %p96, %p97
    %s100 = sadd.s32 %s99, 1
    %p103 = scmp.eq.s32.totalorder %s18, 1
    %p104 = scmp.ne.s32.totalorder %s99, %s101
    %p105 = scmp.eq.s32.totalorder %s18, 0
    %p106 = por %p104, %p105
    %p107 = scmp.ne.s32.totalorder %s99, %s101
    %p108 = scmp.eq.s32.totalorder %s23, 1
    %p109 = por %p107, %p108
    %p110 = scmp.ne.s32.totalorder %s101, %s102
    %p111 = scmp.eq.s32.totalorder %s23, 0
    %p112 = por %p110, %p111
    %p113 = scmp.ne.s32.totalorder %s101, %s102
    %p114 = scmp.eq.s32.totalorder %s24, 1
    %p115 = por %p113, %p114
    %p117 = scmp.ne.s32.totalorder %s102, %s116
    %p118 = scmp.eq.s32.totalorder %s24, 0
    %p119 = por %p117, %p118
    %s121 = sadd.s32 %s120, 1
    %p124 = scmp.eq.s32.totalorder %s18, 1
    %p125 = scmp.ne.s32.totalorder %s120, %s122
    %p126 = scmp.eq.s32.totalorder %s18, 0
    %p127 = por %p125, %p126
    %p128 = scmp.ne.s32.totalorder %s120, %s122
    %p129 = scmp.eq.s32.totalorder %s23, 1
    %p130 = por %p128, %p129
    %p131 = scmp.ne.s32.totalorder %s122, %s123
    %p132 = scmp.eq.s32.totalorder %s23, 0
    %p133 = por %p131, %p132
    %p134 = scmp.ne.s32.totalorder %s122, %s123
    %p135 = scmp.eq.s32.totalorder %s24, 1
    %p136 = por %p134, %p135
    %p138 = scmp.ne.s32.totalorder %s123, %s137
    %p139 = scmp.eq.s32.totalorder %s24, 0
    %p140 = por %p138, %p139
    %s142 = sadd.s32 %s141, 1
    %p145 = scmp.eq.s32.totalorder %s18, 1
    %p146 = scmp.ne.s32.totalorder %s141, %s143
    %p147 = scmp.eq.s32.totalorder %s18, 0
    %p148 = por %p146, %p147
    %p149 = scmp.ne.s32.totalorder %s141, %s143
    %p150 = scmp.eq.s32.totalorder %s23, 1
    %p151 = por %p149, %p150
    %p152 = scmp.ne.s32.totalorder %s143, %s144
    %p153 = scmp.eq.s32.totalorder %s23, 0
    %p154 = por %p152, %p153
    %p155 = scmp.ne.s32.totalorder %s143, %s144
    %p156 = scmp.eq.s32.totalorder %s24, 1
    %p157 = por %p155, %p156
    %p159 = scmp.ne.s32.totalorder %s144, %s158
    %p160 = scmp.eq.s32.totalorder %s24, 0
    %p161 = por %p159, %p160
    %s163 = sadd.s32 %s162, 1
    %p166 = scmp.eq.s32.totalorder %s18, 1
    %p167 = scmp.ne.s32.totalorder %s162, %s164
    %p168 = scmp.eq.s32.totalorder %s18, 0
    %p169 = por %p167, %p168
    %p170 = scmp.ne.s32.totalorder %s162, %s164
    %p171 = scmp.eq.s32.totalorder %s23, 1
    %p172 = por %p170, %p171
    %p173 = scmp.ne.s32.totalorder %s164, %s165
    %p174 = scmp.eq.s32.totalorder %s23, 0
    %p175 = por %p173, %p174
    %p176 = scmp.ne.s32.totalorder %s164, %s165
    %p177 = scmp.eq.s32.totalorder %s24, 1
    %p178 = por %p176, %p177
    %p180 = scmp.ne.s32.totalorder %s165, %s179
    %p181 = scmp.eq.s32.totalorder %s24, 0
    %p182 = por %p180, %p181
    %s184 = sadd.s32 %s183, 1
    %p187 = scmp.eq.s32.totalorder %s18, 1
    %p188 = scmp.ne.s32.totalorder %s183, %s185
    %p189 = scmp.eq.s32.totalorder %s18, 0
    %p190 = por %p188, %p189
    %p191 = scmp.ne.s32.totalorder %s183, %s185
    %p192 = scmp.eq.s32.totalorder %s23, 1
    %p193 = por %p191, %p192
    %p194 = scmp.ne.s32.totalorder %s185, %s186
    %p195 = scmp.eq.s32.totalorder %s23, 0
    %p196 = por %p194, %p195
    %p197 = scmp.ne.s32.totalorder %s185, %s186
    %p198 = scmp.eq.s32.totalorder %s24, 1
    %p199 = por %p197, %p198
    %p201 = scmp.ne.s32.totalorder %s186, %s200
    %p202 = scmp.eq.s32.totalorder %s24, 0
    %p203 = por %p201, %p202
    %s205 = sadd.s32 %s204, 1
    %p208 = scmp.eq.s32.totalorder %s18, 1
    %p209 = scmp.ne.s32.totalorder %s204, %s206
    %p210 = scmp.eq.s32.totalorder %s18, 0
    %p211 = por %p209, %p210
    %p212 = scmp.ne.s32.totalorder %s204, %s206
    %p213 = scmp.eq.s32.totalorder %s23, 1
    %p214 = por %p212, %p213
    %p215 = scmp.ne.s32.totalorder %s206, %s207
    %p216 = scmp.eq.s32.totalorder %s23, 0
    %p217 = por %p215, %p216
    %p218 = scmp.ne.s32.totalorder %s206, %s207
    %p219 = scmp.eq.s32.totalorder %s24, 1
    %p220 = por %p218, %p219
    %p222 = scmp.ne.s32.totalorder %s207, %s221
    %p223 = scmp.eq.s32.totalorder %s24, 0
    %p224 = por %p222, %p223
    %s226 = sadd.s32 %s225, 1
    %p229 = scmp.eq.s32.totalorder %s18, 1
    %p230 = scmp.ne.s32.totalorder %s225, %s227
    %p231 = scmp.eq.s32.totalorder %s18, 0
    %p232 = por %p230, %p231
    %p233 = scmp.ne.s32.totalorder %s225, %s227
    %p234 = scmp.eq.s32.totalorder %s23, 1
    %p235 = por %p233, %p234
    %p236 = scmp.ne.s32.totalorder %s227, %s228
    %p237 = scmp.eq.s32.totalorder %s23, 0
    %p238 = por %p236, %p237
    %p239 = scmp.ne.s32.totalorder %s227, %s228
    %p240 = scmp.eq.s32.totalorder %s24, 1
    %p241 = por %p239, %p240
    %p243 = scmp.ne.s32.totalorder %s228, %s242
    %p244 = scmp.eq.s32.totalorder %s24, 0
    %p245 = por %p243, %p244
    %s247 = sadd.s32 %s246, 1
    %p250 = scmp.eq.s32.totalorder %s18, 1
    %p251 = scmp.ne.s32.totalorder %s246, %s248
    %p252 = scmp.eq.s32.totalorder %s18, 0
    %p253 = por %p251, %p252
    %p254 = scmp.ne.s32.totalorder %s246, %s248
    %p255 = scmp.eq.s32.totalorder %s23, 1
    %p256 = por %p254, %p255
    %p257 = scmp.ne.s32.totalorder %s248, %s249
    %p258 = scmp.eq.s32.totalorder %s23, 0
    %p259 = por %p257, %p258
    %p260 = scmp.ne.s32.totalorder %s248, %s249
    %p261 = scmp.eq.s32.totalorder %s24, 1
    %p262 = por %p260, %p261
    %p264 = scmp.ne.s32.totalorder %s249, %s263
    %p265 = scmp.eq.s32.totalorder %s24, 0
    %p266 = por %p264, %p265
    %s268 = sadd.s32 %s267, 1
    %p271 = scmp.eq.s32.totalorder %s18, 1
    %p272 = scmp.ne.s32.totalorder %s267, %s269
    %p273 = scmp.eq.s32.totalorder %s18, 0
    %p274 = por %p272, %p273
    %p275 = scmp.ne.s32.totalorder %s267, %s269
    %p276 = scmp.eq.s32.totalorder %s23, 1
    %p277 = por %p275, %p276
    %p278 = scmp.ne.s32.totalorder %s269, %s270
    %p279 = scmp.eq.s32.totalorder %s23, 0
    %p280 = por %p278, %p279
    %p281 = scmp.ne.s32.totalorder %s269, %s270
    %p282 = scmp.eq.s32.totalorder %s24, 1
    %p283 = por %p281, %p282
    %p285 = scmp.ne.s32.totalorder %s270, %s284
    %p286 = scmp.eq.s32.totalorder %s24, 0
    %p287 = por %p285, %p286
    %s288 = ssub.s32 %s18, %s25
    %p289 = scmp.eq.s32.totalorder %s288, 0
    %s291 = sadd.s32 %s290, 1
    %s292 = scalar_select %p289, %s290, %s291
    %p295 = pneg %p289
    %p296 = scmp.eq.s32.totalorder %s18, 1
    %p297 = por %p295, %p296
    %p298 = scmp.ne.s32.totalorder %s290, %s293
    %p299 = scmp.eq.s32.totalorder %s18, 0
    %p300 = por %p298, %p299
    %p301 = scmp.ne.s32.totalorder %s290, %s293
    %p302 = scmp.eq.s32.totalorder %s23, 1
    %p303 = por %p301, %p302
    %p304 = scmp.ne.s32.totalorder %s293, %s294
    %p305 = scmp.eq.s32.totalorder %s23, 0
    %p306 = por %p304, %p305
    %p307 = scmp.ne.s32.totalorder %s293, %s294
    %p308 = scmp.eq.s32.totalorder %s24, 1
    %p309 = por %p307, %p308
    %p311 = scmp.ne.s32.totalorder %s294, %s310
    %p312 = scmp.eq.s32.totalorder %s24, 0
    %p313 = por %p311, %p312
    %p314 = scmp.le.s32.totalorder 1, %s18
    %p315 = scmp.lt.s32.totalorder %s18, 3
    %p316 = pnand %p314, %p315
    %p317 = pneg %p316
    // Predicated region
    $region9: #{tpu_custom_call.1} parent=5 // pred_check
      _
    $region10: #{tpu_custom_call.1} parent=5 // pred_check_branch
      %319 = sbr.rel (%p316) target = $region12
    $region11: #{tpu_custom_call.1} parent=5 // pred_region
      %s320 = ssub.s32 %s18, 1
      // Predicated region
      $region13: #{tpu_custom_call.1} parent=11 // pred_check
        %p321 = pneg %p91
      $region14: #{tpu_custom_call.1} parent=11 // pred_check_branch
        %323 = sbr.rel (%p321) target = $region16
      $region15: #{tpu_custom_call.1} parent=11 // pred_region
        _
      $region16: #{tpu_custom_call.1} parent=11 // pred_fallthru
        _
      // Predicated region
      $region17: #{tpu_custom_call.1} parent=11 // pred_check
        %p324 = pneg %p112
      $region18: #{tpu_custom_call.1} parent=11 // pred_check_branch
        %326 = sbr.rel (%p324) target = $region20
      $region19: #{tpu_custom_call.1} parent=11 // pred_region
        _
      $region20: #{tpu_custom_call.1} parent=11 // pred_fallthru
        _
      // Predicated region
      $region21: #{tpu_custom_call.1} parent=11 // pred_check
        %p327 = pneg %p133
      $region22: #{tpu_custom_call.1} parent=11 // pred_check_branch
        %329 = sbr.rel (%p327) target = $region24
      $region23: #{tpu_custom_call.1} parent=11 // pred_region
        _
      $region24: #{tpu_custom_call.1} parent=11 // pred_fallthru
        _
      // Predicated region
      $region25: #{tpu_custom_call.1} parent=11 // pred_check
        %p330 = pneg %p154
      $region26: #{tpu_custom_call.1} parent=11 // pred_check_branch
        %332 = sbr.rel (%p330) target = $region28
      $region27: #{tpu_custom_call.1} parent=11 // pred_region
        _
      $region28: #{tpu_custom_call.1} parent=11 // pred_fallthru
        _
      // Predicated region
      $region29: #{tpu_custom_call.1} parent=11 // pred_check
        %p333 = pneg %p175
      $region30: #{tpu_custom_call.1} parent=11 // pred_check_branch
        %335 = sbr.rel (%p333) target = $region32
      $region31: #{tpu_custom_call.1} parent=11 // pred_region
        _
      $region32: #{tpu_custom_call.1} parent=11 // pred_fallthru
        _
      // Predicated region
      $region33: #{tpu_custom_call.1} parent=11 // pred_check
        %p336 = pneg %p196
      $region34: #{tpu_custom_call.1} parent=11 // pred_check_branch
        %338 = sbr.rel (%p336) target = $region36
      $region35: #{tpu_custom_call.1} parent=11 // pred_region
        _
      $region36: #{tpu_custom_call.1} parent=11 // pred_fallthru
        _
      // Predicated region
      $region37: #{tpu_custom_call.1} parent=11 // pred_check
        %p339 = pneg %p217
      $region38: #{tpu_custom_call.1} parent=11 // pred_check_branch
        %341 = sbr.rel (%p339) target = $region40
      $region39: #{tpu_custom_call.1} parent=11 // pred_region
        _
      $region40: #{tpu_custom_call.1} parent=11 // pred_fallthru
        _
      // Predicated region
      $region41: #{tpu_custom_call.1} parent=11 // pred_check
        %p342 = pneg %p238
      $region42: #{tpu_custom_call.1} parent=11 // pred_check_branch
        %344 = sbr.rel (%p342) target = $region44
      $region43: #{tpu_custom_call.1} parent=11 // pred_region
        _
      $region44: #{tpu_custom_call.1} parent=11 // pred_fallthru
        _
      // Predicated region
      $region45: #{tpu_custom_call.1} parent=11 // pred_check
        %p345 = pneg %p259
      $region46: #{tpu_custom_call.1} parent=11 // pred_check_branch
        %347 = sbr.rel (%p345) target = $region48
      $region47: #{tpu_custom_call.1} parent=11 // pred_region
        _
      $region48: #{tpu_custom_call.1} parent=11 // pred_fallthru
        _
      // Predicated region
      $region49: #{tpu_custom_call.1} parent=11 // pred_check
        %p348 = pneg %p280
      $region50: #{tpu_custom_call.1} parent=11 // pred_check_branch
        %350 = sbr.rel (%p348) target = $region52
      $region51: #{tpu_custom_call.1} parent=11 // pred_region
        _
      $region52: #{tpu_custom_call.1} parent=11 // pred_fallthru
        _
    $region12: #{tpu_custom_call.1} parent=5 // pred_fallthru
      _
    %p351 = scmp.lt.s32.totalorder %s18, 2
    // Predicated region
    $region53: #{tpu_custom_call.1} parent=5 // pred_check
      %p352 = pneg %p351
    $region54: #{tpu_custom_call.1} parent=5 // pred_check_branch
      %354 = sbr.rel (%p352) target = $region56
    $region55: #{tpu_custom_call.1} parent=5 // pred_region
      // Predicated region
      $region57: #{tpu_custom_call.1} parent=55 // pred_check
        %p355 = pneg %p38
      $region58: #{tpu_custom_call.1} parent=55 // pred_check_branch
        %357 = sbr.rel (%p355) target = $region60
      $region59: #{tpu_custom_call.1} parent=55 // pred_region
        %p358 = scmp.lt.s32.totalorder %s18, 1
        %s359 = scalar_select %p358, %s18, 1
        %s360 = smul.addr %s359, 32
        %s361 = smul.addr %s360, 8
        %s362 = scalar_lea.vmem %s0, %s361
      $region60: #{tpu_custom_call.1} parent=55 // pred_fallthru
        _
      // Predicated region
      $region61: #{tpu_custom_call.1} parent=55 // pred_check
        %p363 = pneg %p64
      $region62: #{tpu_custom_call.1} parent=55 // pred_check_branch
        %365 = sbr.rel (%p363) target = $region64
      $region63: #{tpu_custom_call.1} parent=55 // pred_region
        %p366 = scmp.lt.s32.totalorder %s18, 1
        %s367 = scalar_select %p366, %s18, 1
        %s368 = scalar_lea.vmem %s1, %s367
      $region64: #{tpu_custom_call.1} parent=55 // pred_fallthru
        _
    $region56: #{tpu_custom_call.1} parent=5 // pred_fallthru
      _
    %p369 = scmp.le.s32.totalorder 1, %s18
    %p370 = scmp.lt.s32.totalorder %s18, 3
    %p371 = pnand %p369, %p370
    %p372 = pneg %p371
    // Predicated region
    $region65: #{tpu_custom_call.1} parent=5 // pred_check
      _
    $region66: #{tpu_custom_call.1} parent=5 // pred_check_branch
      %374 = sbr.rel (%p371) target = $region68
    $region67: #{tpu_custom_call.1} parent=5 // pred_region
      %s375 = ssub.s32 %s18, 1
      %p376 = scmp.lt.s32.totalorder %s23, 1
      %s377 = scalar_select %p376, %s23, 1
      %s378 = smul.addr %s377, 32
      %s379 = smul.addr %s378, 8
      %s380 = scalar_lea.vmem %s0, %s379
      %p381 = pneg %p44
      %p382 = pneg %p41
      %p383 = scmp.lt.s32.totalorder %s23, 1
      %s384 = scalar_select %p383, %s23, 1
      %s385 = scalar_lea.vmem %s1, %s384
      %p386 = pneg %p70
      %p387 = pneg %p67
      %p388 = pneg %p91
      %p389 = pneg %p88
      %p390 = pneg %p112
      %p391 = pneg %p109
      %p392 = pneg %p133
      %p393 = pneg %p130
      %p394 = pneg %p154
      %p395 = pneg %p151
      %p396 = pneg %p175
      %p397 = pneg %p172
      %p398 = pneg %p196
      %p399 = pneg %p193
      %p400 = pneg %p217
      %p401 = pneg %p214
      %p402 = pneg %p238
      %p403 = pneg %p235
      %p404 = pneg %p259
      %p405 = pneg %p256
      %p406 = pneg %p280
      %p407 = pneg %p277
      %p408 = pneg %p306
      %p409 = pneg %p303
      %p410 = scmp.lt.s32.totalorder %s23, 1
      %s411 = scalar_select %p410, %s23, 1
      %s412 = smul.addr %s411, 32
      %s413 = smul.addr %s412, 8
      %s414 = scalar_lea.vmem %s12, %s413
      %p415 = scmp.lt.s32.totalorder %s23, 1
      %s416 = scalar_select %p415, %s23, 1
      %s417 = smul.addr %s416, 32
      %s418 = smul.addr %s417, 8
      %s419 = scalar_lea.vmem %s0, %s418
      %p420 = scmp.lt.s32.totalorder %s23, 1
      %s421 = scalar_select %p420, %s23, 1
      %s422 = scalar_lea.vmem %s1, %s421
      %p423 = scmp.lt.s32.totalorder %s23, 1
      %s424 = scalar_select %p423, %s23, 1
      %s425 = smul.addr %s424, 32
      %s426 = smul.addr %s425, 8
      %s427 = scalar_lea.vmem %s12, %s426
      %v428 = vld [vmem:[%s419] sm:$0xff]
      %v429 = vld [vmem:[%s419 + $0x8] sm:$0xff]
      %v430 = vld [vmem:[%s419 + $0x10] sm:$0xff]
      %v431 = vld [vmem:[%s419 + $0x18] sm:$0xff]
      %v432 = vld [vmem:[%s419 + $0x20] sm:$0xff]
      %v433 = vld [vmem:[%s419 + $0x28] sm:$0xff]
      %v434 = vld [vmem:[%s419 + $0x30] sm:$0xff]
      %v435 = vld [vmem:[%s419 + $0x38] sm:$0xff]
      %v436 = vld [vmem:[%s419 + $0x40] sm:$0xff]
      %v437 = vld [vmem:[%s419 + $0x48] sm:$0xff]
      %v438 = vld [vmem:[%s419 + $0x50] sm:$0xff]
      %v439 = vld [vmem:[%s419 + $0x58] sm:$0xff]
      %v440 = vld [vmem:[%s419 + $0x60] sm:$0xff]
      %v441 = vld [vmem:[%s419 + $0x68] sm:$0xff]
      %v442 = vld [vmem:[%s419 + $0x70] sm:$0xff]
      %v443 = vld [vmem:[%s419 + $0x78] sm:$0xff]
      %v444 = vld [vmem:[%s419 + $0x80] sm:$0xff]
      %v445 = vld [vmem:[%s419 + $0x88] sm:$0xff]
      %v446 = vld [vmem:[%s419 + $0x90] sm:$0xff]
      %v447 = vld [vmem:[%s419 + $0x98] sm:$0xff]
      %v448 = vld [vmem:[%s419 + $0xa0] sm:$0xff]
      %v449 = vld [vmem:[%s419 + $0xa8] sm:$0xff]
      %v450 = vld [vmem:[%s419 + $0xb0] sm:$0xff]
      %v451 = vld [vmem:[%s419 + $0xb8] sm:$0xff]
      %v452 = vld [vmem:[%s419 + $0xc0] sm:$0xff]
      %v453 = vld [vmem:[%s419 + $0xc8] sm:$0xff]
      %v454 = vld [vmem:[%s419 + $0xd0] sm:$0xff]
      %v455 = vld [vmem:[%s419 + $0xd8] sm:$0xff]
      %v456 = vld [vmem:[%s419 + $0xe0] sm:$0xff]
      %v457 = vld [vmem:[%s419 + $0xe8] sm:$0xff]
      %v458 = vld [vmem:[%s419 + $0xf0] sm:$0xff]
      %v459 = vld [vmem:[%s419 + $0xf8] sm:$0xff]
      %v460 = vld [vmem:[%s3] sm:$0xff]
      %v461 = vld [vmem:[%s3 + $0x8] sm:$0xff]
      %v462 = vld [vmem:[%s3 + $0x10] sm:$0xff]
      %v463 = vld [vmem:[%s3 + $0x18] sm:$0xff]
      %v464 = vld [vmem:[%s3 + $0x20] sm:$0xff]
      %v465 = vld [vmem:[%s3 + $0x28] sm:$0xff]
      %v466 = vld [vmem:[%s3 + $0x30] sm:$0xff]
      %v467 = vld [vmem:[%s3 + $0x38] sm:$0xff]
      %v468 = vld [vmem:[%s2] sm:$0xff]
      %v469 = vld [vmem:[%s2 + $0x8] sm:$0xff]
      %v470 = vld [vmem:[%s2 + $0x10] sm:$0xff]
      %v471 = vld [vmem:[%s2 + $0x18] sm:$0xff]
      %v472 = vld [vmem:[%s2 + $0x20] sm:$0xff]
      %v473 = vld [vmem:[%s2 + $0x28] sm:$0xff]
      %v474 = vld [vmem:[%s2 + $0x30] sm:$0xff]
      %v475 = vld [vmem:[%s2 + $0x38] sm:$0xff]
      %v476 = vld [vmem:[%s2 + $0x40] sm:$0xff]
      %v477 = vld [vmem:[%s2 + $0x48] sm:$0xff]
      %v478 = vld [vmem:[%s2 + $0x50] sm:$0xff]
      %v479 = vld [vmem:[%s2 + $0x58] sm:$0xff]
      %v480 = vld [vmem:[%s2 + $0x60] sm:$0xff]
      %v481 = vld [vmem:[%s2 + $0x68] sm:$0xff]
      %v482 = vld [vmem:[%s2 + $0x70] sm:$0xff]
      %v483 = vld [vmem:[%s2 + $0x78] sm:$0xff]
      %v484 = vld [vmem:[%s2 + $0x80] sm:$0xff]
      %v485 = vld [vmem:[%s2 + $0x88] sm:$0xff]
      %v486 = vld [vmem:[%s2 + $0x90] sm:$0xff]
      %v487 = vld [vmem:[%s2 + $0x98] sm:$0xff]
      %v488 = vld [vmem:[%s2 + $0xa0] sm:$0xff]
      %v489 = vld [vmem:[%s2 + $0xa8] sm:$0xff]
      %v490 = vld [vmem:[%s2 + $0xb0] sm:$0xff]
      %v491 = vld [vmem:[%s2 + $0xb8] sm:$0xff]
      %v492 = vld [vmem:[%s2 + $0xc0] sm:$0xff]
      %v493 = vld [vmem:[%s2 + $0xc8] sm:$0xff]
      %v494 = vld [vmem:[%s2 + $0xd0] sm:$0xff]
      %v495 = vld [vmem:[%s2 + $0xd8] sm:$0xff]
      %v496 = vld [vmem:[%s2 + $0xe0] sm:$0xff]
      %v497 = vld [vmem:[%s2 + $0xe8] sm:$0xff]
      %v498 = vld [vmem:[%s2 + $0xf0] sm:$0xff]
      %v499 = vld [vmem:[%s2 + $0xf8] sm:$0xff]
      %s500 = scalar_lea.vmem %s2, 256
      %v501 = vld [vmem:[%s500] sm:$0xff]
      %v502 = vld [vmem:[%s500 + $0x8] sm:$0xff]
      %v503 = vld [vmem:[%s500 + $0x10] sm:$0xff]
      %v504 = vld [vmem:[%s500 + $0x18] sm:$0xff]
      %v505 = vld [vmem:[%s500 + $0x20] sm:$0xff]
      %v506 = vld [vmem:[%s500 + $0x28] sm:$0xff]
      %v507 = vld [vmem:[%s500 + $0x30] sm:$0xff]
      %v508 = vld [vmem:[%s500 + $0x38] sm:$0xff]
      %v509 = vld [vmem:[%s500 + $0x40] sm:$0xff]
      %v510 = vld [vmem:[%s500 + $0x48] sm:$0xff]
      %v511 = vld [vmem:[%s500 + $0x50] sm:$0xff]
      %v512 = vld [vmem:[%s500 + $0x58] sm:$0xff]
      %v513 = vld [vmem:[%s500 + $0x60] sm:$0xff]
      %v514 = vld [vmem:[%s500 + $0x68] sm:$0xff]
      %v515 = vld [vmem:[%s500 + $0x70] sm:$0xff]
      %v516 = vld [vmem:[%s500 + $0x78] sm:$0xff]
      %v517 = vld [vmem:[%s500 + $0x80] sm:$0xff]
      %v518 = vld [vmem:[%s500 + $0x88] sm:$0xff]
      %v519 = vld [vmem:[%s500 + $0x90] sm:$0xff]
      %v520 = vld [vmem:[%s500 + $0x98] sm:$0xff]
      %v521 = vld [vmem:[%s500 + $0xa0] sm:$0xff]
      %v522 = vld [vmem:[%s500 + $0xa8] sm:$0xff]
      %v523 = vld [vmem:[%s500 + $0xb0] sm:$0xff]
      %v524 = vld [vmem:[%s500 + $0xb8] sm:$0xff]
      %v525 = vld [vmem:[%s500 + $0xc0] sm:$0xff]
      %v526 = vld [vmem:[%s500 + $0xc8] sm:$0xff]
      %v527 = vld [vmem:[%s500 + $0xd0] sm:$0xff]
      %v528 = vld [vmem:[%s500 + $0xd8] sm:$0xff]
      %v529 = vld [vmem:[%s500 + $0xe0] sm:$0xff]
      %v530 = vld [vmem:[%s500 + $0xe8] sm:$0xff]
      %v531 = vld [vmem:[%s500 + $0xf0] sm:$0xff]
      %v532 = vld [vmem:[%s500 + $0xf8] sm:$0xff]
      %v533 = vld [vmem:[%s4] sm:$0x1]
      %v534 = vld [vmem:[%s5] sm:$0x1]
      %vm535 = vcmask 523264
      %v536 = vsel %vm535, %v428, 0.0
      %v537 = vsel %vm535, %v429, 0.0
      %v538 = vadd.f32 %v536, %v537
      %v539 = vsel %vm535, %v430, 0.0
      %v540 = vadd.f32 %v538, %v539
      %v541 = vsel %vm535, %v431, 0.0
      %v542 = vadd.f32 %v540, %v541
      %v543 = vsel %vm535, %v432, 0.0
      %v544 = vadd.f32 %v542, %v543
      %v545 = vsel %vm535, %v433, 0.0
      %v546 = vadd.f32 %v544, %v545
      %v547 = vsel %vm535, %v434, 0.0
      %v548 = vadd.f32 %v546, %v547
      %v549 = vsel %vm535, %v435, 0.0
      %v550 = vadd.f32 %v548, %v549
      %v551 = vsel %vm535, %v436, 0.0
      %v552 = vadd.f32 %v550, %v551
      %v553 = vsel %vm535, %v437, 0.0
      %v554 = vadd.f32 %v552, %v553
      %v555 = vsel %vm535, %v438, 0.0
      %v556 = vadd.f32 %v554, %v555
      %v557 = vsel %vm535, %v439, 0.0
      %v558 = vadd.f32 %v556, %v557
      %v559 = vsel %vm535, %v440, 0.0
      %v560 = vadd.f32 %v558, %v559
      %v561 = vsel %vm535, %v441, 0.0
      %v562 = vadd.f32 %v560, %v561
      %v563 = vsel %vm535, %v442, 0.0
      %v564 = vadd.f32 %v562, %v563
      %v565 = vsel %vm535, %v443, 0.0
      %v566 = vadd.f32 %v564, %v565
      %v567 = vsel %vm535, %v444, 0.0
      %v568 = vadd.f32 %v566, %v567
      %v569 = vsel %vm535, %v445, 0.0
      %v570 = vadd.f32 %v568, %v569
      %v571 = vsel %vm535, %v446, 0.0
      %v572 = vadd.f32 %v570, %v571
      %v573 = vsel %vm535, %v447, 0.0
      %v574 = vadd.f32 %v572, %v573
      %v575 = vsel %vm535, %v448, 0.0
      %v576 = vadd.f32 %v574, %v575
      %v577 = vsel %vm535, %v449, 0.0
      %v578 = vadd.f32 %v576, %v577
      %v579 = vsel %vm535, %v450, 0.0
      %v580 = vadd.f32 %v578, %v579
      %v581 = vsel %vm535, %v451, 0.0
      %v582 = vadd.f32 %v580, %v581
      %v583 = vsel %vm535, %v452, 0.0
      %v584 = vadd.f32 %v582, %v583
      %v585 = vsel %vm535, %v453, 0.0
      %v586 = vadd.f32 %v584, %v585
      %v587 = vsel %vm535, %v454, 0.0
      %v588 = vadd.f32 %v586, %v587
      %v589 = vsel %vm535, %v455, 0.0
      %v590 = vadd.f32 %v588, %v589
      %v591 = vsel %vm535, %v456, 0.0
      %v592 = vadd.f32 %v590, %v591
      %v593 = vsel %vm535, %v457, 0.0
      %v594 = vadd.f32 %v592, %v593
      %v595 = vsel %vm535, %v458, 0.0
      %v596 = vadd.f32 %v594, %v595
      %v597 = vsel %vm535, %v459, 0.0
      %v598 = vadd.f32 %v596, %v597
      %v599 = vrot.slane %v598, 4
      %v600 = vadd.f32 %v598, %v599
      %v601 = vrot.slane %v600, 2
      %v602 = vadd.f32 %v600, %v601
      %v603 = vrot.slane %v602, 1
      %v604 = vadd.f32 %v602, %v603
      %v605 = vmul.f32 %v428, %v428
      %v606 = vmul.f32 %v429, %v429
      %v607 = vmul.f32 %v430, %v430
      %v608 = vmul.f32 %v431, %v431
      %v609 = vmul.f32 %v432, %v432
      %v610 = vmul.f32 %v433, %v433
      %v611 = vmul.f32 %v434, %v434
      %v612 = vmul.f32 %v435, %v435
      %v613 = vmul.f32 %v436, %v436
      %v614 = vmul.f32 %v437, %v437
      %v615 = vmul.f32 %v438, %v438
      %v616 = vmul.f32 %v439, %v439
      %v617 = vmul.f32 %v440, %v440
      %v618 = vmul.f32 %v441, %v441
      %v619 = vmul.f32 %v442, %v442
      %v620 = vmul.f32 %v443, %v443
      %v621 = vmul.f32 %v444, %v444
      %v622 = vmul.f32 %v445, %v445
      %v623 = vmul.f32 %v446, %v446
      %v624 = vmul.f32 %v447, %v447
      %v625 = vmul.f32 %v448, %v448
      %v626 = vmul.f32 %v449, %v449
      %v627 = vmul.f32 %v450, %v450
      %v628 = vmul.f32 %v451, %v451
      %v629 = vmul.f32 %v452, %v452
      %v630 = vmul.f32 %v453, %v453
      %v631 = vmul.f32 %v454, %v454
      %v632 = vmul.f32 %v455, %v455
      %v633 = vmul.f32 %v456, %v456
      %v634 = vmul.f32 %v457, %v457
      %v635 = vmul.f32 %v458, %v458
      %v636 = vmul.f32 %v459, %v459
      %v637 = vsel %vm535, %v605, 0.0
      %v638 = vsel %vm535, %v606, 0.0
      %v639 = vadd.f32 %v637, %v638
      %v640 = vsel %vm535, %v607, 0.0
      %v641 = vadd.f32 %v639, %v640
      %v642 = vsel %vm535, %v608, 0.0
      %v643 = vadd.f32 %v641, %v642
      %v644 = vsel %vm535, %v609, 0.0
      %v645 = vadd.f32 %v643, %v644
      %v646 = vsel %vm535, %v610, 0.0
      %v647 = vadd.f32 %v645, %v646
      %v648 = vsel %vm535, %v611, 0.0
      %v649 = vadd.f32 %v647, %v648
      %v650 = vsel %vm535, %v612, 0.0
      %v651 = vadd.f32 %v649, %v650
      %v652 = vsel %vm535, %v613, 0.0
      %v653 = vadd.f32 %v651, %v652
      %v654 = vsel %vm535, %v614, 0.0
      %v655 = vadd.f32 %v653, %v654
      %v656 = vsel %vm535, %v615, 0.0
      %v657 = vadd.f32 %v655, %v656
      %v658 = vsel %vm535, %v616, 0.0
      %v659 = vadd.f32 %v657, %v658
      %v660 = vsel %vm535, %v617, 0.0
      %v661 = vadd.f32 %v659, %v660
      %v662 = vsel %vm535, %v618, 0.0
      %v663 = vadd.f32 %v661, %v662
      %v664 = vsel %vm535, %v619, 0.0
      %v665 = vadd.f32 %v663, %v664
      %v666 = vsel %vm535, %v620, 0.0
      %v667 = vadd.f32 %v665, %v666
      %v668 = vsel %vm535, %v621, 0.0
      %v669 = vadd.f32 %v667, %v668
      %v670 = vsel %vm535, %v622, 0.0
      %v671 = vadd.f32 %v669, %v670
      %v672 = vsel %vm535, %v623, 0.0
      %v673 = vadd.f32 %v671, %v672
      %v674 = vsel %vm535, %v624, 0.0
      %v675 = vadd.f32 %v673, %v674
      %v676 = vsel %vm535, %v625, 0.0
      %v677 = vadd.f32 %v675, %v676
      %v678 = vsel %vm535, %v626, 0.0
      %v679 = vadd.f32 %v677, %v678
      %v680 = vsel %vm535, %v627, 0.0
      %v681 = vadd.f32 %v679, %v680
      %v682 = vsel %vm535, %v628, 0.0
      %v683 = vadd.f32 %v681, %v682
      %v684 = vsel %vm535, %v629, 0.0
      %v685 = vadd.f32 %v683, %v684
      %v686 = vsel %vm535, %v630, 0.0
      %v687 = vadd.f32 %v685, %v686
      %v688 = vsel %vm535, %v631, 0.0
      %v689 = vadd.f32 %v687, %v688
      %v690 = vsel %vm535, %v632, 0.0
      %v691 = vadd.f32 %v689, %v690
      %v692 = vsel %vm535, %v633, 0.0
      %v693 = vadd.f32 %v691, %v692
      %v694 = vsel %vm535, %v634, 0.0
      %v695 = vadd.f32 %v693, %v694
      %v696 = vsel %vm535, %v635, 0.0
      %v697 = vadd.f32 %v695, %v696
      %v698 = vsel %vm535, %v636, 0.0
      %v699 = vadd.f32 %v697, %v698
      %v700 = vrot.slane %v699, 4
      %v701 = vadd.f32 %v699, %v700
      %v702 = vrot.slane %v701, 2
      %v703 = vadd.f32 %v701, %v702
      %v704 = vrot.slane %v703, 1
      %v705 = vadd.f32 %v703, %v704
      %v707 = vsel %vm535, %v604, 0
      %709 = vmatpush.msra.mxu0 0.0
      %710 = vmatpush.msra.mxu0 0.0
      %711 = vmatpush.msra.mxu0 0.0
      %712 = vmatpush.msra.mxu0 0.0
      %713 = vmatpush.msra.mxu0 0.0
      %714 = vmatpush.msra.mxu0 0.0
      %715 = vmatpush.msra.mxu0 0.0
      %716 = vmatpush.msra.mxu0 0.0
      %717 = vmatpush.msra.mxu0 %v467
      %718 = vmatpush.msra.mxu0 %v466
      %719 = vmatpush.msra.mxu0 %v465
      %720 = vmatpush.msra.mxu0 %v464
      %721 = vmatpush.msra.mxu0 %v463
      %722 = vmatpush.msra.mxu0 %v462
      %723 = vmatpush.msra.mxu0 %v461
      %724 = vmatpush.msra.mxu0 %v460
      %725 = vmatmul.f32.gmra.mxu0 %v707
      %v726 = vpop.f32.mrf.mxu0
      %v727 = vadd.f32 0.0, %v726
      %728 = vdwg.mxu0
      %v729 = vmul.f32 %v727, 0.001953125
      %v731 = vsel %vm535, %v705, 0
      %733 = vmatpush.msra.mxu0 0.0
      %734 = vmatpush.msra.mxu0 0.0
      %735 = vmatpush.msra.mxu0 0.0
      %736 = vmatpush.msra.mxu0 0.0
      %737 = vmatpush.msra.mxu0 0.0
      %738 = vmatpush.msra.mxu0 0.0
      %739 = vmatpush.msra.mxu0 0.0
      %740 = vmatpush.msra.mxu0 0.0
      %741 = vmatpush.msra.mxu0 %v467
      %742 = vmatpush.msra.mxu0 %v466
      %743 = vmatpush.msra.mxu0 %v465
      %744 = vmatpush.msra.mxu0 %v464
      %745 = vmatpush.msra.mxu0 %v463
      %746 = vmatpush.msra.mxu0 %v462
      %747 = vmatpush.msra.mxu0 %v461
      %748 = vmatpush.msra.mxu0 %v460
      %749 = vmatmul.f32.gmra.mxu0 %v731
      %v750 = vpop.f32.mrf.mxu0
      %v751 = vadd.f32 0.0, %v750
      %752 = vdwg.mxu0
      %v753 = vmul.f32 %v751, 0.001953125
      %v754 = vmul.f32 %v729, %v729
      %v755 = vsub.f32 %v753, %v754
      %v756 = vadd.f32 %v755, 1e-06
      %v757 = vrsqrt.pop %v756
      %v758 = vmul.f32 %v757, %v756
      %v759 = vmul.f32 %v758, %v757
      %v760 = vmul.f32 0.5, %v759
      %v761 = vsub.f32 1.5, %v760
      %v762 = vmul.f32 %v757, %v761
      %vm763 = vweird.f32 %v756
      %vm764 = vweird.f32 %v757
      %vm765 = vmor %vm763, %vm764
      %v766 = vsel %vm765, %v757, %v762
      %vm767 = vcmask 261120
      %v769 = vsel %vm767, %v729, 0
      %v772 = vsel %vm767, %v460, 0
      %v775 = vsel %vm767, %v461, 0
      %v778 = vsel %vm767, %v462, 0
      %v781 = vsel %vm767, %v463, 0
      %v784 = vsel %vm767, %v464, 0
      %v787 = vsel %vm767, %v465, 0
      %v790 = vsel %vm767, %v466, 0
      %v793 = vsel %vm767, %v467, 0
      %795 = vmatpush.xpose.msra.mxu0 0.0
      %796 = vmatpush.xpose.msra.mxu0 0.0
      %797 = vmatpush.xpose.msra.mxu0 0.0
      %798 = vmatpush.xpose.msra.mxu0 0.0
      %799 = vmatpush.xpose.msra.mxu0 0.0
      %800 = vmatpush.xpose.msra.mxu0 0.0
      %801 = vmatpush.xpose.msra.mxu0 0.0
      %802 = vmatpush.xpose.msra.mxu0 0.0
      %803 = vmatpush.xpose.msra.mxu0 %v793
      %804 = vmatpush.xpose.msra.mxu0 %v790
      %805 = vmatpush.xpose.msra.mxu0 %v787
      %806 = vmatpush.xpose.msra.mxu0 %v784
      %807 = vmatpush.xpose.msra.mxu0 %v781
      %808 = vmatpush.xpose.msra.mxu0 %v778
      %809 = vmatpush.xpose.msra.mxu0 %v775
      %810 = vmatpush.xpose.msra.mxu0 %v772
      %811 = vmatmul.f32.gmra.mxu0 %v769
      %v812 = vpop.f32.mrf.mxu0
      %v813 = vadd.f32 0.0, %v812
      %814 = vdwg.mxu0
      %v816 = vsel %vm767, %v766, 0
      %818 = vmatpush.xpose.msra.mxu0 0.0
      %819 = vmatpush.xpose.msra.mxu0 0.0
      %820 = vmatpush.xpose.msra.mxu0 0.0
      %821 = vmatpush.xpose.msra.mxu0 0.0
      %822 = vmatpush.xpose.msra.mxu0 0.0
      %823 = vmatpush.xpose.msra.mxu0 0.0
      %824 = vmatpush.xpose.msra.mxu0 0.0
      %825 = vmatpush.xpose.msra.mxu0 0.0
      %826 = vmatpush.xpose.msra.mxu0 %v793
      %827 = vmatpush.xpose.msra.mxu0 %v790
      %828 = vmatpush.xpose.msra.mxu0 %v787
      %829 = vmatpush.xpose.msra.mxu0 %v784
      %830 = vmatpush.xpose.msra.mxu0 %v781
      %831 = vmatpush.xpose.msra.mxu0 %v778
      %832 = vmatpush.xpose.msra.mxu0 %v775
      %833 = vmatpush.xpose.msra.mxu0 %v772
      %834 = vmatmul.f32.gmra.mxu0 %v816
      %v835 = vpop.f32.mrf.mxu0
      %v836 = vadd.f32 0.0, %v835
      %837 = vdwg.mxu0
      %v838 = vperm.slane %v813, 0
      %v839 = vsub.f32 %v428, %v838
      %v840 = vsub.f32 %v429, %v838
      %v841 = vsub.f32 %v430, %v838
      %v842 = vsub.f32 %v431, %v838
      %v843 = vsub.f32 %v432, %v838
      %v844 = vsub.f32 %v433, %v838
      %v845 = vsub.f32 %v434, %v838
      %v846 = vsub.f32 %v435, %v838
      %v847 = vsub.f32 %v436, %v838
      %v848 = vsub.f32 %v437, %v838
      %v849 = vsub.f32 %v438, %v838
      %v850 = vsub.f32 %v439, %v838
      %v851 = vsub.f32 %v440, %v838
      %v852 = vsub.f32 %v441, %v838
      %v853 = vsub.f32 %v442, %v838
      %v854 = vsub.f32 %v443, %v838
      %v855 = vsub.f32 %v444, %v838
      %v856 = vsub.f32 %v445, %v838
      %v857 = vsub.f32 %v446, %v838
      %v858 = vsub.f32 %v447, %v838
      %v859 = vsub.f32 %v448, %v838
      %v860 = vsub.f32 %v449, %v838
      %v861 = vsub.f32 %v450, %v838
      %v862 = vsub.f32 %v451, %v838
      %v863 = vsub.f32 %v452, %v838
      %v864 = vsub.f32 %v453, %v838
      %v865 = vsub.f32 %v454, %v838
      %v866 = vsub.f32 %v455, %v838
      %v867 = vsub.f32 %v456, %v838
      %v868 = vsub.f32 %v457, %v838
      %v869 = vsub.f32 %v458, %v838
      %v870 = vsub.f32 %v459, %v838
      %v871 = vmul.f32 %v836, %v533
      %v872 = vperm.slane %v871, 0
      %v873 = vmul.f32 %v839, %v872
      %v874 = vmul.f32 %v840, %v872
      %v875 = vmul.f32 %v841, %v872
      %v876 = vmul.f32 %v842, %v872
      %v877 = vmul.f32 %v843, %v872
      %v878 = vmul.f32 %v844, %v872
      %v879 = vmul.f32 %v845, %v872
      %v880 = vmul.f32 %v846, %v872
      %v881 = vmul.f32 %v847, %v872
      %v882 = vmul.f32 %v848, %v872
      %v883 = vmul.f32 %v849, %v872
      %v884 = vmul.f32 %v850, %v872
      %v885 = vmul.f32 %v851, %v872
      %v886 = vmul.f32 %v852, %v872
      %v887 = vmul.f32 %v853, %v872
      %v888 = vmul.f32 %v854, %v872
      %v889 = vmul.f32 %v855, %v872
      %v890 = vmul.f32 %v856, %v872
      %v891 = vmul.f32 %v857, %v872
      %v892 = vmul.f32 %v858, %v872
      %v893 = vmul.f32 %v859, %v872
      %v894 = vmul.f32 %v860, %v872
      %v895 = vmul.f32 %v861, %v872
      %v896 = vmul.f32 %v862, %v872
      %v897 = vmul.f32 %v863, %v872
      %v898 = vmul.f32 %v864, %v872
      %v899 = vmul.f32 %v865, %v872
      %v900 = vmul.f32 %v866, %v872
      %v901 = vmul.f32 %v867, %v872
      %v902 = vmul.f32 %v868, %v872
      %v903 = vmul.f32 %v869, %v872
      %v904 = vmul.f32 %v870, %v872
      %v906 = vperm.slane %v534, 0
      %v908 = vadd.f32 %v873, %v906
      %v909 = vadd.f32 %v874, %v906
      %v910 = vadd.f32 %v875, %v906
      %v911 = vadd.f32 %v876, %v906
      %v912 = vadd.f32 %v877, %v906
      %v913 = vadd.f32 %v878, %v906
      %v914 = vadd.f32 %v879, %v906
      %v915 = vadd.f32 %v880, %v906
      %v916 = vadd.f32 %v881, %v906
      %v917 = vadd.f32 %v882, %v906
      %v918 = vadd.f32 %v883, %v906
      %v919 = vadd.f32 %v884, %v906
      %v920 = vadd.f32 %v885, %v906
      %v921 = vadd.f32 %v886, %v906
      %v922 = vadd.f32 %v887, %v906
      %v923 = vadd.f32 %v888, %v906
      %v924 = vadd.f32 %v889, %v906
      %v925 = vadd.f32 %v890, %v906
      %v926 = vadd.f32 %v891, %v906
      %v927 = vadd.f32 %v892, %v906
      %v928 = vadd.f32 %v893, %v906
      %v929 = vadd.f32 %v894, %v906
      %v930 = vadd.f32 %v895, %v906
      %v931 = vadd.f32 %v896, %v906
      %v932 = vadd.f32 %v897, %v906
      %v933 = vadd.f32 %v898, %v906
      %v934 = vadd.f32 %v899, %v906
      %v935 = vadd.f32 %v900, %v906
      %v936 = vadd.f32 %v901, %v906
      %v937 = vadd.f32 %v902, %v906
      %v938 = vadd.f32 %v903, %v906
      %v939 = vadd.f32 %v904, %v906
      %v940 = vxor.u32 %v908, 2147483648
      %v941 = vxor.u32 %v909, 2147483648
      %v942 = vxor.u32 %v910, 2147483648
      %v943 = vxor.u32 %v911, 2147483648
      %v944 = vxor.u32 %v912, 2147483648
      %v945 = vxor.u32 %v913, 2147483648
      %v946 = vxor.u32 %v914, 2147483648
      %v947 = vxor.u32 %v915, 2147483648
      %v948 = vxor.u32 %v916, 2147483648
      %v949 = vxor.u32 %v917, 2147483648
      %v950 = vxor.u32 %v918, 2147483648
      %v951 = vxor.u32 %v919, 2147483648
      %v952 = vxor.u32 %v920, 2147483648
      %v953 = vxor.u32 %v921, 2147483648
      %v954 = vxor.u32 %v922, 2147483648
      %v955 = vxor.u32 %v923, 2147483648
      %v956 = vxor.u32 %v924, 2147483648
      %v957 = vxor.u32 %v925, 2147483648
      %v958 = vxor.u32 %v926, 2147483648
      %v959 = vxor.u32 %v927, 2147483648
      %v960 = vxor.u32 %v928, 2147483648
      %v961 = vxor.u32 %v929, 2147483648
      %v962 = vxor.u32 %v930, 2147483648
      %v963 = vxor.u32 %v931, 2147483648
      %v964 = vxor.u32 %v932, 2147483648
      %v965 = vxor.u32 %v933, 2147483648
      %v966 = vxor.u32 %v934, 2147483648
      %v967 = vxor.u32 %v935, 2147483648
      %v968 = vxor.u32 %v936, 2147483648
      %v969 = vxor.u32 %v937, 2147483648
      %v970 = vxor.u32 %v938, 2147483648
      %v971 = vxor.u32 %v939, 2147483648
      %v972 = vmul.f32 %v940, 1.442695
      %v973 = vpow.pop %v972
      %v974 = vmul.f32 %v941, 1.442695
      %v975 = vpow.pop %v974
      %v976 = vmul.f32 %v942, 1.442695
      %v977 = vpow.pop %v976
      %v978 = vmul.f32 %v943, 1.442695
      %v979 = vpow.pop %v978
      %v980 = vmul.f32 %v944, 1.442695
      %v981 = vpow.pop %v980
      %v982 = vmul.f32 %v945, 1.442695
      %v983 = vpow.pop %v982
      %v984 = vmul.f32 %v946, 1.442695
      %v985 = vpow.pop %v984
      %v986 = vmul.f32 %v947, 1.442695
      %v987 = vpow.pop %v986
      %v988 = vmul.f32 %v948, 1.442695
      %v989 = vpow.pop %v988
      %v990 = vmul.f32 %v949, 1.442695
      %v991 = vpow.pop %v990
      %v992 = vmul.f32 %v950, 1.442695
      %v993 = vpow.pop %v992
      %v994 = vmul.f32 %v951, 1.442695
      %v995 = vpow.pop %v994
      %v996 = vmul.f32 %v952, 1.442695
      %v997 = vpow.pop %v996
      %v998 = vmul.f32 %v953, 1.442695
      %v999 = vpow.pop %v998
      %v1000 = vmul.f32 %v954, 1.442695
      %v1001 = vpow.pop %v1000
      %v1002 = vmul.f32 %v955, 1.442695
      %v1003 = vpow.pop %v1002
      %v1004 = vmul.f32 %v956, 1.442695
      %v1005 = vpow.pop %v1004
      %v1006 = vmul.f32 %v957, 1.442695
      %v1007 = vpow.pop %v1006
      %v1008 = vmul.f32 %v958, 1.442695
      %v1009 = vpow.pop %v1008
      %v1010 = vmul.f32 %v959, 1.442695
      %v1011 = vpow.pop %v1010
      %v1012 = vmul.f32 %v960, 1.442695
      %v1013 = vpow.pop %v1012
      %v1014 = vmul.f32 %v961, 1.442695
      %v1015 = vpow.pop %v1014
      %v1016 = vmul.f32 %v962, 1.442695
      %v1017 = vpow.pop %v1016
      %v1018 = vmul.f32 %v963, 1.442695
      %v1019 = vpow.pop %v1018
      %v1020 = vmul.f32 %v964, 1.442695
      %v1021 = vpow.pop %v1020
      %v1022 = vmul.f32 %v965, 1.442695
      %v1023 = vpow.pop %v1022
      %v1024 = vmul.f32 %v966, 1.442695
      %v1025 = vpow.pop %v1024
      %v1026 = vmul.f32 %v967, 1.442695
      %v1027 = vpow.pop %v1026
      %v1028 = vmul.f32 %v968, 1.442695
      %v1029 = vpow.pop %v1028
      %v1030 = vmul.f32 %v969, 1.442695
      %v1031 = vpow.pop %v1030
      %v1032 = vmul.f32 %v970, 1.442695
      %v1033 = vpow.pop %v1032
      %v1034 = vmul.f32 %v971, 1.442695
      %v1035 = vpow.pop %v1034
      %v1036 = vadd.f32 %v973, 1.0
      %v1037 = vadd.f32 %v975, 1.0
      %v1038 = vadd.f32 %v977, 1.0
      %v1039 = vadd.f32 %v979, 1.0
      %v1040 = vadd.f32 %v981, 1.0
      %v1041 = vadd.f32 %v983, 1.0
      %v1042 = vadd.f32 %v985, 1.0
      %v1043 = vadd.f32 %v987, 1.0
      %v1044 = vadd.f32 %v989, 1.0
      %v1045 = vadd.f32 %v991, 1.0
      %v1046 = vadd.f32 %v993, 1.0
      %v1047 = vadd.f32 %v995, 1.0
      %v1048 = vadd.f32 %v997, 1.0
      %v1049 = vadd.f32 %v999, 1.0
      %v1050 = vadd.f32 %v1001, 1.0
      %v1051 = vadd.f32 %v1003, 1.0
      %v1052 = vadd.f32 %v1005, 1.0
      %v1053 = vadd.f32 %v1007, 1.0
      %v1054 = vadd.f32 %v1009, 1.0
      %v1055 = vadd.f32 %v1011, 1.0
      %v1056 = vadd.f32 %v1013, 1.0
      %v1057 = vadd.f32 %v1015, 1.0
      %v1058 = vadd.f32 %v1017, 1.0
      %v1059 = vadd.f32 %v1019, 1.0
      %v1060 = vadd.f32 %v1021, 1.0
      %v1061 = vadd.f32 %v1023, 1.0
      %v1062 = vadd.f32 %v1025, 1.0
      %v1063 = vadd.f32 %v1027, 1.0
      %v1064 = vadd.f32 %v1029, 1.0
      %v1065 = vadd.f32 %v1031, 1.0
      %v1066 = vadd.f32 %v1033, 1.0
      %v1067 = vadd.f32 %v1035, 1.0
      %v1068 = vrcp.pop %v1036
      %v1069 = vmul.f32 %v1036, %v1068
      %v1070 = vsub.f32 1.0, %v1069
      %v1071 = vmul.f32 %v1068, %v1070
      %v1072 = vadd.f32 %v1068, %v1071
      %vm1073 = vweird.f32 %v1036
      %vm1074 = vweird.f32 %v1068
      %vm1075 = vmor %vm1073, %vm1074
      %v1076 = vsel %vm1075, %v1068, %v1072
      %v1077 = vand.u32 2147483647, %v1036
      %vm1078 = vcmp.eq.f32.partialorder %v1077, 8.507059e+37
      %v1079 = vand.u32 %v1036, 2147483648
      %v1080 = vor.u32 1.1754944e-38, %v1079
      %v1081 = vsel %vm1078, %v1080, %v1076
      %v1082 = vmul.f32 1.0, %v1081
      %v1083 = vrcp.pop %v1037
      %v1084 = vmul.f32 %v1037, %v1083
      %v1085 = vsub.f32 1.0, %v1084
      %v1086 = vmul.f32 %v1083, %v1085
      %v1087 = vadd.f32 %v1083, %v1086
      %vm1088 = vweird.f32 %v1037
      %vm1089 = vweird.f32 %v1083
      %vm1090 = vmor %vm1088, %vm1089
      %v1091 = vsel %vm1090, %v1083, %v1087
      %v1092 = vand.u32 2147483647, %v1037
      %vm1093 = vcmp.eq.f32.partialorder %v1092, 8.507059e+37
      %v1094 = vand.u32 %v1037, 2147483648
      %v1095 = vor.u32 1.1754944e-38, %v1094
      %v1096 = vsel %vm1093, %v1095, %v1091
      %v1097 = vmul.f32 1.0, %v1096
      %v1098 = vrcp.pop %v1038
      %v1099 = vmul.f32 %v1038, %v1098
      %v1100 = vsub.f32 1.0, %v1099
      %v1101 = vmul.f32 %v1098, %v1100
      %v1102 = vadd.f32 %v1098, %v1101
      %vm1103 = vweird.f32 %v1038
      %vm1104 = vweird.f32 %v1098
      %vm1105 = vmor %vm1103, %vm1104
      %v1106 = vsel %vm1105, %v1098, %v1102
      %v1107 = vand.u32 2147483647, %v1038
      %vm1108 = vcmp.eq.f32.partialorder %v1107, 8.507059e+37
      %v1109 = vand.u32 %v1038, 2147483648
      %v1110 = vor.u32 1.1754944e-38, %v1109
      %v1111 = vsel %vm1108, %v1110, %v1106
      %v1112 = vmul.f32 1.0, %v1111
      %v1113 = vrcp.pop %v1039
      %v1114 = vmul.f32 %v1039, %v1113
      %v1115 = vsub.f32 1.0, %v1114
      %v1116 = vmul.f32 %v1113, %v1115
      %v1117 = vadd.f32 %v1113, %v1116
      %vm1118 = vweird.f32 %v1039
      %vm1119 = vweird.f32 %v1113
      %vm1120 = vmor %vm1118, %vm1119
      %v1121 = vsel %vm1120, %v1113, %v1117
      %v1122 = vand.u32 2147483647, %v1039
      %vm1123 = vcmp.eq.f32.partialorder %v1122, 8.507059e+37
      %v1124 = vand.u32 %v1039, 2147483648
      %v1125 = vor.u32 1.1754944e-38, %v1124
      %v1126 = vsel %vm1123, %v1125, %v1121
      %v1127 = vmul.f32 1.0, %v1126
      %v1128 = vrcp.pop %v1040
      %v1129 = vmul.f32 %v1040, %v1128
      %v1130 = vsub.f32 1.0, %v1129
      %v1131 = vmul.f32 %v1128, %v1130
      %v1132 = vadd.f32 %v1128, %v1131
      %vm1133 = vweird.f32 %v1040
      %vm1134 = vweird.f32 %v1128
      %vm1135 = vmor %vm1133, %vm1134
      %v1136 = vsel %vm1135, %v1128, %v1132
      %v1137 = vand.u32 2147483647, %v1040
      %vm1138 = vcmp.eq.f32.partialorder %v1137, 8.507059e+37
      %v1139 = vand.u32 %v1040, 2147483648
      %v1140 = vor.u32 1.1754944e-38, %v1139
      %v1141 = vsel %vm1138, %v1140, %v1136
      %v1142 = vmul.f32 1.0, %v1141
      %v1143 = vrcp.pop %v1041
      %v1144 = vmul.f32 %v1041, %v1143
      %v1145 = vsub.f32 1.0, %v1144
      %v1146 = vmul.f32 %v1143, %v1145
      %v1147 = vadd.f32 %v1143, %v1146
      %vm1148 = vweird.f32 %v1041
      %vm1149 = vweird.f32 %v1143
      %vm1150 = vmor %vm1148, %vm1149
      %v1151 = vsel %vm1150, %v1143, %v1147
      %v1152 = vand.u32 2147483647, %v1041
      %vm1153 = vcmp.eq.f32.partialorder %v1152, 8.507059e+37
      %v1154 = vand.u32 %v1041, 2147483648
      %v1155 = vor.u32 1.1754944e-38, %v1154
      %v1156 = vsel %vm1153, %v1155, %v1151
      %v1157 = vmul.f32 1.0, %v1156
      %v1158 = vrcp.pop %v1042
      %v1159 = vmul.f32 %v1042, %v1158
      %v1160 = vsub.f32 1.0, %v1159
      %v1161 = vmul.f32 %v1158, %v1160
      %v1162 = vadd.f32 %v1158, %v1161
      %vm1163 = vweird.f32 %v1042
      %vm1164 = vweird.f32 %v1158
      %vm1165 = vmor %vm1163, %vm1164
      %v1166 = vsel %vm1165, %v1158, %v1162
      %v1167 = vand.u32 2147483647, %v1042
      %vm1168 = vcmp.eq.f32.partialorder %v1167, 8.507059e+37
      %v1169 = vand.u32 %v1042, 2147483648
      %v1170 = vor.u32 1.1754944e-38, %v1169
      %v1171 = vsel %vm1168, %v1170, %v1166
      %v1172 = vmul.f32 1.0, %v1171
      %v1173 = vrcp.pop %v1043
      %v1174 = vmul.f32 %v1043, %v1173
      %v1175 = vsub.f32 1.0, %v1174
      %v1176 = vmul.f32 %v1173, %v1175
      %v1177 = vadd.f32 %v1173, %v1176
      %vm1178 = vweird.f32 %v1043
      %vm1179 = vweird.f32 %v1173
      %vm1180 = vmor %vm1178, %vm1179
      %v1181 = vsel %vm1180, %v1173, %v1177
      %v1182 = vand.u32 2147483647, %v1043
      %vm1183 = vcmp.eq.f32.partialorder %v1182, 8.507059e+37
      %v1184 = vand.u32 %v1043, 2147483648
      %v1185 = vor.u32 1.1754944e-38, %v1184
      %v1186 = vsel %vm1183, %v1185, %v1181
      %v1187 = vmul.f32 1.0, %v1186
      %v1188 = vrcp.pop %v1044
      %v1189 = vmul.f32 %v1044, %v1188
      %v1190 = vsub.f32 1.0, %v1189
      %v1191 = vmul.f32 %v1188, %v1190
      %v1192 = vadd.f32 %v1188, %v1191
      %vm1193 = vweird.f32 %v1044
      %vm1194 = vweird.f32 %v1188
      %vm1195 = vmor %vm1193, %vm1194
      %v1196 = vsel %vm1195, %v1188, %v1192
      %v1197 = vand.u32 2147483647, %v1044
      %vm1198 = vcmp.eq.f32.partialorder %v1197, 8.507059e+37
      %v1199 = vand.u32 %v1044, 2147483648
      %v1200 = vor.u32 1.1754944e-38, %v1199
      %v1201 = vsel %vm1198, %v1200, %v1196
      %v1202 = vmul.f32 1.0, %v1201
      %v1203 = vrcp.pop %v1045
      %v1204 = vmul.f32 %v1045, %v1203
      %v1205 = vsub.f32 1.0, %v1204
      %v1206 = vmul.f32 %v1203, %v1205
      %v1207 = vadd.f32 %v1203, %v1206
      %vm1208 = vweird.f32 %v1045
      %vm1209 = vweird.f32 %v1203
      %vm1210 = vmor %vm1208, %vm1209
      %v1211 = vsel %vm1210, %v1203, %v1207
      %v1212 = vand.u32 2147483647, %v1045
      %vm1213 = vcmp.eq.f32.partialorder %v1212, 8.507059e+37
      %v1214 = vand.u32 %v1045, 2147483648
      %v1215 = vor.u32 1.1754944e-38, %v1214
      %v1216 = vsel %vm1213, %v1215, %v1211
      %v1217 = vmul.f32 1.0, %v1216
      %v1218 = vrcp.pop %v1046
      %v1219 = vmul.f32 %v1046, %v1218
      %v1220 = vsub.f32 1.0, %v1219
      %v1221 = vmul.f32 %v1218, %v1220
      %v1222 = vadd.f32 %v1218, %v1221
      %vm1223 = vweird.f32 %v1046
      %vm1224 = vweird.f32 %v1218
      %vm1225 = vmor %vm1223, %vm1224
      %v1226 = vsel %vm1225, %v1218, %v1222
      %v1227 = vand.u32 2147483647, %v1046
      %vm1228 = vcmp.eq.f32.partialorder %v1227, 8.507059e+37
      %v1229 = vand.u32 %v1046, 2147483648
      %v1230 = vor.u32 1.1754944e-38, %v1229
      %v1231 = vsel %vm1228, %v1230, %v1226
      %v1232 = vmul.f32 1.0, %v1231
      %v1233 = vrcp.pop %v1047
      %v1234 = vmul.f32 %v1047, %v1233
      %v1235 = vsub.f32 1.0, %v1234
      %v1236 = vmul.f32 %v1233, %v1235
      %v1237 = vadd.f32 %v1233, %v1236
      %vm1238 = vweird.f32 %v1047
      %vm1239 = vweird.f32 %v1233
      %vm1240 = vmor %vm1238, %vm1239
      %v1241 = vsel %vm1240, %v1233, %v1237
      %v1242 = vand.u32 2147483647, %v1047
      %vm1243 = vcmp.eq.f32.partialorder %v1242, 8.507059e+37
      %v1244 = vand.u32 %v1047, 2147483648
      %v1245 = vor.u32 1.1754944e-38, %v1244
      %v1246 = vsel %vm1243, %v1245, %v1241
      %v1247 = vmul.f32 1.0, %v1246
      %v1248 = vrcp.pop %v1048
      %v1249 = vmul.f32 %v1048, %v1248
      %v1250 = vsub.f32 1.0, %v1249
      %v1251 = vmul.f32 %v1248, %v1250
      %v1252 = vadd.f32 %v1248, %v1251
      %vm1253 = vweird.f32 %v1048
      %vm1254 = vweird.f32 %v1248
      %vm1255 = vmor %vm1253, %vm1254
      %v1256 = vsel %vm1255, %v1248, %v1252
      %v1257 = vand.u32 2147483647, %v1048
      %vm1258 = vcmp.eq.f32.partialorder %v1257, 8.507059e+37
      %v1259 = vand.u32 %v1048, 2147483648
      %v1260 = vor.u32 1.1754944e-38, %v1259
      %v1261 = vsel %vm1258, %v1260, %v1256
      %v1262 = vmul.f32 1.0, %v1261
      %v1263 = vrcp.pop %v1049
      %v1264 = vmul.f32 %v1049, %v1263
      %v1265 = vsub.f32 1.0, %v1264
      %v1266 = vmul.f32 %v1263, %v1265
      %v1267 = vadd.f32 %v1263, %v1266
      %vm1268 = vweird.f32 %v1049
      %vm1269 = vweird.f32 %v1263
      %vm1270 = vmor %vm1268, %vm1269
      %v1271 = vsel %vm1270, %v1263, %v1267
      %v1272 = vand.u32 2147483647, %v1049
      %vm1273 = vcmp.eq.f32.partialorder %v1272, 8.507059e+37
      %v1274 = vand.u32 %v1049, 2147483648
      %v1275 = vor.u32 1.1754944e-38, %v1274
      %v1276 = vsel %vm1273, %v1275, %v1271
      %v1277 = vmul.f32 1.0, %v1276
      %v1278 = vrcp.pop %v1050
      %v1279 = vmul.f32 %v1050, %v1278
      %v1280 = vsub.f32 1.0, %v1279
      %v1281 = vmul.f32 %v1278, %v1280
      %v1282 = vadd.f32 %v1278, %v1281
      %vm1283 = vweird.f32 %v1050
      %vm1284 = vweird.f32 %v1278
      %vm1285 = vmor %vm1283, %vm1284
      %v1286 = vsel %vm1285, %v1278, %v1282
      %v1287 = vand.u32 2147483647, %v1050
      %vm1288 = vcmp.eq.f32.partialorder %v1287, 8.507059e+37
      %v1289 = vand.u32 %v1050, 2147483648
      %v1290 = vor.u32 1.1754944e-38, %v1289
      %v1291 = vsel %vm1288, %v1290, %v1286
      %v1292 = vmul.f32 1.0, %v1291
      %v1293 = vrcp.pop %v1051
      %v1294 = vmul.f32 %v1051, %v1293
      %v1295 = vsub.f32 1.0, %v1294
      %v1296 = vmul.f32 %v1293, %v1295
      %v1297 = vadd.f32 %v1293, %v1296
      %vm1298 = vweird.f32 %v1051
      %vm1299 = vweird.f32 %v1293
      %vm1300 = vmor %vm1298, %vm1299
      %v1301 = vsel %vm1300, %v1293, %v1297
      %v1302 = vand.u32 2147483647, %v1051
      %vm1303 = vcmp.eq.f32.partialorder %v1302, 8.507059e+37
      %v1304 = vand.u32 %v1051, 2147483648
      %v1305 = vor.u32 1.1754944e-38, %v1304
      %v1306 = vsel %vm1303, %v1305, %v1301
      %v1307 = vmul.f32 1.0, %v1306
      %v1308 = vrcp.pop %v1052
      %v1309 = vmul.f32 %v1052, %v1308
      %v1310 = vsub.f32 1.0, %v1309
      %v1311 = vmul.f32 %v1308, %v1310
      %v1312 = vadd.f32 %v1308, %v1311
      %vm1313 = vweird.f32 %v1052
      %vm1314 = vweird.f32 %v1308
      %vm1315 = vmor %vm1313, %vm1314
      %v1316 = vsel %vm1315, %v1308, %v1312
      %v1317 = vand.u32 2147483647, %v1052
      %vm1318 = vcmp.eq.f32.partialorder %v1317, 8.507059e+37
      %v1319 = vand.u32 %v1052, 2147483648
      %v1320 = vor.u32 1.1754944e-38, %v1319
      %v1321 = vsel %vm1318, %v1320, %v1316
      %v1322 = vmul.f32 1.0, %v1321
      %v1323 = vrcp.pop %v1053
      %v1324 = vmul.f32 %v1053, %v1323
      %v1325 = vsub.f32 1.0, %v1324
      %v1326 = vmul.f32 %v1323, %v1325
      %v1327 = vadd.f32 %v1323, %v1326
      %vm1328 = vweird.f32 %v1053
      %vm1329 = vweird.f32 %v1323
      %vm1330 = vmor %vm1328, %vm1329
      %v1331 = vsel %vm1330, %v1323, %v1327
      %v1332 = vand.u32 2147483647, %v1053
      %vm1333 = vcmp.eq.f32.partialorder %v1332, 8.507059e+37
      %v1334 = vand.u32 %v1053, 2147483648
      %v1335 = vor.u32 1.1754944e-38, %v1334
      %v1336 = vsel %vm1333, %v1335, %v1331
      %v1337 = vmul.f32 1.0, %v1336
      %v1338 = vrcp.pop %v1054
      %v1339 = vmul.f32 %v1054, %v1338
      %v1340 = vsub.f32 1.0, %v1339
      %v1341 = vmul.f32 %v1338, %v1340
      %v1342 = vadd.f32 %v1338, %v1341
      %vm1343 = vweird.f32 %v1054
      %vm1344 = vweird.f32 %v1338
      %vm1345 = vmor %vm1343, %vm1344
      %v1346 = vsel %vm1345, %v1338, %v1342
      %v1347 = vand.u32 2147483647, %v1054
      %vm1348 = vcmp.eq.f32.partialorder %v1347, 8.507059e+37
      %v1349 = vand.u32 %v1054, 2147483648
      %v1350 = vor.u32 1.1754944e-38, %v1349
      %v1351 = vsel %vm1348, %v1350, %v1346
      %v1352 = vmul.f32 1.0, %v1351
      %v1353 = vrcp.pop %v1055
      %v1354 = vmul.f32 %v1055, %v1353
      %v1355 = vsub.f32 1.0, %v1354
      %v1356 = vmul.f32 %v1353, %v1355
      %v1357 = vadd.f32 %v1353, %v1356
      %vm1358 = vweird.f32 %v1055
      %vm1359 = vweird.f32 %v1353
      %vm1360 = vmor %vm1358, %vm1359
      %v1361 = vsel %vm1360, %v1353, %v1357
      %v1362 = vand.u32 2147483647, %v1055
      %vm1363 = vcmp.eq.f32.partialorder %v1362, 8.507059e+37
      %v1364 = vand.u32 %v1055, 2147483648
      %v1365 = vor.u32 1.1754944e-38, %v1364
      %v1366 = vsel %vm1363, %v1365, %v1361
      %v1367 = vmul.f32 1.0, %v1366
      %v1368 = vrcp.pop %v1056
      %v1369 = vmul.f32 %v1056, %v1368
      %v1370 = vsub.f32 1.0, %v1369
      %v1371 = vmul.f32 %v1368, %v1370
      %v1372 = vadd.f32 %v1368, %v1371
      %vm1373 = vweird.f32 %v1056
      %vm1374 = vweird.f32 %v1368
      %vm1375 = vmor %vm1373, %vm1374
      %v1376 = vsel %vm1375, %v1368, %v1372
      %v1377 = vand.u32 2147483647, %v1056
      %vm1378 = vcmp.eq.f32.partialorder %v1377, 8.507059e+37
      %v1379 = vand.u32 %v1056, 2147483648
      %v1380 = vor.u32 1.1754944e-38, %v1379
      %v1381 = vsel %vm1378, %v1380, %v1376
      %v1382 = vmul.f32 1.0, %v1381
      %v1383 = vrcp.pop %v1057
      %v1384 = vmul.f32 %v1057, %v1383
      %v1385 = vsub.f32 1.0, %v1384
      %v1386 = vmul.f32 %v1383, %v1385
      %v1387 = vadd.f32 %v1383, %v1386
      %vm1388 = vweird.f32 %v1057
      %vm1389 = vweird.f32 %v1383
      %vm1390 = vmor %vm1388, %vm1389
      %v1391 = vsel %vm1390, %v1383, %v1387
      %v1392 = vand.u32 2147483647, %v1057
      %vm1393 = vcmp.eq.f32.partialorder %v1392, 8.507059e+37
      %v1394 = vand.u32 %v1057, 2147483648
      %v1395 = vor.u32 1.1754944e-38, %v1394
      %v1396 = vsel %vm1393, %v1395, %v1391
      %v1397 = vmul.f32 1.0, %v1396
      %v1398 = vrcp.pop %v1058
      %v1399 = vmul.f32 %v1058, %v1398
      %v1400 = vsub.f32 1.0, %v1399
      %v1401 = vmul.f32 %v1398, %v1400
      %v1402 = vadd.f32 %v1398, %v1401
      %vm1403 = vweird.f32 %v1058
      %vm1404 = vweird.f32 %v1398
      %vm1405 = vmor %vm1403, %vm1404
      %v1406 = vsel %vm1405, %v1398, %v1402
      %v1407 = vand.u32 2147483647, %v1058
      %vm1408 = vcmp.eq.f32.partialorder %v1407, 8.507059e+37
      %v1409 = vand.u32 %v1058, 2147483648
      %v1410 = vor.u32 1.1754944e-38, %v1409
      %v1411 = vsel %vm1408, %v1410, %v1406
      %v1412 = vmul.f32 1.0, %v1411
      %v1413 = vrcp.pop %v1059
      %v1414 = vmul.f32 %v1059, %v1413
      %v1415 = vsub.f32 1.0, %v1414
      %v1416 = vmul.f32 %v1413, %v1415
      %v1417 = vadd.f32 %v1413, %v1416
      %vm1418 = vweird.f32 %v1059
      %vm1419 = vweird.f32 %v1413
      %vm1420 = vmor %vm1418, %vm1419
      %v1421 = vsel %vm1420, %v1413, %v1417
      %v1422 = vand.u32 2147483647, %v1059
      %vm1423 = vcmp.eq.f32.partialorder %v1422, 8.507059e+37
      %v1424 = vand.u32 %v1059, 2147483648
      %v1425 = vor.u32 1.1754944e-38, %v1424
      %v1426 = vsel %vm1423, %v1425, %v1421
      %v1427 = vmul.f32 1.0, %v1426
      %v1428 = vrcp.pop %v1060
      %v1429 = vmul.f32 %v1060, %v1428
      %v1430 = vsub.f32 1.0, %v1429
      %v1431 = vmul.f32 %v1428, %v1430
      %v1432 = vadd.f32 %v1428, %v1431
      %vm1433 = vweird.f32 %v1060
      %vm1434 = vweird.f32 %v1428
      %vm1435 = vmor %vm1433, %vm1434
      %v1436 = vsel %vm1435, %v1428, %v1432
      %v1437 = vand.u32 2147483647, %v1060
      %vm1438 = vcmp.eq.f32.partialorder %v1437, 8.507059e+37
      %v1439 = vand.u32 %v1060, 2147483648
      %v1440 = vor.u32 1.1754944e-38, %v1439
      %v1441 = vsel %vm1438, %v1440, %v1436
      %v1442 = vmul.f32 1.0, %v1441
      %v1443 = vrcp.pop %v1061
      %v1444 = vmul.f32 %v1061, %v1443
      %v1445 = vsub.f32 1.0, %v1444
      %v1446 = vmul.f32 %v1443, %v1445
      %v1447 = vadd.f32 %v1443, %v1446
      %vm1448 = vweird.f32 %v1061
      %vm1449 = vweird.f32 %v1443
      %vm1450 = vmor %vm1448, %vm1449
      %v1451 = vsel %vm1450, %v1443, %v1447
      %v1452 = vand.u32 2147483647, %v1061
      %vm1453 = vcmp.eq.f32.partialorder %v1452, 8.507059e+37
      %v1454 = vand.u32 %v1061, 2147483648
      %v1455 = vor.u32 1.1754944e-38, %v1454
      %v1456 = vsel %vm1453, %v1455, %v1451
      %v1457 = vmul.f32 1.0, %v1456
      %v1458 = vrcp.pop %v1062
      %v1459 = vmul.f32 %v1062, %v1458
      %v1460 = vsub.f32 1.0, %v1459
      %v1461 = vmul.f32 %v1458, %v1460
      %v1462 = vadd.f32 %v1458, %v1461
      %vm1463 = vweird.f32 %v1062
      %vm1464 = vweird.f32 %v1458
      %vm1465 = vmor %vm1463, %vm1464
      %v1466 = vsel %vm1465, %v1458, %v1462
      %v1467 = vand.u32 2147483647, %v1062
      %vm1468 = vcmp.eq.f32.partialorder %v1467, 8.507059e+37
      %v1469 = vand.u32 %v1062, 2147483648
      %v1470 = vor.u32 1.1754944e-38, %v1469
      %v1471 = vsel %vm1468, %v1470, %v1466
      %v1472 = vmul.f32 1.0, %v1471
      %v1473 = vrcp.pop %v1063
      %v1474 = vmul.f32 %v1063, %v1473
      %v1475 = vsub.f32 1.0, %v1474
      %v1476 = vmul.f32 %v1473, %v1475
      %v1477 = vadd.f32 %v1473, %v1476
      %vm1478 = vweird.f32 %v1063
      %vm1479 = vweird.f32 %v1473
      %vm1480 = vmor %vm1478, %vm1479
      %v1481 = vsel %vm1480, %v1473, %v1477
      %v1482 = vand.u32 2147483647, %v1063
      %vm1483 = vcmp.eq.f32.partialorder %v1482, 8.507059e+37
      %v1484 = vand.u32 %v1063, 2147483648
      %v1485 = vor.u32 1.1754944e-38, %v1484
      %v1486 = vsel %vm1483, %v1485, %v1481
      %v1487 = vmul.f32 1.0, %v1486
      %v1488 = vrcp.pop %v1064
      %v1489 = vmul.f32 %v1064, %v1488
      %v1490 = vsub.f32 1.0, %v1489
      %v1491 = vmul.f32 %v1488, %v1490
      %v1492 = vadd.f32 %v1488, %v1491
      %vm1493 = vweird.f32 %v1064
      %vm1494 = vweird.f32 %v1488
      %vm1495 = vmor %vm1493, %vm1494
      %v1496 = vsel %vm1495, %v1488, %v1492
      %v1497 = vand.u32 2147483647, %v1064
      %vm1498 = vcmp.eq.f32.partialorder %v1497, 8.507059e+37
      %v1499 = vand.u32 %v1064, 2147483648
      %v1500 = vor.u32 1.1754944e-38, %v1499
      %v1501 = vsel %vm1498, %v1500, %v1496
      %v1502 = vmul.f32 1.0, %v1501
      %v1503 = vrcp.pop %v1065
      %v1504 = vmul.f32 %v1065, %v1503
      %v1505 = vsub.f32 1.0, %v1504
      %v1506 = vmul.f32 %v1503, %v1505
      %v1507 = vadd.f32 %v1503, %v1506
      %vm1508 = vweird.f32 %v1065
      %vm1509 = vweird.f32 %v1503
      %vm1510 = vmor %vm1508, %vm1509
      %v1511 = vsel %vm1510, %v1503, %v1507
      %v1512 = vand.u32 2147483647, %v1065
      %vm1513 = vcmp.eq.f32.partialorder %v1512, 8.507059e+37
      %v1514 = vand.u32 %v1065, 2147483648
      %v1515 = vor.u32 1.1754944e-38, %v1514
      %v1516 = vsel %vm1513, %v1515, %v1511
      %v1517 = vmul.f32 1.0, %v1516
      %v1518 = vrcp.pop %v1066
      %v1519 = vmul.f32 %v1066, %v1518
      %v1520 = vsub.f32 1.0, %v1519
      %v1521 = vmul.f32 %v1518, %v1520
      %v1522 = vadd.f32 %v1518, %v1521
      %vm1523 = vweird.f32 %v1066
      %vm1524 = vweird.f32 %v1518
      %vm1525 = vmor %vm1523, %vm1524
      %v1526 = vsel %vm1525, %v1518, %v1522
      %v1527 = vand.u32 2147483647, %v1066
      %vm1528 = vcmp.eq.f32.partialorder %v1527, 8.507059e+37
      %v1529 = vand.u32 %v1066, 2147483648
      %v1530 = vor.u32 1.1754944e-38, %v1529
      %v1531 = vsel %vm1528, %v1530, %v1526
      %v1532 = vmul.f32 1.0, %v1531
      %v1533 = vrcp.pop %v1067
      %v1534 = vmul.f32 %v1067, %v1533
      %v1535 = vsub.f32 1.0, %v1534
      %v1536 = vmul.f32 %v1533, %v1535
      %v1537 = vadd.f32 %v1533, %v1536
      %vm1538 = vweird.f32 %v1067
      %vm1539 = vweird.f32 %v1533
      %vm1540 = vmor %vm1538, %vm1539
      %v1541 = vsel %vm1540, %v1533, %v1537
      %v1542 = vand.u32 2147483647, %v1067
      %vm1543 = vcmp.eq.f32.partialorder %v1542, 8.507059e+37
      %v1544 = vand.u32 %v1067, 2147483648
      %v1545 = vor.u32 1.1754944e-38, %v1544
      %v1546 = vsel %vm1543, %v1545, %v1541
      %v1547 = vmul.f32 1.0, %v1546
      %v1548 = vmul.f32 %v908, %v1082
      %v1549 = vmul.f32 %v909, %v1097
      %v1550 = vmul.f32 %v910, %v1112
      %v1551 = vmul.f32 %v911, %v1127
      %v1552 = vmul.f32 %v912, %v1142
      %v1553 = vmul.f32 %v913, %v1157
      %v1554 = vmul.f32 %v914, %v1172
      %v1555 = vmul.f32 %v915, %v1187
      %v1556 = vmul.f32 %v916, %v1202
      %v1557 = vmul.f32 %v917, %v1217
      %v1558 = vmul.f32 %v918, %v1232
      %v1559 = vmul.f32 %v919, %v1247
      %v1560 = vmul.f32 %v920, %v1262
      %v1561 = vmul.f32 %v921, %v1277
      %v1562 = vmul.f32 %v922, %v1292
      %v1563 = vmul.f32 %v923, %v1307
      %v1564 = vmul.f32 %v924, %v1322
      %v1565 = vmul.f32 %v925, %v1337
      %v1566 = vmul.f32 %v926, %v1352
      %v1567 = vmul.f32 %v927, %v1367
      %v1568 = vmul.f32 %v928, %v1382
      %v1569 = vmul.f32 %v929, %v1397
      %v1570 = vmul.f32 %v930, %v1412
      %v1571 = vmul.f32 %v931, %v1427
      %v1572 = vmul.f32 %v932, %v1442
      %v1573 = vmul.f32 %v933, %v1457
      %v1574 = vmul.f32 %v934, %v1472
      %v1575 = vmul.f32 %v935, %v1487
      %v1576 = vmul.f32 %v936, %v1502
      %v1577 = vmul.f32 %v937, %v1517
      %v1578 = vmul.f32 %v938, %v1532
      %v1579 = vmul.f32 %v939, %v1547
      %v1580 = vld [vmem:[%s7] sm:$0x1]
      %1582 = vset.pattern.permute.xlu0 0
      %1583 = vperm.xlu0 %1582, %v468
      %v1584 = vpop.permute.xlu0 %1583
      %1586 = vset.pattern.permute.xlu0 0
      %1587 = vperm.xlu0 %1586, %v469
      %v1588 = vpop.permute.xlu0 %1587
      %1590 = vset.pattern.permute.xlu0 0
      %1591 = vperm.xlu0 %1590, %v470
      %v1592 = vpop.permute.xlu0 %1591
      %1594 = vset.pattern.permute.xlu0 0
      %1595 = vperm.xlu0 %1594, %v471
      %v1596 = vpop.permute.xlu0 %1595
      %1598 = vset.pattern.permute.xlu0 0
      %1599 = vperm.xlu0 %1598, %v472
      %v1600 = vpop.permute.xlu0 %1599
      %1602 = vset.pattern.permute.xlu0 0
      %1603 = vperm.xlu0 %1602, %v473
      %v1604 = vpop.permute.xlu0 %1603
      %1606 = vset.pattern.permute.xlu0 0
      %1607 = vperm.xlu0 %1606, %v474
      %v1608 = vpop.permute.xlu0 %1607
      %1610 = vset.pattern.permute.xlu0 0
      %1611 = vperm.xlu0 %1610, %v475
      %v1612 = vpop.permute.xlu0 %1611
      %1614 = vset.pattern.permute.xlu0 0
      %1615 = vperm.xlu0 %1614, %v476
      %v1616 = vpop.permute.xlu0 %1615
      %1618 = vset.pattern.permute.xlu0 0
      %1619 = vperm.xlu0 %1618, %v477
      %v1620 = vpop.permute.xlu0 %1619
      %1622 = vset.pattern.permute.xlu0 0
      %1623 = vperm.xlu0 %1622, %v478
      %v1624 = vpop.permute.xlu0 %1623
      %1626 = vset.pattern.permute.xlu0 0
      %1627 = vperm.xlu0 %1626, %v479
      %v1628 = vpop.permute.xlu0 %1627
      %1630 = vset.pattern.permute.xlu0 0
      %1631 = vperm.xlu0 %1630, %v480
      %v1632 = vpop.permute.xlu0 %1631
      %1634 = vset.pattern.permute.xlu0 0
      %1635 = vperm.xlu0 %1634, %v481
      %v1636 = vpop.permute.xlu0 %1635
      %1638 = vset.pattern.permute.xlu0 0
      %1639 = vperm.xlu0 %1638, %v482
      %v1640 = vpop.permute.xlu0 %1639
      %1642 = vset.pattern.permute.xlu0 0
      %1643 = vperm.xlu0 %1642, %v483
      %v1644 = vpop.permute.xlu0 %1643
      %1646 = vset.pattern.permute.xlu0 0
      %1647 = vperm.xlu0 %1646, %v484
      %v1648 = vpop.permute.xlu0 %1647
      %1650 = vset.pattern.permute.xlu0 0
      %1651 = vperm.xlu0 %1650, %v485
      %v1652 = vpop.permute.xlu0 %1651
      %1654 = vset.pattern.permute.xlu0 0
      %1655 = vperm.xlu0 %1654, %v486
      %v1656 = vpop.permute.xlu0 %1655
      %1658 = vset.pattern.permute.xlu0 0
      %1659 = vperm.xlu0 %1658, %v487
      %v1660 = vpop.permute.xlu0 %1659
      %1662 = vset.pattern.permute.xlu0 0
      %1663 = vperm.xlu0 %1662, %v488
      %v1664 = vpop.permute.xlu0 %1663
      %1666 = vset.pattern.permute.xlu0 0
      %1667 = vperm.xlu0 %1666, %v489
      %v1668 = vpop.permute.xlu0 %1667
      %1670 = vset.pattern.permute.xlu0 0
      %1671 = vperm.xlu0 %1670, %v490
      %v1672 = vpop.permute.xlu0 %1671
      %1674 = vset.pattern.permute.xlu0 0
      %1675 = vperm.xlu0 %1674, %v491
      %v1676 = vpop.permute.xlu0 %1675
      %1678 = vset.pattern.permute.xlu0 0
      %1679 = vperm.xlu0 %1678, %v492
      %v1680 = vpop.permute.xlu0 %1679
      %1682 = vset.pattern.permute.xlu0 0
      %1683 = vperm.xlu0 %1682, %v493
      %v1684 = vpop.permute.xlu0 %1683
      %1686 = vset.pattern.permute.xlu0 0
      %1687 = vperm.xlu0 %1686, %v494
      %v1688 = vpop.permute.xlu0 %1687
      %1690 = vset.pattern.permute.xlu0 0
      %1691 = vperm.xlu0 %1690, %v495
      %v1692 = vpop.permute.xlu0 %1691
      %1694 = vset.pattern.permute.xlu0 0
      %1695 = vperm.xlu0 %1694, %v496
      %v1696 = vpop.permute.xlu0 %1695
      %1698 = vset.pattern.permute.xlu0 0
      %1699 = vperm.xlu0 %1698, %v497
      %v1700 = vpop.permute.xlu0 %1699
      %1702 = vset.pattern.permute.xlu0 0
      %1703 = vperm.xlu0 %1702, %v498
      %v1704 = vpop.permute.xlu0 %1703
      %1706 = vset.pattern.permute.xlu0 0
      %1707 = vperm.xlu0 %1706, %v499
      %v1708 = vpop.permute.xlu0 %1707
      %vm1709 = vcmask 1046528
      %v1710 = vrot.slane %v1584, 1
      %v1711 = vrot.slane %v1588, 1
      %v1712 = vsel %vm1709, %v1710, %v1711
      %v1713 = vrot.slane %v1592, 1
      %v1714 = vsel %vm1709, %v1711, %v1713
      %v1715 = vrot.slane %v1596, 1
      %v1716 = vsel %vm1709, %v1713, %v1715
      %v1717 = vrot.slane %v1600, 1
      %v1718 = vsel %vm1709, %v1715, %v1717
      %v1719 = vrot.slane %v1604, 1
      %v1720 = vsel %vm1709, %v1717, %v1719
      %v1721 = vrot.slane %v1608, 1
      %v1722 = vsel %vm1709, %v1719, %v1721
      %v1723 = vrot.slane %v1612, 1
      %v1724 = vsel %vm1709, %v1721, %v1723
      %v1725 = vrot.slane %v1616, 1
      %v1726 = vsel %vm1709, %v1723, %v1725
      %v1727 = vrot.slane %v1620, 1
      %v1728 = vsel %vm1709, %v1725, %v1727
      %v1729 = vrot.slane %v1624, 1
      %v1730 = vsel %vm1709, %v1727, %v1729
      %v1731 = vrot.slane %v1628, 1
      %v1732 = vsel %vm1709, %v1729, %v1731
      %v1733 = vrot.slane %v1632, 1
      %v1734 = vsel %vm1709, %v1731, %v1733
      %v1735 = vrot.slane %v1636, 1
      %v1736 = vsel %vm1709, %v1733, %v1735
      %v1737 = vrot.slane %v1640, 1
      %v1738 = vsel %vm1709, %v1735, %v1737
      %v1739 = vrot.slane %v1644, 1
      %v1740 = vsel %vm1709, %v1737, %v1739
      %v1741 = vrot.slane %v1648, 1
      %v1742 = vsel %vm1709, %v1739, %v1741
      %v1743 = vrot.slane %v1652, 1
      %v1744 = vsel %vm1709, %v1741, %v1743
      %v1745 = vrot.slane %v1656, 1
      %v1746 = vsel %vm1709, %v1743, %v1745
      %v1747 = vrot.slane %v1660, 1
      %v1748 = vsel %vm1709, %v1745, %v1747
      %v1749 = vrot.slane %v1664, 1
      %v1750 = vsel %vm1709, %v1747, %v1749
      %v1751 = vrot.slane %v1668, 1
      %v1752 = vsel %vm1709, %v1749, %v1751
      %v1753 = vrot.slane %v1672, 1
      %v1754 = vsel %vm1709, %v1751, %v1753
      %v1755 = vrot.slane %v1676, 1
      %v1756 = vsel %vm1709, %v1753, %v1755
      %v1757 = vrot.slane %v1680, 1
      %v1758 = vsel %vm1709, %v1755, %v1757
      %v1759 = vrot.slane %v1684, 1
      %v1760 = vsel %vm1709, %v1757, %v1759
      %v1761 = vrot.slane %v1688, 1
      %v1762 = vsel %vm1709, %v1759, %v1761
      %v1763 = vrot.slane %v1692, 1
      %v1764 = vsel %vm1709, %v1761, %v1763
      %v1765 = vrot.slane %v1696, 1
      %v1766 = vsel %vm1709, %v1763, %v1765
      %v1767 = vrot.slane %v1700, 1
      %v1768 = vsel %vm1709, %v1765, %v1767
      %v1769 = vrot.slane %v1704, 1
      %v1770 = vsel %vm1709, %v1767, %v1769
      %v1771 = vrot.slane %v1708, 1
      %v1772 = vsel %vm1709, %v1769, %v1771
      %v1806 = vmul.f32 %v1710, 0.0
      %v1807 = vmul.f32 %v1712, 0.0
      %v1808 = vmul.f32 %v1714, 0.0
      %v1809 = vmul.f32 %v1548, %v1716
      %v1810 = vmul.f32 %v1549, %v1718
      %v1811 = vmul.f32 %v1550, %v1720
      %v1812 = vmul.f32 %v1551, %v1722
      %v1813 = vmul.f32 %v1552, %v1724
      %v1814 = vmul.f32 %v1553, %v1726
      %v1815 = vmul.f32 %v1554, %v1728
      %v1816 = vmul.f32 %v1555, %v1730
      %v1817 = vmul.f32 %v1556, %v1732
      %v1818 = vmul.f32 %v1557, %v1734
      %v1819 = vmul.f32 %v1558, %v1736
      %v1820 = vmul.f32 %v1559, %v1738
      %v1821 = vmul.f32 %v1560, %v1740
      %v1822 = vmul.f32 %v1561, %v1742
      %v1823 = vmul.f32 %v1562, %v1744
      %v1824 = vmul.f32 %v1563, %v1746
      %v1825 = vmul.f32 %v1564, %v1748
      %v1826 = vmul.f32 %v1565, %v1750
      %v1827 = vmul.f32 %v1566, %v1752
      %v1828 = vmul.f32 %v1567, %v1754
      %v1829 = vmul.f32 %v1568, %v1756
      %v1830 = vmul.f32 %v1569, %v1758
      %v1831 = vmul.f32 %v1570, %v1760
      %v1832 = vmul.f32 %v1571, %v1762
      %v1833 = vmul.f32 %v1572, %v1764
      %v1834 = vmul.f32 %v1573, %v1766
      %v1835 = vmul.f32 %v1574, %v1768
      %v1836 = vmul.f32 %v1575, %v1770
      %v1837 = vmul.f32 %v1576, %v1772
      %v1838 = vmul.f32 %v1577, %v1771
      %v1839 = vld [vmem:[%s6] sm:$0xff]
      %v1840 = vld [vmem:[%s6 + $0x8] sm:$0xff]
      %v1841 = vld [vmem:[%s6 + $0x10] sm:$0xff]
      %v1842 = vld [vmem:[%s6 + $0x18] sm:$0xff]
      %v1843 = vld [vmem:[%s6 + $0x20] sm:$0xff]
      %v1844 = vld [vmem:[%s6 + $0x28] sm:$0xff]
      %v1845 = vld [vmem:[%s6 + $0x30] sm:$0xff]
      %v1846 = vld [vmem:[%s6 + $0x38] sm:$0xff]
      %s1847 = scalar_lea.vmem %s6, 64
      %v1848 = vld [vmem:[%s1847] sm:$0xff]
      %v1849 = vld [vmem:[%s1847 + $0x8] sm:$0xff]
      %v1850 = vld [vmem:[%s1847 + $0x10] sm:$0xff]
      %v1851 = vld [vmem:[%s1847 + $0x18] sm:$0xff]
      %v1852 = vld [vmem:[%s1847 + $0x20] sm:$0xff]
      %v1853 = vld [vmem:[%s1847 + $0x28] sm:$0xff]
      %v1854 = vld [vmem:[%s1847 + $0x30] sm:$0xff]
      %v1855 = vld [vmem:[%s1847 + $0x38] sm:$0xff]
      %v1857 = vsel %vm535, 0.0, 0
      %v1860 = vsel %vm535, %v1548, 0
      %v1863 = vsel %vm535, %v1549, 0
      %v1866 = vsel %vm535, %v1550, 0
      %v1869 = vsel %vm535, %v1551, 0
      %v1872 = vsel %vm535, %v1552, 0
      %v1875 = vsel %vm535, %v1553, 0
      %v1878 = vsel %vm535, %v1554, 0
      %v1881 = vsel %vm535, %v1555, 0
      %v1884 = vsel %vm535, %v1556, 0
      %v1887 = vsel %vm535, %v1557, 0
      %v1890 = vsel %vm535, %v1558, 0
      %v1893 = vsel %vm535, %v1559, 0
      %v1896 = vsel %vm535, %v1560, 0
      %v1899 = vsel %vm535, %v1561, 0
      %v1902 = vsel %vm535, %v1562, 0
      %v1905 = vsel %vm535, %v1563, 0
      %v1908 = vsel %vm535, %v1564, 0
      %v1911 = vsel %vm535, %v1565, 0
      %v1914 = vsel %vm535, %v1566, 0
      %v1917 = vsel %vm535, %v1567, 0
      %v1920 = vsel %vm535, %v1568, 0
      %v1923 = vsel %vm535, %v1569, 0
      %v1926 = vsel %vm535, %v1570, 0
      %v1929 = vsel %vm535, %v1571, 0
      %v1932 = vsel %vm535, %v1572, 0
      %v1935 = vsel %vm535, %v1573, 0
      %v1938 = vsel %vm535, %v1574, 0
      %v1941 = vsel %vm535, %v1575, 0
      %v1944 = vsel %vm535, %v1576, 0
      %v1947 = vsel %vm535, %v1577, 0
      %1949 = vmatpush.msra.mxu0 0.0
      %1950 = vmatpush.msra.mxu0 0.0
      %1951 = vmatpush.msra.mxu0 0.0
      %1952 = vmatpush.msra.mxu0 0.0
      %1953 = vmatpush.msra.mxu0 0.0
      %1954 = vmatpush.msra.mxu0 0.0
      %1955 = vmatpush.msra.mxu0 0.0
      %1956 = vmatpush.msra.mxu0 0.0
      %1957 = vmatpush.msra.mxu0 %v1855
      %1958 = vmatpush.msra.mxu0 %v1854
      %1959 = vmatpush.msra.mxu0 %v1853
      %1960 = vmatpush.msra.mxu0 %v1852
      %1961 = vmatpush.msra.mxu0 %v1851
      %1962 = vmatpush.msra.mxu0 %v1850
      %1963 = vmatpush.msra.mxu0 %v1849
      %1964 = vmatpush.msra.mxu0 %v1848
      %1965 = vmatmul.f32.gmra.mxu0 %v1857
      %v1966 = vpop.f32.mrf.mxu0
      %v1967 = vadd.f32 0.0, %v1966
      %1968 = vmatmul.f32.gmra.mxu0 %v1857
      %v1969 = vpop.f32.mrf.mxu0
      %v1970 = vadd.f32 0.0, %v1969
      %1971 = vmatmul.f32.gmra.mxu0 %v1860
      %v1972 = vpop.f32.mrf.mxu0
      %v1973 = vadd.f32 0.0, %v1972
      %1974 = vmatmul.f32.gmra.mxu0 %v1863
      %v1975 = vpop.f32.mrf.mxu0
      %v1976 = vadd.f32 0.0, %v1975
      %1977 = vmatmul.f32.gmra.mxu0 %v1866
      %v1978 = vpop.f32.mrf.mxu0
      %v1979 = vadd.f32 0.0, %v1978
      %1980 = vmatmul.f32.gmra.mxu0 %v1869
      %v1981 = vpop.f32.mrf.mxu0
      %v1982 = vadd.f32 0.0, %v1981
      %1983 = vmatmul.f32.gmra.mxu0 %v1872
      %v1984 = vpop.f32.mrf.mxu0
      %v1985 = vadd.f32 0.0, %v1984
      %1986 = vmatmul.f32.gmra.mxu0 %v1875
      %v1987 = vpop.f32.mrf.mxu0
      %v1988 = vadd.f32 0.0, %v1987
      %1989 = vmatmul.f32.gmra.mxu0 %v1878
      %v1990 = vpop.f32.mrf.mxu0
      %v1991 = vadd.f32 0.0, %v1990
      %1992 = vmatmul.f32.gmra.mxu0 %v1881
      %v1993 = vpop.f32.mrf.mxu0
      %v1994 = vadd.f32 0.0, %v1993
      %1995 = vmatmul.f32.gmra.mxu0 %v1884
      %v1996 = vpop.f32.mrf.mxu0
      %v1997 = vadd.f32 0.0, %v1996
      %1998 = vmatmul.f32.gmra.mxu0 %v1887
      %v1999 = vpop.f32.mrf.mxu0
      %v2000 = vadd.f32 0.0, %v1999
      %2001 = vmatmul.f32.gmra.mxu0 %v1890
      %v2002 = vpop.f32.mrf.mxu0
      %v2003 = vadd.f32 0.0, %v2002
      %2004 = vmatmul.f32.gmra.mxu0 %v1893
      %v2005 = vpop.f32.mrf.mxu0
      %v2006 = vadd.f32 0.0, %v2005
      %2007 = vmatmul.f32.gmra.mxu0 %v1896
      %v2008 = vpop.f32.mrf.mxu0
      %v2009 = vadd.f32 0.0, %v2008
      %2010 = vmatmul.f32.gmra.mxu0 %v1899
      %v2011 = vpop.f32.mrf.mxu0
      %v2012 = vadd.f32 0.0, %v2011
      %2013 = vmatmul.f32.gmra.mxu0 %v1902
      %v2014 = vpop.f32.mrf.mxu0
      %v2015 = vadd.f32 0.0, %v2014
      %2016 = vmatmul.f32.gmra.mxu0 %v1905
      %v2017 = vpop.f32.mrf.mxu0
      %v2018 = vadd.f32 0.0, %v2017
      %2019 = vmatmul.f32.gmra.mxu0 %v1908
      %v2020 = vpop.f32.mrf.mxu0
      %v2021 = vadd.f32 0.0, %v2020
      %2022 = vmatmul.f32.gmra.mxu0 %v1911
      %v2023 = vpop.f32.mrf.mxu0
      %v2024 = vadd.f32 0.0, %v2023
      %2025 = vmatmul.f32.gmra.mxu0 %v1914
      %v2026 = vpop.f32.mrf.mxu0
      %v2027 = vadd.f32 0.0, %v2026
      %2028 = vmatmul.f32.gmra.mxu0 %v1917
      %v2029 = vpop.f32.mrf.mxu0
      %v2030 = vadd.f32 0.0, %v2029
      %2031 = vmatmul.f32.gmra.mxu0 %v1920
      %v2032 = vpop.f32.mrf.mxu0
      %v2033 = vadd.f32 0.0, %v2032
      %2034 = vmatmul.f32.gmra.mxu0 %v1923
      %v2035 = vpop.f32.mrf.mxu0
      %v2036 = vadd.f32 0.0, %v2035
      %2037 = vmatmul.f32.gmra.mxu0 %v1926
      %v2038 = vpop.f32.mrf.mxu0
      %v2039 = vadd.f32 0.0, %v2038
      %2040 = vmatmul.f32.gmra.mxu0 %v1929
      %v2041 = vpop.f32.mrf.mxu0
      %v2042 = vadd.f32 0.0, %v2041
      %2043 = vmatmul.f32.gmra.mxu0 %v1932
      %v2044 = vpop.f32.mrf.mxu0
      %v2045 = vadd.f32 0.0, %v2044
      %2046 = vmatmul.f32.gmra.mxu0 %v1935
      %v2047 = vpop.f32.mrf.mxu0
      %v2048 = vadd.f32 0.0, %v2047
      %2049 = vmatmul.f32.gmra.mxu0 %v1938
      %v2050 = vpop.f32.mrf.mxu0
      %v2051 = vadd.f32 0.0, %v2050
      %2052 = vmatmul.f32.gmra.mxu0 %v1941
      %v2053 = vpop.f32.mrf.mxu0
      %v2054 = vadd.f32 0.0, %v2053
      %2055 = vmatmul.f32.gmra.mxu0 %v1944
      %v2056 = vpop.f32.mrf.mxu0
      %v2057 = vadd.f32 0.0, %v2056
      %2058 = vmatmul.f32.gmra.mxu0 %v1947
      %v2059 = vpop.f32.mrf.mxu0
      %v2060 = vadd.f32 0.0, %v2059
      %2061 = vdwg.mxu0
      %vm2095 = vcmask 1040384
      %v2096 = vrot.slane %v1806, 7
      %v2097 = vrot.slane %v1807, 7
      %v2098 = vsel %vm2095, %v2096, %v2097
      %v2099 = vrot.slane %v1808, 7
      %v2100 = vsel %vm2095, %v2097, %v2099
      %v2101 = vrot.slane %v1809, 7
      %v2102 = vsel %vm2095, %v2099, %v2101
      %v2103 = vrot.slane %v1810, 7
      %v2104 = vsel %vm2095, %v2101, %v2103
      %v2105 = vrot.slane %v1811, 7
      %v2106 = vsel %vm2095, %v2103, %v2105
      %v2107 = vrot.slane %v1812, 7
      %v2108 = vsel %vm2095, %v2105, %v2107
      %v2109 = vrot.slane %v1813, 7
      %v2110 = vsel %vm2095, %v2107, %v2109
      %v2111 = vrot.slane %v1814, 7
      %v2112 = vsel %vm2095, %v2109, %v2111
      %v2113 = vrot.slane %v1815, 7
      %v2114 = vsel %vm2095, %v2111, %v2113
      %v2115 = vrot.slane %v1816, 7
      %v2116 = vsel %vm2095, %v2113, %v2115
      %v2117 = vrot.slane %v1817, 7
      %v2118 = vsel %vm2095, %v2115, %v2117
      %v2119 = vrot.slane %v1818, 7
      %v2120 = vsel %vm2095, %v2117, %v2119
      %v2121 = vrot.slane %v1819, 7
      %v2122 = vsel %vm2095, %v2119, %v2121
      %v2123 = vrot.slane %v1820, 7
      %v2124 = vsel %vm2095, %v2121, %v2123
      %v2125 = vrot.slane %v1821, 7
      %v2126 = vsel %vm2095, %v2123, %v2125
      %v2127 = vrot.slane %v1822, 7
      %v2128 = vsel %vm2095, %v2125, %v2127
      %v2129 = vrot.slane %v1823, 7
      %v2130 = vsel %vm2095, %v2127, %v2129
      %v2131 = vrot.slane %v1824, 7
      %v2132 = vsel %vm2095, %v2129, %v2131
      %v2133 = vrot.slane %v1825, 7
      %v2134 = vsel %vm2095, %v2131, %v2133
      %v2135 = vrot.slane %v1826, 7
      %v2136 = vsel %vm2095, %v2133, %v2135
      %v2137 = vrot.slane %v1827, 7
      %v2138 = vsel %vm2095, %v2135, %v2137
      %v2139 = vrot.slane %v1828, 7
      %v2140 = vsel %vm2095, %v2137, %v2139
      %v2141 = vrot.slane %v1829, 7
      %v2142 = vsel %vm2095, %v2139, %v2141
      %v2143 = vrot.slane %v1830, 7
      %v2144 = vsel %vm2095, %v2141, %v2143
      %v2145 = vrot.slane %v1831, 7
      %v2146 = vsel %vm2095, %v2143, %v2145
      %v2147 = vrot.slane %v1832, 7
      %v2148 = vsel %vm2095, %v2145, %v2147
      %v2149 = vrot.slane %v1833, 7
      %v2150 = vsel %vm2095, %v2147, %v2149
      %v2151 = vrot.slane %v1834, 7
      %v2152 = vsel %vm2095, %v2149, %v2151
      %v2153 = vrot.slane %v1835, 7
      %v2154 = vsel %vm2095, %v2151, %v2153
      %v2155 = vrot.slane %v1836, 7
      %v2156 = vsel %vm2095, %v2153, %v2155
      %v2157 = vrot.slane %v1837, 7
      %v2158 = vsel %vm2095, %v2155, %v2157
      %v2159 = vrot.slane %v1838, 7
      %v2160 = vsel %vm2095, %v2157, %v2159
      %v2161 = vsel %vm535, %v2098, 0
      %v2163 = vsel %vm535, %v2100, 0
      %v2165 = vsel %vm535, %v2102, 0
      %v2167 = vsel %vm535, %v2104, 0
      %v2169 = vsel %vm535, %v2106, 0
      %v2171 = vsel %vm535, %v2108, 0
      %v2173 = vsel %vm535, %v2110, 0
      %v2175 = vsel %vm535, %v2112, 0
      %v2177 = vsel %vm535, %v2114, 0
      %v2179 = vsel %vm535, %v2116, 0
      %v2181 = vsel %vm535, %v2118, 0
      %v2183 = vsel %vm535, %v2120, 0
      %v2185 = vsel %vm535, %v2122, 0
      %v2187 = vsel %vm535, %v2124, 0
      %v2189 = vsel %vm535, %v2126, 0
      %v2191 = vsel %vm535, %v2128, 0
      %v2193 = vsel %vm535, %v2130, 0
      %v2195 = vsel %vm535, %v2132, 0
      %v2197 = vsel %vm535, %v2134, 0
      %v2199 = vsel %vm535, %v2136, 0
      %v2201 = vsel %vm535, %v2138, 0
      %v2203 = vsel %vm535, %v2140, 0
      %v2205 = vsel %vm535, %v2142, 0
      %v2207 = vsel %vm535, %v2144, 0
      %v2209 = vsel %vm535, %v2146, 0
      %v2211 = vsel %vm535, %v2148, 0
      %v2213 = vsel %vm535, %v2150, 0
      %v2215 = vsel %vm535, %v2152, 0
      %v2217 = vsel %vm535, %v2154, 0
      %v2219 = vsel %vm535, %v2156, 0
      %v2221 = vsel %vm535, %v2158, 0
      %v2223 = vsel %vm535, %v2160, 0
      %2225 = vmatpush.msra.mxu0 0.0
      %2226 = vmatpush.msra.mxu0 0.0
      %2227 = vmatpush.msra.mxu0 0.0
      %2228 = vmatpush.msra.mxu0 0.0
      %2229 = vmatpush.msra.mxu0 0.0
      %2230 = vmatpush.msra.mxu0 0.0
      %2231 = vmatpush.msra.mxu0 0.0
      %2232 = vmatpush.msra.mxu0 0.0
      %2233 = vmatpush.msra.mxu0 %v1846
      %2234 = vmatpush.msra.mxu0 %v1845
      %2235 = vmatpush.msra.mxu0 %v1844
      %2236 = vmatpush.msra.mxu0 %v1843
      %2237 = vmatpush.msra.mxu0 %v1842
      %2238 = vmatpush.msra.mxu0 %v1841
      %2239 = vmatpush.msra.mxu0 %v1840
      %2240 = vmatpush.msra.mxu0 %v1839
      %2241 = vmatmul.f32.gmra.mxu0 %v2161
      %v2242 = vpop.f32.mrf.mxu0
      %v2243 = vadd.f32 %v1967, %v2242
      %2244 = vmatmul.f32.gmra.mxu0 %v2163
      %v2245 = vpop.f32.mrf.mxu0
      %v2246 = vadd.f32 %v1970, %v2245
      %2247 = vmatmul.f32.gmra.mxu0 %v2165
      %v2248 = vpop.f32.mrf.mxu0
      %v2249 = vadd.f32 %v1973, %v2248
      %2250 = vmatmul.f32.gmra.mxu0 %v2167
      %v2251 = vpop.f32.mrf.mxu0
      %v2252 = vadd.f32 %v1976, %v2251
      %2253 = vmatmul.f32.gmra.mxu0 %v2169
      %v2254 = vpop.f32.mrf.mxu0
      %v2255 = vadd.f32 %v1979, %v2254
      %2256 = vmatmul.f32.gmra.mxu0 %v2171
      %v2257 = vpop.f32.mrf.mxu0
      %v2258 = vadd.f32 %v1982, %v2257
      %2259 = vmatmul.f32.gmra.mxu0 %v2173
      %v2260 = vpop.f32.mrf.mxu0
      %v2261 = vadd.f32 %v1985, %v2260
      %2262 = vmatmul.f32.gmra.mxu0 %v2175
      %v2263 = vpop.f32.mrf.mxu0
      %v2264 = vadd.f32 %v1988, %v2263
      %2265 = vmatmul.f32.gmra.mxu0 %v2177
      %v2266 = vpop.f32.mrf.mxu0
      %v2267 = vadd.f32 %v1991, %v2266
      %2268 = vmatmul.f32.gmra.mxu0 %v2179
      %v2269 = vpop.f32.mrf.mxu0
      %v2270 = vadd.f32 %v1994, %v2269
      %2271 = vmatmul.f32.gmra.mxu0 %v2181
      %v2272 = vpop.f32.mrf.mxu0
      %v2273 = vadd.f32 %v1997, %v2272
      %2274 = vmatmul.f32.gmra.mxu0 %v2183
      %v2275 = vpop.f32.mrf.mxu0
      %v2276 = vadd.f32 %v2000, %v2275
      %2277 = vmatmul.f32.gmra.mxu0 %v2185
      %v2278 = vpop.f32.mrf.mxu0
      %v2279 = vadd.f32 %v2003, %v2278
      %2280 = vmatmul.f32.gmra.mxu0 %v2187
      %v2281 = vpop.f32.mrf.mxu0
      %v2282 = vadd.f32 %v2006, %v2281
      %2283 = vmatmul.f32.gmra.mxu0 %v2189
      %v2284 = vpop.f32.mrf.mxu0
      %v2285 = vadd.f32 %v2009, %v2284
      %2286 = vmatmul.f32.gmra.mxu0 %v2191
      %v2287 = vpop.f32.mrf.mxu0
      %v2288 = vadd.f32 %v2012, %v2287
      %2289 = vmatmul.f32.gmra.mxu0 %v2193
      %v2290 = vpop.f32.mrf.mxu0
      %v2291 = vadd.f32 %v2015, %v2290
      %2292 = vmatmul.f32.gmra.mxu0 %v2195
      %v2293 = vpop.f32.mrf.mxu0
      %v2294 = vadd.f32 %v2018, %v2293
      %2295 = vmatmul.f32.gmra.mxu0 %v2197
      %v2296 = vpop.f32.mrf.mxu0
      %v2297 = vadd.f32 %v2021, %v2296
      %2298 = vmatmul.f32.gmra.mxu0 %v2199
      %v2299 = vpop.f32.mrf.mxu0
      %v2300 = vadd.f32 %v2024, %v2299
      %2301 = vmatmul.f32.gmra.mxu0 %v2201
      %v2302 = vpop.f32.mrf.mxu0
      %v2303 = vadd.f32 %v2027, %v2302
      %2304 = vmatmul.f32.gmra.mxu0 %v2203
      %v2305 = vpop.f32.mrf.mxu0
      %v2306 = vadd.f32 %v2030, %v2305
      %2307 = vmatmul.f32.gmra.mxu0 %v2205
      %v2308 = vpop.f32.mrf.mxu0
      %v2309 = vadd.f32 %v2033, %v2308
      %2310 = vmatmul.f32.gmra.mxu0 %v2207
      %v2311 = vpop.f32.mrf.mxu0
      %v2312 = vadd.f32 %v2036, %v2311
      %2313 = vmatmul.f32.gmra.mxu0 %v2209
      %v2314 = vpop.f32.mrf.mxu0
      %v2315 = vadd.f32 %v2039, %v2314
      %2316 = vmatmul.f32.gmra.mxu0 %v2211
      %v2317 = vpop.f32.mrf.mxu0
      %v2318 = vadd.f32 %v2042, %v2317
      %2319 = vmatmul.f32.gmra.mxu0 %v2213
      %v2320 = vpop.f32.mrf.mxu0
      %v2321 = vadd.f32 %v2045, %v2320
      %2322 = vmatmul.f32.gmra.mxu0 %v2215
      %v2323 = vpop.f32.mrf.mxu0
      %v2324 = vadd.f32 %v2048, %v2323
      %2325 = vmatmul.f32.gmra.mxu0 %v2217
      %v2326 = vpop.f32.mrf.mxu0
      %v2327 = vadd.f32 %v2051, %v2326
      %2328 = vmatmul.f32.gmra.mxu0 %v2219
      %v2329 = vpop.f32.mrf.mxu0
      %v2330 = vadd.f32 %v2054, %v2329
      %2331 = vmatmul.f32.gmra.mxu0 %v2221
      %v2332 = vpop.f32.mrf.mxu0
      %v2333 = vadd.f32 %v2057, %v2332
      %2334 = vmatmul.f32.gmra.mxu0 %v2223
      %v2335 = vpop.f32.mrf.mxu0
      %v2336 = vadd.f32 %v2060, %v2335
      %2337 = vdwg.mxu0
      %2339 = vset.pattern.permute.xlu0 0
      %2340 = vperm.xlu0 %2339, %v501
      %v2341 = vpop.permute.xlu0 %2340
      %2343 = vset.pattern.permute.xlu0 0
      %2344 = vperm.xlu0 %2343, %v502
      %v2345 = vpop.permute.xlu0 %2344
      %2347 = vset.pattern.permute.xlu0 0
      %2348 = vperm.xlu0 %2347, %v503
      %v2349 = vpop.permute.xlu0 %2348
      %2351 = vset.pattern.permute.xlu0 0
      %2352 = vperm.xlu0 %2351, %v504
      %v2353 = vpop.permute.xlu0 %2352
      %2355 = vset.pattern.permute.xlu0 0
      %2356 = vperm.xlu0 %2355, %v505
      %v2357 = vpop.permute.xlu0 %2356
      %2359 = vset.pattern.permute.xlu0 0
      %2360 = vperm.xlu0 %2359, %v506
      %v2361 = vpop.permute.xlu0 %2360
      %2363 = vset.pattern.permute.xlu0 0
      %2364 = vperm.xlu0 %2363, %v507
      %v2365 = vpop.permute.xlu0 %2364
      %2367 = vset.pattern.permute.xlu0 0
      %2368 = vperm.xlu0 %2367, %v508
      %v2369 = vpop.permute.xlu0 %2368
      %2371 = vset.pattern.permute.xlu0 0
      %2372 = vperm.xlu0 %2371, %v509
      %v2373 = vpop.permute.xlu0 %2372
      %2375 = vset.pattern.permute.xlu0 0
      %2376 = vperm.xlu0 %2375, %v510
      %v2377 = vpop.permute.xlu0 %2376
      %2379 = vset.pattern.permute.xlu0 0
      %2380 = vperm.xlu0 %2379, %v511
      %v2381 = vpop.permute.xlu0 %2380
      %2383 = vset.pattern.permute.xlu0 0
      %2384 = vperm.xlu0 %2383, %v512
      %v2385 = vpop.permute.xlu0 %2384
      %2387 = vset.pattern.permute.xlu0 0
      %2388 = vperm.xlu0 %2387, %v513
      %v2389 = vpop.permute.xlu0 %2388
      %2391 = vset.pattern.permute.xlu0 0
      %2392 = vperm.xlu0 %2391, %v514
      %v2393 = vpop.permute.xlu0 %2392
      %2395 = vset.pattern.permute.xlu0 0
      %2396 = vperm.xlu0 %2395, %v515
      %v2397 = vpop.permute.xlu0 %2396
      %2399 = vset.pattern.permute.xlu0 0
      %2400 = vperm.xlu0 %2399, %v516
      %v2401 = vpop.permute.xlu0 %2400
      %2403 = vset.pattern.permute.xlu0 0
      %2404 = vperm.xlu0 %2403, %v517
      %v2405 = vpop.permute.xlu0 %2404
      %2407 = vset.pattern.permute.xlu0 0
      %2408 = vperm.xlu0 %2407, %v518
      %v2409 = vpop.permute.xlu0 %2408
      %2411 = vset.pattern.permute.xlu0 0
      %2412 = vperm.xlu0 %2411, %v519
      %v2413 = vpop.permute.xlu0 %2412
      %2415 = vset.pattern.permute.xlu0 0
      %2416 = vperm.xlu0 %2415, %v520
      %v2417 = vpop.permute.xlu0 %2416
      %2419 = vset.pattern.permute.xlu0 0
      %2420 = vperm.xlu0 %2419, %v521
      %v2421 = vpop.permute.xlu0 %2420
      %2423 = vset.pattern.permute.xlu0 0
      %2424 = vperm.xlu0 %2423, %v522
      %v2425 = vpop.permute.xlu0 %2424
      %2427 = vset.pattern.permute.xlu0 0
      %2428 = vperm.xlu0 %2427, %v523
      %v2429 = vpop.permute.xlu0 %2428
      %2431 = vset.pattern.permute.xlu0 0
      %2432 = vperm.xlu0 %2431, %v524
      %v2433 = vpop.permute.xlu0 %2432
      %2435 = vset.pattern.permute.xlu0 0
      %2436 = vperm.xlu0 %2435, %v525
      %v2437 = vpop.permute.xlu0 %2436
      %2439 = vset.pattern.permute.xlu0 0
      %2440 = vperm.xlu0 %2439, %v526
      %v2441 = vpop.permute.xlu0 %2440
      %2443 = vset.pattern.permute.xlu0 0
      %2444 = vperm.xlu0 %2443, %v527
      %v2445 = vpop.permute.xlu0 %2444
      %2447 = vset.pattern.permute.xlu0 0
      %2448 = vperm.xlu0 %2447, %v528
      %v2449 = vpop.permute.xlu0 %2448
      %2451 = vset.pattern.permute.xlu0 0
      %2452 = vperm.xlu0 %2451, %v529
      %v2453 = vpop.permute.xlu0 %2452
      %2455 = vset.pattern.permute.xlu0 0
      %2456 = vperm.xlu0 %2455, %v530
      %v2457 = vpop.permute.xlu0 %2456
      %2459 = vset.pattern.permute.xlu0 0
      %2460 = vperm.xlu0 %2459, %v531
      %v2461 = vpop.permute.xlu0 %2460
      %2463 = vset.pattern.permute.xlu0 0
      %2464 = vperm.xlu0 %2463, %v532
      %v2465 = vpop.permute.xlu0 %2464
      %v2466 = vrot.slane %v2341, 7
      %v2467 = vrot.slane %v2345, 7
      %v2468 = vsel %vm2095, %v2466, %v2467
      %v2469 = vrot.slane %v2349, 7
      %v2470 = vsel %vm2095, %v2467, %v2469
      %v2471 = vrot.slane %v2353, 7
      %v2472 = vsel %vm2095, %v2469, %v2471
      %v2473 = vrot.slane %v2357, 7
      %v2474 = vsel %vm2095, %v2471, %v2473
      %v2475 = vrot.slane %v2361, 7
      %v2476 = vsel %vm2095, %v2473, %v2475
      %v2477 = vrot.slane %v2365, 7
      %v2478 = vsel %vm2095, %v2475, %v2477
      %v2479 = vrot.slane %v2369, 7
      %v2480 = vsel %vm2095, %v2477, %v2479
      %v2481 = vrot.slane %v2373, 7
      %v2482 = vsel %vm2095, %v2479, %v2481
      %v2483 = vrot.slane %v2377, 7
      %v2484 = vsel %vm2095, %v2481, %v2483
      %v2485 = vrot.slane %v2381, 7
      %v2486 = vsel %vm2095, %v2483, %v2485
      %v2487 = vrot.slane %v2385, 7
      %v2488 = vsel %vm2095, %v2485, %v2487
      %v2489 = vrot.slane %v2389, 7
      %v2490 = vsel %vm2095, %v2487, %v2489
      %v2491 = vrot.slane %v2393, 7
      %v2492 = vsel %vm2095, %v2489, %v2491
      %v2493 = vrot.slane %v2397, 7
      %v2494 = vsel %vm2095, %v2491, %v2493
      %v2495 = vrot.slane %v2401, 7
      %v2496 = vsel %vm2095, %v2493, %v2495
      %v2497 = vrot.slane %v2405, 7
      %v2498 = vsel %vm2095, %v2495, %v2497
      %v2499 = vrot.slane %v2409, 7
      %v2500 = vsel %vm2095, %v2497, %v2499
      %v2501 = vrot.slane %v2413, 7
      %v2502 = vsel %vm2095, %v2499, %v2501
      %v2503 = vrot.slane %v2417, 7
      %v2504 = vsel %vm2095, %v2501, %v2503
      %v2505 = vrot.slane %v2421, 7
      %v2506 = vsel %vm2095, %v2503, %v2505
      %v2507 = vrot.slane %v2425, 7
      %v2508 = vsel %vm2095, %v2505, %v2507
      %v2509 = vrot.slane %v2429, 7
      %v2510 = vsel %vm2095, %v2507, %v2509
      %v2511 = vrot.slane %v2433, 7
      %v2512 = vsel %vm2095, %v2509, %v2511
      %v2513 = vrot.slane %v2437, 7
      %v2514 = vsel %vm2095, %v2511, %v2513
      %v2515 = vrot.slane %v2441, 7
      %v2516 = vsel %vm2095, %v2513, %v2515
      %v2517 = vrot.slane %v2445, 7
      %v2518 = vsel %vm2095, %v2515, %v2517
      %v2519 = vrot.slane %v2449, 7
      %v2520 = vsel %vm2095, %v2517, %v2519
      %v2521 = vrot.slane %v2453, 7
      %v2522 = vsel %vm2095, %v2519, %v2521
      %v2523 = vrot.slane %v2457, 7
      %v2524 = vsel %vm2095, %v2521, %v2523
      %v2525 = vrot.slane %v2461, 7
      %v2526 = vsel %vm2095, %v2523, %v2525
      %v2527 = vrot.slane %v2465, 7
      %v2528 = vsel %vm2095, %v2525, %v2527
      %v2562 = vmul.f32 %v2466, 0.0
      %v2563 = vmul.f32 %v2468, 0.0
      %v2564 = vmul.f32 %v1548, %v2470
      %v2565 = vmul.f32 %v1549, %v2472
      %v2566 = vmul.f32 %v1550, %v2474
      %v2567 = vmul.f32 %v1551, %v2476
      %v2568 = vmul.f32 %v1552, %v2478
      %v2569 = vmul.f32 %v1553, %v2480
      %v2570 = vmul.f32 %v1554, %v2482
      %v2571 = vmul.f32 %v1555, %v2484
      %v2572 = vmul.f32 %v1556, %v2486
      %v2573 = vmul.f32 %v1557, %v2488
      %v2574 = vmul.f32 %v1558, %v2490
      %v2575 = vmul.f32 %v1559, %v2492
      %v2576 = vmul.f32 %v1560, %v2494
      %v2577 = vmul.f32 %v1561, %v2496
      %v2578 = vmul.f32 %v1562, %v2498
      %v2579 = vmul.f32 %v1563, %v2500
      %v2580 = vmul.f32 %v1564, %v2502
      %v2581 = vmul.f32 %v1565, %v2504
      %v2582 = vmul.f32 %v1566, %v2506
      %v2583 = vmul.f32 %v1567, %v2508
      %v2584 = vmul.f32 %v1568, %v2510
      %v2585 = vmul.f32 %v1569, %v2512
      %v2586 = vmul.f32 %v1570, %v2514
      %v2587 = vmul.f32 %v1571, %v2516
      %v2588 = vmul.f32 %v1572, %v2518
      %v2589 = vmul.f32 %v1573, %v2520
      %v2590 = vmul.f32 %v1574, %v2522
      %v2591 = vmul.f32 %v1575, %v2524
      %v2592 = vmul.f32 %v1576, %v2526
      %v2593 = vmul.f32 %v1577, %v2528
      %v2594 = vmul.f32 %v1578, %v2527
      %s2595 = scalar_lea.vmem %s6, 128
      %v2596 = vld [vmem:[%s2595] sm:$0xff]
      %v2597 = vld [vmem:[%s2595 + $0x8] sm:$0xff]
      %v2598 = vld [vmem:[%s2595 + $0x10] sm:$0xff]
      %v2599 = vld [vmem:[%s2595 + $0x18] sm:$0xff]
      %v2600 = vld [vmem:[%s2595 + $0x20] sm:$0xff]
      %v2601 = vld [vmem:[%s2595 + $0x28] sm:$0xff]
      %v2602 = vld [vmem:[%s2595 + $0x30] sm:$0xff]
      %v2603 = vld [vmem:[%s2595 + $0x38] sm:$0xff]
      %v2637 = vrot.slane %v2562, 1
      %v2638 = vrot.slane %v2563, 1
      %v2639 = vsel %vm1709, %v2637, %v2638
      %v2640 = vrot.slane %v2564, 1
      %v2641 = vsel %vm1709, %v2638, %v2640
      %v2642 = vrot.slane %v2565, 1
      %v2643 = vsel %vm1709, %v2640, %v2642
      %v2644 = vrot.slane %v2566, 1
      %v2645 = vsel %vm1709, %v2642, %v2644
      %v2646 = vrot.slane %v2567, 1
      %v2647 = vsel %vm1709, %v2644, %v2646
      %v2648 = vrot.slane %v2568, 1
      %v2649 = vsel %vm1709, %v2646, %v2648
      %v2650 = vrot.slane %v2569, 1
      %v2651 = vsel %vm1709, %v2648, %v2650
      %v2652 = vrot.slane %v2570, 1
      %v2653 = vsel %vm1709, %v2650, %v2652
      %v2654 = vrot.slane %v2571, 1
      %v2655 = vsel %vm1709, %v2652, %v2654
      %v2656 = vrot.slane %v2572, 1
      %v2657 = vsel %vm1709, %v2654, %v2656
      %v2658 = vrot.slane %v2573, 1
      %v2659 = vsel %vm1709, %v2656, %v2658
      %v2660 = vrot.slane %v2574, 1
      %v2661 = vsel %vm1709, %v2658, %v2660
      %v2662 = vrot.slane %v2575, 1
      %v2663 = vsel %vm1709, %v2660, %v2662
      %v2664 = vrot.slane %v2576, 1
      %v2665 = vsel %vm1709, %v2662, %v2664
      %v2666 = vrot.slane %v2577, 1
      %v2667 = vsel %vm1709, %v2664, %v2666
      %v2668 = vrot.slane %v2578, 1
      %v2669 = vsel %vm1709, %v2666, %v2668
      %v2670 = vrot.slane %v2579, 1
      %v2671 = vsel %vm1709, %v2668, %v2670
      %v2672 = vrot.slane %v2580, 1
      %v2673 = vsel %vm1709, %v2670, %v2672
      %v2674 = vrot.slane %v2581, 1
      %v2675 = vsel %vm1709, %v2672, %v2674
      %v2676 = vrot.slane %v2582, 1
      %v2677 = vsel %vm1709, %v2674, %v2676
      %v2678 = vrot.slane %v2583, 1
      %v2679 = vsel %vm1709, %v2676, %v2678
      %v2680 = vrot.slane %v2584, 1
      %v2681 = vsel %vm1709, %v2678, %v2680
      %v2682 = vrot.slane %v2585, 1
      %v2683 = vsel %vm1709, %v2680, %v2682
      %v2684 = vrot.slane %v2586, 1
      %v2685 = vsel %vm1709, %v2682, %v2684
      %v2686 = vrot.slane %v2587, 1
      %v2687 = vsel %vm1709, %v2684, %v2686
      %v2688 = vrot.slane %v2588, 1
      %v2689 = vsel %vm1709, %v2686, %v2688
      %v2690 = vrot.slane %v2589, 1
      %v2691 = vsel %vm1709, %v2688, %v2690
      %v2692 = vrot.slane %v2590, 1
      %v2693 = vsel %vm1709, %v2690, %v2692
      %v2694 = vrot.slane %v2591, 1
      %v2695 = vsel %vm1709, %v2692, %v2694
      %v2696 = vrot.slane %v2592, 1
      %v2697 = vsel %vm1709, %v2694, %v2696
      %v2698 = vrot.slane %v2593, 1
      %v2699 = vsel %vm1709, %v2696, %v2698
      %v2700 = vrot.slane %v2594, 1
      %v2701 = vsel %vm1709, %v2698, %v2700
      %v2702 = vsel %vm535, %v2639, 0
      %v2704 = vsel %vm535, %v2641, 0
      %v2706 = vsel %vm535, %v2643, 0
      %v2708 = vsel %vm535, %v2645, 0
      %v2710 = vsel %vm535, %v2647, 0
      %v2712 = vsel %vm535, %v2649, 0
      %v2714 = vsel %vm535, %v2651, 0
      %v2716 = vsel %vm535, %v2653, 0
      %v2718 = vsel %vm535, %v2655, 0
      %v2720 = vsel %vm535, %v2657, 0
      %v2722 = vsel %vm535, %v2659, 0
      %v2724 = vsel %vm535, %v2661, 0
      %v2726 = vsel %vm535, %v2663, 0
      %v2728 = vsel %vm535, %v2665, 0
      %v2730 = vsel %vm535, %v2667, 0
      %v2732 = vsel %vm535, %v2669, 0
      %v2734 = vsel %vm535, %v2671, 0
      %v2736 = vsel %vm535, %v2673, 0
      %v2738 = vsel %vm535, %v2675, 0
      %v2740 = vsel %vm535, %v2677, 0
      %v2742 = vsel %vm535, %v2679, 0
      %v2744 = vsel %vm535, %v2681, 0
      %v2746 = vsel %vm535, %v2683, 0
      %v2748 = vsel %vm535, %v2685, 0
      %v2750 = vsel %vm535, %v2687, 0
      %v2752 = vsel %vm535, %v2689, 0
      %v2754 = vsel %vm535, %v2691, 0
      %v2756 = vsel %vm535, %v2693, 0
      %v2758 = vsel %vm535, %v2695, 0
      %v2760 = vsel %vm535, %v2697, 0
      %v2762 = vsel %vm535, %v2699, 0
      %v2764 = vsel %vm535, %v2701, 0
      %2766 = vmatpush.msra.mxu0 0.0
      %2767 = vmatpush.msra.mxu0 0.0
      %2768 = vmatpush.msra.mxu0 0.0
      %2769 = vmatpush.msra.mxu0 0.0
      %2770 = vmatpush.msra.mxu0 0.0
      %2771 = vmatpush.msra.mxu0 0.0
      %2772 = vmatpush.msra.mxu0 0.0
      %2773 = vmatpush.msra.mxu0 0.0
      %2774 = vmatpush.msra.mxu0 %v2603
      %2775 = vmatpush.msra.mxu0 %v2602
      %2776 = vmatpush.msra.mxu0 %v2601
      %2777 = vmatpush.msra.mxu0 %v2600
      %2778 = vmatpush.msra.mxu0 %v2599
      %2779 = vmatpush.msra.mxu0 %v2598
      %2780 = vmatpush.msra.mxu0 %v2597
      %2781 = vmatpush.msra.mxu0 %v2596
      %2782 = vmatmul.f32.gmra.mxu0 %v2702
      %v2783 = vpop.f32.mrf.mxu0
      %v2784 = vadd.f32 0.0, %v2783
      %2785 = vmatmul.f32.gmra.mxu0 %v2704
      %v2786 = vpop.f32.mrf.mxu0
      %v2787 = vadd.f32 0.0, %v2786
      %2788 = vmatmul.f32.gmra.mxu0 %v2706
      %v2789 = vpop.f32.mrf.mxu0
      %v2790 = vadd.f32 0.0, %v2789
      %2791 = vmatmul.f32.gmra.mxu0 %v2708
      %v2792 = vpop.f32.mrf.mxu0
      %v2793 = vadd.f32 0.0, %v2792
      %2794 = vmatmul.f32.gmra.mxu0 %v2710
      %v2795 = vpop.f32.mrf.mxu0
      %v2796 = vadd.f32 0.0, %v2795
      %2797 = vmatmul.f32.gmra.mxu0 %v2712
      %v2798 = vpop.f32.mrf.mxu0
      %v2799 = vadd.f32 0.0, %v2798
      %2800 = vmatmul.f32.gmra.mxu0 %v2714
      %v2801 = vpop.f32.mrf.mxu0
      %v2802 = vadd.f32 0.0, %v2801
      %2803 = vmatmul.f32.gmra.mxu0 %v2716
      %v2804 = vpop.f32.mrf.mxu0
      %v2805 = vadd.f32 0.0, %v2804
      %2806 = vmatmul.f32.gmra.mxu0 %v2718
      %v2807 = vpop.f32.mrf.mxu0
      %v2808 = vadd.f32 0.0, %v2807
      %2809 = vmatmul.f32.gmra.mxu0 %v2720
      %v2810 = vpop.f32.mrf.mxu0
      %v2811 = vadd.f32 0.0, %v2810
      %2812 = vmatmul.f32.gmra.mxu0 %v2722
      %v2813 = vpop.f32.mrf.mxu0
      %v2814 = vadd.f32 0.0, %v2813
      %2815 = vmatmul.f32.gmra.mxu0 %v2724
      %v2816 = vpop.f32.mrf.mxu0
      %v2817 = vadd.f32 0.0, %v2816
      %2818 = vmatmul.f32.gmra.mxu0 %v2726
      %v2819 = vpop.f32.mrf.mxu0
      %v2820 = vadd.f32 0.0, %v2819
      %2821 = vmatmul.f32.gmra.mxu0 %v2728
      %v2822 = vpop.f32.mrf.mxu0
      %v2823 = vadd.f32 0.0, %v2822
      %2824 = vmatmul.f32.gmra.mxu0 %v2730
      %v2825 = vpop.f32.mrf.mxu0
      %v2826 = vadd.f32 0.0, %v2825
      %2827 = vmatmul.f32.gmra.mxu0 %v2732
      %v2828 = vpop.f32.mrf.mxu0
      %v2829 = vadd.f32 0.0, %v2828
      %2830 = vmatmul.f32.gmra.mxu0 %v2734
      %v2831 = vpop.f32.mrf.mxu0
      %v2832 = vadd.f32 0.0, %v2831
      %2833 = vmatmul.f32.gmra.mxu0 %v2736
      %v2834 = vpop.f32.mrf.mxu0
      %v2835 = vadd.f32 0.0, %v2834
      %2836 = vmatmul.f32.gmra.mxu0 %v2738
      %v2837 = vpop.f32.mrf.mxu0
      %v2838 = vadd.f32 0.0, %v2837
      %2839 = vmatmul.f32.gmra.mxu0 %v2740
      %v2840 = vpop.f32.mrf.mxu0
      %v2841 = vadd.f32 0.0, %v2840
      %2842 = vmatmul.f32.gmra.mxu0 %v2742
      %v2843 = vpop.f32.mrf.mxu0
      %v2844 = vadd.f32 0.0, %v2843
      %2845 = vmatmul.f32.gmra.mxu0 %v2744
      %v2846 = vpop.f32.mrf.mxu0
      %v2847 = vadd.f32 0.0, %v2846
      %2848 = vmatmul.f32.gmra.mxu0 %v2746
      %v2849 = vpop.f32.mrf.mxu0
      %v2850 = vadd.f32 0.0, %v2849
      %2851 = vmatmul.f32.gmra.mxu0 %v2748
      %v2852 = vpop.f32.mrf.mxu0
      %v2853 = vadd.f32 0.0, %v2852
      %2854 = vmatmul.f32.gmra.mxu0 %v2750
      %v2855 = vpop.f32.mrf.mxu0
      %v2856 = vadd.f32 0.0, %v2855
      %2857 = vmatmul.f32.gmra.mxu0 %v2752
      %v2858 = vpop.f32.mrf.mxu0
      %v2859 = vadd.f32 0.0, %v2858
      %2860 = vmatmul.f32.gmra.mxu0 %v2754
      %v2861 = vpop.f32.mrf.mxu0
      %v2862 = vadd.f32 0.0, %v2861
      %2863 = vmatmul.f32.gmra.mxu0 %v2756
      %v2864 = vpop.f32.mrf.mxu0
      %v2865 = vadd.f32 0.0, %v2864
      %2866 = vmatmul.f32.gmra.mxu0 %v2758
      %v2867 = vpop.f32.mrf.mxu0
      %v2868 = vadd.f32 0.0, %v2867
      %2869 = vmatmul.f32.gmra.mxu0 %v2760
      %v2870 = vpop.f32.mrf.mxu0
      %v2871 = vadd.f32 0.0, %v2870
      %2872 = vmatmul.f32.gmra.mxu0 %v2762
      %v2873 = vpop.f32.mrf.mxu0
      %v2874 = vadd.f32 0.0, %v2873
      %2875 = vmatmul.f32.gmra.mxu0 %v2764
      %v2876 = vpop.f32.mrf.mxu0
      %v2877 = vadd.f32 0.0, %v2876
      %2878 = vdwg.mxu0
      %v2879 = vadd.f32 %v2243, %v2784
      %v2880 = vadd.f32 %v2246, %v2787
      %v2881 = vadd.f32 %v2249, %v2790
      %v2882 = vadd.f32 %v2252, %v2793
      %v2883 = vadd.f32 %v2255, %v2796
      %v2884 = vadd.f32 %v2258, %v2799
      %v2885 = vadd.f32 %v2261, %v2802
      %v2886 = vadd.f32 %v2264, %v2805
      %v2887 = vadd.f32 %v2267, %v2808
      %v2888 = vadd.f32 %v2270, %v2811
      %v2889 = vadd.f32 %v2273, %v2814
      %v2890 = vadd.f32 %v2276, %v2817
      %v2891 = vadd.f32 %v2279, %v2820
      %v2892 = vadd.f32 %v2282, %v2823
      %v2893 = vadd.f32 %v2285, %v2826
      %v2894 = vadd.f32 %v2288, %v2829
      %v2895 = vadd.f32 %v2291, %v2832
      %v2896 = vadd.f32 %v2294, %v2835
      %v2897 = vadd.f32 %v2297, %v2838
      %v2898 = vadd.f32 %v2300, %v2841
      %v2899 = vadd.f32 %v2303, %v2844
      %v2900 = vadd.f32 %v2306, %v2847
      %v2901 = vadd.f32 %v2309, %v2850
      %v2902 = vadd.f32 %v2312, %v2853
      %v2903 = vadd.f32 %v2315, %v2856
      %v2904 = vadd.f32 %v2318, %v2859
      %v2905 = vadd.f32 %v2321, %v2862
      %v2906 = vadd.f32 %v2324, %v2865
      %v2907 = vadd.f32 %v2327, %v2868
      %v2908 = vadd.f32 %v2330, %v2871
      %v2909 = vadd.f32 %v2333, %v2874
      %v2910 = vadd.f32 %v2336, %v2877
      %v2911 = vmul.f32 %v1548, %v1712
      %v2912 = vmul.f32 %v1549, %v1714
      %v2913 = vmul.f32 %v1550, %v1716
      %v2914 = vmul.f32 %v1551, %v1718
      %v2915 = vmul.f32 %v1552, %v1720
      %v2916 = vmul.f32 %v1553, %v1722
      %v2917 = vmul.f32 %v1554, %v1724
      %v2918 = vmul.f32 %v1555, %v1726
      %v2919 = vmul.f32 %v1556, %v1728
      %v2920 = vmul.f32 %v1557, %v1730
      %v2921 = vmul.f32 %v1558, %v1732
      %v2922 = vmul.f32 %v1559, %v1734
      %v2923 = vmul.f32 %v1560, %v1736
      %v2924 = vmul.f32 %v1561, %v1738
      %v2925 = vmul.f32 %v1562, %v1740
      %v2926 = vmul.f32 %v1563, %v1742
      %v2927 = vmul.f32 %v1564, %v1744
      %v2928 = vmul.f32 %v1565, %v1746
      %v2929 = vmul.f32 %v1566, %v1748
      %v2930 = vmul.f32 %v1567, %v1750
      %v2931 = vmul.f32 %v1568, %v1752
      %v2932 = vmul.f32 %v1569, %v1754
      %v2933 = vmul.f32 %v1570, %v1756
      %v2934 = vmul.f32 %v1571, %v1758
      %v2935 = vmul.f32 %v1572, %v1760
      %v2936 = vmul.f32 %v1573, %v1762
      %v2937 = vmul.f32 %v1574, %v1764
      %v2938 = vmul.f32 %v1575, %v1766
      %v2939 = vmul.f32 %v1576, %v1768
      %v2940 = vmul.f32 %v1577, %v1770
      %v2941 = vmul.f32 %v1578, %v1772
      %v2942 = vmul.f32 %v1579, %v1771
      %s2943 = scalar_lea.vmem %s6, 192
      %v2944 = vld [vmem:[%s2943] sm:$0xff]
      %v2945 = vld [vmem:[%s2943 + $0x8] sm:$0xff]
      %v2946 = vld [vmem:[%s2943 + $0x10] sm:$0xff]
      %v2947 = vld [vmem:[%s2943 + $0x18] sm:$0xff]
      %v2948 = vld [vmem:[%s2943 + $0x20] sm:$0xff]
      %v2949 = vld [vmem:[%s2943 + $0x28] sm:$0xff]
      %v2950 = vld [vmem:[%s2943 + $0x30] sm:$0xff]
      %v2951 = vld [vmem:[%s2943 + $0x38] sm:$0xff]
      %v2984 = vrot.slane %v2911, 7
      %v2985 = vsel %vm2095, %v2096, %v2984
      %v2986 = vrot.slane %v2912, 7
      %v2987 = vsel %vm2095, %v2984, %v2986
      %v2988 = vrot.slane %v2913, 7
      %v2989 = vsel %vm2095, %v2986, %v2988
      %v2990 = vrot.slane %v2914, 7
      %v2991 = vsel %vm2095, %v2988, %v2990
      %v2992 = vrot.slane %v2915, 7
      %v2993 = vsel %vm2095, %v2990, %v2992
      %v2994 = vrot.slane %v2916, 7
      %v2995 = vsel %vm2095, %v2992, %v2994
      %v2996 = vrot.slane %v2917, 7
      %v2997 = vsel %vm2095, %v2994, %v2996
      %v2998 = vrot.slane %v2918, 7
      %v2999 = vsel %vm2095, %v2996, %v2998
      %v3000 = vrot.slane %v2919, 7
      %v3001 = vsel %vm2095, %v2998, %v3000
      %v3002 = vrot.slane %v2920, 7
      %v3003 = vsel %vm2095, %v3000, %v3002
      %v3004 = vrot.slane %v2921, 7
      %v3005 = vsel %vm2095, %v3002, %v3004
      %v3006 = vrot.slane %v2922, 7
      %v3007 = vsel %vm2095, %v3004, %v3006
      %v3008 = vrot.slane %v2923, 7
      %v3009 = vsel %vm2095, %v3006, %v3008
      %v3010 = vrot.slane %v2924, 7
      %v3011 = vsel %vm2095, %v3008, %v3010
      %v3012 = vrot.slane %v2925, 7
      %v3013 = vsel %vm2095, %v3010, %v3012
      %v3014 = vrot.slane %v2926, 7
      %v3015 = vsel %vm2095, %v3012, %v3014
      %v3016 = vrot.slane %v2927, 7
      %v3017 = vsel %vm2095, %v3014, %v3016
      %v3018 = vrot.slane %v2928, 7
      %v3019 = vsel %vm2095, %v3016, %v3018
      %v3020 = vrot.slane %v2929, 7
      %v3021 = vsel %vm2095, %v3018, %v3020
      %v3022 = vrot.slane %v2930, 7
      %v3023 = vsel %vm2095, %v3020, %v3022
      %v3024 = vrot.slane %v2931, 7
      %v3025 = vsel %vm2095, %v3022, %v3024
      %v3026 = vrot.slane %v2932, 7
      %v3027 = vsel %vm2095, %v3024, %v3026
      %v3028 = vrot.slane %v2933, 7
      %v3029 = vsel %vm2095, %v3026, %v3028
      %v3030 = vrot.slane %v2934, 7
      %v3031 = vsel %vm2095, %v3028, %v3030
      %v3032 = vrot.slane %v2935, 7
      %v3033 = vsel %vm2095, %v3030, %v3032
      %v3034 = vrot.slane %v2936, 7
      %v3035 = vsel %vm2095, %v3032, %v3034
      %v3036 = vrot.slane %v2937, 7
      %v3037 = vsel %vm2095, %v3034, %v3036
      %v3038 = vrot.slane %v2938, 7
      %v3039 = vsel %vm2095, %v3036, %v3038
      %v3040 = vrot.slane %v2939, 7
      %v3041 = vsel %vm2095, %v3038, %v3040
      %v3042 = vrot.slane %v2940, 7
      %v3043 = vsel %vm2095, %v3040, %v3042
      %v3044 = vrot.slane %v2941, 7
      %v3045 = vsel %vm2095, %v3042, %v3044
      %v3046 = vrot.slane %v2942, 7
      %v3047 = vsel %vm2095, %v3044, %v3046
      %v3048 = vsel %vm535, %v2985, 0
      %v3050 = vsel %vm535, %v2987, 0
      %v3052 = vsel %vm535, %v2989, 0
      %v3054 = vsel %vm535, %v2991, 0
      %v3056 = vsel %vm535, %v2993, 0
      %v3058 = vsel %vm535, %v2995, 0
      %v3060 = vsel %vm535, %v2997, 0
      %v3062 = vsel %vm535, %v2999, 0
      %v3064 = vsel %vm535, %v3001, 0
      %v3066 = vsel %vm535, %v3003, 0
      %v3068 = vsel %vm535, %v3005, 0
      %v3070 = vsel %vm535, %v3007, 0
      %v3072 = vsel %vm535, %v3009, 0
      %v3074 = vsel %vm535, %v3011, 0
      %v3076 = vsel %vm535, %v3013, 0
      %v3078 = vsel %vm535, %v3015, 0
      %v3080 = vsel %vm535, %v3017, 0
      %v3082 = vsel %vm535, %v3019, 0
      %v3084 = vsel %vm535, %v3021, 0
      %v3086 = vsel %vm535, %v3023, 0
      %v3088 = vsel %vm535, %v3025, 0
      %v3090 = vsel %vm535, %v3027, 0
      %v3092 = vsel %vm535, %v3029, 0
      %v3094 = vsel %vm535, %v3031, 0
      %v3096 = vsel %vm535, %v3033, 0
      %v3098 = vsel %vm535, %v3035, 0
      %v3100 = vsel %vm535, %v3037, 0
      %v3102 = vsel %vm535, %v3039, 0
      %v3104 = vsel %vm535, %v3041, 0
      %v3106 = vsel %vm535, %v3043, 0
      %v3108 = vsel %vm535, %v3045, 0
      %v3110 = vsel %vm535, %v3047, 0
      %3112 = vmatpush.msra.mxu0 0.0
      %3113 = vmatpush.msra.mxu0 0.0
      %3114 = vmatpush.msra.mxu0 0.0
      %3115 = vmatpush.msra.mxu0 0.0
      %3116 = vmatpush.msra.mxu0 0.0
      %3117 = vmatpush.msra.mxu0 0.0
      %3118 = vmatpush.msra.mxu0 0.0
      %3119 = vmatpush.msra.mxu0 0.0
      %3120 = vmatpush.msra.mxu0 %v2951
      %3121 = vmatpush.msra.mxu0 %v2950
      %3122 = vmatpush.msra.mxu0 %v2949
      %3123 = vmatpush.msra.mxu0 %v2948
      %3124 = vmatpush.msra.mxu0 %v2947
      %3125 = vmatpush.msra.mxu0 %v2946
      %3126 = vmatpush.msra.mxu0 %v2945
      %3127 = vmatpush.msra.mxu0 %v2944
      %3128 = vmatmul.f32.gmra.mxu0 %v3048
      %v3129 = vpop.f32.mrf.mxu0
      %v3130 = vadd.f32 0.0, %v3129
      %3131 = vmatmul.f32.gmra.mxu0 %v3050
      %v3132 = vpop.f32.mrf.mxu0
      %v3133 = vadd.f32 0.0, %v3132
      %3134 = vmatmul.f32.gmra.mxu0 %v3052
      %v3135 = vpop.f32.mrf.mxu0
      %v3136 = vadd.f32 0.0, %v3135
      %3137 = vmatmul.f32.gmra.mxu0 %v3054
      %v3138 = vpop.f32.mrf.mxu0
      %v3139 = vadd.f32 0.0, %v3138
      %3140 = vmatmul.f32.gmra.mxu0 %v3056
      %v3141 = vpop.f32.mrf.mxu0
      %v3142 = vadd.f32 0.0, %v3141
      %3143 = vmatmul.f32.gmra.mxu0 %v3058
      %v3144 = vpop.f32.mrf.mxu0
      %v3145 = vadd.f32 0.0, %v3144
      %3146 = vmatmul.f32.gmra.mxu0 %v3060
      %v3147 = vpop.f32.mrf.mxu0
      %v3148 = vadd.f32 0.0, %v3147
      %3149 = vmatmul.f32.gmra.mxu0 %v3062
      %v3150 = vpop.f32.mrf.mxu0
      %v3151 = vadd.f32 0.0, %v3150
      %3152 = vmatmul.f32.gmra.mxu0 %v3064
      %v3153 = vpop.f32.mrf.mxu0
      %v3154 = vadd.f32 0.0, %v3153
      %3155 = vmatmul.f32.gmra.mxu0 %v3066
      %v3156 = vpop.f32.mrf.mxu0
      %v3157 = vadd.f32 0.0, %v3156
      %3158 = vmatmul.f32.gmra.mxu0 %v3068
      %v3159 = vpop.f32.mrf.mxu0
      %v3160 = vadd.f32 0.0, %v3159
      %3161 = vmatmul.f32.gmra.mxu0 %v3070
      %v3162 = vpop.f32.mrf.mxu0
      %v3163 = vadd.f32 0.0, %v3162
      %3164 = vmatmul.f32.gmra.mxu0 %v3072
      %v3165 = vpop.f32.mrf.mxu0
      %v3166 = vadd.f32 0.0, %v3165
      %3167 = vmatmul.f32.gmra.mxu0 %v3074
      %v3168 = vpop.f32.mrf.mxu0
      %v3169 = vadd.f32 0.0, %v3168
      %3170 = vmatmul.f32.gmra.mxu0 %v3076
      %v3171 = vpop.f32.mrf.mxu0
      %v3172 = vadd.f32 0.0, %v3171
      %3173 = vmatmul.f32.gmra.mxu0 %v3078
      %v3174 = vpop.f32.mrf.mxu0
      %v3175 = vadd.f32 0.0, %v3174
      %3176 = vmatmul.f32.gmra.mxu0 %v3080
      %v3177 = vpop.f32.mrf.mxu0
      %v3178 = vadd.f32 0.0, %v3177
      %3179 = vmatmul.f32.gmra.mxu0 %v3082
      %v3180 = vpop.f32.mrf.mxu0
      %v3181 = vadd.f32 0.0, %v3180
      %3182 = vmatmul.f32.gmra.mxu0 %v3084
      %v3183 = vpop.f32.mrf.mxu0
      %v3184 = vadd.f32 0.0, %v3183
      %3185 = vmatmul.f32.gmra.mxu0 %v3086
      %v3186 = vpop.f32.mrf.mxu0
      %v3187 = vadd.f32 0.0, %v3186
      %3188 = vmatmul.f32.gmra.mxu0 %v3088
      %v3189 = vpop.f32.mrf.mxu0
      %v3190 = vadd.f32 0.0, %v3189
      %3191 = vmatmul.f32.gmra.mxu0 %v3090
      %v3192 = vpop.f32.mrf.mxu0
      %v3193 = vadd.f32 0.0, %v3192
      %3194 = vmatmul.f32.gmra.mxu0 %v3092
      %v3195 = vpop.f32.mrf.mxu0
      %v3196 = vadd.f32 0.0, %v3195
      %3197 = vmatmul.f32.gmra.mxu0 %v3094
      %v3198 = vpop.f32.mrf.mxu0
      %v3199 = vadd.f32 0.0, %v3198
      %3200 = vmatmul.f32.gmra.mxu0 %v3096
      %v3201 = vpop.f32.mrf.mxu0
      %v3202 = vadd.f32 0.0, %v3201
      %3203 = vmatmul.f32.gmra.mxu0 %v3098
      %v3204 = vpop.f32.mrf.mxu0
      %v3205 = vadd.f32 0.0, %v3204
      %3206 = vmatmul.f32.gmra.mxu0 %v3100
      %v3207 = vpop.f32.mrf.mxu0
      %v3208 = vadd.f32 0.0, %v3207
      %3209 = vmatmul.f32.gmra.mxu0 %v3102
      %v3210 = vpop.f32.mrf.mxu0
      %v3211 = vadd.f32 0.0, %v3210
      %3212 = vmatmul.f32.gmra.mxu0 %v3104
      %v3213 = vpop.f32.mrf.mxu0
      %v3214 = vadd.f32 0.0, %v3213
      %3215 = vmatmul.f32.gmra.mxu0 %v3106
      %v3216 = vpop.f32.mrf.mxu0
      %v3217 = vadd.f32 0.0, %v3216
      %3218 = vmatmul.f32.gmra.mxu0 %v3108
      %v3219 = vpop.f32.mrf.mxu0
      %v3220 = vadd.f32 0.0, %v3219
      %3221 = vmatmul.f32.gmra.mxu0 %v3110
      %v3222 = vpop.f32.mrf.mxu0
      %v3223 = vadd.f32 0.0, %v3222
      %3224 = vdwg.mxu0
      %v3225 = vadd.f32 %v2879, %v3130
      %v3226 = vadd.f32 %v2880, %v3133
      %v3227 = vadd.f32 %v2881, %v3136
      %v3228 = vadd.f32 %v2882, %v3139
      %v3229 = vadd.f32 %v2883, %v3142
      %v3230 = vadd.f32 %v2884, %v3145
      %v3231 = vadd.f32 %v2885, %v3148
      %v3232 = vadd.f32 %v2886, %v3151
      %v3233 = vadd.f32 %v2887, %v3154
      %v3234 = vadd.f32 %v2888, %v3157
      %v3235 = vadd.f32 %v2889, %v3160
      %v3236 = vadd.f32 %v2890, %v3163
      %v3237 = vadd.f32 %v2891, %v3166
      %v3238 = vadd.f32 %v2892, %v3169
      %v3239 = vadd.f32 %v2893, %v3172
      %v3240 = vadd.f32 %v2894, %v3175
      %v3241 = vadd.f32 %v2895, %v3178
      %v3242 = vadd.f32 %v2896, %v3181
      %v3243 = vadd.f32 %v2897, %v3184
      %v3244 = vadd.f32 %v2898, %v3187
      %v3245 = vadd.f32 %v2899, %v3190
      %v3246 = vadd.f32 %v2900, %v3193
      %v3247 = vadd.f32 %v2901, %v3196
      %v3248 = vadd.f32 %v2902, %v3199
      %v3249 = vadd.f32 %v2903, %v3202
      %v3250 = vadd.f32 %v2904, %v3205
      %v3251 = vadd.f32 %v2905, %v3208
      %v3252 = vadd.f32 %v2906, %v3211
      %v3253 = vadd.f32 %v2907, %v3214
      %v3254 = vadd.f32 %v2908, %v3217
      %v3255 = vadd.f32 %v2909, %v3220
      %v3256 = vadd.f32 %v2910, %v3223
      %s3257 = scalar_lea.vmem %s6, 256
      %v3258 = vld [vmem:[%s3257] sm:$0xff]
      %v3259 = vld [vmem:[%s3257 + $0x8] sm:$0xff]
      %v3260 = vld [vmem:[%s3257 + $0x10] sm:$0xff]
      %v3261 = vld [vmem:[%s3257 + $0x18] sm:$0xff]
      %v3262 = vld [vmem:[%s3257 + $0x20] sm:$0xff]
      %v3263 = vld [vmem:[%s3257 + $0x28] sm:$0xff]
      %v3264 = vld [vmem:[%s3257 + $0x30] sm:$0xff]
      %v3265 = vld [vmem:[%s3257 + $0x38] sm:$0xff]
      %v3267 = vsel %vm535, %v1578, 0
      %v3270 = vsel %vm535, %v1579, 0
      %3272 = vmatpush.msra.mxu0 0.0
      %3273 = vmatpush.msra.mxu0 0.0
      %3274 = vmatpush.msra.mxu0 0.0
      %3275 = vmatpush.msra.mxu0 0.0
      %3276 = vmatpush.msra.mxu0 0.0
      %3277 = vmatpush.msra.mxu0 0.0
      %3278 = vmatpush.msra.mxu0 0.0
      %3279 = vmatpush.msra.mxu0 0.0
      %3280 = vmatpush.msra.mxu0 %v3265
      %3281 = vmatpush.msra.mxu0 %v3264
      %3282 = vmatpush.msra.mxu0 %v3263
      %3283 = vmatpush.msra.mxu0 %v3262
      %3284 = vmatpush.msra.mxu0 %v3261
      %3285 = vmatpush.msra.mxu0 %v3260
      %3286 = vmatpush.msra.mxu0 %v3259
      %3287 = vmatpush.msra.mxu0 %v3258
      %3288 = vmatmul.f32.gmra.mxu0 %v1860
      %v3289 = vpop.f32.mrf.mxu0
      %v3290 = vadd.f32 0.0, %v3289
      %3291 = vmatmul.f32.gmra.mxu0 %v1863
      %v3292 = vpop.f32.mrf.mxu0
      %v3293 = vadd.f32 0.0, %v3292
      %3294 = vmatmul.f32.gmra.mxu0 %v1866
      %v3295 = vpop.f32.mrf.mxu0
      %v3296 = vadd.f32 0.0, %v3295
      %3297 = vmatmul.f32.gmra.mxu0 %v1869
      %v3298 = vpop.f32.mrf.mxu0
      %v3299 = vadd.f32 0.0, %v3298
      %3300 = vmatmul.f32.gmra.mxu0 %v1872
      %v3301 = vpop.f32.mrf.mxu0
      %v3302 = vadd.f32 0.0, %v3301
      %3303 = vmatmul.f32.gmra.mxu0 %v1875
      %v3304 = vpop.f32.mrf.mxu0
      %v3305 = vadd.f32 0.0, %v3304
      %3306 = vmatmul.f32.gmra.mxu0 %v1878
      %v3307 = vpop.f32.mrf.mxu0
      %v3308 = vadd.f32 0.0, %v3307
      %3309 = vmatmul.f32.gmra.mxu0 %v1881
      %v3310 = vpop.f32.mrf.mxu0
      %v3311 = vadd.f32 0.0, %v3310
      %3312 = vmatmul.f32.gmra.mxu0 %v1884
      %v3313 = vpop.f32.mrf.mxu0
      %v3314 = vadd.f32 0.0, %v3313
      %3315 = vmatmul.f32.gmra.mxu0 %v1887
      %v3316 = vpop.f32.mrf.mxu0
      %v3317 = vadd.f32 0.0, %v3316
      %3318 = vmatmul.f32.gmra.mxu0 %v1890
      %v3319 = vpop.f32.mrf.mxu0
      %v3320 = vadd.f32 0.0, %v3319
      %3321 = vmatmul.f32.gmra.mxu0 %v1893
      %v3322 = vpop.f32.mrf.mxu0
      %v3323 = vadd.f32 0.0, %v3322
      %3324 = vmatmul.f32.gmra.mxu0 %v1896
      %v3325 = vpop.f32.mrf.mxu0
      %v3326 = vadd.f32 0.0, %v3325
      %3327 = vmatmul.f32.gmra.mxu0 %v1899
      %v3328 = vpop.f32.mrf.mxu0
      %v3329 = vadd.f32 0.0, %v3328
      %3330 = vmatmul.f32.gmra.mxu0 %v1902
      %v3331 = vpop.f32.mrf.mxu0
      %v3332 = vadd.f32 0.0, %v3331
      %3333 = vmatmul.f32.gmra.mxu0 %v1905
      %v3334 = vpop.f32.mrf.mxu0
      %v3335 = vadd.f32 0.0, %v3334
      %3336 = vmatmul.f32.gmra.mxu0 %v1908
      %v3337 = vpop.f32.mrf.mxu0
      %v3338 = vadd.f32 0.0, %v3337
      %3339 = vmatmul.f32.gmra.mxu0 %v1911
      %v3340 = vpop.f32.mrf.mxu0
      %v3341 = vadd.f32 0.0, %v3340
      %3342 = vmatmul.f32.gmra.mxu0 %v1914
      %v3343 = vpop.f32.mrf.mxu0
      %v3344 = vadd.f32 0.0, %v3343
      %3345 = vmatmul.f32.gmra.mxu0 %v1917
      %v3346 = vpop.f32.mrf.mxu0
      %v3347 = vadd.f32 0.0, %v3346
      %3348 = vmatmul.f32.gmra.mxu0 %v1920
      %v3349 = vpop.f32.mrf.mxu0
      %v3350 = vadd.f32 0.0, %v3349
      %3351 = vmatmul.f32.gmra.mxu0 %v1923
      %v3352 = vpop.f32.mrf.mxu0
      %v3353 = vadd.f32 0.0, %v3352
      %3354 = vmatmul.f32.gmra.mxu0 %v1926
      %v3355 = vpop.f32.mrf.mxu0
      %v3356 = vadd.f32 0.0, %v3355
      %3357 = vmatmul.f32.gmra.mxu0 %v1929
      %v3358 = vpop.f32.mrf.mxu0
      %v3359 = vadd.f32 0.0, %v3358
      %3360 = vmatmul.f32.gmra.mxu0 %v1932
      %v3361 = vpop.f32.mrf.mxu0
      %v3362 = vadd.f32 0.0, %v3361
      %3363 = vmatmul.f32.gmra.mxu0 %v1935
      %v3364 = vpop.f32.mrf.mxu0
      %v3365 = vadd.f32 0.0, %v3364
      %3366 = vmatmul.f32.gmra.mxu0 %v1938
      %v3367 = vpop.f32.mrf.mxu0
      %v3368 = vadd.f32 0.0, %v3367
      %3369 = vmatmul.f32.gmra.mxu0 %v1941
      %v3370 = vpop.f32.mrf.mxu0
      %v3371 = vadd.f32 0.0, %v3370
      %3372 = vmatmul.f32.gmra.mxu0 %v1944
      %v3373 = vpop.f32.mrf.mxu0
      %v3374 = vadd.f32 0.0, %v3373
      %3375 = vmatmul.f32.gmra.mxu0 %v1947
      %v3376 = vpop.f32.mrf.mxu0
      %v3377 = vadd.f32 0.0, %v3376
      %3378 = vmatmul.f32.gmra.mxu0 %v3267
      %v3379 = vpop.f32.mrf.mxu0
      %v3380 = vadd.f32 0.0, %v3379
      %3381 = vmatmul.f32.gmra.mxu0 %v3270
      %v3382 = vpop.f32.mrf.mxu0
      %v3383 = vadd.f32 0.0, %v3382
      %3384 = vdwg.mxu0
      %v3385 = vadd.f32 %v3225, %v3290
      %v3386 = vadd.f32 %v3226, %v3293
      %v3387 = vadd.f32 %v3227, %v3296
      %v3388 = vadd.f32 %v3228, %v3299
      %v3389 = vadd.f32 %v3229, %v3302
      %v3390 = vadd.f32 %v3230, %v3305
      %v3391 = vadd.f32 %v3231, %v3308
      %v3392 = vadd.f32 %v3232, %v3311
      %v3393 = vadd.f32 %v3233, %v3314
      %v3394 = vadd.f32 %v3234, %v3317
      %v3395 = vadd.f32 %v3235, %v3320
      %v3396 = vadd.f32 %v3236, %v3323
      %v3397 = vadd.f32 %v3237, %v3326
      %v3398 = vadd.f32 %v3238, %v3329
      %v3399 = vadd.f32 %v3239, %v3332
      %v3400 = vadd.f32 %v3240, %v3335
      %v3401 = vadd.f32 %v3241, %v3338
      %v3402 = vadd.f32 %v3242, %v3341
      %v3403 = vadd.f32 %v3243, %v3344
      %v3404 = vadd.f32 %v3244, %v3347
      %v3405 = vadd.f32 %v3245, %v3350
      %v3406 = vadd.f32 %v3246, %v3353
      %v3407 = vadd.f32 %v3247, %v3356
      %v3408 = vadd.f32 %v3248, %v3359
      %v3409 = vadd.f32 %v3249, %v3362
      %v3410 = vadd.f32 %v3250, %v3365
      %v3411 = vadd.f32 %v3251, %v3368
      %v3412 = vadd.f32 %v3252, %v3371
      %v3413 = vadd.f32 %v3253, %v3374
      %v3414 = vadd.f32 %v3254, %v3377
      %v3415 = vadd.f32 %v3255, %v3380
      %v3416 = vadd.f32 %v3256, %v3383
      %v3417 = vmul.f32 %v1548, %v2466
      %v3418 = vmul.f32 %v1549, %v2468
      %v3419 = vmul.f32 %v1550, %v2470
      %v3420 = vmul.f32 %v1551, %v2472
      %v3421 = vmul.f32 %v1552, %v2474
      %v3422 = vmul.f32 %v1553, %v2476
      %v3423 = vmul.f32 %v1554, %v2478
      %v3424 = vmul.f32 %v1555, %v2480
      %v3425 = vmul.f32 %v1556, %v2482
      %v3426 = vmul.f32 %v1557, %v2484
      %v3427 = vmul.f32 %v1558, %v2486
      %v3428 = vmul.f32 %v1559, %v2488
      %v3429 = vmul.f32 %v1560, %v2490
      %v3430 = vmul.f32 %v1561, %v2492
      %v3431 = vmul.f32 %v1562, %v2494
      %v3432 = vmul.f32 %v1563, %v2496
      %v3433 = vmul.f32 %v1564, %v2498
      %v3434 = vmul.f32 %v1565, %v2500
      %v3435 = vmul.f32 %v1566, %v2502
      %v3436 = vmul.f32 %v1567, %v2504
      %v3437 = vmul.f32 %v1568, %v2506
      %v3438 = vmul.f32 %v1569, %v2508
      %v3439 = vmul.f32 %v1570, %v2510
      %v3440 = vmul.f32 %v1571, %v2512
      %v3441 = vmul.f32 %v1572, %v2514
      %v3442 = vmul.f32 %v1573, %v2516
      %v3443 = vmul.f32 %v1574, %v2518
      %v3444 = vmul.f32 %v1575, %v2520
      %v3445 = vmul.f32 %v1576, %v2522
      %v3446 = vmul.f32 %v1577, %v2524
      %v3447 = vmul.f32 %v1578, %v2526
      %v3448 = vmul.f32 %v1579, %v2528
      %v3449 = vmul.f32 %v2527, 0.0
      %s3450 = scalar_lea.vmem %s6, 320
      %v3451 = vld [vmem:[%s3450] sm:$0xff]
      %v3452 = vld [vmem:[%s3450 + $0x8] sm:$0xff]
      %v3453 = vld [vmem:[%s3450 + $0x10] sm:$0xff]
      %v3454 = vld [vmem:[%s3450 + $0x18] sm:$0xff]
      %v3455 = vld [vmem:[%s3450 + $0x20] sm:$0xff]
      %v3456 = vld [vmem:[%s3450 + $0x28] sm:$0xff]
      %v3457 = vld [vmem:[%s3450 + $0x30] sm:$0xff]
      %v3458 = vld [vmem:[%s3450 + $0x38] sm:$0xff]
      %v3492 = vrot.slane %v3417, 1
      %v3493 = vrot.slane %v3418, 1
      %v3494 = vsel %vm1709, %v3492, %v3493
      %v3495 = vrot.slane %v3419, 1
      %v3496 = vsel %vm1709, %v3493, %v3495
      %v3497 = vrot.slane %v3420, 1
      %v3498 = vsel %vm1709, %v3495, %v3497
      %v3499 = vrot.slane %v3421, 1
      %v3500 = vsel %vm1709, %v3497, %v3499
      %v3501 = vrot.slane %v3422, 1
      %v3502 = vsel %vm1709, %v3499, %v3501
      %v3503 = vrot.slane %v3423, 1
      %v3504 = vsel %vm1709, %v3501, %v3503
      %v3505 = vrot.slane %v3424, 1
      %v3506 = vsel %vm1709, %v3503, %v3505
      %v3507 = vrot.slane %v3425, 1
      %v3508 = vsel %vm1709, %v3505, %v3507
      %v3509 = vrot.slane %v3426, 1
      %v3510 = vsel %vm1709, %v3507, %v3509
      %v3511 = vrot.slane %v3427, 1
      %v3512 = vsel %vm1709, %v3509, %v3511
      %v3513 = vrot.slane %v3428, 1
      %v3514 = vsel %vm1709, %v3511, %v3513
      %v3515 = vrot.slane %v3429, 1
      %v3516 = vsel %vm1709, %v3513, %v3515
      %v3517 = vrot.slane %v3430, 1
      %v3518 = vsel %vm1709, %v3515, %v3517
      %v3519 = vrot.slane %v3431, 1
      %v3520 = vsel %vm1709, %v3517, %v3519
      %v3521 = vrot.slane %v3432, 1
      %v3522 = vsel %vm1709, %v3519, %v3521
      %v3523 = vrot.slane %v3433, 1
      %v3524 = vsel %vm1709, %v3521, %v3523
      %v3525 = vrot.slane %v3434, 1
      %v3526 = vsel %vm1709, %v3523, %v3525
      %v3527 = vrot.slane %v3435, 1
      %v3528 = vsel %vm1709, %v3525, %v3527
      %v3529 = vrot.slane %v3436, 1
      %v3530 = vsel %vm1709, %v3527, %v3529
      %v3531 = vrot.slane %v3437, 1
      %v3532 = vsel %vm1709, %v3529, %v3531
      %v3533 = vrot.slane %v3438, 1
      %v3534 = vsel %vm1709, %v3531, %v3533
      %v3535 = vrot.slane %v3439, 1
      %v3536 = vsel %vm1709, %v3533, %v3535
      %v3537 = vrot.slane %v3440, 1
      %v3538 = vsel %vm1709, %v3535, %v3537
      %v3539 = vrot.slane %v3441, 1
      %v3540 = vsel %vm1709, %v3537, %v3539
      %v3541 = vrot.slane %v3442, 1
      %v3542 = vsel %vm1709, %v3539, %v3541
      %v3543 = vrot.slane %v3443, 1
      %v3544 = vsel %vm1709, %v3541, %v3543
      %v3545 = vrot.slane %v3444, 1
      %v3546 = vsel %vm1709, %v3543, %v3545
      %v3547 = vrot.slane %v3445, 1
      %v3548 = vsel %vm1709, %v3545, %v3547
      %v3549 = vrot.slane %v3446, 1
      %v3550 = vsel %vm1709, %v3547, %v3549
      %v3551 = vrot.slane %v3447, 1
      %v3552 = vsel %vm1709, %v3549, %v3551
      %v3553 = vrot.slane %v3448, 1
      %v3554 = vsel %vm1709, %v3551, %v3553
      %v3555 = vrot.slane %v3449, 1
      %v3556 = vsel %vm1709, %v3553, %v3555
      %v3557 = vsel %vm535, %v3494, 0
      %v3559 = vsel %vm535, %v3496, 0
      %v3561 = vsel %vm535, %v3498, 0
      %v3563 = vsel %vm535, %v3500, 0
      %v3565 = vsel %vm535, %v3502, 0
      %v3567 = vsel %vm535, %v3504, 0
      %v3569 = vsel %vm535, %v3506, 0
      %v3571 = vsel %vm535, %v3508, 0
      %v3573 = vsel %vm535, %v3510, 0
      %v3575 = vsel %vm535, %v3512, 0
      %v3577 = vsel %vm535, %v3514, 0
      %v3579 = vsel %vm535, %v3516, 0
      %v3581 = vsel %vm535, %v3518, 0
      %v3583 = vsel %vm535, %v3520, 0
      %v3585 = vsel %vm535, %v3522, 0
      %v3587 = vsel %vm535, %v3524, 0
      %v3589 = vsel %vm535, %v3526, 0
      %v3591 = vsel %vm535, %v3528, 0
      %v3593 = vsel %vm535, %v3530, 0
      %v3595 = vsel %vm535, %v3532, 0
      %v3597 = vsel %vm535, %v3534, 0
      %v3599 = vsel %vm535, %v3536, 0
      %v3601 = vsel %vm535, %v3538, 0
      %v3603 = vsel %vm535, %v3540, 0
      %v3605 = vsel %vm535, %v3542, 0
      %v3607 = vsel %vm535, %v3544, 0
      %v3609 = vsel %vm535, %v3546, 0
      %v3611 = vsel %vm535, %v3548, 0
      %v3613 = vsel %vm535, %v3550, 0
      %v3615 = vsel %vm535, %v3552, 0
      %v3617 = vsel %vm535, %v3554, 0
      %v3619 = vsel %vm535, %v3556, 0
      %3621 = vmatpush.msra.mxu0 0.0
      %3622 = vmatpush.msra.mxu0 0.0
      %3623 = vmatpush.msra.mxu0 0.0
      %3624 = vmatpush.msra.mxu0 0.0
      %3625 = vmatpush.msra.mxu0 0.0
      %3626 = vmatpush.msra.mxu0 0.0
      %3627 = vmatpush.msra.mxu0 0.0
      %3628 = vmatpush.msra.mxu0 0.0
      %3629 = vmatpush.msra.mxu0 %v3458
      %3630 = vmatpush.msra.mxu0 %v3457
      %3631 = vmatpush.msra.mxu0 %v3456
      %3632 = vmatpush.msra.mxu0 %v3455
      %3633 = vmatpush.msra.mxu0 %v3454
      %3634 = vmatpush.msra.mxu0 %v3453
      %3635 = vmatpush.msra.mxu0 %v3452
      %3636 = vmatpush.msra.mxu0 %v3451
      %3637 = vmatmul.f32.gmra.mxu0 %v3557
      %v3638 = vpop.f32.mrf.mxu0
      %v3639 = vadd.f32 0.0, %v3638
      %3640 = vmatmul.f32.gmra.mxu0 %v3559
      %v3641 = vpop.f32.mrf.mxu0
      %v3642 = vadd.f32 0.0, %v3641
      %3643 = vmatmul.f32.gmra.mxu0 %v3561
      %v3644 = vpop.f32.mrf.mxu0
      %v3645 = vadd.f32 0.0, %v3644
      %3646 = vmatmul.f32.gmra.mxu0 %v3563
      %v3647 = vpop.f32.mrf.mxu0
      %v3648 = vadd.f32 0.0, %v3647
      %3649 = vmatmul.f32.gmra.mxu0 %v3565
      %v3650 = vpop.f32.mrf.mxu0
      %v3651 = vadd.f32 0.0, %v3650
      %3652 = vmatmul.f32.gmra.mxu0 %v3567
      %v3653 = vpop.f32.mrf.mxu0
      %v3654 = vadd.f32 0.0, %v3653
      %3655 = vmatmul.f32.gmra.mxu0 %v3569
      %v3656 = vpop.f32.mrf.mxu0
      %v3657 = vadd.f32 0.0, %v3656
      %3658 = vmatmul.f32.gmra.mxu0 %v3571
      %v3659 = vpop.f32.mrf.mxu0
      %v3660 = vadd.f32 0.0, %v3659
      %3661 = vmatmul.f32.gmra.mxu0 %v3573
      %v3662 = vpop.f32.mrf.mxu0
      %v3663 = vadd.f32 0.0, %v3662
      %3664 = vmatmul.f32.gmra.mxu0 %v3575
      %v3665 = vpop.f32.mrf.mxu0
      %v3666 = vadd.f32 0.0, %v3665
      %3667 = vmatmul.f32.gmra.mxu0 %v3577
      %v3668 = vpop.f32.mrf.mxu0
      %v3669 = vadd.f32 0.0, %v3668
      %3670 = vmatmul.f32.gmra.mxu0 %v3579
      %v3671 = vpop.f32.mrf.mxu0
      %v3672 = vadd.f32 0.0, %v3671
      %3673 = vmatmul.f32.gmra.mxu0 %v3581
      %v3674 = vpop.f32.mrf.mxu0
      %v3675 = vadd.f32 0.0, %v3674
      %3676 = vmatmul.f32.gmra.mxu0 %v3583
      %v3677 = vpop.f32.mrf.mxu0
      %v3678 = vadd.f32 0.0, %v3677
      %3679 = vmatmul.f32.gmra.mxu0 %v3585
      %v3680 = vpop.f32.mrf.mxu0
      %v3681 = vadd.f32 0.0, %v3680
      %3682 = vmatmul.f32.gmra.mxu0 %v3587
      %v3683 = vpop.f32.mrf.mxu0
      %v3684 = vadd.f32 0.0, %v3683
      %3685 = vmatmul.f32.gmra.mxu0 %v3589
      %v3686 = vpop.f32.mrf.mxu0
      %v3687 = vadd.f32 0.0, %v3686
      %3688 = vmatmul.f32.gmra.mxu0 %v3591
      %v3689 = vpop.f32.mrf.mxu0
      %v3690 = vadd.f32 0.0, %v3689
      %3691 = vmatmul.f32.gmra.mxu0 %v3593
      %v3692 = vpop.f32.mrf.mxu0
      %v3693 = vadd.f32 0.0, %v3692
      %3694 = vmatmul.f32.gmra.mxu0 %v3595
      %v3695 = vpop.f32.mrf.mxu0
      %v3696 = vadd.f32 0.0, %v3695
      %3697 = vmatmul.f32.gmra.mxu0 %v3597
      %v3698 = vpop.f32.mrf.mxu0
      %v3699 = vadd.f32 0.0, %v3698
      %3700 = vmatmul.f32.gmra.mxu0 %v3599
      %v3701 = vpop.f32.mrf.mxu0
      %v3702 = vadd.f32 0.0, %v3701
      %3703 = vmatmul.f32.gmra.mxu0 %v3601
      %v3704 = vpop.f32.mrf.mxu0
      %v3705 = vadd.f32 0.0, %v3704
      %3706 = vmatmul.f32.gmra.mxu0 %v3603
      %v3707 = vpop.f32.mrf.mxu0
      %v3708 = vadd.f32 0.0, %v3707
      %3709 = vmatmul.f32.gmra.mxu0 %v3605
      %v3710 = vpop.f32.mrf.mxu0
      %v3711 = vadd.f32 0.0, %v3710
      %3712 = vmatmul.f32.gmra.mxu0 %v3607
      %v3713 = vpop.f32.mrf.mxu0
      %v3714 = vadd.f32 0.0, %v3713
      %3715 = vmatmul.f32.gmra.mxu0 %v3609
      %v3716 = vpop.f32.mrf.mxu0
      %v3717 = vadd.f32 0.0, %v3716
      %3718 = vmatmul.f32.gmra.mxu0 %v3611
      %v3719 = vpop.f32.mrf.mxu0
      %v3720 = vadd.f32 0.0, %v3719
      %3721 = vmatmul.f32.gmra.mxu0 %v3613
      %v3722 = vpop.f32.mrf.mxu0
      %v3723 = vadd.f32 0.0, %v3722
      %3724 = vmatmul.f32.gmra.mxu0 %v3615
      %v3725 = vpop.f32.mrf.mxu0
      %v3726 = vadd.f32 0.0, %v3725
      %3727 = vmatmul.f32.gmra.mxu0 %v3617
      %v3728 = vpop.f32.mrf.mxu0
      %v3729 = vadd.f32 0.0, %v3728
      %3730 = vmatmul.f32.gmra.mxu0 %v3619
      %v3731 = vpop.f32.mrf.mxu0
      %v3732 = vadd.f32 0.0, %v3731
      %3733 = vdwg.mxu0
      %v3734 = vadd.f32 %v3385, %v3639
      %v3735 = vadd.f32 %v3386, %v3642
      %v3736 = vadd.f32 %v3387, %v3645
      %v3737 = vadd.f32 %v3388, %v3648
      %v3738 = vadd.f32 %v3389, %v3651
      %v3739 = vadd.f32 %v3390, %v3654
      %v3740 = vadd.f32 %v3391, %v3657
      %v3741 = vadd.f32 %v3392, %v3660
      %v3742 = vadd.f32 %v3393, %v3663
      %v3743 = vadd.f32 %v3394, %v3666
      %v3744 = vadd.f32 %v3395, %v3669
      %v3745 = vadd.f32 %v3396, %v3672
      %v3746 = vadd.f32 %v3397, %v3675
      %v3747 = vadd.f32 %v3398, %v3678
      %v3748 = vadd.f32 %v3399, %v3681
      %v3749 = vadd.f32 %v3400, %v3684
      %v3750 = vadd.f32 %v3401, %v3687
      %v3751 = vadd.f32 %v3402, %v3690
      %v3752 = vadd.f32 %v3403, %v3693
      %v3753 = vadd.f32 %v3404, %v3696
      %v3754 = vadd.f32 %v3405, %v3699
      %v3755 = vadd.f32 %v3406, %v3702
      %v3756 = vadd.f32 %v3407, %v3705
      %v3757 = vadd.f32 %v3408, %v3708
      %v3758 = vadd.f32 %v3409, %v3711
      %v3759 = vadd.f32 %v3410, %v3714
      %v3760 = vadd.f32 %v3411, %v3717
      %v3761 = vadd.f32 %v3412, %v3720
      %v3762 = vadd.f32 %v3413, %v3723
      %v3763 = vadd.f32 %v3414, %v3726
      %v3764 = vadd.f32 %v3415, %v3729
      %v3765 = vadd.f32 %v3416, %v3732
      %v3766 = vmul.f32 %v1549, %v1710
      %v3767 = vmul.f32 %v1550, %v1712
      %v3768 = vmul.f32 %v1551, %v1714
      %v3769 = vmul.f32 %v1552, %v1716
      %v3770 = vmul.f32 %v1553, %v1718
      %v3771 = vmul.f32 %v1554, %v1720
      %v3772 = vmul.f32 %v1555, %v1722
      %v3773 = vmul.f32 %v1556, %v1724
      %v3774 = vmul.f32 %v1557, %v1726
      %v3775 = vmul.f32 %v1558, %v1728
      %v3776 = vmul.f32 %v1559, %v1730
      %v3777 = vmul.f32 %v1560, %v1732
      %v3778 = vmul.f32 %v1561, %v1734
      %v3779 = vmul.f32 %v1562, %v1736
      %v3780 = vmul.f32 %v1563, %v1738
      %v3781 = vmul.f32 %v1564, %v1740
      %v3782 = vmul.f32 %v1565, %v1742
      %v3783 = vmul.f32 %v1566, %v1744
      %v3784 = vmul.f32 %v1567, %v1746
      %v3785 = vmul.f32 %v1568, %v1748
      %v3786 = vmul.f32 %v1569, %v1750
      %v3787 = vmul.f32 %v1570, %v1752
      %v3788 = vmul.f32 %v1571, %v1754
      %v3789 = vmul.f32 %v1572, %v1756
      %v3790 = vmul.f32 %v1573, %v1758
      %v3791 = vmul.f32 %v1574, %v1760
      %v3792 = vmul.f32 %v1575, %v1762
      %v3793 = vmul.f32 %v1576, %v1764
      %v3794 = vmul.f32 %v1577, %v1766
      %v3795 = vmul.f32 %v1578, %v1768
      %v3796 = vmul.f32 %v1579, %v1770
      %v3797 = vmul.f32 %v1772, 0.0
      %v3798 = vmul.f32 %v1771, 0.0
      %s3799 = scalar_lea.vmem %s6, 384
      %v3800 = vld [vmem:[%s3799] sm:$0xff]
      %v3801 = vld [vmem:[%s3799 + $0x8] sm:$0xff]
      %v3802 = vld [vmem:[%s3799 + $0x10] sm:$0xff]
      %v3803 = vld [vmem:[%s3799 + $0x18] sm:$0xff]
      %v3804 = vld [vmem:[%s3799 + $0x20] sm:$0xff]
      %v3805 = vld [vmem:[%s3799 + $0x28] sm:$0xff]
      %v3806 = vld [vmem:[%s3799 + $0x30] sm:$0xff]
      %v3807 = vld [vmem:[%s3799 + $0x38] sm:$0xff]
      %v3841 = vrot.slane %v3766, 7
      %v3842 = vrot.slane %v3767, 7
      %v3843 = vsel %vm2095, %v3841, %v3842
      %v3844 = vrot.slane %v3768, 7
      %v3845 = vsel %vm2095, %v3842, %v3844
      %v3846 = vrot.slane %v3769, 7
      %v3847 = vsel %vm2095, %v3844, %v3846
      %v3848 = vrot.slane %v3770, 7
      %v3849 = vsel %vm2095, %v3846, %v3848
      %v3850 = vrot.slane %v3771, 7
      %v3851 = vsel %vm2095, %v3848, %v3850
      %v3852 = vrot.slane %v3772, 7
      %v3853 = vsel %vm2095, %v3850, %v3852
      %v3854 = vrot.slane %v3773, 7
      %v3855 = vsel %vm2095, %v3852, %v3854
      %v3856 = vrot.slane %v3774, 7
      %v3857 = vsel %vm2095, %v3854, %v3856
      %v3858 = vrot.slane %v3775, 7
      %v3859 = vsel %vm2095, %v3856, %v3858
      %v3860 = vrot.slane %v3776, 7
      %v3861 = vsel %vm2095, %v3858, %v3860
      %v3862 = vrot.slane %v3777, 7
      %v3863 = vsel %vm2095, %v3860, %v3862
      %v3864 = vrot.slane %v3778, 7
      %v3865 = vsel %vm2095, %v3862, %v3864
      %v3866 = vrot.slane %v3779, 7
      %v3867 = vsel %vm2095, %v3864, %v3866
      %v3868 = vrot.slane %v3780, 7
      %v3869 = vsel %vm2095, %v3866, %v3868
      %v3870 = vrot.slane %v3781, 7
      %v3871 = vsel %vm2095, %v3868, %v3870
      %v3872 = vrot.slane %v3782, 7
      %v3873 = vsel %vm2095, %v3870, %v3872
      %v3874 = vrot.slane %v3783, 7
      %v3875 = vsel %vm2095, %v3872, %v3874
      %v3876 = vrot.slane %v3784, 7
      %v3877 = vsel %vm2095, %v3874, %v3876
      %v3878 = vrot.slane %v3785, 7
      %v3879 = vsel %vm2095, %v3876, %v3878
      %v3880 = vrot.slane %v3786, 7
      %v3881 = vsel %vm2095, %v3878, %v3880
      %v3882 = vrot.slane %v3787, 7
      %v3883 = vsel %vm2095, %v3880, %v3882
      %v3884 = vrot.slane %v3788, 7
      %v3885 = vsel %vm2095, %v3882, %v3884
      %v3886 = vrot.slane %v3789, 7
      %v3887 = vsel %vm2095, %v3884, %v3886
      %v3888 = vrot.slane %v3790, 7
      %v3889 = vsel %vm2095, %v3886, %v3888
      %v3890 = vrot.slane %v3791, 7
      %v3891 = vsel %vm2095, %v3888, %v3890
      %v3892 = vrot.slane %v3792, 7
      %v3893 = vsel %vm2095, %v3890, %v3892
      %v3894 = vrot.slane %v3793, 7
      %v3895 = vsel %vm2095, %v3892, %v3894
      %v3896 = vrot.slane %v3794, 7
      %v3897 = vsel %vm2095, %v3894, %v3896
      %v3898 = vrot.slane %v3795, 7
      %v3899 = vsel %vm2095, %v3896, %v3898
      %v3900 = vrot.slane %v3796, 7
      %v3901 = vsel %vm2095, %v3898, %v3900
      %v3902 = vrot.slane %v3797, 7
      %v3903 = vsel %vm2095, %v3900, %v3902
      %v3904 = vrot.slane %v3798, 7
      %v3905 = vsel %vm2095, %v3902, %v3904
      %v3906 = vsel %vm535, %v3843, 0
      %v3908 = vsel %vm535, %v3845, 0
      %v3910 = vsel %vm535, %v3847, 0
      %v3912 = vsel %vm535, %v3849, 0
      %v3914 = vsel %vm535, %v3851, 0
      %v3916 = vsel %vm535, %v3853, 0
      %v3918 = vsel %vm535, %v3855, 0
      %v3920 = vsel %vm535, %v3857, 0
      %v3922 = vsel %vm535, %v3859, 0
      %v3924 = vsel %vm535, %v3861, 0
      %v3926 = vsel %vm535, %v3863, 0
      %v3928 = vsel %vm535, %v3865, 0
      %v3930 = vsel %vm535, %v3867, 0
      %v3932 = vsel %vm535, %v3869, 0
      %v3934 = vsel %vm535, %v3871, 0
      %v3936 = vsel %vm535, %v3873, 0
      %v3938 = vsel %vm535, %v3875, 0
      %v3940 = vsel %vm535, %v3877, 0
      %v3942 = vsel %vm535, %v3879, 0
      %v3944 = vsel %vm535, %v3881, 0
      %v3946 = vsel %vm535, %v3883, 0
      %v3948 = vsel %vm535, %v3885, 0
      %v3950 = vsel %vm535, %v3887, 0
      %v3952 = vsel %vm535, %v3889, 0
      %v3954 = vsel %vm535, %v3891, 0
      %v3956 = vsel %vm535, %v3893, 0
      %v3958 = vsel %vm535, %v3895, 0
      %v3960 = vsel %vm535, %v3897, 0
      %v3962 = vsel %vm535, %v3899, 0
      %v3964 = vsel %vm535, %v3901, 0
      %v3966 = vsel %vm535, %v3903, 0
      %v3968 = vsel %vm535, %v3905, 0
      %3970 = vmatpush.msra.mxu0 0.0
      %3971 = vmatpush.msra.mxu0 0.0
      %3972 = vmatpush.msra.mxu0 0.0
      %3973 = vmatpush.msra.mxu0 0.0
      %3974 = vmatpush.msra.mxu0 0.0
      %3975 = vmatpush.msra.mxu0 0.0
      %3976 = vmatpush.msra.mxu0 0.0
      %3977 = vmatpush.msra.mxu0 0.0
      %3978 = vmatpush.msra.mxu0 %v3807
      %3979 = vmatpush.msra.mxu0 %v3806
      %3980 = vmatpush.msra.mxu0 %v3805
      %3981 = vmatpush.msra.mxu0 %v3804
      %3982 = vmatpush.msra.mxu0 %v3803
      %3983 = vmatpush.msra.mxu0 %v3802
      %3984 = vmatpush.msra.mxu0 %v3801
      %3985 = vmatpush.msra.mxu0 %v3800
      %3986 = vmatmul.f32.gmra.mxu0 %v3906
      %v3987 = vpop.f32.mrf.mxu0
      %v3988 = vadd.f32 0.0, %v3987
      %3989 = vmatmul.f32.gmra.mxu0 %v3908
      %v3990 = vpop.f32.mrf.mxu0
      %v3991 = vadd.f32 0.0, %v3990
      %3992 = vmatmul.f32.gmra.mxu0 %v3910
      %v3993 = vpop.f32.mrf.mxu0
      %v3994 = vadd.f32 0.0, %v3993
      %3995 = vmatmul.f32.gmra.mxu0 %v3912
      %v3996 = vpop.f32.mrf.mxu0
      %v3997 = vadd.f32 0.0, %v3996
      %3998 = vmatmul.f32.gmra.mxu0 %v3914
      %v3999 = vpop.f32.mrf.mxu0
      %v4000 = vadd.f32 0.0, %v3999
      %4001 = vmatmul.f32.gmra.mxu0 %v3916
      %v4002 = vpop.f32.mrf.mxu0
      %v4003 = vadd.f32 0.0, %v4002
      %4004 = vmatmul.f32.gmra.mxu0 %v3918
      %v4005 = vpop.f32.mrf.mxu0
      %v4006 = vadd.f32 0.0, %v4005
      %4007 = vmatmul.f32.gmra.mxu0 %v3920
      %v4008 = vpop.f32.mrf.mxu0
      %v4009 = vadd.f32 0.0, %v4008
      %4010 = vmatmul.f32.gmra.mxu0 %v3922
      %v4011 = vpop.f32.mrf.mxu0
      %v4012 = vadd.f32 0.0, %v4011
      %4013 = vmatmul.f32.gmra.mxu0 %v3924
      %v4014 = vpop.f32.mrf.mxu0
      %v4015 = vadd.f32 0.0, %v4014
      %4016 = vmatmul.f32.gmra.mxu0 %v3926
      %v4017 = vpop.f32.mrf.mxu0
      %v4018 = vadd.f32 0.0, %v4017
      %4019 = vmatmul.f32.gmra.mxu0 %v3928
      %v4020 = vpop.f32.mrf.mxu0
      %v4021 = vadd.f32 0.0, %v4020
      %4022 = vmatmul.f32.gmra.mxu0 %v3930
      %v4023 = vpop.f32.mrf.mxu0
      %v4024 = vadd.f32 0.0, %v4023
      %4025 = vmatmul.f32.gmra.mxu0 %v3932
      %v4026 = vpop.f32.mrf.mxu0
      %v4027 = vadd.f32 0.0, %v4026
      %4028 = vmatmul.f32.gmra.mxu0 %v3934
      %v4029 = vpop.f32.mrf.mxu0
      %v4030 = vadd.f32 0.0, %v4029
      %4031 = vmatmul.f32.gmra.mxu0 %v3936
      %v4032 = vpop.f32.mrf.mxu0
      %v4033 = vadd.f32 0.0, %v4032
      %4034 = vmatmul.f32.gmra.mxu0 %v3938
      %v4035 = vpop.f32.mrf.mxu0
      %v4036 = vadd.f32 0.0, %v4035
      %4037 = vmatmul.f32.gmra.mxu0 %v3940
      %v4038 = vpop.f32.mrf.mxu0
      %v4039 = vadd.f32 0.0, %v4038
      %4040 = vmatmul.f32.gmra.mxu0 %v3942
      %v4041 = vpop.f32.mrf.mxu0
      %v4042 = vadd.f32 0.0, %v4041
      %4043 = vmatmul.f32.gmra.mxu0 %v3944
      %v4044 = vpop.f32.mrf.mxu0
      %v4045 = vadd.f32 0.0, %v4044
      %4046 = vmatmul.f32.gmra.mxu0 %v3946
      %v4047 = vpop.f32.mrf.mxu0
      %v4048 = vadd.f32 0.0, %v4047
      %4049 = vmatmul.f32.gmra.mxu0 %v3948
      %v4050 = vpop.f32.mrf.mxu0
      %v4051 = vadd.f32 0.0, %v4050
      %4052 = vmatmul.f32.gmra.mxu0 %v3950
      %v4053 = vpop.f32.mrf.mxu0
      %v4054 = vadd.f32 0.0, %v4053
      %4055 = vmatmul.f32.gmra.mxu0 %v3952
      %v4056 = vpop.f32.mrf.mxu0
      %v4057 = vadd.f32 0.0, %v4056
      %4058 = vmatmul.f32.gmra.mxu0 %v3954
      %v4059 = vpop.f32.mrf.mxu0
      %v4060 = vadd.f32 0.0, %v4059
      %4061 = vmatmul.f32.gmra.mxu0 %v3956
      %v4062 = vpop.f32.mrf.mxu0
      %v4063 = vadd.f32 0.0, %v4062
      %4064 = vmatmul.f32.gmra.mxu0 %v3958
      %v4065 = vpop.f32.mrf.mxu0
      %v4066 = vadd.f32 0.0, %v4065
      %4067 = vmatmul.f32.gmra.mxu0 %v3960
      %v4068 = vpop.f32.mrf.mxu0
      %v4069 = vadd.f32 0.0, %v4068
      %4070 = vmatmul.f32.gmra.mxu0 %v3962
      %v4071 = vpop.f32.mrf.mxu0
      %v4072 = vadd.f32 0.0, %v4071
      %4073 = vmatmul.f32.gmra.mxu0 %v3964
      %v4074 = vpop.f32.mrf.mxu0
      %v4075 = vadd.f32 0.0, %v4074
      %4076 = vmatmul.f32.gmra.mxu0 %v3966
      %v4077 = vpop.f32.mrf.mxu0
      %v4078 = vadd.f32 0.0, %v4077
      %4079 = vmatmul.f32.gmra.mxu0 %v3968
      %v4080 = vpop.f32.mrf.mxu0
      %v4081 = vadd.f32 0.0, %v4080
      %4082 = vdwg.mxu0
      %v4083 = vadd.f32 %v3734, %v3988
      %v4084 = vadd.f32 %v3735, %v3991
      %v4085 = vadd.f32 %v3736, %v3994
      %v4086 = vadd.f32 %v3737, %v3997
      %v4087 = vadd.f32 %v3738, %v4000
      %v4088 = vadd.f32 %v3739, %v4003
      %v4089 = vadd.f32 %v3740, %v4006
      %v4090 = vadd.f32 %v3741, %v4009
      %v4091 = vadd.f32 %v3742, %v4012
      %v4092 = vadd.f32 %v3743, %v4015
      %v4093 = vadd.f32 %v3744, %v4018
      %v4094 = vadd.f32 %v3745, %v4021
      %v4095 = vadd.f32 %v3746, %v4024
      %v4096 = vadd.f32 %v3747, %v4027
      %v4097 = vadd.f32 %v3748, %v4030
      %v4098 = vadd.f32 %v3749, %v4033
      %v4099 = vadd.f32 %v3750, %v4036
      %v4100 = vadd.f32 %v3751, %v4039
      %v4101 = vadd.f32 %v3752, %v4042
      %v4102 = vadd.f32 %v3753, %v4045
      %v4103 = vadd.f32 %v3754, %v4048
      %v4104 = vadd.f32 %v3755, %v4051
      %v4105 = vadd.f32 %v3756, %v4054
      %v4106 = vadd.f32 %v3757, %v4057
      %v4107 = vadd.f32 %v3758, %v4060
      %v4108 = vadd.f32 %v3759, %v4063
      %v4109 = vadd.f32 %v3760, %v4066
      %v4110 = vadd.f32 %v3761, %v4069
      %v4111 = vadd.f32 %v3762, %v4072
      %v4112 = vadd.f32 %v3763, %v4075
      %v4113 = vadd.f32 %v3764, %v4078
      %v4114 = vadd.f32 %v3765, %v4081
      %s4115 = scalar_lea.vmem %s6, 448
      %v4116 = vld [vmem:[%s4115] sm:$0xff]
      %v4117 = vld [vmem:[%s4115 + $0x8] sm:$0xff]
      %v4118 = vld [vmem:[%s4115 + $0x10] sm:$0xff]
      %v4119 = vld [vmem:[%s4115 + $0x18] sm:$0xff]
      %v4120 = vld [vmem:[%s4115 + $0x20] sm:$0xff]
      %v4121 = vld [vmem:[%s4115 + $0x28] sm:$0xff]
      %v4122 = vld [vmem:[%s4115 + $0x30] sm:$0xff]
      %v4123 = vld [vmem:[%s4115 + $0x38] sm:$0xff]
      %4124 = vmatpush.msra.mxu0 0.0
      %4125 = vmatpush.msra.mxu0 0.0
      %4126 = vmatpush.msra.mxu0 0.0
      %4127 = vmatpush.msra.mxu0 0.0
      %4128 = vmatpush.msra.mxu0 0.0
      %4129 = vmatpush.msra.mxu0 0.0
      %4130 = vmatpush.msra.mxu0 0.0
      %4131 = vmatpush.msra.mxu0 0.0
      %4132 = vmatpush.msra.mxu0 %v4123
      %4133 = vmatpush.msra.mxu0 %v4122
      %4134 = vmatpush.msra.mxu0 %v4121
      %4135 = vmatpush.msra.mxu0 %v4120
      %4136 = vmatpush.msra.mxu0 %v4119
      %4137 = vmatpush.msra.mxu0 %v4118
      %4138 = vmatpush.msra.mxu0 %v4117
      %4139 = vmatpush.msra.mxu0 %v4116
      %4140 = vmatmul.f32.gmra.mxu0 %v1866
      %v4141 = vpop.f32.mrf.mxu0
      %v4142 = vadd.f32 0.0, %v4141
      %4143 = vmatmul.f32.gmra.mxu0 %v1869
      %v4144 = vpop.f32.mrf.mxu0
      %v4145 = vadd.f32 0.0, %v4144
      %4146 = vmatmul.f32.gmra.mxu0 %v1872
      %v4147 = vpop.f32.mrf.mxu0
      %v4148 = vadd.f32 0.0, %v4147
      %4149 = vmatmul.f32.gmra.mxu0 %v1875
      %v4150 = vpop.f32.mrf.mxu0
      %v4151 = vadd.f32 0.0, %v4150
      %4152 = vmatmul.f32.gmra.mxu0 %v1878
      %v4153 = vpop.f32.mrf.mxu0
      %v4154 = vadd.f32 0.0, %v4153
      %4155 = vmatmul.f32.gmra.mxu0 %v1881
      %v4156 = vpop.f32.mrf.mxu0
      %v4157 = vadd.f32 0.0, %v4156
      %4158 = vmatmul.f32.gmra.mxu0 %v1884
      %v4159 = vpop.f32.mrf.mxu0
      %v4160 = vadd.f32 0.0, %v4159
      %4161 = vmatmul.f32.gmra.mxu0 %v1887
      %v4162 = vpop.f32.mrf.mxu0
      %v4163 = vadd.f32 0.0, %v4162
      %4164 = vmatmul.f32.gmra.mxu0 %v1890
      %v4165 = vpop.f32.mrf.mxu0
      %v4166 = vadd.f32 0.0, %v4165
      %4167 = vmatmul.f32.gmra.mxu0 %v1893
      %v4168 = vpop.f32.mrf.mxu0
      %v4169 = vadd.f32 0.0, %v4168
      %4170 = vmatmul.f32.gmra.mxu0 %v1896
      %v4171 = vpop.f32.mrf.mxu0
      %v4172 = vadd.f32 0.0, %v4171
      %4173 = vmatmul.f32.gmra.mxu0 %v1899
      %v4174 = vpop.f32.mrf.mxu0
      %v4175 = vadd.f32 0.0, %v4174
      %4176 = vmatmul.f32.gmra.mxu0 %v1902
      %v4177 = vpop.f32.mrf.mxu0
      %v4178 = vadd.f32 0.0, %v4177
      %4179 = vmatmul.f32.gmra.mxu0 %v1905
      %v4180 = vpop.f32.mrf.mxu0
      %v4181 = vadd.f32 0.0, %v4180
      %4182 = vmatmul.f32.gmra.mxu0 %v1908
      %v4183 = vpop.f32.mrf.mxu0
      %v4184 = vadd.f32 0.0, %v4183
      %4185 = vmatmul.f32.gmra.mxu0 %v1911
      %v4186 = vpop.f32.mrf.mxu0
      %v4187 = vadd.f32 0.0, %v4186
      %4188 = vmatmul.f32.gmra.mxu0 %v1914
      %v4189 = vpop.f32.mrf.mxu0
      %v4190 = vadd.f32 0.0, %v4189
      %4191 = vmatmul.f32.gmra.mxu0 %v1917
      %v4192 = vpop.f32.mrf.mxu0
      %v4193 = vadd.f32 0.0, %v4192
      %4194 = vmatmul.f32.gmra.mxu0 %v1920
      %v4195 = vpop.f32.mrf.mxu0
      %v4196 = vadd.f32 0.0, %v4195
      %4197 = vmatmul.f32.gmra.mxu0 %v1923
      %v4198 = vpop.f32.mrf.mxu0
      %v4199 = vadd.f32 0.0, %v4198
      %4200 = vmatmul.f32.gmra.mxu0 %v1926
      %v4201 = vpop.f32.mrf.mxu0
      %v4202 = vadd.f32 0.0, %v4201
      %4203 = vmatmul.f32.gmra.mxu0 %v1929
      %v4204 = vpop.f32.mrf.mxu0
      %v4205 = vadd.f32 0.0, %v4204
      %4206 = vmatmul.f32.gmra.mxu0 %v1932
      %v4207 = vpop.f32.mrf.mxu0
      %v4208 = vadd.f32 0.0, %v4207
      %4209 = vmatmul.f32.gmra.mxu0 %v1935
      %v4210 = vpop.f32.mrf.mxu0
      %v4211 = vadd.f32 0.0, %v4210
      %4212 = vmatmul.f32.gmra.mxu0 %v1938
      %v4213 = vpop.f32.mrf.mxu0
      %v4214 = vadd.f32 0.0, %v4213
      %4215 = vmatmul.f32.gmra.mxu0 %v1941
      %v4216 = vpop.f32.mrf.mxu0
      %v4217 = vadd.f32 0.0, %v4216
      %4218 = vmatmul.f32.gmra.mxu0 %v1944
      %v4219 = vpop.f32.mrf.mxu0
      %v4220 = vadd.f32 0.0, %v4219
      %4221 = vmatmul.f32.gmra.mxu0 %v1947
      %v4222 = vpop.f32.mrf.mxu0
      %v4223 = vadd.f32 0.0, %v4222
      %4224 = vmatmul.f32.gmra.mxu0 %v3267
      %v4225 = vpop.f32.mrf.mxu0
      %v4226 = vadd.f32 0.0, %v4225
      %4227 = vmatmul.f32.gmra.mxu0 %v3270
      %v4228 = vpop.f32.mrf.mxu0
      %v4229 = vadd.f32 0.0, %v4228
      %4230 = vmatmul.f32.gmra.mxu0 %v1857
      %v4231 = vpop.f32.mrf.mxu0
      %v4232 = vadd.f32 0.0, %v4231
      %4233 = vmatmul.f32.gmra.mxu0 %v1857
      %v4234 = vpop.f32.mrf.mxu0
      %v4235 = vadd.f32 0.0, %v4234
      %4236 = vdwg.mxu0
      %v4237 = vadd.f32 %v4083, %v4142
      %v4238 = vadd.f32 %v4084, %v4145
      %v4239 = vadd.f32 %v4085, %v4148
      %v4240 = vadd.f32 %v4086, %v4151
      %v4241 = vadd.f32 %v4087, %v4154
      %v4242 = vadd.f32 %v4088, %v4157
      %v4243 = vadd.f32 %v4089, %v4160
      %v4244 = vadd.f32 %v4090, %v4163
      %v4245 = vadd.f32 %v4091, %v4166
      %v4246 = vadd.f32 %v4092, %v4169
      %v4247 = vadd.f32 %v4093, %v4172
      %v4248 = vadd.f32 %v4094, %v4175
      %v4249 = vadd.f32 %v4095, %v4178
      %v4250 = vadd.f32 %v4096, %v4181
      %v4251 = vadd.f32 %v4097, %v4184
      %v4252 = vadd.f32 %v4098, %v4187
      %v4253 = vadd.f32 %v4099, %v4190
      %v4254 = vadd.f32 %v4100, %v4193
      %v4255 = vadd.f32 %v4101, %v4196
      %v4256 = vadd.f32 %v4102, %v4199
      %v4257 = vadd.f32 %v4103, %v4202
      %v4258 = vadd.f32 %v4104, %v4205
      %v4259 = vadd.f32 %v4105, %v4208
      %v4260 = vadd.f32 %v4106, %v4211
      %v4261 = vadd.f32 %v4107, %v4214
      %v4262 = vadd.f32 %v4108, %v4217
      %v4263 = vadd.f32 %v4109, %v4220
      %v4264 = vadd.f32 %v4110, %v4223
      %v4265 = vadd.f32 %v4111, %v4226
      %v4266 = vadd.f32 %v4112, %v4229
      %v4267 = vadd.f32 %v4113, %v4232
      %v4268 = vadd.f32 %v4114, %v4235
      %v4269 = vmul.f32 %v1550, %v2466
      %v4270 = vmul.f32 %v1551, %v2468
      %v4271 = vmul.f32 %v1552, %v2470
      %v4272 = vmul.f32 %v1553, %v2472
      %v4273 = vmul.f32 %v1554, %v2474
      %v4274 = vmul.f32 %v1555, %v2476
      %v4275 = vmul.f32 %v1556, %v2478
      %v4276 = vmul.f32 %v1557, %v2480
      %v4277 = vmul.f32 %v1558, %v2482
      %v4278 = vmul.f32 %v1559, %v2484
      %v4279 = vmul.f32 %v1560, %v2486
      %v4280 = vmul.f32 %v1561, %v2488
      %v4281 = vmul.f32 %v1562, %v2490
      %v4282 = vmul.f32 %v1563, %v2492
      %v4283 = vmul.f32 %v1564, %v2494
      %v4284 = vmul.f32 %v1565, %v2496
      %v4285 = vmul.f32 %v1566, %v2498
      %v4286 = vmul.f32 %v1567, %v2500
      %v4287 = vmul.f32 %v1568, %v2502
      %v4288 = vmul.f32 %v1569, %v2504
      %v4289 = vmul.f32 %v1570, %v2506
      %v4290 = vmul.f32 %v1571, %v2508
      %v4291 = vmul.f32 %v1572, %v2510
      %v4292 = vmul.f32 %v1573, %v2512
      %v4293 = vmul.f32 %v1574, %v2514
      %v4294 = vmul.f32 %v1575, %v2516
      %v4295 = vmul.f32 %v1576, %v2518
      %v4296 = vmul.f32 %v1577, %v2520
      %v4297 = vmul.f32 %v1578, %v2522
      %v4298 = vmul.f32 %v1579, %v2524
      %v4299 = vmul.f32 %v2526, 0.0
      %v4300 = vmul.f32 %v2528, 0.0
      %s4301 = scalar_lea.vmem %s6, 512
      %v4302 = vld [vmem:[%s4301] sm:$0xff]
      %v4303 = vld [vmem:[%s4301 + $0x8] sm:$0xff]
      %v4304 = vld [vmem:[%s4301 + $0x10] sm:$0xff]
      %v4305 = vld [vmem:[%s4301 + $0x18] sm:$0xff]
      %v4306 = vld [vmem:[%s4301 + $0x20] sm:$0xff]
      %v4307 = vld [vmem:[%s4301 + $0x28] sm:$0xff]
      %v4308 = vld [vmem:[%s4301 + $0x30] sm:$0xff]
      %v4309 = vld [vmem:[%s4301 + $0x38] sm:$0xff]
      %v4342 = vrot.slane %v4269, 1
      %v4343 = vrot.slane %v4270, 1
      %v4344 = vsel %vm1709, %v4342, %v4343
      %v4345 = vrot.slane %v4271, 1
      %v4346 = vsel %vm1709, %v4343, %v4345
      %v4347 = vrot.slane %v4272, 1
      %v4348 = vsel %vm1709, %v4345, %v4347
      %v4349 = vrot.slane %v4273, 1
      %v4350 = vsel %vm1709, %v4347, %v4349
      %v4351 = vrot.slane %v4274, 1
      %v4352 = vsel %vm1709, %v4349, %v4351
      %v4353 = vrot.slane %v4275, 1
      %v4354 = vsel %vm1709, %v4351, %v4353
      %v4355 = vrot.slane %v4276, 1
      %v4356 = vsel %vm1709, %v4353, %v4355
      %v4357 = vrot.slane %v4277, 1
      %v4358 = vsel %vm1709, %v4355, %v4357
      %v4359 = vrot.slane %v4278, 1
      %v4360 = vsel %vm1709, %v4357, %v4359
      %v4361 = vrot.slane %v4279, 1
      %v4362 = vsel %vm1709, %v4359, %v4361
      %v4363 = vrot.slane %v4280, 1
      %v4364 = vsel %vm1709, %v4361, %v4363
      %v4365 = vrot.slane %v4281, 1
      %v4366 = vsel %vm1709, %v4363, %v4365
      %v4367 = vrot.slane %v4282, 1
      %v4368 = vsel %vm1709, %v4365, %v4367
      %v4369 = vrot.slane %v4283, 1
      %v4370 = vsel %vm1709, %v4367, %v4369
      %v4371 = vrot.slane %v4284, 1
      %v4372 = vsel %vm1709, %v4369, %v4371
      %v4373 = vrot.slane %v4285, 1
      %v4374 = vsel %vm1709, %v4371, %v4373
      %v4375 = vrot.slane %v4286, 1
      %v4376 = vsel %vm1709, %v4373, %v4375
      %v4377 = vrot.slane %v4287, 1
      %v4378 = vsel %vm1709, %v4375, %v4377
      %v4379 = vrot.slane %v4288, 1
      %v4380 = vsel %vm1709, %v4377, %v4379
      %v4381 = vrot.slane %v4289, 1
      %v4382 = vsel %vm1709, %v4379, %v4381
      %v4383 = vrot.slane %v4290, 1
      %v4384 = vsel %vm1709, %v4381, %v4383
      %v4385 = vrot.slane %v4291, 1
      %v4386 = vsel %vm1709, %v4383, %v4385
      %v4387 = vrot.slane %v4292, 1
      %v4388 = vsel %vm1709, %v4385, %v4387
      %v4389 = vrot.slane %v4293, 1
      %v4390 = vsel %vm1709, %v4387, %v4389
      %v4391 = vrot.slane %v4294, 1
      %v4392 = vsel %vm1709, %v4389, %v4391
      %v4393 = vrot.slane %v4295, 1
      %v4394 = vsel %vm1709, %v4391, %v4393
      %v4395 = vrot.slane %v4296, 1
      %v4396 = vsel %vm1709, %v4393, %v4395
      %v4397 = vrot.slane %v4297, 1
      %v4398 = vsel %vm1709, %v4395, %v4397
      %v4399 = vrot.slane %v4298, 1
      %v4400 = vsel %vm1709, %v4397, %v4399
      %v4401 = vrot.slane %v4299, 1
      %v4402 = vsel %vm1709, %v4399, %v4401
      %v4403 = vrot.slane %v4300, 1
      %v4404 = vsel %vm1709, %v4401, %v4403
      %v4405 = vsel %vm1709, %v4403, %v3555
      %v4406 = vsel %vm535, %v4344, 0
      %v4408 = vsel %vm535, %v4346, 0
      %v4410 = vsel %vm535, %v4348, 0
      %v4412 = vsel %vm535, %v4350, 0
      %v4414 = vsel %vm535, %v4352, 0
      %v4416 = vsel %vm535, %v4354, 0
      %v4418 = vsel %vm535, %v4356, 0
      %v4420 = vsel %vm535, %v4358, 0
      %v4422 = vsel %vm535, %v4360, 0
      %v4424 = vsel %vm535, %v4362, 0
      %v4426 = vsel %vm535, %v4364, 0
      %v4428 = vsel %vm535, %v4366, 0
      %v4430 = vsel %vm535, %v4368, 0
      %v4432 = vsel %vm535, %v4370, 0
      %v4434 = vsel %vm535, %v4372, 0
      %v4436 = vsel %vm535, %v4374, 0
      %v4438 = vsel %vm535, %v4376, 0
      %v4440 = vsel %vm535, %v4378, 0
      %v4442 = vsel %vm535, %v4380, 0
      %v4444 = vsel %vm535, %v4382, 0
      %v4446 = vsel %vm535, %v4384, 0
      %v4448 = vsel %vm535, %v4386, 0
      %v4450 = vsel %vm535, %v4388, 0
      %v4452 = vsel %vm535, %v4390, 0
      %v4454 = vsel %vm535, %v4392, 0
      %v4456 = vsel %vm535, %v4394, 0
      %v4458 = vsel %vm535, %v4396, 0
      %v4460 = vsel %vm535, %v4398, 0
      %v4462 = vsel %vm535, %v4400, 0
      %v4464 = vsel %vm535, %v4402, 0
      %v4466 = vsel %vm535, %v4404, 0
      %v4468 = vsel %vm535, %v4405, 0
      %4470 = vmatpush.msra.mxu0 0.0
      %4471 = vmatpush.msra.mxu0 0.0
      %4472 = vmatpush.msra.mxu0 0.0
      %4473 = vmatpush.msra.mxu0 0.0
      %4474 = vmatpush.msra.mxu0 0.0
      %4475 = vmatpush.msra.mxu0 0.0
      %4476 = vmatpush.msra.mxu0 0.0
      %4477 = vmatpush.msra.mxu0 0.0
      %4478 = vmatpush.msra.mxu0 %v4309
      %4479 = vmatpush.msra.mxu0 %v4308
      %4480 = vmatpush.msra.mxu0 %v4307
      %4481 = vmatpush.msra.mxu0 %v4306
      %4482 = vmatpush.msra.mxu0 %v4305
      %4483 = vmatpush.msra.mxu0 %v4304
      %4484 = vmatpush.msra.mxu0 %v4303
      %4485 = vmatpush.msra.mxu0 %v4302
      %4486 = vmatmul.f32.gmra.mxu0 %v4406
      %v4487 = vpop.f32.mrf.mxu0
      %v4488 = vadd.f32 0.0, %v4487
      %4489 = vmatmul.f32.gmra.mxu0 %v4408
      %v4490 = vpop.f32.mrf.mxu0
      %v4491 = vadd.f32 0.0, %v4490
      %4492 = vmatmul.f32.gmra.mxu0 %v4410
      %v4493 = vpop.f32.mrf.mxu0
      %v4494 = vadd.f32 0.0, %v4493
      %4495 = vmatmul.f32.gmra.mxu0 %v4412
      %v4496 = vpop.f32.mrf.mxu0
      %v4497 = vadd.f32 0.0, %v4496
      %4498 = vmatmul.f32.gmra.mxu0 %v4414
      %v4499 = vpop.f32.mrf.mxu0
      %v4500 = vadd.f32 0.0, %v4499
      %4501 = vmatmul.f32.gmra.mxu0 %v4416
      %v4502 = vpop.f32.mrf.mxu0
      %v4503 = vadd.f32 0.0, %v4502
      %4504 = vmatmul.f32.gmra.mxu0 %v4418
      %v4505 = vpop.f32.mrf.mxu0
      %v4506 = vadd.f32 0.0, %v4505
      %4507 = vmatmul.f32.gmra.mxu0 %v4420
      %v4508 = vpop.f32.mrf.mxu0
      %v4509 = vadd.f32 0.0, %v4508
      %4510 = vmatmul.f32.gmra.mxu0 %v4422
      %v4511 = vpop.f32.mrf.mxu0
      %v4512 = vadd.f32 0.0, %v4511
      %4513 = vmatmul.f32.gmra.mxu0 %v4424
      %v4514 = vpop.f32.mrf.mxu0
      %v4515 = vadd.f32 0.0, %v4514
      %4516 = vmatmul.f32.gmra.mxu0 %v4426
      %v4517 = vpop.f32.mrf.mxu0
      %v4518 = vadd.f32 0.0, %v4517
      %4519 = vmatmul.f32.gmra.mxu0 %v4428
      %v4520 = vpop.f32.mrf.mxu0
      %v4521 = vadd.f32 0.0, %v4520
      %4522 = vmatmul.f32.gmra.mxu0 %v4430
      %v4523 = vpop.f32.mrf.mxu0
      %v4524 = vadd.f32 0.0, %v4523
      %4525 = vmatmul.f32.gmra.mxu0 %v4432
      %v4526 = vpop.f32.mrf.mxu0
      %v4527 = vadd.f32 0.0, %v4526
      %4528 = vmatmul.f32.gmra.mxu0 %v4434
      %v4529 = vpop.f32.mrf.mxu0
      %v4530 = vadd.f32 0.0, %v4529
      %4531 = vmatmul.f32.gmra.mxu0 %v4436
      %v4532 = vpop.f32.mrf.mxu0
      %v4533 = vadd.f32 0.0, %v4532
      %4534 = vmatmul.f32.gmra.mxu0 %v4438
      %v4535 = vpop.f32.mrf.mxu0
      %v4536 = vadd.f32 0.0, %v4535
      %4537 = vmatmul.f32.gmra.mxu0 %v4440
      %v4538 = vpop.f32.mrf.mxu0
      %v4539 = vadd.f32 0.0, %v4538
      %4540 = vmatmul.f32.gmra.mxu0 %v4442
      %v4541 = vpop.f32.mrf.mxu0
      %v4542 = vadd.f32 0.0, %v4541
      %4543 = vmatmul.f32.gmra.mxu0 %v4444
      %v4544 = vpop.f32.mrf.mxu0
      %v4545 = vadd.f32 0.0, %v4544
      %4546 = vmatmul.f32.gmra.mxu0 %v4446
      %v4547 = vpop.f32.mrf.mxu0
      %v4548 = vadd.f32 0.0, %v4547
      %4549 = vmatmul.f32.gmra.mxu0 %v4448
      %v4550 = vpop.f32.mrf.mxu0
      %v4551 = vadd.f32 0.0, %v4550
      %4552 = vmatmul.f32.gmra.mxu0 %v4450
      %v4553 = vpop.f32.mrf.mxu0
      %v4554 = vadd.f32 0.0, %v4553
      %4555 = vmatmul.f32.gmra.mxu0 %v4452
      %v4556 = vpop.f32.mrf.mxu0
      %v4557 = vadd.f32 0.0, %v4556
      %4558 = vmatmul.f32.gmra.mxu0 %v4454
      %v4559 = vpop.f32.mrf.mxu0
      %v4560 = vadd.f32 0.0, %v4559
      %4561 = vmatmul.f32.gmra.mxu0 %v4456
      %v4562 = vpop.f32.mrf.mxu0
      %v4563 = vadd.f32 0.0, %v4562
      %4564 = vmatmul.f32.gmra.mxu0 %v4458
      %v4565 = vpop.f32.mrf.mxu0
      %v4566 = vadd.f32 0.0, %v4565
      %4567 = vmatmul.f32.gmra.mxu0 %v4460
      %v4568 = vpop.f32.mrf.mxu0
      %v4569 = vadd.f32 0.0, %v4568
      %4570 = vmatmul.f32.gmra.mxu0 %v4462
      %v4571 = vpop.f32.mrf.mxu0
      %v4572 = vadd.f32 0.0, %v4571
      %4573 = vmatmul.f32.gmra.mxu0 %v4464
      %v4574 = vpop.f32.mrf.mxu0
      %v4575 = vadd.f32 0.0, %v4574
      %4576 = vmatmul.f32.gmra.mxu0 %v4466
      %v4577 = vpop.f32.mrf.mxu0
      %v4578 = vadd.f32 0.0, %v4577
      %4579 = vmatmul.f32.gmra.mxu0 %v4468
      %v4580 = vpop.f32.mrf.mxu0
      %v4581 = vadd.f32 0.0, %v4580
      %4582 = vdwg.mxu0
      %v4583 = vadd.f32 %v4237, %v4488
      %v4584 = vadd.f32 %v4238, %v4491
      %v4585 = vadd.f32 %v4239, %v4494
      %v4586 = vadd.f32 %v4240, %v4497
      %v4587 = vadd.f32 %v4241, %v4500
      %v4588 = vadd.f32 %v4242, %v4503
      %v4589 = vadd.f32 %v4243, %v4506
      %v4590 = vadd.f32 %v4244, %v4509
      %v4591 = vadd.f32 %v4245, %v4512
      %v4592 = vadd.f32 %v4246, %v4515
      %v4593 = vadd.f32 %v4247, %v4518
      %v4594 = vadd.f32 %v4248, %v4521
      %v4595 = vadd.f32 %v4249, %v4524
      %v4596 = vadd.f32 %v4250, %v4527
      %v4597 = vadd.f32 %v4251, %v4530
      %v4598 = vadd.f32 %v4252, %v4533
      %v4599 = vadd.f32 %v4253, %v4536
      %v4600 = vadd.f32 %v4254, %v4539
      %v4601 = vadd.f32 %v4255, %v4542
      %v4602 = vadd.f32 %v4256, %v4545
      %v4603 = vadd.f32 %v4257, %v4548
      %v4604 = vadd.f32 %v4258, %v4551
      %v4605 = vadd.f32 %v4259, %v4554
      %v4606 = vadd.f32 %v4260, %v4557
      %v4607 = vadd.f32 %v4261, %v4560
      %v4608 = vadd.f32 %v4262, %v4563
      %v4609 = vadd.f32 %v4263, %v4566
      %v4610 = vadd.f32 %v4264, %v4569
      %v4611 = vadd.f32 %v4265, %v4572
      %v4612 = vadd.f32 %v4266, %v4575
      %v4613 = vadd.f32 %v4267, %v4578
      %v4614 = vadd.f32 %v4268, %v4581
      %v4616 = vperm.slane %v1580, 0
      %v4618 = vadd.f32 %v4583, %v4616
      %v4619 = vadd.f32 %v4584, %v4616
      %v4620 = vadd.f32 %v4585, %v4616
      %v4621 = vadd.f32 %v4586, %v4616
      %v4622 = vadd.f32 %v4587, %v4616
      %v4623 = vadd.f32 %v4588, %v4616
      %v4624 = vadd.f32 %v4589, %v4616
      %v4625 = vadd.f32 %v4590, %v4616
      %v4626 = vadd.f32 %v4591, %v4616
      %v4627 = vadd.f32 %v4592, %v4616
      %v4628 = vadd.f32 %v4593, %v4616
      %v4629 = vadd.f32 %v4594, %v4616
      %v4630 = vadd.f32 %v4595, %v4616
      %v4631 = vadd.f32 %v4596, %v4616
      %v4632 = vadd.f32 %v4597, %v4616
      %v4633 = vadd.f32 %v4598, %v4616
      %v4634 = vadd.f32 %v4599, %v4616
      %v4635 = vadd.f32 %v4600, %v4616
      %v4636 = vadd.f32 %v4601, %v4616
      %v4637 = vadd.f32 %v4602, %v4616
      %v4638 = vadd.f32 %v4603, %v4616
      %v4639 = vadd.f32 %v4604, %v4616
      %v4640 = vadd.f32 %v4605, %v4616
      %v4641 = vadd.f32 %v4606, %v4616
      %v4642 = vadd.f32 %v4607, %v4616
      %v4643 = vadd.f32 %v4608, %v4616
      %v4644 = vadd.f32 %v4609, %v4616
      %v4645 = vadd.f32 %v4610, %v4616
      %v4646 = vadd.f32 %v4611, %v4616
      %v4647 = vadd.f32 %v4612, %v4616
      %v4648 = vadd.f32 %v4613, %v4616
      %v4649 = vadd.f32 %v4614, %v4616
      %v4650 = vld [vmem:[%s422] sm:$0x1]
      %v4652 = vperm.slane %v4650, 0
      %v4654 = vadd.f32 %v4618, %v4652
      %v4655 = vadd.f32 %v4619, %v4652
      %v4656 = vadd.f32 %v4620, %v4652
      %v4657 = vadd.f32 %v4621, %v4652
      %v4658 = vadd.f32 %v4622, %v4652
      %v4659 = vadd.f32 %v4623, %v4652
      %v4660 = vadd.f32 %v4624, %v4652
      %v4661 = vadd.f32 %v4625, %v4652
      %v4662 = vadd.f32 %v4626, %v4652
      %v4663 = vadd.f32 %v4627, %v4652
      %v4664 = vadd.f32 %v4628, %v4652
      %v4665 = vadd.f32 %v4629, %v4652
      %v4666 = vadd.f32 %v4630, %v4652
      %v4667 = vadd.f32 %v4631, %v4652
      %v4668 = vadd.f32 %v4632, %v4652
      %v4669 = vadd.f32 %v4633, %v4652
      %v4670 = vadd.f32 %v4634, %v4652
      %v4671 = vadd.f32 %v4635, %v4652
      %v4672 = vadd.f32 %v4636, %v4652
      %v4673 = vadd.f32 %v4637, %v4652
      %v4674 = vadd.f32 %v4638, %v4652
      %v4675 = vadd.f32 %v4639, %v4652
      %v4676 = vadd.f32 %v4640, %v4652
      %v4677 = vadd.f32 %v4641, %v4652
      %v4678 = vadd.f32 %v4642, %v4652
      %v4679 = vadd.f32 %v4643, %v4652
      %v4680 = vadd.f32 %v4644, %v4652
      %v4681 = vadd.f32 %v4645, %v4652
      %v4682 = vadd.f32 %v4646, %v4652
      %v4683 = vadd.f32 %v4647, %v4652
      %v4684 = vadd.f32 %v4648, %v4652
      %v4685 = vadd.f32 %v4649, %v4652
      %v4686 = vld [vmem:[%s8] sm:$0x1]
      %v4687 = vld [vmem:[%s9] sm:$0x1]
      %v4688 = vsel %vm535, %v4654, 0.0
      %v4689 = vsel %vm535, %v4655, 0.0
      %v4690 = vadd.f32 %v4688, %v4689
      %v4691 = vsel %vm535, %v4656, 0.0
      %v4692 = vadd.f32 %v4690, %v4691
      %v4693 = vsel %vm535, %v4657, 0.0
      %v4694 = vadd.f32 %v4692, %v4693
      %v4695 = vsel %vm535, %v4658, 0.0
      %v4696 = vadd.f32 %v4694, %v4695
      %v4697 = vsel %vm535, %v4659, 0.0
      %v4698 = vadd.f32 %v4696, %v4697
      %v4699 = vsel %vm535, %v4660, 0.0
      %v4700 = vadd.f32 %v4698, %v4699
      %v4701 = vsel %vm535, %v4661, 0.0
      %v4702 = vadd.f32 %v4700, %v4701
      %v4703 = vsel %vm535, %v4662, 0.0
      %v4704 = vadd.f32 %v4702, %v4703
      %v4705 = vsel %vm535, %v4663, 0.0
      %v4706 = vadd.f32 %v4704, %v4705
      %v4707 = vsel %vm535, %v4664, 0.0
      %v4708 = vadd.f32 %v4706, %v4707
      %v4709 = vsel %vm535, %v4665, 0.0
      %v4710 = vadd.f32 %v4708, %v4709
      %v4711 = vsel %vm535, %v4666, 0.0
      %v4712 = vadd.f32 %v4710, %v4711
      %v4713 = vsel %vm535, %v4667, 0.0
      %v4714 = vadd.f32 %v4712, %v4713
      %v4715 = vsel %vm535, %v4668, 0.0
      %v4716 = vadd.f32 %v4714, %v4715
      %v4717 = vsel %vm535, %v4669, 0.0
      %v4718 = vadd.f32 %v4716, %v4717
      %v4719 = vsel %vm535, %v4670, 0.0
      %v4720 = vadd.f32 %v4718, %v4719
      %v4721 = vsel %vm535, %v4671, 0.0
      %v4722 = vadd.f32 %v4720, %v4721
      %v4723 = vsel %vm535, %v4672, 0.0
      %v4724 = vadd.f32 %v4722, %v4723
      %v4725 = vsel %vm535, %v4673, 0.0
      %v4726 = vadd.f32 %v4724, %v4725
      %v4727 = vsel %vm535, %v4674, 0.0
      %v4728 = vadd.f32 %v4726, %v4727
      %v4729 = vsel %vm535, %v4675, 0.0
      %v4730 = vadd.f32 %v4728, %v4729
      %v4731 = vsel %vm535, %v4676, 0.0
      %v4732 = vadd.f32 %v4730, %v4731
      %v4733 = vsel %vm535, %v4677, 0.0
      %v4734 = vadd.f32 %v4732, %v4733
      %v4735 = vsel %vm535, %v4678, 0.0
      %v4736 = vadd.f32 %v4734, %v4735
      %v4737 = vsel %vm535, %v4679, 0.0
      %v4738 = vadd.f32 %v4736, %v4737
      %v4739 = vsel %vm535, %v4680, 0.0
      %v4740 = vadd.f32 %v4738, %v4739
      %v4741 = vsel %vm535, %v4681, 0.0
      %v4742 = vadd.f32 %v4740, %v4741
      %v4743 = vsel %vm535, %v4682, 0.0
      %v4744 = vadd.f32 %v4742, %v4743
      %v4745 = vsel %vm535, %v4683, 0.0
      %v4746 = vadd.f32 %v4744, %v4745
      %v4747 = vsel %vm535, %v4684, 0.0
      %v4748 = vadd.f32 %v4746, %v4747
      %v4749 = vsel %vm535, %v4685, 0.0
      %v4750 = vadd.f32 %v4748, %v4749
      %v4751 = vrot.slane %v4750, 4
      %v4752 = vadd.f32 %v4750, %v4751
      %v4753 = vrot.slane %v4752, 2
      %v4754 = vadd.f32 %v4752, %v4753
      %v4755 = vrot.slane %v4754, 1
      %v4756 = vadd.f32 %v4754, %v4755
      %v4757 = vmul.f32 %v4654, %v4654
      %v4758 = vmul.f32 %v4655, %v4655
      %v4759 = vmul.f32 %v4656, %v4656
      %v4760 = vmul.f32 %v4657, %v4657
      %v4761 = vmul.f32 %v4658, %v4658
      %v4762 = vmul.f32 %v4659, %v4659
      %v4763 = vmul.f32 %v4660, %v4660
      %v4764 = vmul.f32 %v4661, %v4661
      %v4765 = vmul.f32 %v4662, %v4662
      %v4766 = vmul.f32 %v4663, %v4663
      %v4767 = vmul.f32 %v4664, %v4664
      %v4768 = vmul.f32 %v4665, %v4665
      %v4769 = vmul.f32 %v4666, %v4666
      %v4770 = vmul.f32 %v4667, %v4667
      %v4771 = vmul.f32 %v4668, %v4668
      %v4772 = vmul.f32 %v4669, %v4669
      %v4773 = vmul.f32 %v4670, %v4670
      %v4774 = vmul.f32 %v4671, %v4671
      %v4775 = vmul.f32 %v4672, %v4672
      %v4776 = vmul.f32 %v4673, %v4673
      %v4777 = vmul.f32 %v4674, %v4674
      %v4778 = vmul.f32 %v4675, %v4675
      %v4779 = vmul.f32 %v4676, %v4676
      %v4780 = vmul.f32 %v4677, %v4677
      %v4781 = vmul.f32 %v4678, %v4678
      %v4782 = vmul.f32 %v4679, %v4679
      %v4783 = vmul.f32 %v4680, %v4680
      %v4784 = vmul.f32 %v4681, %v4681
      %v4785 = vmul.f32 %v4682, %v4682
      %v4786 = vmul.f32 %v4683, %v4683
      %v4787 = vmul.f32 %v4684, %v4684
      %v4788 = vmul.f32 %v4685, %v4685
      %v4789 = vsel %vm535, %v4757, 0.0
      %v4790 = vsel %vm535, %v4758, 0.0
      %v4791 = vadd.f32 %v4789, %v4790
      %v4792 = vsel %vm535, %v4759, 0.0
      %v4793 = vadd.f32 %v4791, %v4792
      %v4794 = vsel %vm535, %v4760, 0.0
      %v4795 = vadd.f32 %v4793, %v4794
      %v4796 = vsel %vm535, %v4761, 0.0
      %v4797 = vadd.f32 %v4795, %v4796
      %v4798 = vsel %vm535, %v4762, 0.0
      %v4799 = vadd.f32 %v4797, %v4798
      %v4800 = vsel %vm535, %v4763, 0.0
      %v4801 = vadd.f32 %v4799, %v4800
      %v4802 = vsel %vm535, %v4764, 0.0
      %v4803 = vadd.f32 %v4801, %v4802
      %v4804 = vsel %vm535, %v4765, 0.0
      %v4805 = vadd.f32 %v4803, %v4804
      %v4806 = vsel %vm535, %v4766, 0.0
      %v4807 = vadd.f32 %v4805, %v4806
      %v4808 = vsel %vm535, %v4767, 0.0
      %v4809 = vadd.f32 %v4807, %v4808
      %v4810 = vsel %vm535, %v4768, 0.0
      %v4811 = vadd.f32 %v4809, %v4810
      %v4812 = vsel %vm535, %v4769, 0.0
      %v4813 = vadd.f32 %v4811, %v4812
      %v4814 = vsel %vm535, %v4770, 0.0
      %v4815 = vadd.f32 %v4813, %v4814
      %v4816 = vsel %vm535, %v4771, 0.0
      %v4817 = vadd.f32 %v4815, %v4816
      %v4818 = vsel %vm535, %v4772, 0.0
      %v4819 = vadd.f32 %v4817, %v4818
      %v4820 = vsel %vm535, %v4773, 0.0
      %v4821 = vadd.f32 %v4819, %v4820
      %v4822 = vsel %vm535, %v4774, 0.0
      %v4823 = vadd.f32 %v4821, %v4822
      %v4824 = vsel %vm535, %v4775, 0.0
      %v4825 = vadd.f32 %v4823, %v4824
      %v4826 = vsel %vm535, %v4776, 0.0
      %v4827 = vadd.f32 %v4825, %v4826
      %v4828 = vsel %vm535, %v4777, 0.0
      %v4829 = vadd.f32 %v4827, %v4828
      %v4830 = vsel %vm535, %v4778, 0.0
      %v4831 = vadd.f32 %v4829, %v4830
      %v4832 = vsel %vm535, %v4779, 0.0
      %v4833 = vadd.f32 %v4831, %v4832
      %v4834 = vsel %vm535, %v4780, 0.0
      %v4835 = vadd.f32 %v4833, %v4834
      %v4836 = vsel %vm535, %v4781, 0.0
      %v4837 = vadd.f32 %v4835, %v4836
      %v4838 = vsel %vm535, %v4782, 0.0
      %v4839 = vadd.f32 %v4837, %v4838
      %v4840 = vsel %vm535, %v4783, 0.0
      %v4841 = vadd.f32 %v4839, %v4840
      %v4842 = vsel %vm535, %v4784, 0.0
      %v4843 = vadd.f32 %v4841, %v4842
      %v4844 = vsel %vm535, %v4785, 0.0
      %v4845 = vadd.f32 %v4843, %v4844
      %v4846 = vsel %vm535, %v4786, 0.0
      %v4847 = vadd.f32 %v4845, %v4846
      %v4848 = vsel %vm535, %v4787, 0.0
      %v4849 = vadd.f32 %v4847, %v4848
      %v4850 = vsel %vm535, %v4788, 0.0
      %v4851 = vadd.f32 %v4849, %v4850
      %v4852 = vrot.slane %v4851, 4
      %v4853 = vadd.f32 %v4851, %v4852
      %v4854 = vrot.slane %v4853, 2
      %v4855 = vadd.f32 %v4853, %v4854
      %v4856 = vrot.slane %v4855, 1
      %v4857 = vadd.f32 %v4855, %v4856
      %v4859 = vsel %vm535, %v4756, 0
      %4861 = vmatpush.msra.mxu0 0.0
      %4862 = vmatpush.msra.mxu0 0.0
      %4863 = vmatpush.msra.mxu0 0.0
      %4864 = vmatpush.msra.mxu0 0.0
      %4865 = vmatpush.msra.mxu0 0.0
      %4866 = vmatpush.msra.mxu0 0.0
      %4867 = vmatpush.msra.mxu0 0.0
      %4868 = vmatpush.msra.mxu0 0.0
      %4869 = vmatpush.msra.mxu0 %v467
      %4870 = vmatpush.msra.mxu0 %v466
      %4871 = vmatpush.msra.mxu0 %v465
      %4872 = vmatpush.msra.mxu0 %v464
      %4873 = vmatpush.msra.mxu0 %v463
      %4874 = vmatpush.msra.mxu0 %v462
      %4875 = vmatpush.msra.mxu0 %v461
      %4876 = vmatpush.msra.mxu0 %v460
      %4877 = vmatmul.f32.gmra.mxu0 %v4859
      %v4878 = vpop.f32.mrf.mxu0
      %v4879 = vadd.f32 0.0, %v4878
      %4880 = vdwg.mxu0
      %v4881 = vmul.f32 %v4879, 0.001953125
      %v4883 = vsel %vm535, %v4857, 0
      %4885 = vmatpush.msra.mxu0 0.0
      %4886 = vmatpush.msra.mxu0 0.0
      %4887 = vmatpush.msra.mxu0 0.0
      %4888 = vmatpush.msra.mxu0 0.0
      %4889 = vmatpush.msra.mxu0 0.0
      %4890 = vmatpush.msra.mxu0 0.0
      %4891 = vmatpush.msra.mxu0 0.0
      %4892 = vmatpush.msra.mxu0 0.0
      %4893 = vmatpush.msra.mxu0 %v467
      %4894 = vmatpush.msra.mxu0 %v466
      %4895 = vmatpush.msra.mxu0 %v465
      %4896 = vmatpush.msra.mxu0 %v464
      %4897 = vmatpush.msra.mxu0 %v463
      %4898 = vmatpush.msra.mxu0 %v462
      %4899 = vmatpush.msra.mxu0 %v461
      %4900 = vmatpush.msra.mxu0 %v460
      %4901 = vmatmul.f32.gmra.mxu0 %v4883
      %v4902 = vpop.f32.mrf.mxu0
      %v4903 = vadd.f32 0.0, %v4902
      %4904 = vdwg.mxu0
      %v4905 = vmul.f32 %v4903, 0.001953125
      %v4906 = vmul.f32 %v4881, %v4881
      %v4907 = vsub.f32 %v4905, %v4906
      %v4908 = vadd.f32 %v4907, 1e-06
      %v4909 = vrsqrt.pop %v4908
      %v4910 = vmul.f32 %v4909, %v4908
      %v4911 = vmul.f32 %v4910, %v4909
      %v4912 = vmul.f32 0.5, %v4911
      %v4913 = vsub.f32 1.5, %v4912
      %v4914 = vmul.f32 %v4909, %v4913
      %vm4915 = vweird.f32 %v4908
      %vm4916 = vweird.f32 %v4909
      %vm4917 = vmor %vm4915, %vm4916
      %v4918 = vsel %vm4917, %v4909, %v4914
      %v4920 = vsel %vm767, %v4881, 0
      %4922 = vmatpush.xpose.msra.mxu0 0.0
      %4923 = vmatpush.xpose.msra.mxu0 0.0
      %4924 = vmatpush.xpose.msra.mxu0 0.0
      %4925 = vmatpush.xpose.msra.mxu0 0.0
      %4926 = vmatpush.xpose.msra.mxu0 0.0
      %4927 = vmatpush.xpose.msra.mxu0 0.0
      %4928 = vmatpush.xpose.msra.mxu0 0.0
      %4929 = vmatpush.xpose.msra.mxu0 0.0
      %4930 = vmatpush.xpose.msra.mxu0 %v793
      %4931 = vmatpush.xpose.msra.mxu0 %v790
      %4932 = vmatpush.xpose.msra.mxu0 %v787
      %4933 = vmatpush.xpose.msra.mxu0 %v784
      %4934 = vmatpush.xpose.msra.mxu0 %v781
      %4935 = vmatpush.xpose.msra.mxu0 %v778
      %4936 = vmatpush.xpose.msra.mxu0 %v775
      %4937 = vmatpush.xpose.msra.mxu0 %v772
      %4938 = vmatmul.f32.gmra.mxu0 %v4920
      %v4939 = vpop.f32.mrf.mxu0
      %v4940 = vadd.f32 0.0, %v4939
      %4941 = vdwg.mxu0
      %v4943 = vsel %vm767, %v4918, 0
      %4945 = vmatpush.xpose.msra.mxu0 0.0
      %4946 = vmatpush.xpose.msra.mxu0 0.0
      %4947 = vmatpush.xpose.msra.mxu0 0.0
      %4948 = vmatpush.xpose.msra.mxu0 0.0
      %4949 = vmatpush.xpose.msra.mxu0 0.0
      %4950 = vmatpush.xpose.msra.mxu0 0.0
      %4951 = vmatpush.xpose.msra.mxu0 0.0
      %4952 = vmatpush.xpose.msra.mxu0 0.0
      %4953 = vmatpush.xpose.msra.mxu0 %v793
      %4954 = vmatpush.xpose.msra.mxu0 %v790
      %4955 = vmatpush.xpose.msra.mxu0 %v787
      %4956 = vmatpush.xpose.msra.mxu0 %v784
      %4957 = vmatpush.xpose.msra.mxu0 %v781
      %4958 = vmatpush.xpose.msra.mxu0 %v778
      %4959 = vmatpush.xpose.msra.mxu0 %v775
      %4960 = vmatpush.xpose.msra.mxu0 %v772
      %4961 = vmatmul.f32.gmra.mxu0 %v4943
      %v4962 = vpop.f32.mrf.mxu0
      %v4963 = vadd.f32 0.0, %v4962
      %4964 = vdwg.mxu0
      %v4965 = vperm.slane %v4940, 0
      %v4966 = vsub.f32 %v4654, %v4965
      %v4967 = vsub.f32 %v4655, %v4965
      %v4968 = vsub.f32 %v4656, %v4965
      %v4969 = vsub.f32 %v4657, %v4965
      %v4970 = vsub.f32 %v4658, %v4965
      %v4971 = vsub.f32 %v4659, %v4965
      %v4972 = vsub.f32 %v4660, %v4965
      %v4973 = vsub.f32 %v4661, %v4965
      %v4974 = vsub.f32 %v4662, %v4965
      %v4975 = vsub.f32 %v4663, %v4965
      %v4976 = vsub.f32 %v4664, %v4965
      %v4977 = vsub.f32 %v4665, %v4965
      %v4978 = vsub.f32 %v4666, %v4965
      %v4979 = vsub.f32 %v4667, %v4965
      %v4980 = vsub.f32 %v4668, %v4965
      %v4981 = vsub.f32 %v4669, %v4965
      %v4982 = vsub.f32 %v4670, %v4965
      %v4983 = vsub.f32 %v4671, %v4965
      %v4984 = vsub.f32 %v4672, %v4965
      %v4985 = vsub.f32 %v4673, %v4965
      %v4986 = vsub.f32 %v4674, %v4965
      %v4987 = vsub.f32 %v4675, %v4965
      %v4988 = vsub.f32 %v4676, %v4965
      %v4989 = vsub.f32 %v4677, %v4965
      %v4990 = vsub.f32 %v4678, %v4965
      %v4991 = vsub.f32 %v4679, %v4965
      %v4992 = vsub.f32 %v4680, %v4965
      %v4993 = vsub.f32 %v4681, %v4965
      %v4994 = vsub.f32 %v4682, %v4965
      %v4995 = vsub.f32 %v4683, %v4965
      %v4996 = vsub.f32 %v4684, %v4965
      %v4997 = vsub.f32 %v4685, %v4965
      %v4998 = vmul.f32 %v4963, %v4686
      %v4999 = vperm.slane %v4998, 0
      %v5000 = vmul.f32 %v4966, %v4999
      %v5001 = vmul.f32 %v4967, %v4999
      %v5002 = vmul.f32 %v4968, %v4999
      %v5003 = vmul.f32 %v4969, %v4999
      %v5004 = vmul.f32 %v4970, %v4999
      %v5005 = vmul.f32 %v4971, %v4999
      %v5006 = vmul.f32 %v4972, %v4999
      %v5007 = vmul.f32 %v4973, %v4999
      %v5008 = vmul.f32 %v4974, %v4999
      %v5009 = vmul.f32 %v4975, %v4999
      %v5010 = vmul.f32 %v4976, %v4999
      %v5011 = vmul.f32 %v4977, %v4999
      %v5012 = vmul.f32 %v4978, %v4999
      %v5013 = vmul.f32 %v4979, %v4999
      %v5014 = vmul.f32 %v4980, %v4999
      %v5015 = vmul.f32 %v4981, %v4999
      %v5016 = vmul.f32 %v4982, %v4999
      %v5017 = vmul.f32 %v4983, %v4999
      %v5018 = vmul.f32 %v4984, %v4999
      %v5019 = vmul.f32 %v4985, %v4999
      %v5020 = vmul.f32 %v4986, %v4999
      %v5021 = vmul.f32 %v4987, %v4999
      %v5022 = vmul.f32 %v4988, %v4999
      %v5023 = vmul.f32 %v4989, %v4999
      %v5024 = vmul.f32 %v4990, %v4999
      %v5025 = vmul.f32 %v4991, %v4999
      %v5026 = vmul.f32 %v4992, %v4999
      %v5027 = vmul.f32 %v4993, %v4999
      %v5028 = vmul.f32 %v4994, %v4999
      %v5029 = vmul.f32 %v4995, %v4999
      %v5030 = vmul.f32 %v4996, %v4999
      %v5031 = vmul.f32 %v4997, %v4999
      %v5033 = vperm.slane %v4687, 0
      %v5035 = vadd.f32 %v5000, %v5033
      %v5036 = vadd.f32 %v5001, %v5033
      %v5037 = vadd.f32 %v5002, %v5033
      %v5038 = vadd.f32 %v5003, %v5033
      %v5039 = vadd.f32 %v5004, %v5033
      %v5040 = vadd.f32 %v5005, %v5033
      %v5041 = vadd.f32 %v5006, %v5033
      %v5042 = vadd.f32 %v5007, %v5033
      %v5043 = vadd.f32 %v5008, %v5033
      %v5044 = vadd.f32 %v5009, %v5033
      %v5045 = vadd.f32 %v5010, %v5033
      %v5046 = vadd.f32 %v5011, %v5033
      %v5047 = vadd.f32 %v5012, %v5033
      %v5048 = vadd.f32 %v5013, %v5033
      %v5049 = vadd.f32 %v5014, %v5033
      %v5050 = vadd.f32 %v5015, %v5033
      %v5051 = vadd.f32 %v5016, %v5033
      %v5052 = vadd.f32 %v5017, %v5033
      %v5053 = vadd.f32 %v5018, %v5033
      %v5054 = vadd.f32 %v5019, %v5033
      %v5055 = vadd.f32 %v5020, %v5033
      %v5056 = vadd.f32 %v5021, %v5033
      %v5057 = vadd.f32 %v5022, %v5033
      %v5058 = vadd.f32 %v5023, %v5033
      %v5059 = vadd.f32 %v5024, %v5033
      %v5060 = vadd.f32 %v5025, %v5033
      %v5061 = vadd.f32 %v5026, %v5033
      %v5062 = vadd.f32 %v5027, %v5033
      %v5063 = vadd.f32 %v5028, %v5033
      %v5064 = vadd.f32 %v5029, %v5033
      %v5065 = vadd.f32 %v5030, %v5033
      %v5066 = vadd.f32 %v5031, %v5033
      %v5067 = vxor.u32 %v5035, 2147483648
      %v5068 = vxor.u32 %v5036, 2147483648
      %v5069 = vxor.u32 %v5037, 2147483648
      %v5070 = vxor.u32 %v5038, 2147483648
      %v5071 = vxor.u32 %v5039, 2147483648
      %v5072 = vxor.u32 %v5040, 2147483648
      %v5073 = vxor.u32 %v5041, 2147483648
      %v5074 = vxor.u32 %v5042, 2147483648
      %v5075 = vxor.u32 %v5043, 2147483648
      %v5076 = vxor.u32 %v5044, 2147483648
      %v5077 = vxor.u32 %v5045, 2147483648
      %v5078 = vxor.u32 %v5046, 2147483648
      %v5079 = vxor.u32 %v5047, 2147483648
      %v5080 = vxor.u32 %v5048, 2147483648
      %v5081 = vxor.u32 %v5049, 2147483648
      %v5082 = vxor.u32 %v5050, 2147483648
      %v5083 = vxor.u32 %v5051, 2147483648
      %v5084 = vxor.u32 %v5052, 2147483648
      %v5085 = vxor.u32 %v5053, 2147483648
      %v5086 = vxor.u32 %v5054, 2147483648
      %v5087 = vxor.u32 %v5055, 2147483648
      %v5088 = vxor.u32 %v5056, 2147483648
      %v5089 = vxor.u32 %v5057, 2147483648
      %v5090 = vxor.u32 %v5058, 2147483648
      %v5091 = vxor.u32 %v5059, 2147483648
      %v5092 = vxor.u32 %v5060, 2147483648
      %v5093 = vxor.u32 %v5061, 2147483648
      %v5094 = vxor.u32 %v5062, 2147483648
      %v5095 = vxor.u32 %v5063, 2147483648
      %v5096 = vxor.u32 %v5064, 2147483648
      %v5097 = vxor.u32 %v5065, 2147483648
      %v5098 = vxor.u32 %v5066, 2147483648
      %v5099 = vmul.f32 %v5067, 1.442695
      %v5100 = vpow.pop %v5099
      %v5101 = vmul.f32 %v5068, 1.442695
      %v5102 = vpow.pop %v5101
      %v5103 = vmul.f32 %v5069, 1.442695
      %v5104 = vpow.pop %v5103
      %v5105 = vmul.f32 %v5070, 1.442695
      %v5106 = vpow.pop %v5105
      %v5107 = vmul.f32 %v5071, 1.442695
      %v5108 = vpow.pop %v5107
      %v5109 = vmul.f32 %v5072, 1.442695
      %v5110 = vpow.pop %v5109
      %v5111 = vmul.f32 %v5073, 1.442695
      %v5112 = vpow.pop %v5111
      %v5113 = vmul.f32 %v5074, 1.442695
      %v5114 = vpow.pop %v5113
      %v5115 = vmul.f32 %v5075, 1.442695
      %v5116 = vpow.pop %v5115
      %v5117 = vmul.f32 %v5076, 1.442695
      %v5118 = vpow.pop %v5117
      %v5119 = vmul.f32 %v5077, 1.442695
      %v5120 = vpow.pop %v5119
      %v5121 = vmul.f32 %v5078, 1.442695
      %v5122 = vpow.pop %v5121
      %v5123 = vmul.f32 %v5079, 1.442695
      %v5124 = vpow.pop %v5123
      %v5125 = vmul.f32 %v5080, 1.442695
      %v5126 = vpow.pop %v5125
      %v5127 = vmul.f32 %v5081, 1.442695
      %v5128 = vpow.pop %v5127
      %v5129 = vmul.f32 %v5082, 1.442695
      %v5130 = vpow.pop %v5129
      %v5131 = vmul.f32 %v5083, 1.442695
      %v5132 = vpow.pop %v5131
      %v5133 = vmul.f32 %v5084, 1.442695
      %v5134 = vpow.pop %v5133
      %v5135 = vmul.f32 %v5085, 1.442695
      %v5136 = vpow.pop %v5135
      %v5137 = vmul.f32 %v5086, 1.442695
      %v5138 = vpow.pop %v5137
      %v5139 = vmul.f32 %v5087, 1.442695
      %v5140 = vpow.pop %v5139
      %v5141 = vmul.f32 %v5088, 1.442695
      %v5142 = vpow.pop %v5141
      %v5143 = vmul.f32 %v5089, 1.442695
      %v5144 = vpow.pop %v5143
      %v5145 = vmul.f32 %v5090, 1.442695
      %v5146 = vpow.pop %v5145
      %v5147 = vmul.f32 %v5091, 1.442695
      %v5148 = vpow.pop %v5147
      %v5149 = vmul.f32 %v5092, 1.442695
      %v5150 = vpow.pop %v5149
      %v5151 = vmul.f32 %v5093, 1.442695
      %v5152 = vpow.pop %v5151
      %v5153 = vmul.f32 %v5094, 1.442695
      %v5154 = vpow.pop %v5153
      %v5155 = vmul.f32 %v5095, 1.442695
      %v5156 = vpow.pop %v5155
      %v5157 = vmul.f32 %v5096, 1.442695
      %v5158 = vpow.pop %v5157
      %v5159 = vmul.f32 %v5097, 1.442695
      %v5160 = vpow.pop %v5159
      %v5161 = vmul.f32 %v5098, 1.442695
      %v5162 = vpow.pop %v5161
      %v5163 = vadd.f32 %v5100, 1.0
      %v5164 = vadd.f32 %v5102, 1.0
      %v5165 = vadd.f32 %v5104, 1.0
      %v5166 = vadd.f32 %v5106, 1.0
      %v5167 = vadd.f32 %v5108, 1.0
      %v5168 = vadd.f32 %v5110, 1.0
      %v5169 = vadd.f32 %v5112, 1.0
      %v5170 = vadd.f32 %v5114, 1.0
      %v5171 = vadd.f32 %v5116, 1.0
      %v5172 = vadd.f32 %v5118, 1.0
      %v5173 = vadd.f32 %v5120, 1.0
      %v5174 = vadd.f32 %v5122, 1.0
      %v5175 = vadd.f32 %v5124, 1.0
      %v5176 = vadd.f32 %v5126, 1.0
      %v5177 = vadd.f32 %v5128, 1.0
      %v5178 = vadd.f32 %v5130, 1.0
      %v5179 = vadd.f32 %v5132, 1.0
      %v5180 = vadd.f32 %v5134, 1.0
      %v5181 = vadd.f32 %v5136, 1.0
      %v5182 = vadd.f32 %v5138, 1.0
      %v5183 = vadd.f32 %v5140, 1.0
      %v5184 = vadd.f32 %v5142, 1.0
      %v5185 = vadd.f32 %v5144, 1.0
      %v5186 = vadd.f32 %v5146, 1.0
      %v5187 = vadd.f32 %v5148, 1.0
      %v5188 = vadd.f32 %v5150, 1.0
      %v5189 = vadd.f32 %v5152, 1.0
      %v5190 = vadd.f32 %v5154, 1.0
      %v5191 = vadd.f32 %v5156, 1.0
      %v5192 = vadd.f32 %v5158, 1.0
      %v5193 = vadd.f32 %v5160, 1.0
      %v5194 = vadd.f32 %v5162, 1.0
      %v5195 = vrcp.pop %v5163
      %v5196 = vmul.f32 %v5163, %v5195
      %v5197 = vsub.f32 1.0, %v5196
      %v5198 = vmul.f32 %v5195, %v5197
      %v5199 = vadd.f32 %v5195, %v5198
      %vm5200 = vweird.f32 %v5163
      %vm5201 = vweird.f32 %v5195
      %vm5202 = vmor %vm5200, %vm5201
      %v5203 = vsel %vm5202, %v5195, %v5199
      %v5204 = vand.u32 2147483647, %v5163
      %vm5205 = vcmp.eq.f32.partialorder %v5204, 8.507059e+37
      %v5206 = vand.u32 %v5163, 2147483648
      %v5207 = vor.u32 1.1754944e-38, %v5206
      %v5208 = vsel %vm5205, %v5207, %v5203
      %v5209 = vmul.f32 1.0, %v5208
      %v5210 = vrcp.pop %v5164
      %v5211 = vmul.f32 %v5164, %v5210
      %v5212 = vsub.f32 1.0, %v5211
      %v5213 = vmul.f32 %v5210, %v5212
      %v5214 = vadd.f32 %v5210, %v5213
      %vm5215 = vweird.f32 %v5164
      %vm5216 = vweird.f32 %v5210
      %vm5217 = vmor %vm5215, %vm5216
      %v5218 = vsel %vm5217, %v5210, %v5214
      %v5219 = vand.u32 2147483647, %v5164
      %vm5220 = vcmp.eq.f32.partialorder %v5219, 8.507059e+37
      %v5221 = vand.u32 %v5164, 2147483648
      %v5222 = vor.u32 1.1754944e-38, %v5221
      %v5223 = vsel %vm5220, %v5222, %v5218
      %v5224 = vmul.f32 1.0, %v5223
      %v5225 = vrcp.pop %v5165
      %v5226 = vmul.f32 %v5165, %v5225
      %v5227 = vsub.f32 1.0, %v5226
      %v5228 = vmul.f32 %v5225, %v5227
      %v5229 = vadd.f32 %v5225, %v5228
      %vm5230 = vweird.f32 %v5165
      %vm5231 = vweird.f32 %v5225
      %vm5232 = vmor %vm5230, %vm5231
      %v5233 = vsel %vm5232, %v5225, %v5229
      %v5234 = vand.u32 2147483647, %v5165
      %vm5235 = vcmp.eq.f32.partialorder %v5234, 8.507059e+37
      %v5236 = vand.u32 %v5165, 2147483648
      %v5237 = vor.u32 1.1754944e-38, %v5236
      %v5238 = vsel %vm5235, %v5237, %v5233
      %v5239 = vmul.f32 1.0, %v5238
      %v5240 = vrcp.pop %v5166
      %v5241 = vmul.f32 %v5166, %v5240
      %v5242 = vsub.f32 1.0, %v5241
      %v5243 = vmul.f32 %v5240, %v5242
      %v5244 = vadd.f32 %v5240, %v5243
      %vm5245 = vweird.f32 %v5166
      %vm5246 = vweird.f32 %v5240
      %vm5247 = vmor %vm5245, %vm5246
      %v5248 = vsel %vm5247, %v5240, %v5244
      %v5249 = vand.u32 2147483647, %v5166
      %vm5250 = vcmp.eq.f32.partialorder %v5249, 8.507059e+37
      %v5251 = vand.u32 %v5166, 2147483648
      %v5252 = vor.u32 1.1754944e-38, %v5251
      %v5253 = vsel %vm5250, %v5252, %v5248
      %v5254 = vmul.f32 1.0, %v5253
      %v5255 = vrcp.pop %v5167
      %v5256 = vmul.f32 %v5167, %v5255
      %v5257 = vsub.f32 1.0, %v5256
      %v5258 = vmul.f32 %v5255, %v5257
      %v5259 = vadd.f32 %v5255, %v5258
      %vm5260 = vweird.f32 %v5167
      %vm5261 = vweird.f32 %v5255
      %vm5262 = vmor %vm5260, %vm5261
      %v5263 = vsel %vm5262, %v5255, %v5259
      %v5264 = vand.u32 2147483647, %v5167
      %vm5265 = vcmp.eq.f32.partialorder %v5264, 8.507059e+37
      %v5266 = vand.u32 %v5167, 2147483648
      %v5267 = vor.u32 1.1754944e-38, %v5266
      %v5268 = vsel %vm5265, %v5267, %v5263
      %v5269 = vmul.f32 1.0, %v5268
      %v5270 = vrcp.pop %v5168
      %v5271 = vmul.f32 %v5168, %v5270
      %v5272 = vsub.f32 1.0, %v5271
      %v5273 = vmul.f32 %v5270, %v5272
      %v5274 = vadd.f32 %v5270, %v5273
      %vm5275 = vweird.f32 %v5168
      %vm5276 = vweird.f32 %v5270
      %vm5277 = vmor %vm5275, %vm5276
      %v5278 = vsel %vm5277, %v5270, %v5274
      %v5279 = vand.u32 2147483647, %v5168
      %vm5280 = vcmp.eq.f32.partialorder %v5279, 8.507059e+37
      %v5281 = vand.u32 %v5168, 2147483648
      %v5282 = vor.u32 1.1754944e-38, %v5281
      %v5283 = vsel %vm5280, %v5282, %v5278
      %v5284 = vmul.f32 1.0, %v5283
      %v5285 = vrcp.pop %v5169
      %v5286 = vmul.f32 %v5169, %v5285
      %v5287 = vsub.f32 1.0, %v5286
      %v5288 = vmul.f32 %v5285, %v5287
      %v5289 = vadd.f32 %v5285, %v5288
      %vm5290 = vweird.f32 %v5169
      %vm5291 = vweird.f32 %v5285
      %vm5292 = vmor %vm5290, %vm5291
      %v5293 = vsel %vm5292, %v5285, %v5289
      %v5294 = vand.u32 2147483647, %v5169
      %vm5295 = vcmp.eq.f32.partialorder %v5294, 8.507059e+37
      %v5296 = vand.u32 %v5169, 2147483648
      %v5297 = vor.u32 1.1754944e-38, %v5296
      %v5298 = vsel %vm5295, %v5297, %v5293
      %v5299 = vmul.f32 1.0, %v5298
      %v5300 = vrcp.pop %v5170
      %v5301 = vmul.f32 %v5170, %v5300
      %v5302 = vsub.f32 1.0, %v5301
      %v5303 = vmul.f32 %v5300, %v5302
      %v5304 = vadd.f32 %v5300, %v5303
      %vm5305 = vweird.f32 %v5170
      %vm5306 = vweird.f32 %v5300
      %vm5307 = vmor %vm5305, %vm5306
      %v5308 = vsel %vm5307, %v5300, %v5304
      %v5309 = vand.u32 2147483647, %v5170
      %vm5310 = vcmp.eq.f32.partialorder %v5309, 8.507059e+37
      %v5311 = vand.u32 %v5170, 2147483648
      %v5312 = vor.u32 1.1754944e-38, %v5311
      %v5313 = vsel %vm5310, %v5312, %v5308
      %v5314 = vmul.f32 1.0, %v5313
      %v5315 = vrcp.pop %v5171
      %v5316 = vmul.f32 %v5171, %v5315
      %v5317 = vsub.f32 1.0, %v5316
      %v5318 = vmul.f32 %v5315, %v5317
      %v5319 = vadd.f32 %v5315, %v5318
      %vm5320 = vweird.f32 %v5171
      %vm5321 = vweird.f32 %v5315
      %vm5322 = vmor %vm5320, %vm5321
      %v5323 = vsel %vm5322, %v5315, %v5319
      %v5324 = vand.u32 2147483647, %v5171
      %vm5325 = vcmp.eq.f32.partialorder %v5324, 8.507059e+37
      %v5326 = vand.u32 %v5171, 2147483648
      %v5327 = vor.u32 1.1754944e-38, %v5326
      %v5328 = vsel %vm5325, %v5327, %v5323
      %v5329 = vmul.f32 1.0, %v5328
      %v5330 = vrcp.pop %v5172
      %v5331 = vmul.f32 %v5172, %v5330
      %v5332 = vsub.f32 1.0, %v5331
      %v5333 = vmul.f32 %v5330, %v5332
      %v5334 = vadd.f32 %v5330, %v5333
      %vm5335 = vweird.f32 %v5172
      %vm5336 = vweird.f32 %v5330
      %vm5337 = vmor %vm5335, %vm5336
      %v5338 = vsel %vm5337, %v5330, %v5334
      %v5339 = vand.u32 2147483647, %v5172
      %vm5340 = vcmp.eq.f32.partialorder %v5339, 8.507059e+37
      %v5341 = vand.u32 %v5172, 2147483648
      %v5342 = vor.u32 1.1754944e-38, %v5341
      %v5343 = vsel %vm5340, %v5342, %v5338
      %v5344 = vmul.f32 1.0, %v5343
      %v5345 = vrcp.pop %v5173
      %v5346 = vmul.f32 %v5173, %v5345
      %v5347 = vsub.f32 1.0, %v5346
      %v5348 = vmul.f32 %v5345, %v5347
      %v5349 = vadd.f32 %v5345, %v5348
      %vm5350 = vweird.f32 %v5173
      %vm5351 = vweird.f32 %v5345
      %vm5352 = vmor %vm5350, %vm5351
      %v5353 = vsel %vm5352, %v5345, %v5349
      %v5354 = vand.u32 2147483647, %v5173
      %vm5355 = vcmp.eq.f32.partialorder %v5354, 8.507059e+37
      %v5356 = vand.u32 %v5173, 2147483648
      %v5357 = vor.u32 1.1754944e-38, %v5356
      %v5358 = vsel %vm5355, %v5357, %v5353
      %v5359 = vmul.f32 1.0, %v5358
      %v5360 = vrcp.pop %v5174
      %v5361 = vmul.f32 %v5174, %v5360
      %v5362 = vsub.f32 1.0, %v5361
      %v5363 = vmul.f32 %v5360, %v5362
      %v5364 = vadd.f32 %v5360, %v5363
      %vm5365 = vweird.f32 %v5174
      %vm5366 = vweird.f32 %v5360
      %vm5367 = vmor %vm5365, %vm5366
      %v5368 = vsel %vm5367, %v5360, %v5364
      %v5369 = vand.u32 2147483647, %v5174
      %vm5370 = vcmp.eq.f32.partialorder %v5369, 8.507059e+37
      %v5371 = vand.u32 %v5174, 2147483648
      %v5372 = vor.u32 1.1754944e-38, %v5371
      %v5373 = vsel %vm5370, %v5372, %v5368
      %v5374 = vmul.f32 1.0, %v5373
      %v5375 = vrcp.pop %v5175
      %v5376 = vmul.f32 %v5175, %v5375
      %v5377 = vsub.f32 1.0, %v5376
      %v5378 = vmul.f32 %v5375, %v5377
      %v5379 = vadd.f32 %v5375, %v5378
      %vm5380 = vweird.f32 %v5175
      %vm5381 = vweird.f32 %v5375
      %vm5382 = vmor %vm5380, %vm5381
      %v5383 = vsel %vm5382, %v5375, %v5379
      %v5384 = vand.u32 2147483647, %v5175
      %vm5385 = vcmp.eq.f32.partialorder %v5384, 8.507059e+37
      %v5386 = vand.u32 %v5175, 2147483648
      %v5387 = vor.u32 1.1754944e-38, %v5386
      %v5388 = vsel %vm5385, %v5387, %v5383
      %v5389 = vmul.f32 1.0, %v5388
      %v5390 = vrcp.pop %v5176
      %v5391 = vmul.f32 %v5176, %v5390
      %v5392 = vsub.f32 1.0, %v5391
      %v5393 = vmul.f32 %v5390, %v5392
      %v5394 = vadd.f32 %v5390, %v5393
      %vm5395 = vweird.f32 %v5176
      %vm5396 = vweird.f32 %v5390
      %vm5397 = vmor %vm5395, %vm5396
      %v5398 = vsel %vm5397, %v5390, %v5394
      %v5399 = vand.u32 2147483647, %v5176
      %vm5400 = vcmp.eq.f32.partialorder %v5399, 8.507059e+37
      %v5401 = vand.u32 %v5176, 2147483648
      %v5402 = vor.u32 1.1754944e-38, %v5401
      %v5403 = vsel %vm5400, %v5402, %v5398
      %v5404 = vmul.f32 1.0, %v5403
      %v5405 = vrcp.pop %v5177
      %v5406 = vmul.f32 %v5177, %v5405
      %v5407 = vsub.f32 1.0, %v5406
      %v5408 = vmul.f32 %v5405, %v5407
      %v5409 = vadd.f32 %v5405, %v5408
      %vm5410 = vweird.f32 %v5177
      %vm5411 = vweird.f32 %v5405
      %vm5412 = vmor %vm5410, %vm5411
      %v5413 = vsel %vm5412, %v5405, %v5409
      %v5414 = vand.u32 2147483647, %v5177
      %vm5415 = vcmp.eq.f32.partialorder %v5414, 8.507059e+37
      %v5416 = vand.u32 %v5177, 2147483648
      %v5417 = vor.u32 1.1754944e-38, %v5416
      %v5418 = vsel %vm5415, %v5417, %v5413
      %v5419 = vmul.f32 1.0, %v5418
      %v5420 = vrcp.pop %v5178
      %v5421 = vmul.f32 %v5178, %v5420
      %v5422 = vsub.f32 1.0, %v5421
      %v5423 = vmul.f32 %v5420, %v5422
      %v5424 = vadd.f32 %v5420, %v5423
      %vm5425 = vweird.f32 %v5178
      %vm5426 = vweird.f32 %v5420
      %vm5427 = vmor %vm5425, %vm5426
      %v5428 = vsel %vm5427, %v5420, %v5424
      %v5429 = vand.u32 2147483647, %v5178
      %vm5430 = vcmp.eq.f32.partialorder %v5429, 8.507059e+37
      %v5431 = vand.u32 %v5178, 2147483648
      %v5432 = vor.u32 1.1754944e-38, %v5431
      %v5433 = vsel %vm5430, %v5432, %v5428
      %v5434 = vmul.f32 1.0, %v5433
      %v5435 = vrcp.pop %v5179
      %v5436 = vmul.f32 %v5179, %v5435
      %v5437 = vsub.f32 1.0, %v5436
      %v5438 = vmul.f32 %v5435, %v5437
      %v5439 = vadd.f32 %v5435, %v5438
      %vm5440 = vweird.f32 %v5179
      %vm5441 = vweird.f32 %v5435
      %vm5442 = vmor %vm5440, %vm5441
      %v5443 = vsel %vm5442, %v5435, %v5439
      %v5444 = vand.u32 2147483647, %v5179
      %vm5445 = vcmp.eq.f32.partialorder %v5444, 8.507059e+37
      %v5446 = vand.u32 %v5179, 2147483648
      %v5447 = vor.u32 1.1754944e-38, %v5446
      %v5448 = vsel %vm5445, %v5447, %v5443
      %v5449 = vmul.f32 1.0, %v5448
      %v5450 = vrcp.pop %v5180
      %v5451 = vmul.f32 %v5180, %v5450
      %v5452 = vsub.f32 1.0, %v5451
      %v5453 = vmul.f32 %v5450, %v5452
      %v5454 = vadd.f32 %v5450, %v5453
      %vm5455 = vweird.f32 %v5180
      %vm5456 = vweird.f32 %v5450
      %vm5457 = vmor %vm5455, %vm5456
      %v5458 = vsel %vm5457, %v5450, %v5454
      %v5459 = vand.u32 2147483647, %v5180
      %vm5460 = vcmp.eq.f32.partialorder %v5459, 8.507059e+37
      %v5461 = vand.u32 %v5180, 2147483648
      %v5462 = vor.u32 1.1754944e-38, %v5461
      %v5463 = vsel %vm5460, %v5462, %v5458
      %v5464 = vmul.f32 1.0, %v5463
      %v5465 = vrcp.pop %v5181
      %v5466 = vmul.f32 %v5181, %v5465
      %v5467 = vsub.f32 1.0, %v5466
      %v5468 = vmul.f32 %v5465, %v5467
      %v5469 = vadd.f32 %v5465, %v5468
      %vm5470 = vweird.f32 %v5181
      %vm5471 = vweird.f32 %v5465
      %vm5472 = vmor %vm5470, %vm5471
      %v5473 = vsel %vm5472, %v5465, %v5469
      %v5474 = vand.u32 2147483647, %v5181
      %vm5475 = vcmp.eq.f32.partialorder %v5474, 8.507059e+37
      %v5476 = vand.u32 %v5181, 2147483648
      %v5477 = vor.u32 1.1754944e-38, %v5476
      %v5478 = vsel %vm5475, %v5477, %v5473
      %v5479 = vmul.f32 1.0, %v5478
      %v5480 = vrcp.pop %v5182
      %v5481 = vmul.f32 %v5182, %v5480
      %v5482 = vsub.f32 1.0, %v5481
      %v5483 = vmul.f32 %v5480, %v5482
      %v5484 = vadd.f32 %v5480, %v5483
      %vm5485 = vweird.f32 %v5182
      %vm5486 = vweird.f32 %v5480
      %vm5487 = vmor %vm5485, %vm5486
      %v5488 = vsel %vm5487, %v5480, %v5484
      %v5489 = vand.u32 2147483647, %v5182
      %vm5490 = vcmp.eq.f32.partialorder %v5489, 8.507059e+37
      %v5491 = vand.u32 %v5182, 2147483648
      %v5492 = vor.u32 1.1754944e-38, %v5491
      %v5493 = vsel %vm5490, %v5492, %v5488
      %v5494 = vmul.f32 1.0, %v5493
      %v5495 = vrcp.pop %v5183
      %v5496 = vmul.f32 %v5183, %v5495
      %v5497 = vsub.f32 1.0, %v5496
      %v5498 = vmul.f32 %v5495, %v5497
      %v5499 = vadd.f32 %v5495, %v5498
      %vm5500 = vweird.f32 %v5183
      %vm5501 = vweird.f32 %v5495
      %vm5502 = vmor %vm5500, %vm5501
      %v5503 = vsel %vm5502, %v5495, %v5499
      %v5504 = vand.u32 2147483647, %v5183
      %vm5505 = vcmp.eq.f32.partialorder %v5504, 8.507059e+37
      %v5506 = vand.u32 %v5183, 2147483648
      %v5507 = vor.u32 1.1754944e-38, %v5506
      %v5508 = vsel %vm5505, %v5507, %v5503
      %v5509 = vmul.f32 1.0, %v5508
      %v5510 = vrcp.pop %v5184
      %v5511 = vmul.f32 %v5184, %v5510
      %v5512 = vsub.f32 1.0, %v5511
      %v5513 = vmul.f32 %v5510, %v5512
      %v5514 = vadd.f32 %v5510, %v5513
      %vm5515 = vweird.f32 %v5184
      %vm5516 = vweird.f32 %v5510
      %vm5517 = vmor %vm5515, %vm5516
      %v5518 = vsel %vm5517, %v5510, %v5514
      %v5519 = vand.u32 2147483647, %v5184
      %vm5520 = vcmp.eq.f32.partialorder %v5519, 8.507059e+37
      %v5521 = vand.u32 %v5184, 2147483648
      %v5522 = vor.u32 1.1754944e-38, %v5521
      %v5523 = vsel %vm5520, %v5522, %v5518
      %v5524 = vmul.f32 1.0, %v5523
      %v5525 = vrcp.pop %v5185
      %v5526 = vmul.f32 %v5185, %v5525
      %v5527 = vsub.f32 1.0, %v5526
      %v5528 = vmul.f32 %v5525, %v5527
      %v5529 = vadd.f32 %v5525, %v5528
      %vm5530 = vweird.f32 %v5185
      %vm5531 = vweird.f32 %v5525
      %vm5532 = vmor %vm5530, %vm5531
      %v5533 = vsel %vm5532, %v5525, %v5529
      %v5534 = vand.u32 2147483647, %v5185
      %vm5535 = vcmp.eq.f32.partialorder %v5534, 8.507059e+37
      %v5536 = vand.u32 %v5185, 2147483648
      %v5537 = vor.u32 1.1754944e-38, %v5536
      %v5538 = vsel %vm5535, %v5537, %v5533
      %v5539 = vmul.f32 1.0, %v5538
      %v5540 = vrcp.pop %v5186
      %v5541 = vmul.f32 %v5186, %v5540
      %v5542 = vsub.f32 1.0, %v5541
      %v5543 = vmul.f32 %v5540, %v5542
      %v5544 = vadd.f32 %v5540, %v5543
      %vm5545 = vweird.f32 %v5186
      %vm5546 = vweird.f32 %v5540
      %vm5547 = vmor %vm5545, %vm5546
      %v5548 = vsel %vm5547, %v5540, %v5544
      %v5549 = vand.u32 2147483647, %v5186
      %vm5550 = vcmp.eq.f32.partialorder %v5549, 8.507059e+37
      %v5551 = vand.u32 %v5186, 2147483648
      %v5552 = vor.u32 1.1754944e-38, %v5551
      %v5553 = vsel %vm5550, %v5552, %v5548
      %v5554 = vmul.f32 1.0, %v5553
      %v5555 = vrcp.pop %v5187
      %v5556 = vmul.f32 %v5187, %v5555
      %v5557 = vsub.f32 1.0, %v5556
      %v5558 = vmul.f32 %v5555, %v5557
      %v5559 = vadd.f32 %v5555, %v5558
      %vm5560 = vweird.f32 %v5187
      %vm5561 = vweird.f32 %v5555
      %vm5562 = vmor %vm5560, %vm5561
      %v5563 = vsel %vm5562, %v5555, %v5559
      %v5564 = vand.u32 2147483647, %v5187
      %vm5565 = vcmp.eq.f32.partialorder %v5564, 8.507059e+37
      %v5566 = vand.u32 %v5187, 2147483648
      %v5567 = vor.u32 1.1754944e-38, %v5566
      %v5568 = vsel %vm5565, %v5567, %v5563
      %v5569 = vmul.f32 1.0, %v5568
      %v5570 = vrcp.pop %v5188
      %v5571 = vmul.f32 %v5188, %v5570
      %v5572 = vsub.f32 1.0, %v5571
      %v5573 = vmul.f32 %v5570, %v5572
      %v5574 = vadd.f32 %v5570, %v5573
      %vm5575 = vweird.f32 %v5188
      %vm5576 = vweird.f32 %v5570
      %vm5577 = vmor %vm5575, %vm5576
      %v5578 = vsel %vm5577, %v5570, %v5574
      %v5579 = vand.u32 2147483647, %v5188
      %vm5580 = vcmp.eq.f32.partialorder %v5579, 8.507059e+37
      %v5581 = vand.u32 %v5188, 2147483648
      %v5582 = vor.u32 1.1754944e-38, %v5581
      %v5583 = vsel %vm5580, %v5582, %v5578
      %v5584 = vmul.f32 1.0, %v5583
      %v5585 = vrcp.pop %v5189
      %v5586 = vmul.f32 %v5189, %v5585
      %v5587 = vsub.f32 1.0, %v5586
      %v5588 = vmul.f32 %v5585, %v5587
      %v5589 = vadd.f32 %v5585, %v5588
      %vm5590 = vweird.f32 %v5189
      %vm5591 = vweird.f32 %v5585
      %vm5592 = vmor %vm5590, %vm5591
      %v5593 = vsel %vm5592, %v5585, %v5589
      %v5594 = vand.u32 2147483647, %v5189
      %vm5595 = vcmp.eq.f32.partialorder %v5594, 8.507059e+37
      %v5596 = vand.u32 %v5189, 2147483648
      %v5597 = vor.u32 1.1754944e-38, %v5596
      %v5598 = vsel %vm5595, %v5597, %v5593
      %v5599 = vmul.f32 1.0, %v5598
      %v5600 = vrcp.pop %v5190
      %v5601 = vmul.f32 %v5190, %v5600
      %v5602 = vsub.f32 1.0, %v5601
      %v5603 = vmul.f32 %v5600, %v5602
      %v5604 = vadd.f32 %v5600, %v5603
      %vm5605 = vweird.f32 %v5190
      %vm5606 = vweird.f32 %v5600
      %vm5607 = vmor %vm5605, %vm5606
      %v5608 = vsel %vm5607, %v5600, %v5604
      %v5609 = vand.u32 2147483647, %v5190
      %vm5610 = vcmp.eq.f32.partialorder %v5609, 8.507059e+37
      %v5611 = vand.u32 %v5190, 2147483648
      %v5612 = vor.u32 1.1754944e-38, %v5611
      %v5613 = vsel %vm5610, %v5612, %v5608
      %v5614 = vmul.f32 1.0, %v5613
      %v5615 = vrcp.pop %v5191
      %v5616 = vmul.f32 %v5191, %v5615
      %v5617 = vsub.f32 1.0, %v5616
      %v5618 = vmul.f32 %v5615, %v5617
      %v5619 = vadd.f32 %v5615, %v5618
      %vm5620 = vweird.f32 %v5191
      %vm5621 = vweird.f32 %v5615
      %vm5622 = vmor %vm5620, %vm5621
      %v5623 = vsel %vm5622, %v5615, %v5619
      %v5624 = vand.u32 2147483647, %v5191
      %vm5625 = vcmp.eq.f32.partialorder %v5624, 8.507059e+37
      %v5626 = vand.u32 %v5191, 2147483648
      %v5627 = vor.u32 1.1754944e-38, %v5626
      %v5628 = vsel %vm5625, %v5627, %v5623
      %v5629 = vmul.f32 1.0, %v5628
      %v5630 = vrcp.pop %v5192
      %v5631 = vmul.f32 %v5192, %v5630
      %v5632 = vsub.f32 1.0, %v5631
      %v5633 = vmul.f32 %v5630, %v5632
      %v5634 = vadd.f32 %v5630, %v5633
      %vm5635 = vweird.f32 %v5192
      %vm5636 = vweird.f32 %v5630
      %vm5637 = vmor %vm5635, %vm5636
      %v5638 = vsel %vm5637, %v5630, %v5634
      %v5639 = vand.u32 2147483647, %v5192
      %vm5640 = vcmp.eq.f32.partialorder %v5639, 8.507059e+37
      %v5641 = vand.u32 %v5192, 2147483648
      %v5642 = vor.u32 1.1754944e-38, %v5641
      %v5643 = vsel %vm5640, %v5642, %v5638
      %v5644 = vmul.f32 1.0, %v5643
      %v5645 = vrcp.pop %v5193
      %v5646 = vmul.f32 %v5193, %v5645
      %v5647 = vsub.f32 1.0, %v5646
      %v5648 = vmul.f32 %v5645, %v5647
      %v5649 = vadd.f32 %v5645, %v5648
      %vm5650 = vweird.f32 %v5193
      %vm5651 = vweird.f32 %v5645
      %vm5652 = vmor %vm5650, %vm5651
      %v5653 = vsel %vm5652, %v5645, %v5649
      %v5654 = vand.u32 2147483647, %v5193
      %vm5655 = vcmp.eq.f32.partialorder %v5654, 8.507059e+37
      %v5656 = vand.u32 %v5193, 2147483648
      %v5657 = vor.u32 1.1754944e-38, %v5656
      %v5658 = vsel %vm5655, %v5657, %v5653
      %v5659 = vmul.f32 1.0, %v5658
      %v5660 = vrcp.pop %v5194
      %v5661 = vmul.f32 %v5194, %v5660
      %v5662 = vsub.f32 1.0, %v5661
      %v5663 = vmul.f32 %v5660, %v5662
      %v5664 = vadd.f32 %v5660, %v5663
      %vm5665 = vweird.f32 %v5194
      %vm5666 = vweird.f32 %v5660
      %vm5667 = vmor %vm5665, %vm5666
      %v5668 = vsel %vm5667, %v5660, %v5664
      %v5669 = vand.u32 2147483647, %v5194
      %vm5670 = vcmp.eq.f32.partialorder %v5669, 8.507059e+37
      %v5671 = vand.u32 %v5194, 2147483648
      %v5672 = vor.u32 1.1754944e-38, %v5671
      %v5673 = vsel %vm5670, %v5672, %v5668
      %v5674 = vmul.f32 1.0, %v5673
      %v5675 = vmul.f32 %v5035, %v5209
      %v5676 = vmul.f32 %v5036, %v5224
      %v5677 = vmul.f32 %v5037, %v5239
      %v5678 = vmul.f32 %v5038, %v5254
      %v5679 = vmul.f32 %v5039, %v5269
      %v5680 = vmul.f32 %v5040, %v5284
      %v5681 = vmul.f32 %v5041, %v5299
      %v5682 = vmul.f32 %v5042, %v5314
      %v5683 = vmul.f32 %v5043, %v5329
      %v5684 = vmul.f32 %v5044, %v5344
      %v5685 = vmul.f32 %v5045, %v5359
      %v5686 = vmul.f32 %v5046, %v5374
      %v5687 = vmul.f32 %v5047, %v5389
      %v5688 = vmul.f32 %v5048, %v5404
      %v5689 = vmul.f32 %v5049, %v5419
      %v5690 = vmul.f32 %v5050, %v5434
      %v5691 = vmul.f32 %v5051, %v5449
      %v5692 = vmul.f32 %v5052, %v5464
      %v5693 = vmul.f32 %v5053, %v5479
      %v5694 = vmul.f32 %v5054, %v5494
      %v5695 = vmul.f32 %v5055, %v5509
      %v5696 = vmul.f32 %v5056, %v5524
      %v5697 = vmul.f32 %v5057, %v5539
      %v5698 = vmul.f32 %v5058, %v5554
      %v5699 = vmul.f32 %v5059, %v5569
      %v5700 = vmul.f32 %v5060, %v5584
      %v5701 = vmul.f32 %v5061, %v5599
      %v5702 = vmul.f32 %v5062, %v5614
      %v5703 = vmul.f32 %v5063, %v5629
      %v5704 = vmul.f32 %v5064, %v5644
      %v5705 = vmul.f32 %v5065, %v5659
      %v5706 = vmul.f32 %v5066, %v5674
      %v5707 = vld [vmem:[%s11] sm:$0x1]
      %v5708 = vmul.f32 %v5675, %v1716
      %v5709 = vmul.f32 %v5676, %v1718
      %v5710 = vmul.f32 %v5677, %v1720
      %v5711 = vmul.f32 %v5678, %v1722
      %v5712 = vmul.f32 %v5679, %v1724
      %v5713 = vmul.f32 %v5680, %v1726
      %v5714 = vmul.f32 %v5681, %v1728
      %v5715 = vmul.f32 %v5682, %v1730
      %v5716 = vmul.f32 %v5683, %v1732
      %v5717 = vmul.f32 %v5684, %v1734
      %v5718 = vmul.f32 %v5685, %v1736
      %v5719 = vmul.f32 %v5686, %v1738
      %v5720 = vmul.f32 %v5687, %v1740
      %v5721 = vmul.f32 %v5688, %v1742
      %v5722 = vmul.f32 %v5689, %v1744
      %v5723 = vmul.f32 %v5690, %v1746
      %v5724 = vmul.f32 %v5691, %v1748
      %v5725 = vmul.f32 %v5692, %v1750
      %v5726 = vmul.f32 %v5693, %v1752
      %v5727 = vmul.f32 %v5694, %v1754
      %v5728 = vmul.f32 %v5695, %v1756
      %v5729 = vmul.f32 %v5696, %v1758
      %v5730 = vmul.f32 %v5697, %v1760
      %v5731 = vmul.f32 %v5698, %v1762
      %v5732 = vmul.f32 %v5699, %v1764
      %v5733 = vmul.f32 %v5700, %v1766
      %v5734 = vmul.f32 %v5701, %v1768
      %v5735 = vmul.f32 %v5702, %v1770
      %v5736 = vmul.f32 %v5703, %v1772
      %v5737 = vmul.f32 %v5704, %v1771
      %v5738 = vld [vmem:[%s10] sm:$0xff]
      %v5739 = vld [vmem:[%s10 + $0x8] sm:$0xff]
      %v5740 = vld [vmem:[%s10 + $0x10] sm:$0xff]
      %v5741 = vld [vmem:[%s10 + $0x18] sm:$0xff]
      %v5742 = vld [vmem:[%s10 + $0x20] sm:$0xff]
      %v5743 = vld [vmem:[%s10 + $0x28] sm:$0xff]
      %v5744 = vld [vmem:[%s10 + $0x30] sm:$0xff]
      %v5745 = vld [vmem:[%s10 + $0x38] sm:$0xff]
      %s5746 = scalar_lea.vmem %s10, 64
      %v5747 = vld [vmem:[%s5746] sm:$0xff]
      %v5748 = vld [vmem:[%s5746 + $0x8] sm:$0xff]
      %v5749 = vld [vmem:[%s5746 + $0x10] sm:$0xff]
      %v5750 = vld [vmem:[%s5746 + $0x18] sm:$0xff]
      %v5751 = vld [vmem:[%s5746 + $0x20] sm:$0xff]
      %v5752 = vld [vmem:[%s5746 + $0x28] sm:$0xff]
      %v5753 = vld [vmem:[%s5746 + $0x30] sm:$0xff]
      %v5754 = vld [vmem:[%s5746 + $0x38] sm:$0xff]
      %v5756 = vsel %vm535, %v5675, 0
      %v5759 = vsel %vm535, %v5676, 0
      %v5762 = vsel %vm535, %v5677, 0
      %v5765 = vsel %vm535, %v5678, 0
      %v5768 = vsel %vm535, %v5679, 0
      %v5771 = vsel %vm535, %v5680, 0
      %v5774 = vsel %vm535, %v5681, 0
      %v5777 = vsel %vm535, %v5682, 0
      %v5780 = vsel %vm535, %v5683, 0
      %v5783 = vsel %vm535, %v5684, 0
      %v5786 = vsel %vm535, %v5685, 0
      %v5789 = vsel %vm535, %v5686, 0
      %v5792 = vsel %vm535, %v5687, 0
      %v5795 = vsel %vm535, %v5688, 0
      %v5798 = vsel %vm535, %v5689, 0
      %v5801 = vsel %vm535, %v5690, 0
      %v5804 = vsel %vm535, %v5691, 0
      %v5807 = vsel %vm535, %v5692, 0
      %v5810 = vsel %vm535, %v5693, 0
      %v5813 = vsel %vm535, %v5694, 0
      %v5816 = vsel %vm535, %v5695, 0
      %v5819 = vsel %vm535, %v5696, 0
      %v5822 = vsel %vm535, %v5697, 0
      %v5825 = vsel %vm535, %v5698, 0
      %v5828 = vsel %vm535, %v5699, 0
      %v5831 = vsel %vm535, %v5700, 0
      %v5834 = vsel %vm535, %v5701, 0
      %v5837 = vsel %vm535, %v5702, 0
      %v5840 = vsel %vm535, %v5703, 0
      %v5843 = vsel %vm535, %v5704, 0
      %5845 = vmatpush.msra.mxu0 0.0
      %5846 = vmatpush.msra.mxu0 0.0
      %5847 = vmatpush.msra.mxu0 0.0
      %5848 = vmatpush.msra.mxu0 0.0
      %5849 = vmatpush.msra.mxu0 0.0
      %5850 = vmatpush.msra.mxu0 0.0
      %5851 = vmatpush.msra.mxu0 0.0
      %5852 = vmatpush.msra.mxu0 0.0
      %5853 = vmatpush.msra.mxu0 %v5754
      %5854 = vmatpush.msra.mxu0 %v5753
      %5855 = vmatpush.msra.mxu0 %v5752
      %5856 = vmatpush.msra.mxu0 %v5751
      %5857 = vmatpush.msra.mxu0 %v5750
      %5858 = vmatpush.msra.mxu0 %v5749
      %5859 = vmatpush.msra.mxu0 %v5748
      %5860 = vmatpush.msra.mxu0 %v5747
      %5861 = vmatmul.f32.gmra.mxu0 %v1857
      %v5862 = vpop.f32.mrf.mxu0
      %v5863 = vadd.f32 0.0, %v5862
      %5864 = vmatmul.f32.gmra.mxu0 %v1857
      %v5865 = vpop.f32.mrf.mxu0
      %v5866 = vadd.f32 0.0, %v5865
      %5867 = vmatmul.f32.gmra.mxu0 %v5756
      %v5868 = vpop.f32.mrf.mxu0
      %v5869 = vadd.f32 0.0, %v5868
      %5870 = vmatmul.f32.gmra.mxu0 %v5759
      %v5871 = vpop.f32.mrf.mxu0
      %v5872 = vadd.f32 0.0, %v5871
      %5873 = vmatmul.f32.gmra.mxu0 %v5762
      %v5874 = vpop.f32.mrf.mxu0
      %v5875 = vadd.f32 0.0, %v5874
      %5876 = vmatmul.f32.gmra.mxu0 %v5765
      %v5877 = vpop.f32.mrf.mxu0
      %v5878 = vadd.f32 0.0, %v5877
      %5879 = vmatmul.f32.gmra.mxu0 %v5768
      %v5880 = vpop.f32.mrf.mxu0
      %v5881 = vadd.f32 0.0, %v5880
      %5882 = vmatmul.f32.gmra.mxu0 %v5771
      %v5883 = vpop.f32.mrf.mxu0
      %v5884 = vadd.f32 0.0, %v5883
      %5885 = vmatmul.f32.gmra.mxu0 %v5774
      %v5886 = vpop.f32.mrf.mxu0
      %v5887 = vadd.f32 0.0, %v5886
      %5888 = vmatmul.f32.gmra.mxu0 %v5777
      %v5889 = vpop.f32.mrf.mxu0
      %v5890 = vadd.f32 0.0, %v5889
      %5891 = vmatmul.f32.gmra.mxu0 %v5780
      %v5892 = vpop.f32.mrf.mxu0
      %v5893 = vadd.f32 0.0, %v5892
      %5894 = vmatmul.f32.gmra.mxu0 %v5783
      %v5895 = vpop.f32.mrf.mxu0
      %v5896 = vadd.f32 0.0, %v5895
      %5897 = vmatmul.f32.gmra.mxu0 %v5786
      %v5898 = vpop.f32.mrf.mxu0
      %v5899 = vadd.f32 0.0, %v5898
      %5900 = vmatmul.f32.gmra.mxu0 %v5789
      %v5901 = vpop.f32.mrf.mxu0
      %v5902 = vadd.f32 0.0, %v5901
      %5903 = vmatmul.f32.gmra.mxu0 %v5792
      %v5904 = vpop.f32.mrf.mxu0
      %v5905 = vadd.f32 0.0, %v5904
      %5906 = vmatmul.f32.gmra.mxu0 %v5795
      %v5907 = vpop.f32.mrf.mxu0
      %v5908 = vadd.f32 0.0, %v5907
      %5909 = vmatmul.f32.gmra.mxu0 %v5798
      %v5910 = vpop.f32.mrf.mxu0
      %v5911 = vadd.f32 0.0, %v5910
      %5912 = vmatmul.f32.gmra.mxu0 %v5801
      %v5913 = vpop.f32.mrf.mxu0
      %v5914 = vadd.f32 0.0, %v5913
      %5915 = vmatmul.f32.gmra.mxu0 %v5804
      %v5916 = vpop.f32.mrf.mxu0
      %v5917 = vadd.f32 0.0, %v5916
      %5918 = vmatmul.f32.gmra.mxu0 %v5807
      %v5919 = vpop.f32.mrf.mxu0
      %v5920 = vadd.f32 0.0, %v5919
      %5921 = vmatmul.f32.gmra.mxu0 %v5810
      %v5922 = vpop.f32.mrf.mxu0
      %v5923 = vadd.f32 0.0, %v5922
      %5924 = vmatmul.f32.gmra.mxu0 %v5813
      %v5925 = vpop.f32.mrf.mxu0
      %v5926 = vadd.f32 0.0, %v5925
      %5927 = vmatmul.f32.gmra.mxu0 %v5816
      %v5928 = vpop.f32.mrf.mxu0
      %v5929 = vadd.f32 0.0, %v5928
      %5930 = vmatmul.f32.gmra.mxu0 %v5819
      %v5931 = vpop.f32.mrf.mxu0
      %v5932 = vadd.f32 0.0, %v5931
      %5933 = vmatmul.f32.gmra.mxu0 %v5822
      %v5934 = vpop.f32.mrf.mxu0
      %v5935 = vadd.f32 0.0, %v5934
      %5936 = vmatmul.f32.gmra.mxu0 %v5825
      %v5937 = vpop.f32.mrf.mxu0
      %v5938 = vadd.f32 0.0, %v5937
      %5939 = vmatmul.f32.gmra.mxu0 %v5828
      %v5940 = vpop.f32.mrf.mxu0
      %v5941 = vadd.f32 0.0, %v5940
      %5942 = vmatmul.f32.gmra.mxu0 %v5831
      %v5943 = vpop.f32.mrf.mxu0
      %v5944 = vadd.f32 0.0, %v5943
      %5945 = vmatmul.f32.gmra.mxu0 %v5834
      %v5946 = vpop.f32.mrf.mxu0
      %v5947 = vadd.f32 0.0, %v5946
      %5948 = vmatmul.f32.gmra.mxu0 %v5837
      %v5949 = vpop.f32.mrf.mxu0
      %v5950 = vadd.f32 0.0, %v5949
      %5951 = vmatmul.f32.gmra.mxu0 %v5840
      %v5952 = vpop.f32.mrf.mxu0
      %v5953 = vadd.f32 0.0, %v5952
      %5954 = vmatmul.f32.gmra.mxu0 %v5843
      %v5955 = vpop.f32.mrf.mxu0
      %v5956 = vadd.f32 0.0, %v5955
      %5957 = vdwg.mxu0
      %v5988 = vrot.slane %v5708, 7
      %v5989 = vsel %vm2095, %v2099, %v5988
      %v5990 = vrot.slane %v5709, 7
      %v5991 = vsel %vm2095, %v5988, %v5990
      %v5992 = vrot.slane %v5710, 7
      %v5993 = vsel %vm2095, %v5990, %v5992
      %v5994 = vrot.slane %v5711, 7
      %v5995 = vsel %vm2095, %v5992, %v5994
      %v5996 = vrot.slane %v5712, 7
      %v5997 = vsel %vm2095, %v5994, %v5996
      %v5998 = vrot.slane %v5713, 7
      %v5999 = vsel %vm2095, %v5996, %v5998
      %v6000 = vrot.slane %v5714, 7
      %v6001 = vsel %vm2095, %v5998, %v6000
      %v6002 = vrot.slane %v5715, 7
      %v6003 = vsel %vm2095, %v6000, %v6002
      %v6004 = vrot.slane %v5716, 7
      %v6005 = vsel %vm2095, %v6002, %v6004
      %v6006 = vrot.slane %v5717, 7
      %v6007 = vsel %vm2095, %v6004, %v6006
      %v6008 = vrot.slane %v5718, 7
      %v6009 = vsel %vm2095, %v6006, %v6008
      %v6010 = vrot.slane %v5719, 7
      %v6011 = vsel %vm2095, %v6008, %v6010
      %v6012 = vrot.slane %v5720, 7
      %v6013 = vsel %vm2095, %v6010, %v6012
      %v6014 = vrot.slane %v5721, 7
      %v6015 = vsel %vm2095, %v6012, %v6014
      %v6016 = vrot.slane %v5722, 7
      %v6017 = vsel %vm2095, %v6014, %v6016
      %v6018 = vrot.slane %v5723, 7
      %v6019 = vsel %vm2095, %v6016, %v6018
      %v6020 = vrot.slane %v5724, 7
      %v6021 = vsel %vm2095, %v6018, %v6020
      %v6022 = vrot.slane %v5725, 7
      %v6023 = vsel %vm2095, %v6020, %v6022
      %v6024 = vrot.slane %v5726, 7
      %v6025 = vsel %vm2095, %v6022, %v6024
      %v6026 = vrot.slane %v5727, 7
      %v6027 = vsel %vm2095, %v6024, %v6026
      %v6028 = vrot.slane %v5728, 7
      %v6029 = vsel %vm2095, %v6026, %v6028
      %v6030 = vrot.slane %v5729, 7
      %v6031 = vsel %vm2095, %v6028, %v6030
      %v6032 = vrot.slane %v5730, 7
      %v6033 = vsel %vm2095, %v6030, %v6032
      %v6034 = vrot.slane %v5731, 7
      %v6035 = vsel %vm2095, %v6032, %v6034
      %v6036 = vrot.slane %v5732, 7
      %v6037 = vsel %vm2095, %v6034, %v6036
      %v6038 = vrot.slane %v5733, 7
      %v6039 = vsel %vm2095, %v6036, %v6038
      %v6040 = vrot.slane %v5734, 7
      %v6041 = vsel %vm2095, %v6038, %v6040
      %v6042 = vrot.slane %v5735, 7
      %v6043 = vsel %vm2095, %v6040, %v6042
      %v6044 = vrot.slane %v5736, 7
      %v6045 = vsel %vm2095, %v6042, %v6044
      %v6046 = vrot.slane %v5737, 7
      %v6047 = vsel %vm2095, %v6044, %v6046
      %v6048 = vsel %vm535, %v5989, 0
      %v6050 = vsel %vm535, %v5991, 0
      %v6052 = vsel %vm535, %v5993, 0
      %v6054 = vsel %vm535, %v5995, 0
      %v6056 = vsel %vm535, %v5997, 0
      %v6058 = vsel %vm535, %v5999, 0
      %v6060 = vsel %vm535, %v6001, 0
      %v6062 = vsel %vm535, %v6003, 0
      %v6064 = vsel %vm535, %v6005, 0
      %v6066 = vsel %vm535, %v6007, 0
      %v6068 = vsel %vm535, %v6009, 0
      %v6070 = vsel %vm535, %v6011, 0
      %v6072 = vsel %vm535, %v6013, 0
      %v6074 = vsel %vm535, %v6015, 0
      %v6076 = vsel %vm535, %v6017, 0
      %v6078 = vsel %vm535, %v6019, 0
      %v6080 = vsel %vm535, %v6021, 0
      %v6082 = vsel %vm535, %v6023, 0
      %v6084 = vsel %vm535, %v6025, 0
      %v6086 = vsel %vm535, %v6027, 0
      %v6088 = vsel %vm535, %v6029, 0
      %v6090 = vsel %vm535, %v6031, 0
      %v6092 = vsel %vm535, %v6033, 0
      %v6094 = vsel %vm535, %v6035, 0
      %v6096 = vsel %vm535, %v6037, 0
      %v6098 = vsel %vm535, %v6039, 0
      %v6100 = vsel %vm535, %v6041, 0
      %v6102 = vsel %vm535, %v6043, 0
      %v6104 = vsel %vm535, %v6045, 0
      %v6106 = vsel %vm535, %v6047, 0
      %6108 = vmatpush.msra.mxu0 0.0
      %6109 = vmatpush.msra.mxu0 0.0
      %6110 = vmatpush.msra.mxu0 0.0
      %6111 = vmatpush.msra.mxu0 0.0
      %6112 = vmatpush.msra.mxu0 0.0
      %6113 = vmatpush.msra.mxu0 0.0
      %6114 = vmatpush.msra.mxu0 0.0
      %6115 = vmatpush.msra.mxu0 0.0
      %6116 = vmatpush.msra.mxu0 %v5745
      %6117 = vmatpush.msra.mxu0 %v5744
      %6118 = vmatpush.msra.mxu0 %v5743
      %6119 = vmatpush.msra.mxu0 %v5742
      %6120 = vmatpush.msra.mxu0 %v5741
      %6121 = vmatpush.msra.mxu0 %v5740
      %6122 = vmatpush.msra.mxu0 %v5739
      %6123 = vmatpush.msra.mxu0 %v5738
      %6124 = vmatmul.f32.gmra.mxu0 %v2161
      %v6125 = vpop.f32.mrf.mxu0
      %v6126 = vadd.f32 %v5863, %v6125
      %6127 = vmatmul.f32.gmra.mxu0 %v2163
      %v6128 = vpop.f32.mrf.mxu0
      %v6129 = vadd.f32 %v5866, %v6128
      %6130 = vmatmul.f32.gmra.mxu0 %v6048
      %v6131 = vpop.f32.mrf.mxu0
      %v6132 = vadd.f32 %v5869, %v6131
      %6133 = vmatmul.f32.gmra.mxu0 %v6050
      %v6134 = vpop.f32.mrf.mxu0
      %v6135 = vadd.f32 %v5872, %v6134
      %6136 = vmatmul.f32.gmra.mxu0 %v6052
      %v6137 = vpop.f32.mrf.mxu0
      %v6138 = vadd.f32 %v5875, %v6137
      %6139 = vmatmul.f32.gmra.mxu0 %v6054
      %v6140 = vpop.f32.mrf.mxu0
      %v6141 = vadd.f32 %v5878, %v6140
      %6142 = vmatmul.f32.gmra.mxu0 %v6056
      %v6143 = vpop.f32.mrf.mxu0
      %v6144 = vadd.f32 %v5881, %v6143
      %6145 = vmatmul.f32.gmra.mxu0 %v6058
      %v6146 = vpop.f32.mrf.mxu0
      %v6147 = vadd.f32 %v5884, %v6146
      %6148 = vmatmul.f32.gmra.mxu0 %v6060
      %v6149 = vpop.f32.mrf.mxu0
      %v6150 = vadd.f32 %v5887, %v6149
      %6151 = vmatmul.f32.gmra.mxu0 %v6062
      %v6152 = vpop.f32.mrf.mxu0
      %v6153 = vadd.f32 %v5890, %v6152
      %6154 = vmatmul.f32.gmra.mxu0 %v6064
      %v6155 = vpop.f32.mrf.mxu0
      %v6156 = vadd.f32 %v5893, %v6155
      %6157 = vmatmul.f32.gmra.mxu0 %v6066
      %v6158 = vpop.f32.mrf.mxu0
      %v6159 = vadd.f32 %v5896, %v6158
      %6160 = vmatmul.f32.gmra.mxu0 %v6068
      %v6161 = vpop.f32.mrf.mxu0
      %v6162 = vadd.f32 %v5899, %v6161
      %6163 = vmatmul.f32.gmra.mxu0 %v6070
      %v6164 = vpop.f32.mrf.mxu0
      %v6165 = vadd.f32 %v5902, %v6164
      %6166 = vmatmul.f32.gmra.mxu0 %v6072
      %v6167 = vpop.f32.mrf.mxu0
      %v6168 = vadd.f32 %v5905, %v6167
      %6169 = vmatmul.f32.gmra.mxu0 %v6074
      %v6170 = vpop.f32.mrf.mxu0
      %v6171 = vadd.f32 %v5908, %v6170
      %6172 = vmatmul.f32.gmra.mxu0 %v6076
      %v6173 = vpop.f32.mrf.mxu0
      %v6174 = vadd.f32 %v5911, %v6173
      %6175 = vmatmul.f32.gmra.mxu0 %v6078
      %v6176 = vpop.f32.mrf.mxu0
      %v6177 = vadd.f32 %v5914, %v6176
      %6178 = vmatmul.f32.gmra.mxu0 %v6080
      %v6179 = vpop.f32.mrf.mxu0
      %v6180 = vadd.f32 %v5917, %v6179
      %6181 = vmatmul.f32.gmra.mxu0 %v6082
      %v6182 = vpop.f32.mrf.mxu0
      %v6183 = vadd.f32 %v5920, %v6182
      %6184 = vmatmul.f32.gmra.mxu0 %v6084
      %v6185 = vpop.f32.mrf.mxu0
      %v6186 = vadd.f32 %v5923, %v6185
      %6187 = vmatmul.f32.gmra.mxu0 %v6086
      %v6188 = vpop.f32.mrf.mxu0
      %v6189 = vadd.f32 %v5926, %v6188
      %6190 = vmatmul.f32.gmra.mxu0 %v6088
      %v6191 = vpop.f32.mrf.mxu0
      %v6192 = vadd.f32 %v5929, %v6191
      %6193 = vmatmul.f32.gmra.mxu0 %v6090
      %v6194 = vpop.f32.mrf.mxu0
      %v6195 = vadd.f32 %v5932, %v6194
      %6196 = vmatmul.f32.gmra.mxu0 %v6092
      %v6197 = vpop.f32.mrf.mxu0
      %v6198 = vadd.f32 %v5935, %v6197
      %6199 = vmatmul.f32.gmra.mxu0 %v6094
      %v6200 = vpop.f32.mrf.mxu0
      %v6201 = vadd.f32 %v5938, %v6200
      %6202 = vmatmul.f32.gmra.mxu0 %v6096
      %v6203 = vpop.f32.mrf.mxu0
      %v6204 = vadd.f32 %v5941, %v6203
      %6205 = vmatmul.f32.gmra.mxu0 %v6098
      %v6206 = vpop.f32.mrf.mxu0
      %v6207 = vadd.f32 %v5944, %v6206
      %6208 = vmatmul.f32.gmra.mxu0 %v6100
      %v6209 = vpop.f32.mrf.mxu0
      %v6210 = vadd.f32 %v5947, %v6209
      %6211 = vmatmul.f32.gmra.mxu0 %v6102
      %v6212 = vpop.f32.mrf.mxu0
      %v6213 = vadd.f32 %v5950, %v6212
      %6214 = vmatmul.f32.gmra.mxu0 %v6104
      %v6215 = vpop.f32.mrf.mxu0
      %v6216 = vadd.f32 %v5953, %v6215
      %6217 = vmatmul.f32.gmra.mxu0 %v6106
      %v6218 = vpop.f32.mrf.mxu0
      %v6219 = vadd.f32 %v5956, %v6218
      %6220 = vdwg.mxu0
      %v6221 = vmul.f32 %v5675, %v2470
      %v6222 = vmul.f32 %v5676, %v2472
      %v6223 = vmul.f32 %v5677, %v2474
      %v6224 = vmul.f32 %v5678, %v2476
      %v6225 = vmul.f32 %v5679, %v2478
      %v6226 = vmul.f32 %v5680, %v2480
      %v6227 = vmul.f32 %v5681, %v2482
      %v6228 = vmul.f32 %v5682, %v2484
      %v6229 = vmul.f32 %v5683, %v2486
      %v6230 = vmul.f32 %v5684, %v2488
      %v6231 = vmul.f32 %v5685, %v2490
      %v6232 = vmul.f32 %v5686, %v2492
      %v6233 = vmul.f32 %v5687, %v2494
      %v6234 = vmul.f32 %v5688, %v2496
      %v6235 = vmul.f32 %v5689, %v2498
      %v6236 = vmul.f32 %v5690, %v2500
      %v6237 = vmul.f32 %v5691, %v2502
      %v6238 = vmul.f32 %v5692, %v2504
      %v6239 = vmul.f32 %v5693, %v2506
      %v6240 = vmul.f32 %v5694, %v2508
      %v6241 = vmul.f32 %v5695, %v2510
      %v6242 = vmul.f32 %v5696, %v2512
      %v6243 = vmul.f32 %v5697, %v2514
      %v6244 = vmul.f32 %v5698, %v2516
      %v6245 = vmul.f32 %v5699, %v2518
      %v6246 = vmul.f32 %v5700, %v2520
      %v6247 = vmul.f32 %v5701, %v2522
      %v6248 = vmul.f32 %v5702, %v2524
      %v6249 = vmul.f32 %v5703, %v2526
      %v6250 = vmul.f32 %v5704, %v2528
      %v6251 = vmul.f32 %v5705, %v2527
      %s6252 = scalar_lea.vmem %s10, 128
      %v6253 = vld [vmem:[%s6252] sm:$0xff]
      %v6254 = vld [vmem:[%s6252 + $0x8] sm:$0xff]
      %v6255 = vld [vmem:[%s6252 + $0x10] sm:$0xff]
      %v6256 = vld [vmem:[%s6252 + $0x18] sm:$0xff]
      %v6257 = vld [vmem:[%s6252 + $0x20] sm:$0xff]
      %v6258 = vld [vmem:[%s6252 + $0x28] sm:$0xff]
      %v6259 = vld [vmem:[%s6252 + $0x30] sm:$0xff]
      %v6260 = vld [vmem:[%s6252 + $0x38] sm:$0xff]
      %v6292 = vrot.slane %v6221, 1
      %v6293 = vsel %vm1709, %v2638, %v6292
      %v6294 = vrot.slane %v6222, 1
      %v6295 = vsel %vm1709, %v6292, %v6294
      %v6296 = vrot.slane %v6223, 1
      %v6297 = vsel %vm1709, %v6294, %v6296
      %v6298 = vrot.slane %v6224, 1
      %v6299 = vsel %vm1709, %v6296, %v6298
      %v6300 = vrot.slane %v6225, 1
      %v6301 = vsel %vm1709, %v6298, %v6300
      %v6302 = vrot.slane %v6226, 1
      %v6303 = vsel %vm1709, %v6300, %v6302
      %v6304 = vrot.slane %v6227, 1
      %v6305 = vsel %vm1709, %v6302, %v6304
      %v6306 = vrot.slane %v6228, 1
      %v6307 = vsel %vm1709, %v6304, %v6306
      %v6308 = vrot.slane %v6229, 1
      %v6309 = vsel %vm1709, %v6306, %v6308
      %v6310 = vrot.slane %v6230, 1
      %v6311 = vsel %vm1709, %v6308, %v6310
      %v6312 = vrot.slane %v6231, 1
      %v6313 = vsel %vm1709, %v6310, %v6312
      %v6314 = vrot.slane %v6232, 1
      %v6315 = vsel %vm1709, %v6312, %v6314
      %v6316 = vrot.slane %v6233, 1
      %v6317 = vsel %vm1709, %v6314, %v6316
      %v6318 = vrot.slane %v6234, 1
      %v6319 = vsel %vm1709, %v6316, %v6318
      %v6320 = vrot.slane %v6235, 1
      %v6321 = vsel %vm1709, %v6318, %v6320
      %v6322 = vrot.slane %v6236, 1
      %v6323 = vsel %vm1709, %v6320, %v6322
      %v6324 = vrot.slane %v6237, 1
      %v6325 = vsel %vm1709, %v6322, %v6324
      %v6326 = vrot.slane %v6238, 1
      %v6327 = vsel %vm1709, %v6324, %v6326
      %v6328 = vrot.slane %v6239, 1
      %v6329 = vsel %vm1709, %v6326, %v6328
      %v6330 = vrot.slane %v6240, 1
      %v6331 = vsel %vm1709, %v6328, %v6330
      %v6332 = vrot.slane %v6241, 1
      %v6333 = vsel %vm1709, %v6330, %v6332
      %v6334 = vrot.slane %v6242, 1
      %v6335 = vsel %vm1709, %v6332, %v6334
      %v6336 = vrot.slane %v6243, 1
      %v6337 = vsel %vm1709, %v6334, %v6336
      %v6338 = vrot.slane %v6244, 1
      %v6339 = vsel %vm1709, %v6336, %v6338
      %v6340 = vrot.slane %v6245, 1
      %v6341 = vsel %vm1709, %v6338, %v6340
      %v6342 = vrot.slane %v6246, 1
      %v6343 = vsel %vm1709, %v6340, %v6342
      %v6344 = vrot.slane %v6247, 1
      %v6345 = vsel %vm1709, %v6342, %v6344
      %v6346 = vrot.slane %v6248, 1
      %v6347 = vsel %vm1709, %v6344, %v6346
      %v6348 = vrot.slane %v6249, 1
      %v6349 = vsel %vm1709, %v6346, %v6348
      %v6350 = vrot.slane %v6250, 1
      %v6351 = vsel %vm1709, %v6348, %v6350
      %v6352 = vrot.slane %v6251, 1
      %v6353 = vsel %vm1709, %v6350, %v6352
      %v6354 = vsel %vm535, %v6293, 0
      %v6356 = vsel %vm535, %v6295, 0
      %v6358 = vsel %vm535, %v6297, 0
      %v6360 = vsel %vm535, %v6299, 0
      %v6362 = vsel %vm535, %v6301, 0
      %v6364 = vsel %vm535, %v6303, 0
      %v6366 = vsel %vm535, %v6305, 0
      %v6368 = vsel %vm535, %v6307, 0
      %v6370 = vsel %vm535, %v6309, 0
      %v6372 = vsel %vm535, %v6311, 0
      %v6374 = vsel %vm535, %v6313, 0
      %v6376 = vsel %vm535, %v6315, 0
      %v6378 = vsel %vm535, %v6317, 0
      %v6380 = vsel %vm535, %v6319, 0
      %v6382 = vsel %vm535, %v6321, 0
      %v6384 = vsel %vm535, %v6323, 0
      %v6386 = vsel %vm535, %v6325, 0
      %v6388 = vsel %vm535, %v6327, 0
      %v6390 = vsel %vm535, %v6329, 0
      %v6392 = vsel %vm535, %v6331, 0
      %v6394 = vsel %vm535, %v6333, 0
      %v6396 = vsel %vm535, %v6335, 0
      %v6398 = vsel %vm535, %v6337, 0
      %v6400 = vsel %vm535, %v6339, 0
      %v6402 = vsel %vm535, %v6341, 0
      %v6404 = vsel %vm535, %v6343, 0
      %v6406 = vsel %vm535, %v6345, 0
      %v6408 = vsel %vm535, %v6347, 0
      %v6410 = vsel %vm535, %v6349, 0
      %v6412 = vsel %vm535, %v6351, 0
      %v6414 = vsel %vm535, %v6353, 0
      %6416 = vmatpush.msra.mxu0 0.0
      %6417 = vmatpush.msra.mxu0 0.0
      %6418 = vmatpush.msra.mxu0 0.0
      %6419 = vmatpush.msra.mxu0 0.0
      %6420 = vmatpush.msra.mxu0 0.0
      %6421 = vmatpush.msra.mxu0 0.0
      %6422 = vmatpush.msra.mxu0 0.0
      %6423 = vmatpush.msra.mxu0 0.0
      %6424 = vmatpush.msra.mxu0 %v6260
      %6425 = vmatpush.msra.mxu0 %v6259
      %6426 = vmatpush.msra.mxu0 %v6258
      %6427 = vmatpush.msra.mxu0 %v6257
      %6428 = vmatpush.msra.mxu0 %v6256
      %6429 = vmatpush.msra.mxu0 %v6255
      %6430 = vmatpush.msra.mxu0 %v6254
      %6431 = vmatpush.msra.mxu0 %v6253
      %6432 = vmatmul.f32.gmra.mxu0 %v2702
      %v6433 = vpop.f32.mrf.mxu0
      %v6434 = vadd.f32 0.0, %v6433
      %6435 = vmatmul.f32.gmra.mxu0 %v6354
      %v6436 = vpop.f32.mrf.mxu0
      %v6437 = vadd.f32 0.0, %v6436
      %6438 = vmatmul.f32.gmra.mxu0 %v6356
      %v6439 = vpop.f32.mrf.mxu0
      %v6440 = vadd.f32 0.0, %v6439
      %6441 = vmatmul.f32.gmra.mxu0 %v6358
      %v6442 = vpop.f32.mrf.mxu0
      %v6443 = vadd.f32 0.0, %v6442
      %6444 = vmatmul.f32.gmra.mxu0 %v6360
      %v6445 = vpop.f32.mrf.mxu0
      %v6446 = vadd.f32 0.0, %v6445
      %6447 = vmatmul.f32.gmra.mxu0 %v6362
      %v6448 = vpop.f32.mrf.mxu0
      %v6449 = vadd.f32 0.0, %v6448
      %6450 = vmatmul.f32.gmra.mxu0 %v6364
      %v6451 = vpop.f32.mrf.mxu0
      %v6452 = vadd.f32 0.0, %v6451
      %6453 = vmatmul.f32.gmra.mxu0 %v6366
      %v6454 = vpop.f32.mrf.mxu0
      %v6455 = vadd.f32 0.0, %v6454
      %6456 = vmatmul.f32.gmra.mxu0 %v6368
      %v6457 = vpop.f32.mrf.mxu0
      %v6458 = vadd.f32 0.0, %v6457
      %6459 = vmatmul.f32.gmra.mxu0 %v6370
      %v6460 = vpop.f32.mrf.mxu0
      %v6461 = vadd.f32 0.0, %v6460
      %6462 = vmatmul.f32.gmra.mxu0 %v6372
      %v6463 = vpop.f32.mrf.mxu0
      %v6464 = vadd.f32 0.0, %v6463
      %6465 = vmatmul.f32.gmra.mxu0 %v6374
      %v6466 = vpop.f32.mrf.mxu0
      %v6467 = vadd.f32 0.0, %v6466
      %6468 = vmatmul.f32.gmra.mxu0 %v6376
      %v6469 = vpop.f32.mrf.mxu0
      %v6470 = vadd.f32 0.0, %v6469
      %6471 = vmatmul.f32.gmra.mxu0 %v6378
      %v6472 = vpop.f32.mrf.mxu0
      %v6473 = vadd.f32 0.0, %v6472
      %6474 = vmatmul.f32.gmra.mxu0 %v6380
      %v6475 = vpop.f32.mrf.mxu0
      %v6476 = vadd.f32 0.0, %v6475
      %6477 = vmatmul.f32.gmra.mxu0 %v6382
      %v6478 = vpop.f32.mrf.mxu0
      %v6479 = vadd.f32 0.0, %v6478
      %6480 = vmatmul.f32.gmra.mxu0 %v6384
      %v6481 = vpop.f32.mrf.mxu0
      %v6482 = vadd.f32 0.0, %v6481
      %6483 = vmatmul.f32.gmra.mxu0 %v6386
      %v6484 = vpop.f32.mrf.mxu0
      %v6485 = vadd.f32 0.0, %v6484
      %6486 = vmatmul.f32.gmra.mxu0 %v6388
      %v6487 = vpop.f32.mrf.mxu0
      %v6488 = vadd.f32 0.0, %v6487
      %6489 = vmatmul.f32.gmra.mxu0 %v6390
      %v6490 = vpop.f32.mrf.mxu0
      %v6491 = vadd.f32 0.0, %v6490
      %6492 = vmatmul.f32.gmra.mxu0 %v6392
      %v6493 = vpop.f32.mrf.mxu0
      %v6494 = vadd.f32 0.0, %v6493
      %6495 = vmatmul.f32.gmra.mxu0 %v6394
      %v6496 = vpop.f32.mrf.mxu0
      %v6497 = vadd.f32 0.0, %v6496
      %6498 = vmatmul.f32.gmra.mxu0 %v6396
      %v6499 = vpop.f32.mrf.mxu0
      %v6500 = vadd.f32 0.0, %v6499
      %6501 = vmatmul.f32.gmra.mxu0 %v6398
      %v6502 = vpop.f32.mrf.mxu0
      %v6503 = vadd.f32 0.0, %v6502
      %6504 = vmatmul.f32.gmra.mxu0 %v6400
      %v6505 = vpop.f32.mrf.mxu0
      %v6506 = vadd.f32 0.0, %v6505
      %6507 = vmatmul.f32.gmra.mxu0 %v6402
      %v6508 = vpop.f32.mrf.mxu0
      %v6509 = vadd.f32 0.0, %v6508
      %6510 = vmatmul.f32.gmra.mxu0 %v6404
      %v6511 = vpop.f32.mrf.mxu0
      %v6512 = vadd.f32 0.0, %v6511
      %6513 = vmatmul.f32.gmra.mxu0 %v6406
      %v6514 = vpop.f32.mrf.mxu0
      %v6515 = vadd.f32 0.0, %v6514
      %6516 = vmatmul.f32.gmra.mxu0 %v6408
      %v6517 = vpop.f32.mrf.mxu0
      %v6518 = vadd.f32 0.0, %v6517
      %6519 = vmatmul.f32.gmra.mxu0 %v6410
      %v6520 = vpop.f32.mrf.mxu0
      %v6521 = vadd.f32 0.0, %v6520
      %6522 = vmatmul.f32.gmra.mxu0 %v6412
      %v6523 = vpop.f32.mrf.mxu0
      %v6524 = vadd.f32 0.0, %v6523
      %6525 = vmatmul.f32.gmra.mxu0 %v6414
      %v6526 = vpop.f32.mrf.mxu0
      %v6527 = vadd.f32 0.0, %v6526
      %6528 = vdwg.mxu0
      %v6529 = vadd.f32 %v6126, %v6434
      %v6530 = vadd.f32 %v6129, %v6437
      %v6531 = vadd.f32 %v6132, %v6440
      %v6532 = vadd.f32 %v6135, %v6443
      %v6533 = vadd.f32 %v6138, %v6446
      %v6534 = vadd.f32 %v6141, %v6449
      %v6535 = vadd.f32 %v6144, %v6452
      %v6536 = vadd.f32 %v6147, %v6455
      %v6537 = vadd.f32 %v6150, %v6458
      %v6538 = vadd.f32 %v6153, %v6461
      %v6539 = vadd.f32 %v6156, %v6464
      %v6540 = vadd.f32 %v6159, %v6467
      %v6541 = vadd.f32 %v6162, %v6470
      %v6542 = vadd.f32 %v6165, %v6473
      %v6543 = vadd.f32 %v6168, %v6476
      %v6544 = vadd.f32 %v6171, %v6479
      %v6545 = vadd.f32 %v6174, %v6482
      %v6546 = vadd.f32 %v6177, %v6485
      %v6547 = vadd.f32 %v6180, %v6488
      %v6548 = vadd.f32 %v6183, %v6491
      %v6549 = vadd.f32 %v6186, %v6494
      %v6550 = vadd.f32 %v6189, %v6497
      %v6551 = vadd.f32 %v6192, %v6500
      %v6552 = vadd.f32 %v6195, %v6503
      %v6553 = vadd.f32 %v6198, %v6506
      %v6554 = vadd.f32 %v6201, %v6509
      %v6555 = vadd.f32 %v6204, %v6512
      %v6556 = vadd.f32 %v6207, %v6515
      %v6557 = vadd.f32 %v6210, %v6518
      %v6558 = vadd.f32 %v6213, %v6521
      %v6559 = vadd.f32 %v6216, %v6524
      %v6560 = vadd.f32 %v6219, %v6527
      %v6561 = vmul.f32 %v5675, %v1712
      %v6562 = vmul.f32 %v5676, %v1714
      %v6563 = vmul.f32 %v5677, %v1716
      %v6564 = vmul.f32 %v5678, %v1718
      %v6565 = vmul.f32 %v5679, %v1720
      %v6566 = vmul.f32 %v5680, %v1722
      %v6567 = vmul.f32 %v5681, %v1724
      %v6568 = vmul.f32 %v5682, %v1726
      %v6569 = vmul.f32 %v5683, %v1728
      %v6570 = vmul.f32 %v5684, %v1730
      %v6571 = vmul.f32 %v5685, %v1732
      %v6572 = vmul.f32 %v5686, %v1734
      %v6573 = vmul.f32 %v5687, %v1736
      %v6574 = vmul.f32 %v5688, %v1738
      %v6575 = vmul.f32 %v5689, %v1740
      %v6576 = vmul.f32 %v5690, %v1742
      %v6577 = vmul.f32 %v5691, %v1744
      %v6578 = vmul.f32 %v5692, %v1746
      %v6579 = vmul.f32 %v5693, %v1748
      %v6580 = vmul.f32 %v5694, %v1750
      %v6581 = vmul.f32 %v5695, %v1752
      %v6582 = vmul.f32 %v5696, %v1754
      %v6583 = vmul.f32 %v5697, %v1756
      %v6584 = vmul.f32 %v5698, %v1758
      %v6585 = vmul.f32 %v5699, %v1760
      %v6586 = vmul.f32 %v5700, %v1762
      %v6587 = vmul.f32 %v5701, %v1764
      %v6588 = vmul.f32 %v5702, %v1766
      %v6589 = vmul.f32 %v5703, %v1768
      %v6590 = vmul.f32 %v5704, %v1770
      %v6591 = vmul.f32 %v5705, %v1772
      %v6592 = vmul.f32 %v5706, %v1771
      %s6593 = scalar_lea.vmem %s10, 192
      %v6594 = vld [vmem:[%s6593] sm:$0xff]
      %v6595 = vld [vmem:[%s6593 + $0x8] sm:$0xff]
      %v6596 = vld [vmem:[%s6593 + $0x10] sm:$0xff]
      %v6597 = vld [vmem:[%s6593 + $0x18] sm:$0xff]
      %v6598 = vld [vmem:[%s6593 + $0x20] sm:$0xff]
      %v6599 = vld [vmem:[%s6593 + $0x28] sm:$0xff]
      %v6600 = vld [vmem:[%s6593 + $0x30] sm:$0xff]
      %v6601 = vld [vmem:[%s6593 + $0x38] sm:$0xff]
      %v6634 = vrot.slane %v6561, 7
      %v6635 = vsel %vm2095, %v2096, %v6634
      %v6636 = vrot.slane %v6562, 7
      %v6637 = vsel %vm2095, %v6634, %v6636
      %v6638 = vrot.slane %v6563, 7
      %v6639 = vsel %vm2095, %v6636, %v6638
      %v6640 = vrot.slane %v6564, 7
      %v6641 = vsel %vm2095, %v6638, %v6640
      %v6642 = vrot.slane %v6565, 7
      %v6643 = vsel %vm2095, %v6640, %v6642
      %v6644 = vrot.slane %v6566, 7
      %v6645 = vsel %vm2095, %v6642, %v6644
      %v6646 = vrot.slane %v6567, 7
      %v6647 = vsel %vm2095, %v6644, %v6646
      %v6648 = vrot.slane %v6568, 7
      %v6649 = vsel %vm2095, %v6646, %v6648
      %v6650 = vrot.slane %v6569, 7
      %v6651 = vsel %vm2095, %v6648, %v6650
      %v6652 = vrot.slane %v6570, 7
      %v6653 = vsel %vm2095, %v6650, %v6652
      %v6654 = vrot.slane %v6571, 7
      %v6655 = vsel %vm2095, %v6652, %v6654
      %v6656 = vrot.slane %v6572, 7
      %v6657 = vsel %vm2095, %v6654, %v6656
      %v6658 = vrot.slane %v6573, 7
      %v6659 = vsel %vm2095, %v6656, %v6658
      %v6660 = vrot.slane %v6574, 7
      %v6661 = vsel %vm2095, %v6658, %v6660
      %v6662 = vrot.slane %v6575, 7
      %v6663 = vsel %vm2095, %v6660, %v6662
      %v6664 = vrot.slane %v6576, 7
      %v6665 = vsel %vm2095, %v6662, %v6664
      %v6666 = vrot.slane %v6577, 7
      %v6667 = vsel %vm2095, %v6664, %v6666
      %v6668 = vrot.slane %v6578, 7
      %v6669 = vsel %vm2095, %v6666, %v6668
      %v6670 = vrot.slane %v6579, 7
      %v6671 = vsel %vm2095, %v6668, %v6670
      %v6672 = vrot.slane %v6580, 7
      %v6673 = vsel %vm2095, %v6670, %v6672
      %v6674 = vrot.slane %v6581, 7
      %v6675 = vsel %vm2095, %v6672, %v6674
      %v6676 = vrot.slane %v6582, 7
      %v6677 = vsel %vm2095, %v6674, %v6676
      %v6678 = vrot.slane %v6583, 7
      %v6679 = vsel %vm2095, %v6676, %v6678
      %v6680 = vrot.slane %v6584, 7
      %v6681 = vsel %vm2095, %v6678, %v6680
      %v6682 = vrot.slane %v6585, 7
      %v6683 = vsel %vm2095, %v6680, %v6682
      %v6684 = vrot.slane %v6586, 7
      %v6685 = vsel %vm2095, %v6682, %v6684
      %v6686 = vrot.slane %v6587, 7
      %v6687 = vsel %vm2095, %v6684, %v6686
      %v6688 = vrot.slane %v6588, 7
      %v6689 = vsel %vm2095, %v6686, %v6688
      %v6690 = vrot.slane %v6589, 7
      %v6691 = vsel %vm2095, %v6688, %v6690
      %v6692 = vrot.slane %v6590, 7
      %v6693 = vsel %vm2095, %v6690, %v6692
      %v6694 = vrot.slane %v6591, 7
      %v6695 = vsel %vm2095, %v6692, %v6694
      %v6696 = vrot.slane %v6592, 7
      %v6697 = vsel %vm2095, %v6694, %v6696
      %v6698 = vsel %vm535, %v6635, 0
      %v6700 = vsel %vm535, %v6637, 0
      %v6702 = vsel %vm535, %v6639, 0
      %v6704 = vsel %vm535, %v6641, 0
      %v6706 = vsel %vm535, %v6643, 0
      %v6708 = vsel %vm535, %v6645, 0
      %v6710 = vsel %vm535, %v6647, 0
      %v6712 = vsel %vm535, %v6649, 0
      %v6714 = vsel %vm535, %v6651, 0
      %v6716 = vsel %vm535, %v6653, 0
      %v6718 = vsel %vm535, %v6655, 0
      %v6720 = vsel %vm535, %v6657, 0
      %v6722 = vsel %vm535, %v6659, 0
      %v6724 = vsel %vm535, %v6661, 0
      %v6726 = vsel %vm535, %v6663, 0
      %v6728 = vsel %vm535, %v6665, 0
      %v6730 = vsel %vm535, %v6667, 0
      %v6732 = vsel %vm535, %v6669, 0
      %v6734 = vsel %vm535, %v6671, 0
      %v6736 = vsel %vm535, %v6673, 0
      %v6738 = vsel %vm535, %v6675, 0
      %v6740 = vsel %vm535, %v6677, 0
      %v6742 = vsel %vm535, %v6679, 0
      %v6744 = vsel %vm535, %v6681, 0
      %v6746 = vsel %vm535, %v6683, 0
      %v6748 = vsel %vm535, %v6685, 0
      %v6750 = vsel %vm535, %v6687, 0
      %v6752 = vsel %vm535, %v6689, 0
      %v6754 = vsel %vm535, %v6691, 0
      %v6756 = vsel %vm535, %v6693, 0
      %v6758 = vsel %vm535, %v6695, 0
      %v6760 = vsel %vm535, %v6697, 0
      %6762 = vmatpush.msra.mxu0 0.0
      %6763 = vmatpush.msra.mxu0 0.0
      %6764 = vmatpush.msra.mxu0 0.0
      %6765 = vmatpush.msra.mxu0 0.0
      %6766 = vmatpush.msra.mxu0 0.0
      %6767 = vmatpush.msra.mxu0 0.0
      %6768 = vmatpush.msra.mxu0 0.0
      %6769 = vmatpush.msra.mxu0 0.0
      %6770 = vmatpush.msra.mxu0 %v6601
      %6771 = vmatpush.msra.mxu0 %v6600
      %6772 = vmatpush.msra.mxu0 %v6599
      %6773 = vmatpush.msra.mxu0 %v6598
      %6774 = vmatpush.msra.mxu0 %v6597
      %6775 = vmatpush.msra.mxu0 %v6596
      %6776 = vmatpush.msra.mxu0 %v6595
      %6777 = vmatpush.msra.mxu0 %v6594
      %6778 = vmatmul.f32.gmra.mxu0 %v6698
      %v6779 = vpop.f32.mrf.mxu0
      %v6780 = vadd.f32 0.0, %v6779
      %6781 = vmatmul.f32.gmra.mxu0 %v6700
      %v6782 = vpop.f32.mrf.mxu0
      %v6783 = vadd.f32 0.0, %v6782
      %6784 = vmatmul.f32.gmra.mxu0 %v6702
      %v6785 = vpop.f32.mrf.mxu0
      %v6786 = vadd.f32 0.0, %v6785
      %6787 = vmatmul.f32.gmra.mxu0 %v6704
      %v6788 = vpop.f32.mrf.mxu0
      %v6789 = vadd.f32 0.0, %v6788
      %6790 = vmatmul.f32.gmra.mxu0 %v6706
      %v6791 = vpop.f32.mrf.mxu0
      %v6792 = vadd.f32 0.0, %v6791
      %6793 = vmatmul.f32.gmra.mxu0 %v6708
      %v6794 = vpop.f32.mrf.mxu0
      %v6795 = vadd.f32 0.0, %v6794
      %6796 = vmatmul.f32.gmra.mxu0 %v6710
      %v6797 = vpop.f32.mrf.mxu0
      %v6798 = vadd.f32 0.0, %v6797
      %6799 = vmatmul.f32.gmra.mxu0 %v6712
      %v6800 = vpop.f32.mrf.mxu0
      %v6801 = vadd.f32 0.0, %v6800
      %6802 = vmatmul.f32.gmra.mxu0 %v6714
      %v6803 = vpop.f32.mrf.mxu0
      %v6804 = vadd.f32 0.0, %v6803
      %6805 = vmatmul.f32.gmra.mxu0 %v6716
      %v6806 = vpop.f32.mrf.mxu0
      %v6807 = vadd.f32 0.0, %v6806
      %6808 = vmatmul.f32.gmra.mxu0 %v6718
      %v6809 = vpop.f32.mrf.mxu0
      %v6810 = vadd.f32 0.0, %v6809
      %6811 = vmatmul.f32.gmra.mxu0 %v6720
      %v6812 = vpop.f32.mrf.mxu0
      %v6813 = vadd.f32 0.0, %v6812
      %6814 = vmatmul.f32.gmra.mxu0 %v6722
      %v6815 = vpop.f32.mrf.mxu0
      %v6816 = vadd.f32 0.0, %v6815
      %6817 = vmatmul.f32.gmra.mxu0 %v6724
      %v6818 = vpop.f32.mrf.mxu0
      %v6819 = vadd.f32 0.0, %v6818
      %6820 = vmatmul.f32.gmra.mxu0 %v6726
      %v6821 = vpop.f32.mrf.mxu0
      %v6822 = vadd.f32 0.0, %v6821
      %6823 = vmatmul.f32.gmra.mxu0 %v6728
      %v6824 = vpop.f32.mrf.mxu0
      %v6825 = vadd.f32 0.0, %v6824
      %6826 = vmatmul.f32.gmra.mxu0 %v6730
      %v6827 = vpop.f32.mrf.mxu0
      %v6828 = vadd.f32 0.0, %v6827
      %6829 = vmatmul.f32.gmra.mxu0 %v6732
      %v6830 = vpop.f32.mrf.mxu0
      %v6831 = vadd.f32 0.0, %v6830
      %6832 = vmatmul.f32.gmra.mxu0 %v6734
      %v6833 = vpop.f32.mrf.mxu0
      %v6834 = vadd.f32 0.0, %v6833
      %6835 = vmatmul.f32.gmra.mxu0 %v6736
      %v6836 = vpop.f32.mrf.mxu0
      %v6837 = vadd.f32 0.0, %v6836
      %6838 = vmatmul.f32.gmra.mxu0 %v6738
      %v6839 = vpop.f32.mrf.mxu0
      %v6840 = vadd.f32 0.0, %v6839
      %6841 = vmatmul.f32.gmra.mxu0 %v6740
      %v6842 = vpop.f32.mrf.mxu0
      %v6843 = vadd.f32 0.0, %v6842
      %6844 = vmatmul.f32.gmra.mxu0 %v6742
      %v6845 = vpop.f32.mrf.mxu0
      %v6846 = vadd.f32 0.0, %v6845
      %6847 = vmatmul.f32.gmra.mxu0 %v6744
      %v6848 = vpop.f32.mrf.mxu0
      %v6849 = vadd.f32 0.0, %v6848
      %6850 = vmatmul.f32.gmra.mxu0 %v6746
      %v6851 = vpop.f32.mrf.mxu0
      %v6852 = vadd.f32 0.0, %v6851
      %6853 = vmatmul.f32.gmra.mxu0 %v6748
      %v6854 = vpop.f32.mrf.mxu0
      %v6855 = vadd.f32 0.0, %v6854
      %6856 = vmatmul.f32.gmra.mxu0 %v6750
      %v6857 = vpop.f32.mrf.mxu0
      %v6858 = vadd.f32 0.0, %v6857
      %6859 = vmatmul.f32.gmra.mxu0 %v6752
      %v6860 = vpop.f32.mrf.mxu0
      %v6861 = vadd.f32 0.0, %v6860
      %6862 = vmatmul.f32.gmra.mxu0 %v6754
      %v6863 = vpop.f32.mrf.mxu0
      %v6864 = vadd.f32 0.0, %v6863
      %6865 = vmatmul.f32.gmra.mxu0 %v6756
      %v6866 = vpop.f32.mrf.mxu0
      %v6867 = vadd.f32 0.0, %v6866
      %6868 = vmatmul.f32.gmra.mxu0 %v6758
      %v6869 = vpop.f32.mrf.mxu0
      %v6870 = vadd.f32 0.0, %v6869
      %6871 = vmatmul.f32.gmra.mxu0 %v6760
      %v6872 = vpop.f32.mrf.mxu0
      %v6873 = vadd.f32 0.0, %v6872
      %6874 = vdwg.mxu0
      %v6875 = vadd.f32 %v6529, %v6780
      %v6876 = vadd.f32 %v6530, %v6783
      %v6877 = vadd.f32 %v6531, %v6786
      %v6878 = vadd.f32 %v6532, %v6789
      %v6879 = vadd.f32 %v6533, %v6792
      %v6880 = vadd.f32 %v6534, %v6795
      %v6881 = vadd.f32 %v6535, %v6798
      %v6882 = vadd.f32 %v6536, %v6801
      %v6883 = vadd.f32 %v6537, %v6804
      %v6884 = vadd.f32 %v6538, %v6807
      %v6885 = vadd.f32 %v6539, %v6810
      %v6886 = vadd.f32 %v6540, %v6813
      %v6887 = vadd.f32 %v6541, %v6816
      %v6888 = vadd.f32 %v6542, %v6819
      %v6889 = vadd.f32 %v6543, %v6822
      %v6890 = vadd.f32 %v6544, %v6825
      %v6891 = vadd.f32 %v6545, %v6828
      %v6892 = vadd.f32 %v6546, %v6831
      %v6893 = vadd.f32 %v6547, %v6834
      %v6894 = vadd.f32 %v6548, %v6837
      %v6895 = vadd.f32 %v6549, %v6840
      %v6896 = vadd.f32 %v6550, %v6843
      %v6897 = vadd.f32 %v6551, %v6846
      %v6898 = vadd.f32 %v6552, %v6849
      %v6899 = vadd.f32 %v6553, %v6852
      %v6900 = vadd.f32 %v6554, %v6855
      %v6901 = vadd.f32 %v6555, %v6858
      %v6902 = vadd.f32 %v6556, %v6861
      %v6903 = vadd.f32 %v6557, %v6864
      %v6904 = vadd.f32 %v6558, %v6867
      %v6905 = vadd.f32 %v6559, %v6870
      %v6906 = vadd.f32 %v6560, %v6873
      %s6907 = scalar_lea.vmem %s10, 256
      %v6908 = vld [vmem:[%s6907] sm:$0xff]
      %v6909 = vld [vmem:[%s6907 + $0x8] sm:$0xff]
      %v6910 = vld [vmem:[%s6907 + $0x10] sm:$0xff]
      %v6911 = vld [vmem:[%s6907 + $0x18] sm:$0xff]
      %v6912 = vld [vmem:[%s6907 + $0x20] sm:$0xff]
      %v6913 = vld [vmem:[%s6907 + $0x28] sm:$0xff]
      %v6914 = vld [vmem:[%s6907 + $0x30] sm:$0xff]
      %v6915 = vld [vmem:[%s6907 + $0x38] sm:$0xff]
      %v6917 = vsel %vm535, %v5705, 0
      %v6920 = vsel %vm535, %v5706, 0
      %6922 = vmatpush.msra.mxu0 0.0
      %6923 = vmatpush.msra.mxu0 0.0
      %6924 = vmatpush.msra.mxu0 0.0
      %6925 = vmatpush.msra.mxu0 0.0
      %6926 = vmatpush.msra.mxu0 0.0
      %6927 = vmatpush.msra.mxu0 0.0
      %6928 = vmatpush.msra.mxu0 0.0
      %6929 = vmatpush.msra.mxu0 0.0
      %6930 = vmatpush.msra.mxu0 %v6915
      %6931 = vmatpush.msra.mxu0 %v6914
      %6932 = vmatpush.msra.mxu0 %v6913
      %6933 = vmatpush.msra.mxu0 %v6912
      %6934 = vmatpush.msra.mxu0 %v6911
      %6935 = vmatpush.msra.mxu0 %v6910
      %6936 = vmatpush.msra.mxu0 %v6909
      %6937 = vmatpush.msra.mxu0 %v6908
      %6938 = vmatmul.f32.gmra.mxu0 %v5756
      %v6939 = vpop.f32.mrf.mxu0
      %v6940 = vadd.f32 0.0, %v6939
      %6941 = vmatmul.f32.gmra.mxu0 %v5759
      %v6942 = vpop.f32.mrf.mxu0
      %v6943 = vadd.f32 0.0, %v6942
      %6944 = vmatmul.f32.gmra.mxu0 %v5762
      %v6945 = vpop.f32.mrf.mxu0
      %v6946 = vadd.f32 0.0, %v6945
      %6947 = vmatmul.f32.gmra.mxu0 %v5765
      %v6948 = vpop.f32.mrf.mxu0
      %v6949 = vadd.f32 0.0, %v6948
      %6950 = vmatmul.f32.gmra.mxu0 %v5768
      %v6951 = vpop.f32.mrf.mxu0
      %v6952 = vadd.f32 0.0, %v6951
      %6953 = vmatmul.f32.gmra.mxu0 %v5771
      %v6954 = vpop.f32.mrf.mxu0
      %v6955 = vadd.f32 0.0, %v6954
      %6956 = vmatmul.f32.gmra.mxu0 %v5774
      %v6957 = vpop.f32.mrf.mxu0
      %v6958 = vadd.f32 0.0, %v6957
      %6959 = vmatmul.f32.gmra.mxu0 %v5777
      %v6960 = vpop.f32.mrf.mxu0
      %v6961 = vadd.f32 0.0, %v6960
      %6962 = vmatmul.f32.gmra.mxu0 %v5780
      %v6963 = vpop.f32.mrf.mxu0
      %v6964 = vadd.f32 0.0, %v6963
      %6965 = vmatmul.f32.gmra.mxu0 %v5783
      %v6966 = vpop.f32.mrf.mxu0
      %v6967 = vadd.f32 0.0, %v6966
      %6968 = vmatmul.f32.gmra.mxu0 %v5786
      %v6969 = vpop.f32.mrf.mxu0
      %v6970 = vadd.f32 0.0, %v6969
      %6971 = vmatmul.f32.gmra.mxu0 %v5789
      %v6972 = vpop.f32.mrf.mxu0
      %v6973 = vadd.f32 0.0, %v6972
      %6974 = vmatmul.f32.gmra.mxu0 %v5792
      %v6975 = vpop.f32.mrf.mxu0
      %v6976 = vadd.f32 0.0, %v6975
      %6977 = vmatmul.f32.gmra.mxu0 %v5795
      %v6978 = vpop.f32.mrf.mxu0
      %v6979 = vadd.f32 0.0, %v6978
      %6980 = vmatmul.f32.gmra.mxu0 %v5798
      %v6981 = vpop.f32.mrf.mxu0
      %v6982 = vadd.f32 0.0, %v6981
      %6983 = vmatmul.f32.gmra.mxu0 %v5801
      %v6984 = vpop.f32.mrf.mxu0
      %v6985 = vadd.f32 0.0, %v6984
      %6986 = vmatmul.f32.gmra.mxu0 %v5804
      %v6987 = vpop.f32.mrf.mxu0
      %v6988 = vadd.f32 0.0, %v6987
      %6989 = vmatmul.f32.gmra.mxu0 %v5807
      %v6990 = vpop.f32.mrf.mxu0
      %v6991 = vadd.f32 0.0, %v6990
      %6992 = vmatmul.f32.gmra.mxu0 %v5810
      %v6993 = vpop.f32.mrf.mxu0
      %v6994 = vadd.f32 0.0, %v6993
      %6995 = vmatmul.f32.gmra.mxu0 %v5813
      %v6996 = vpop.f32.mrf.mxu0
      %v6997 = vadd.f32 0.0, %v6996
      %6998 = vmatmul.f32.gmra.mxu0 %v5816
      %v6999 = vpop.f32.mrf.mxu0
      %v7000 = vadd.f32 0.0, %v6999
      %7001 = vmatmul.f32.gmra.mxu0 %v5819
      %v7002 = vpop.f32.mrf.mxu0
      %v7003 = vadd.f32 0.0, %v7002
      %7004 = vmatmul.f32.gmra.mxu0 %v5822
      %v7005 = vpop.f32.mrf.mxu0
      %v7006 = vadd.f32 0.0, %v7005
      %7007 = vmatmul.f32.gmra.mxu0 %v5825
      %v7008 = vpop.f32.mrf.mxu0
      %v7009 = vadd.f32 0.0, %v7008
      %7010 = vmatmul.f32.gmra.mxu0 %v5828
      %v7011 = vpop.f32.mrf.mxu0
      %v7012 = vadd.f32 0.0, %v7011
      %7013 = vmatmul.f32.gmra.mxu0 %v5831
      %v7014 = vpop.f32.mrf.mxu0
      %v7015 = vadd.f32 0.0, %v7014
      %7016 = vmatmul.f32.gmra.mxu0 %v5834
      %v7017 = vpop.f32.mrf.mxu0
      %v7018 = vadd.f32 0.0, %v7017
      %7019 = vmatmul.f32.gmra.mxu0 %v5837
      %v7020 = vpop.f32.mrf.mxu0
      %v7021 = vadd.f32 0.0, %v7020
      %7022 = vmatmul.f32.gmra.mxu0 %v5840
      %v7023 = vpop.f32.mrf.mxu0
      %v7024 = vadd.f32 0.0, %v7023
      %7025 = vmatmul.f32.gmra.mxu0 %v5843
      %v7026 = vpop.f32.mrf.mxu0
      %v7027 = vadd.f32 0.0, %v7026
      %7028 = vmatmul.f32.gmra.mxu0 %v6917
      %v7029 = vpop.f32.mrf.mxu0
      %v7030 = vadd.f32 0.0, %v7029
      %7031 = vmatmul.f32.gmra.mxu0 %v6920
      %v7032 = vpop.f32.mrf.mxu0
      %v7033 = vadd.f32 0.0, %v7032
      %7034 = vdwg.mxu0
      %v7035 = vadd.f32 %v6875, %v6940
      %v7036 = vadd.f32 %v6876, %v6943
      %v7037 = vadd.f32 %v6877, %v6946
      %v7038 = vadd.f32 %v6878, %v6949
      %v7039 = vadd.f32 %v6879, %v6952
      %v7040 = vadd.f32 %v6880, %v6955
      %v7041 = vadd.f32 %v6881, %v6958
      %v7042 = vadd.f32 %v6882, %v6961
      %v7043 = vadd.f32 %v6883, %v6964
      %v7044 = vadd.f32 %v6884, %v6967
      %v7045 = vadd.f32 %v6885, %v6970
      %v7046 = vadd.f32 %v6886, %v6973
      %v7047 = vadd.f32 %v6887, %v6976
      %v7048 = vadd.f32 %v6888, %v6979
      %v7049 = vadd.f32 %v6889, %v6982
      %v7050 = vadd.f32 %v6890, %v6985
      %v7051 = vadd.f32 %v6891, %v6988
      %v7052 = vadd.f32 %v6892, %v6991
      %v7053 = vadd.f32 %v6893, %v6994
      %v7054 = vadd.f32 %v6894, %v6997
      %v7055 = vadd.f32 %v6895, %v7000
      %v7056 = vadd.f32 %v6896, %v7003
      %v7057 = vadd.f32 %v6897, %v7006
      %v7058 = vadd.f32 %v6898, %v7009
      %v7059 = vadd.f32 %v6899, %v7012
      %v7060 = vadd.f32 %v6900, %v7015
      %v7061 = vadd.f32 %v6901, %v7018
      %v7062 = vadd.f32 %v6902, %v7021
      %v7063 = vadd.f32 %v6903, %v7024
      %v7064 = vadd.f32 %v6904, %v7027
      %v7065 = vadd.f32 %v6905, %v7030
      %v7066 = vadd.f32 %v6906, %v7033
      %v7067 = vmul.f32 %v5675, %v2466
      %v7068 = vmul.f32 %v5676, %v2468
      %v7069 = vmul.f32 %v5677, %v2470
      %v7070 = vmul.f32 %v5678, %v2472
      %v7071 = vmul.f32 %v5679, %v2474
      %v7072 = vmul.f32 %v5680, %v2476
      %v7073 = vmul.f32 %v5681, %v2478
      %v7074 = vmul.f32 %v5682, %v2480
      %v7075 = vmul.f32 %v5683, %v2482
      %v7076 = vmul.f32 %v5684, %v2484
      %v7077 = vmul.f32 %v5685, %v2486
      %v7078 = vmul.f32 %v5686, %v2488
      %v7079 = vmul.f32 %v5687, %v2490
      %v7080 = vmul.f32 %v5688, %v2492
      %v7081 = vmul.f32 %v5689, %v2494
      %v7082 = vmul.f32 %v5690, %v2496
      %v7083 = vmul.f32 %v5691, %v2498
      %v7084 = vmul.f32 %v5692, %v2500
      %v7085 = vmul.f32 %v5693, %v2502
      %v7086 = vmul.f32 %v5694, %v2504
      %v7087 = vmul.f32 %v5695, %v2506
      %v7088 = vmul.f32 %v5696, %v2508
      %v7089 = vmul.f32 %v5697, %v2510
      %v7090 = vmul.f32 %v5698, %v2512
      %v7091 = vmul.f32 %v5699, %v2514
      %v7092 = vmul.f32 %v5700, %v2516
      %v7093 = vmul.f32 %v5701, %v2518
      %v7094 = vmul.f32 %v5702, %v2520
      %v7095 = vmul.f32 %v5703, %v2522
      %v7096 = vmul.f32 %v5704, %v2524
      %v7097 = vmul.f32 %v5705, %v2526
      %v7098 = vmul.f32 %v5706, %v2528
      %s7099 = scalar_lea.vmem %s10, 320
      %v7100 = vld [vmem:[%s7099] sm:$0xff]
      %v7101 = vld [vmem:[%s7099 + $0x8] sm:$0xff]
      %v7102 = vld [vmem:[%s7099 + $0x10] sm:$0xff]
      %v7103 = vld [vmem:[%s7099 + $0x18] sm:$0xff]
      %v7104 = vld [vmem:[%s7099 + $0x20] sm:$0xff]
      %v7105 = vld [vmem:[%s7099 + $0x28] sm:$0xff]
      %v7106 = vld [vmem:[%s7099 + $0x30] sm:$0xff]
      %v7107 = vld [vmem:[%s7099 + $0x38] sm:$0xff]
      %v7140 = vrot.slane %v7067, 1
      %v7141 = vrot.slane %v7068, 1
      %v7142 = vsel %vm1709, %v7140, %v7141
      %v7143 = vrot.slane %v7069, 1
      %v7144 = vsel %vm1709, %v7141, %v7143
      %v7145 = vrot.slane %v7070, 1
      %v7146 = vsel %vm1709, %v7143, %v7145
      %v7147 = vrot.slane %v7071, 1
      %v7148 = vsel %vm1709, %v7145, %v7147
      %v7149 = vrot.slane %v7072, 1
      %v7150 = vsel %vm1709, %v7147, %v7149
      %v7151 = vrot.slane %v7073, 1
      %v7152 = vsel %vm1709, %v7149, %v7151
      %v7153 = vrot.slane %v7074, 1
      %v7154 = vsel %vm1709, %v7151, %v7153
      %v7155 = vrot.slane %v7075, 1
      %v7156 = vsel %vm1709, %v7153, %v7155
      %v7157 = vrot.slane %v7076, 1
      %v7158 = vsel %vm1709, %v7155, %v7157
      %v7159 = vrot.slane %v7077, 1
      %v7160 = vsel %vm1709, %v7157, %v7159
      %v7161 = vrot.slane %v7078, 1
      %v7162 = vsel %vm1709, %v7159, %v7161
      %v7163 = vrot.slane %v7079, 1
      %v7164 = vsel %vm1709, %v7161, %v7163
      %v7165 = vrot.slane %v7080, 1
      %v7166 = vsel %vm1709, %v7163, %v7165
      %v7167 = vrot.slane %v7081, 1
      %v7168 = vsel %vm1709, %v7165, %v7167
      %v7169 = vrot.slane %v7082, 1
      %v7170 = vsel %vm1709, %v7167, %v7169
      %v7171 = vrot.slane %v7083, 1
      %v7172 = vsel %vm1709, %v7169, %v7171
      %v7173 = vrot.slane %v7084, 1
      %v7174 = vsel %vm1709, %v7171, %v7173
      %v7175 = vrot.slane %v7085, 1
      %v7176 = vsel %vm1709, %v7173, %v7175
      %v7177 = vrot.slane %v7086, 1
      %v7178 = vsel %vm1709, %v7175, %v7177
      %v7179 = vrot.slane %v7087, 1
      %v7180 = vsel %vm1709, %v7177, %v7179
      %v7181 = vrot.slane %v7088, 1
      %v7182 = vsel %vm1709, %v7179, %v7181
      %v7183 = vrot.slane %v7089, 1
      %v7184 = vsel %vm1709, %v7181, %v7183
      %v7185 = vrot.slane %v7090, 1
      %v7186 = vsel %vm1709, %v7183, %v7185
      %v7187 = vrot.slane %v7091, 1
      %v7188 = vsel %vm1709, %v7185, %v7187
      %v7189 = vrot.slane %v7092, 1
      %v7190 = vsel %vm1709, %v7187, %v7189
      %v7191 = vrot.slane %v7093, 1
      %v7192 = vsel %vm1709, %v7189, %v7191
      %v7193 = vrot.slane %v7094, 1
      %v7194 = vsel %vm1709, %v7191, %v7193
      %v7195 = vrot.slane %v7095, 1
      %v7196 = vsel %vm1709, %v7193, %v7195
      %v7197 = vrot.slane %v7096, 1
      %v7198 = vsel %vm1709, %v7195, %v7197
      %v7199 = vrot.slane %v7097, 1
      %v7200 = vsel %vm1709, %v7197, %v7199
      %v7201 = vrot.slane %v7098, 1
      %v7202 = vsel %vm1709, %v7199, %v7201
      %v7203 = vsel %vm1709, %v7201, %v3555
      %v7204 = vsel %vm535, %v7142, 0
      %v7206 = vsel %vm535, %v7144, 0
      %v7208 = vsel %vm535, %v7146, 0
      %v7210 = vsel %vm535, %v7148, 0
      %v7212 = vsel %vm535, %v7150, 0
      %v7214 = vsel %vm535, %v7152, 0
      %v7216 = vsel %vm535, %v7154, 0
      %v7218 = vsel %vm535, %v7156, 0
      %v7220 = vsel %vm535, %v7158, 0
      %v7222 = vsel %vm535, %v7160, 0
      %v7224 = vsel %vm535, %v7162, 0
      %v7226 = vsel %vm535, %v7164, 0
      %v7228 = vsel %vm535, %v7166, 0
      %v7230 = vsel %vm535, %v7168, 0
      %v7232 = vsel %vm535, %v7170, 0
      %v7234 = vsel %vm535, %v7172, 0
      %v7236 = vsel %vm535, %v7174, 0
      %v7238 = vsel %vm535, %v7176, 0
      %v7240 = vsel %vm535, %v7178, 0
      %v7242 = vsel %vm535, %v7180, 0
      %v7244 = vsel %vm535, %v7182, 0
      %v7246 = vsel %vm535, %v7184, 0
      %v7248 = vsel %vm535, %v7186, 0
      %v7250 = vsel %vm535, %v7188, 0
      %v7252 = vsel %vm535, %v7190, 0
      %v7254 = vsel %vm535, %v7192, 0
      %v7256 = vsel %vm535, %v7194, 0
      %v7258 = vsel %vm535, %v7196, 0
      %v7260 = vsel %vm535, %v7198, 0
      %v7262 = vsel %vm535, %v7200, 0
      %v7264 = vsel %vm535, %v7202, 0
      %v7266 = vsel %vm535, %v7203, 0
      %7268 = vmatpush.msra.mxu0 0.0
      %7269 = vmatpush.msra.mxu0 0.0
      %7270 = vmatpush.msra.mxu0 0.0
      %7271 = vmatpush.msra.mxu0 0.0
      %7272 = vmatpush.msra.mxu0 0.0
      %7273 = vmatpush.msra.mxu0 0.0
      %7274 = vmatpush.msra.mxu0 0.0
      %7275 = vmatpush.msra.mxu0 0.0
      %7276 = vmatpush.msra.mxu0 %v7107
      %7277 = vmatpush.msra.mxu0 %v7106
      %7278 = vmatpush.msra.mxu0 %v7105
      %7279 = vmatpush.msra.mxu0 %v7104
      %7280 = vmatpush.msra.mxu0 %v7103
      %7281 = vmatpush.msra.mxu0 %v7102
      %7282 = vmatpush.msra.mxu0 %v7101
      %7283 = vmatpush.msra.mxu0 %v7100
      %7284 = vmatmul.f32.gmra.mxu0 %v7204
      %v7285 = vpop.f32.mrf.mxu0
      %v7286 = vadd.f32 0.0, %v7285
      %7287 = vmatmul.f32.gmra.mxu0 %v7206
      %v7288 = vpop.f32.mrf.mxu0
      %v7289 = vadd.f32 0.0, %v7288
      %7290 = vmatmul.f32.gmra.mxu0 %v7208
      %v7291 = vpop.f32.mrf.mxu0
      %v7292 = vadd.f32 0.0, %v7291
      %7293 = vmatmul.f32.gmra.mxu0 %v7210
      %v7294 = vpop.f32.mrf.mxu0
      %v7295 = vadd.f32 0.0, %v7294
      %7296 = vmatmul.f32.gmra.mxu0 %v7212
      %v7297 = vpop.f32.mrf.mxu0
      %v7298 = vadd.f32 0.0, %v7297
      %7299 = vmatmul.f32.gmra.mxu0 %v7214
      %v7300 = vpop.f32.mrf.mxu0
      %v7301 = vadd.f32 0.0, %v7300
      %7302 = vmatmul.f32.gmra.mxu0 %v7216
      %v7303 = vpop.f32.mrf.mxu0
      %v7304 = vadd.f32 0.0, %v7303
      %7305 = vmatmul.f32.gmra.mxu0 %v7218
      %v7306 = vpop.f32.mrf.mxu0
      %v7307 = vadd.f32 0.0, %v7306
      %7308 = vmatmul.f32.gmra.mxu0 %v7220
      %v7309 = vpop.f32.mrf.mxu0
      %v7310 = vadd.f32 0.0, %v7309
      %7311 = vmatmul.f32.gmra.mxu0 %v7222
      %v7312 = vpop.f32.mrf.mxu0
      %v7313 = vadd.f32 0.0, %v7312
      %7314 = vmatmul.f32.gmra.mxu0 %v7224
      %v7315 = vpop.f32.mrf.mxu0
      %v7316 = vadd.f32 0.0, %v7315
      %7317 = vmatmul.f32.gmra.mxu0 %v7226
      %v7318 = vpop.f32.mrf.mxu0
      %v7319 = vadd.f32 0.0, %v7318
      %7320 = vmatmul.f32.gmra.mxu0 %v7228
      %v7321 = vpop.f32.mrf.mxu0
      %v7322 = vadd.f32 0.0, %v7321
      %7323 = vmatmul.f32.gmra.mxu0 %v7230
      %v7324 = vpop.f32.mrf.mxu0
      %v7325 = vadd.f32 0.0, %v7324
      %7326 = vmatmul.f32.gmra.mxu0 %v7232
      %v7327 = vpop.f32.mrf.mxu0
      %v7328 = vadd.f32 0.0, %v7327
      %7329 = vmatmul.f32.gmra.mxu0 %v7234
      %v7330 = vpop.f32.mrf.mxu0
      %v7331 = vadd.f32 0.0, %v7330
      %7332 = vmatmul.f32.gmra.mxu0 %v7236
      %v7333 = vpop.f32.mrf.mxu0
      %v7334 = vadd.f32 0.0, %v7333
      %7335 = vmatmul.f32.gmra.mxu0 %v7238
      %v7336 = vpop.f32.mrf.mxu0
      %v7337 = vadd.f32 0.0, %v7336
      %7338 = vmatmul.f32.gmra.mxu0 %v7240
      %v7339 = vpop.f32.mrf.mxu0
      %v7340 = vadd.f32 0.0, %v7339
      %7341 = vmatmul.f32.gmra.mxu0 %v7242
      %v7342 = vpop.f32.mrf.mxu0
      %v7343 = vadd.f32 0.0, %v7342
      %7344 = vmatmul.f32.gmra.mxu0 %v7244
      %v7345 = vpop.f32.mrf.mxu0
      %v7346 = vadd.f32 0.0, %v7345
      %7347 = vmatmul.f32.gmra.mxu0 %v7246
      %v7348 = vpop.f32.mrf.mxu0
      %v7349 = vadd.f32 0.0, %v7348
      %7350 = vmatmul.f32.gmra.mxu0 %v7248
      %v7351 = vpop.f32.mrf.mxu0
      %v7352 = vadd.f32 0.0, %v7351
      %7353 = vmatmul.f32.gmra.mxu0 %v7250
      %v7354 = vpop.f32.mrf.mxu0
      %v7355 = vadd.f32 0.0, %v7354
      %7356 = vmatmul.f32.gmra.mxu0 %v7252
      %v7357 = vpop.f32.mrf.mxu0
      %v7358 = vadd.f32 0.0, %v7357
      %7359 = vmatmul.f32.gmra.mxu0 %v7254
      %v7360 = vpop.f32.mrf.mxu0
      %v7361 = vadd.f32 0.0, %v7360
      %7362 = vmatmul.f32.gmra.mxu0 %v7256
      %v7363 = vpop.f32.mrf.mxu0
      %v7364 = vadd.f32 0.0, %v7363
      %7365 = vmatmul.f32.gmra.mxu0 %v7258
      %v7366 = vpop.f32.mrf.mxu0
      %v7367 = vadd.f32 0.0, %v7366
      %7368 = vmatmul.f32.gmra.mxu0 %v7260
      %v7369 = vpop.f32.mrf.mxu0
      %v7370 = vadd.f32 0.0, %v7369
      %7371 = vmatmul.f32.gmra.mxu0 %v7262
      %v7372 = vpop.f32.mrf.mxu0
      %v7373 = vadd.f32 0.0, %v7372
      %7374 = vmatmul.f32.gmra.mxu0 %v7264
      %v7375 = vpop.f32.mrf.mxu0
      %v7376 = vadd.f32 0.0, %v7375
      %7377 = vmatmul.f32.gmra.mxu0 %v7266
      %v7378 = vpop.f32.mrf.mxu0
      %v7379 = vadd.f32 0.0, %v7378
      %7380 = vdwg.mxu0
      %v7381 = vadd.f32 %v7035, %v7286
      %v7382 = vadd.f32 %v7036, %v7289
      %v7383 = vadd.f32 %v7037, %v7292
      %v7384 = vadd.f32 %v7038, %v7295
      %v7385 = vadd.f32 %v7039, %v7298
      %v7386 = vadd.f32 %v7040, %v7301
      %v7387 = vadd.f32 %v7041, %v7304
      %v7388 = vadd.f32 %v7042, %v7307
      %v7389 = vadd.f32 %v7043, %v7310
      %v7390 = vadd.f32 %v7044, %v7313
      %v7391 = vadd.f32 %v7045, %v7316
      %v7392 = vadd.f32 %v7046, %v7319
      %v7393 = vadd.f32 %v7047, %v7322
      %v7394 = vadd.f32 %v7048, %v7325
      %v7395 = vadd.f32 %v7049, %v7328
      %v7396 = vadd.f32 %v7050, %v7331
      %v7397 = vadd.f32 %v7051, %v7334
      %v7398 = vadd.f32 %v7052, %v7337
      %v7399 = vadd.f32 %v7053, %v7340
      %v7400 = vadd.f32 %v7054, %v7343
      %v7401 = vadd.f32 %v7055, %v7346
      %v7402 = vadd.f32 %v7056, %v7349
      %v7403 = vadd.f32 %v7057, %v7352
      %v7404 = vadd.f32 %v7058, %v7355
      %v7405 = vadd.f32 %v7059, %v7358
      %v7406 = vadd.f32 %v7060, %v7361
      %v7407 = vadd.f32 %v7061, %v7364
      %v7408 = vadd.f32 %v7062, %v7367
      %v7409 = vadd.f32 %v7063, %v7370
      %v7410 = vadd.f32 %v7064, %v7373
      %v7411 = vadd.f32 %v7065, %v7376
      %v7412 = vadd.f32 %v7066, %v7379
      %v7413 = vmul.f32 %v5676, %v1710
      %v7414 = vmul.f32 %v5677, %v1712
      %v7415 = vmul.f32 %v5678, %v1714
      %v7416 = vmul.f32 %v5679, %v1716
      %v7417 = vmul.f32 %v5680, %v1718
      %v7418 = vmul.f32 %v5681, %v1720
      %v7419 = vmul.f32 %v5682, %v1722
      %v7420 = vmul.f32 %v5683, %v1724
      %v7421 = vmul.f32 %v5684, %v1726
      %v7422 = vmul.f32 %v5685, %v1728
      %v7423 = vmul.f32 %v5686, %v1730
      %v7424 = vmul.f32 %v5687, %v1732
      %v7425 = vmul.f32 %v5688, %v1734
      %v7426 = vmul.f32 %v5689, %v1736
      %v7427 = vmul.f32 %v5690, %v1738
      %v7428 = vmul.f32 %v5691, %v1740
      %v7429 = vmul.f32 %v5692, %v1742
      %v7430 = vmul.f32 %v5693, %v1744
      %v7431 = vmul.f32 %v5694, %v1746
      %v7432 = vmul.f32 %v5695, %v1748
      %v7433 = vmul.f32 %v5696, %v1750
      %v7434 = vmul.f32 %v5697, %v1752
      %v7435 = vmul.f32 %v5698, %v1754
      %v7436 = vmul.f32 %v5699, %v1756
      %v7437 = vmul.f32 %v5700, %v1758
      %v7438 = vmul.f32 %v5701, %v1760
      %v7439 = vmul.f32 %v5702, %v1762
      %v7440 = vmul.f32 %v5703, %v1764
      %v7441 = vmul.f32 %v5704, %v1766
      %v7442 = vmul.f32 %v5705, %v1768
      %v7443 = vmul.f32 %v5706, %v1770
      %s7444 = scalar_lea.vmem %s10, 384
      %v7445 = vld [vmem:[%s7444] sm:$0xff]
      %v7446 = vld [vmem:[%s7444 + $0x8] sm:$0xff]
      %v7447 = vld [vmem:[%s7444 + $0x10] sm:$0xff]
      %v7448 = vld [vmem:[%s7444 + $0x18] sm:$0xff]
      %v7449 = vld [vmem:[%s7444 + $0x20] sm:$0xff]
      %v7450 = vld [vmem:[%s7444 + $0x28] sm:$0xff]
      %v7451 = vld [vmem:[%s7444 + $0x30] sm:$0xff]
      %v7452 = vld [vmem:[%s7444 + $0x38] sm:$0xff]
      %v7484 = vrot.slane %v7413, 7
      %v7485 = vrot.slane %v7414, 7
      %v7486 = vsel %vm2095, %v7484, %v7485
      %v7487 = vrot.slane %v7415, 7
      %v7488 = vsel %vm2095, %v7485, %v7487
      %v7489 = vrot.slane %v7416, 7
      %v7490 = vsel %vm2095, %v7487, %v7489
      %v7491 = vrot.slane %v7417, 7
      %v7492 = vsel %vm2095, %v7489, %v7491
      %v7493 = vrot.slane %v7418, 7
      %v7494 = vsel %vm2095, %v7491, %v7493
      %v7495 = vrot.slane %v7419, 7
      %v7496 = vsel %vm2095, %v7493, %v7495
      %v7497 = vrot.slane %v7420, 7
      %v7498 = vsel %vm2095, %v7495, %v7497
      %v7499 = vrot.slane %v7421, 7
      %v7500 = vsel %vm2095, %v7497, %v7499
      %v7501 = vrot.slane %v7422, 7
      %v7502 = vsel %vm2095, %v7499, %v7501
      %v7503 = vrot.slane %v7423, 7
      %v7504 = vsel %vm2095, %v7501, %v7503
      %v7505 = vrot.slane %v7424, 7
      %v7506 = vsel %vm2095, %v7503, %v7505
      %v7507 = vrot.slane %v7425, 7
      %v7508 = vsel %vm2095, %v7505, %v7507
      %v7509 = vrot.slane %v7426, 7
      %v7510 = vsel %vm2095, %v7507, %v7509
      %v7511 = vrot.slane %v7427, 7
      %v7512 = vsel %vm2095, %v7509, %v7511
      %v7513 = vrot.slane %v7428, 7
      %v7514 = vsel %vm2095, %v7511, %v7513
      %v7515 = vrot.slane %v7429, 7
      %v7516 = vsel %vm2095, %v7513, %v7515
      %v7517 = vrot.slane %v7430, 7
      %v7518 = vsel %vm2095, %v7515, %v7517
      %v7519 = vrot.slane %v7431, 7
      %v7520 = vsel %vm2095, %v7517, %v7519
      %v7521 = vrot.slane %v7432, 7
      %v7522 = vsel %vm2095, %v7519, %v7521
      %v7523 = vrot.slane %v7433, 7
      %v7524 = vsel %vm2095, %v7521, %v7523
      %v7525 = vrot.slane %v7434, 7
      %v7526 = vsel %vm2095, %v7523, %v7525
      %v7527 = vrot.slane %v7435, 7
      %v7528 = vsel %vm2095, %v7525, %v7527
      %v7529 = vrot.slane %v7436, 7
      %v7530 = vsel %vm2095, %v7527, %v7529
      %v7531 = vrot.slane %v7437, 7
      %v7532 = vsel %vm2095, %v7529, %v7531
      %v7533 = vrot.slane %v7438, 7
      %v7534 = vsel %vm2095, %v7531, %v7533
      %v7535 = vrot.slane %v7439, 7
      %v7536 = vsel %vm2095, %v7533, %v7535
      %v7537 = vrot.slane %v7440, 7
      %v7538 = vsel %vm2095, %v7535, %v7537
      %v7539 = vrot.slane %v7441, 7
      %v7540 = vsel %vm2095, %v7537, %v7539
      %v7541 = vrot.slane %v7442, 7
      %v7542 = vsel %vm2095, %v7539, %v7541
      %v7543 = vrot.slane %v7443, 7
      %v7544 = vsel %vm2095, %v7541, %v7543
      %v7545 = vsel %vm2095, %v7543, %v3902
      %v7546 = vsel %vm535, %v7486, 0
      %v7548 = vsel %vm535, %v7488, 0
      %v7550 = vsel %vm535, %v7490, 0
      %v7552 = vsel %vm535, %v7492, 0
      %v7554 = vsel %vm535, %v7494, 0
      %v7556 = vsel %vm535, %v7496, 0
      %v7558 = vsel %vm535, %v7498, 0
      %v7560 = vsel %vm535, %v7500, 0
      %v7562 = vsel %vm535, %v7502, 0
      %v7564 = vsel %vm535, %v7504, 0
      %v7566 = vsel %vm535, %v7506, 0
      %v7568 = vsel %vm535, %v7508, 0
      %v7570 = vsel %vm535, %v7510, 0
      %v7572 = vsel %vm535, %v7512, 0
      %v7574 = vsel %vm535, %v7514, 0
      %v7576 = vsel %vm535, %v7516, 0
      %v7578 = vsel %vm535, %v7518, 0
      %v7580 = vsel %vm535, %v7520, 0
      %v7582 = vsel %vm535, %v7522, 0
      %v7584 = vsel %vm535, %v7524, 0
      %v7586 = vsel %vm535, %v7526, 0
      %v7588 = vsel %vm535, %v7528, 0
      %v7590 = vsel %vm535, %v7530, 0
      %v7592 = vsel %vm535, %v7532, 0
      %v7594 = vsel %vm535, %v7534, 0
      %v7596 = vsel %vm535, %v7536, 0
      %v7598 = vsel %vm535, %v7538, 0
      %v7600 = vsel %vm535, %v7540, 0
      %v7602 = vsel %vm535, %v7542, 0
      %v7604 = vsel %vm535, %v7544, 0
      %v7606 = vsel %vm535, %v7545, 0
      %7608 = vmatpush.msra.mxu0 0.0
      %7609 = vmatpush.msra.mxu0 0.0
      %7610 = vmatpush.msra.mxu0 0.0
      %7611 = vmatpush.msra.mxu0 0.0
      %7612 = vmatpush.msra.mxu0 0.0
      %7613 = vmatpush.msra.mxu0 0.0
      %7614 = vmatpush.msra.mxu0 0.0
      %7615 = vmatpush.msra.mxu0 0.0
      %7616 = vmatpush.msra.mxu0 %v7452
      %7617 = vmatpush.msra.mxu0 %v7451
      %7618 = vmatpush.msra.mxu0 %v7450
      %7619 = vmatpush.msra.mxu0 %v7449
      %7620 = vmatpush.msra.mxu0 %v7448
      %7621 = vmatpush.msra.mxu0 %v7447
      %7622 = vmatpush.msra.mxu0 %v7446
      %7623 = vmatpush.msra.mxu0 %v7445
      %7624 = vmatmul.f32.gmra.mxu0 %v7546
      %v7625 = vpop.f32.mrf.mxu0
      %v7626 = vadd.f32 0.0, %v7625
      %7627 = vmatmul.f32.gmra.mxu0 %v7548
      %v7628 = vpop.f32.mrf.mxu0
      %v7629 = vadd.f32 0.0, %v7628
      %7630 = vmatmul.f32.gmra.mxu0 %v7550
      %v7631 = vpop.f32.mrf.mxu0
      %v7632 = vadd.f32 0.0, %v7631
      %7633 = vmatmul.f32.gmra.mxu0 %v7552
      %v7634 = vpop.f32.mrf.mxu0
      %v7635 = vadd.f32 0.0, %v7634
      %7636 = vmatmul.f32.gmra.mxu0 %v7554
      %v7637 = vpop.f32.mrf.mxu0
      %v7638 = vadd.f32 0.0, %v7637
      %7639 = vmatmul.f32.gmra.mxu0 %v7556
      %v7640 = vpop.f32.mrf.mxu0
      %v7641 = vadd.f32 0.0, %v7640
      %7642 = vmatmul.f32.gmra.mxu0 %v7558
      %v7643 = vpop.f32.mrf.mxu0
      %v7644 = vadd.f32 0.0, %v7643
      %7645 = vmatmul.f32.gmra.mxu0 %v7560
      %v7646 = vpop.f32.mrf.mxu0
      %v7647 = vadd.f32 0.0, %v7646
      %7648 = vmatmul.f32.gmra.mxu0 %v7562
      %v7649 = vpop.f32.mrf.mxu0
      %v7650 = vadd.f32 0.0, %v7649
      %7651 = vmatmul.f32.gmra.mxu0 %v7564
      %v7652 = vpop.f32.mrf.mxu0
      %v7653 = vadd.f32 0.0, %v7652
      %7654 = vmatmul.f32.gmra.mxu0 %v7566
      %v7655 = vpop.f32.mrf.mxu0
      %v7656 = vadd.f32 0.0, %v7655
      %7657 = vmatmul.f32.gmra.mxu0 %v7568
      %v7658 = vpop.f32.mrf.mxu0
      %v7659 = vadd.f32 0.0, %v7658
      %7660 = vmatmul.f32.gmra.mxu0 %v7570
      %v7661 = vpop.f32.mrf.mxu0
      %v7662 = vadd.f32 0.0, %v7661
      %7663 = vmatmul.f32.gmra.mxu0 %v7572
      %v7664 = vpop.f32.mrf.mxu0
      %v7665 = vadd.f32 0.0, %v7664
      %7666 = vmatmul.f32.gmra.mxu0 %v7574
      %v7667 = vpop.f32.mrf.mxu0
      %v7668 = vadd.f32 0.0, %v7667
      %7669 = vmatmul.f32.gmra.mxu0 %v7576
      %v7670 = vpop.f32.mrf.mxu0
      %v7671 = vadd.f32 0.0, %v7670
      %7672 = vmatmul.f32.gmra.mxu0 %v7578
      %v7673 = vpop.f32.mrf.mxu0
      %v7674 = vadd.f32 0.0, %v7673
      %7675 = vmatmul.f32.gmra.mxu0 %v7580
      %v7676 = vpop.f32.mrf.mxu0
      %v7677 = vadd.f32 0.0, %v7676
      %7678 = vmatmul.f32.gmra.mxu0 %v7582
      %v7679 = vpop.f32.mrf.mxu0
      %v7680 = vadd.f32 0.0, %v7679
      %7681 = vmatmul.f32.gmra.mxu0 %v7584
      %v7682 = vpop.f32.mrf.mxu0
      %v7683 = vadd.f32 0.0, %v7682
      %7684 = vmatmul.f32.gmra.mxu0 %v7586
      %v7685 = vpop.f32.mrf.mxu0
      %v7686 = vadd.f32 0.0, %v7685
      %7687 = vmatmul.f32.gmra.mxu0 %v7588
      %v7688 = vpop.f32.mrf.mxu0
      %v7689 = vadd.f32 0.0, %v7688
      %7690 = vmatmul.f32.gmra.mxu0 %v7590
      %v7691 = vpop.f32.mrf.mxu0
      %v7692 = vadd.f32 0.0, %v7691
      %7693 = vmatmul.f32.gmra.mxu0 %v7592
      %v7694 = vpop.f32.mrf.mxu0
      %v7695 = vadd.f32 0.0, %v7694
      %7696 = vmatmul.f32.gmra.mxu0 %v7594
      %v7697 = vpop.f32.mrf.mxu0
      %v7698 = vadd.f32 0.0, %v7697
      %7699 = vmatmul.f32.gmra.mxu0 %v7596
      %v7700 = vpop.f32.mrf.mxu0
      %v7701 = vadd.f32 0.0, %v7700
      %7702 = vmatmul.f32.gmra.mxu0 %v7598
      %v7703 = vpop.f32.mrf.mxu0
      %v7704 = vadd.f32 0.0, %v7703
      %7705 = vmatmul.f32.gmra.mxu0 %v7600
      %v7706 = vpop.f32.mrf.mxu0
      %v7707 = vadd.f32 0.0, %v7706
      %7708 = vmatmul.f32.gmra.mxu0 %v7602
      %v7709 = vpop.f32.mrf.mxu0
      %v7710 = vadd.f32 0.0, %v7709
      %7711 = vmatmul.f32.gmra.mxu0 %v7604
      %v7712 = vpop.f32.mrf.mxu0
      %v7713 = vadd.f32 0.0, %v7712
      %7714 = vmatmul.f32.gmra.mxu0 %v7606
      %v7715 = vpop.f32.mrf.mxu0
      %v7716 = vadd.f32 0.0, %v7715
      %7717 = vmatmul.f32.gmra.mxu0 %v3968
      %v7718 = vpop.f32.mrf.mxu0
      %v7719 = vadd.f32 0.0, %v7718
      %7720 = vdwg.mxu0
      %v7721 = vadd.f32 %v7381, %v7626
      %v7722 = vadd.f32 %v7382, %v7629
      %v7723 = vadd.f32 %v7383, %v7632
      %v7724 = vadd.f32 %v7384, %v7635
      %v7725 = vadd.f32 %v7385, %v7638
      %v7726 = vadd.f32 %v7386, %v7641
      %v7727 = vadd.f32 %v7387, %v7644
      %v7728 = vadd.f32 %v7388, %v7647
      %v7729 = vadd.f32 %v7389, %v7650
      %v7730 = vadd.f32 %v7390, %v7653
      %v7731 = vadd.f32 %v7391, %v7656
      %v7732 = vadd.f32 %v7392, %v7659
      %v7733 = vadd.f32 %v7393, %v7662
      %v7734 = vadd.f32 %v7394, %v7665
      %v7735 = vadd.f32 %v7395, %v7668
      %v7736 = vadd.f32 %v7396, %v7671
      %v7737 = vadd.f32 %v7397, %v7674
      %v7738 = vadd.f32 %v7398, %v7677
      %v7739 = vadd.f32 %v7399, %v7680
      %v7740 = vadd.f32 %v7400, %v7683
      %v7741 = vadd.f32 %v7401, %v7686
      %v7742 = vadd.f32 %v7402, %v7689
      %v7743 = vadd.f32 %v7403, %v7692
      %v7744 = vadd.f32 %v7404, %v7695
      %v7745 = vadd.f32 %v7405, %v7698
      %v7746 = vadd.f32 %v7406, %v7701
      %v7747 = vadd.f32 %v7407, %v7704
      %v7748 = vadd.f32 %v7408, %v7707
      %v7749 = vadd.f32 %v7409, %v7710
      %v7750 = vadd.f32 %v7410, %v7713
      %v7751 = vadd.f32 %v7411, %v7716
      %v7752 = vadd.f32 %v7412, %v7719
      %s7753 = scalar_lea.vmem %s10, 448
      %v7754 = vld [vmem:[%s7753] sm:$0xff]
      %v7755 = vld [vmem:[%s7753 + $0x8] sm:$0xff]
      %v7756 = vld [vmem:[%s7753 + $0x10] sm:$0xff]
      %v7757 = vld [vmem:[%s7753 + $0x18] sm:$0xff]
      %v7758 = vld [vmem:[%s7753 + $0x20] sm:$0xff]
      %v7759 = vld [vmem:[%s7753 + $0x28] sm:$0xff]
      %v7760 = vld [vmem:[%s7753 + $0x30] sm:$0xff]
      %v7761 = vld [vmem:[%s7753 + $0x38] sm:$0xff]
      %7762 = vmatpush.msra.mxu0 0.0
      %7763 = vmatpush.msra.mxu0 0.0
      %7764 = vmatpush.msra.mxu0 0.0
      %7765 = vmatpush.msra.mxu0 0.0
      %7766 = vmatpush.msra.mxu0 0.0
      %7767 = vmatpush.msra.mxu0 0.0
      %7768 = vmatpush.msra.mxu0 0.0
      %7769 = vmatpush.msra.mxu0 0.0
      %7770 = vmatpush.msra.mxu0 %v7761
      %7771 = vmatpush.msra.mxu0 %v7760
      %7772 = vmatpush.msra.mxu0 %v7759
      %7773 = vmatpush.msra.mxu0 %v7758
      %7774 = vmatpush.msra.mxu0 %v7757
      %7775 = vmatpush.msra.mxu0 %v7756
      %7776 = vmatpush.msra.mxu0 %v7755
      %7777 = vmatpush.msra.mxu0 %v7754
      %7778 = vmatmul.f32.gmra.mxu0 %v5762
      %v7779 = vpop.f32.mrf.mxu0
      %v7780 = vadd.f32 0.0, %v7779
      %7781 = vmatmul.f32.gmra.mxu0 %v5765
      %v7782 = vpop.f32.mrf.mxu0
      %v7783 = vadd.f32 0.0, %v7782
      %7784 = vmatmul.f32.gmra.mxu0 %v5768
      %v7785 = vpop.f32.mrf.mxu0
      %v7786 = vadd.f32 0.0, %v7785
      %7787 = vmatmul.f32.gmra.mxu0 %v5771
      %v7788 = vpop.f32.mrf.mxu0
      %v7789 = vadd.f32 0.0, %v7788
      %7790 = vmatmul.f32.gmra.mxu0 %v5774
      %v7791 = vpop.f32.mrf.mxu0
      %v7792 = vadd.f32 0.0, %v7791
      %7793 = vmatmul.f32.gmra.mxu0 %v5777
      %v7794 = vpop.f32.mrf.mxu0
      %v7795 = vadd.f32 0.0, %v7794
      %7796 = vmatmul.f32.gmra.mxu0 %v5780
      %v7797 = vpop.f32.mrf.mxu0
      %v7798 = vadd.f32 0.0, %v7797
      %7799 = vmatmul.f32.gmra.mxu0 %v5783
      %v7800 = vpop.f32.mrf.mxu0
      %v7801 = vadd.f32 0.0, %v7800
      %7802 = vmatmul.f32.gmra.mxu0 %v5786
      %v7803 = vpop.f32.mrf.mxu0
      %v7804 = vadd.f32 0.0, %v7803
      %7805 = vmatmul.f32.gmra.mxu0 %v5789
      %v7806 = vpop.f32.mrf.mxu0
      %v7807 = vadd.f32 0.0, %v7806
      %7808 = vmatmul.f32.gmra.mxu0 %v5792
      %v7809 = vpop.f32.mrf.mxu0
      %v7810 = vadd.f32 0.0, %v7809
      %7811 = vmatmul.f32.gmra.mxu0 %v5795
      %v7812 = vpop.f32.mrf.mxu0
      %v7813 = vadd.f32 0.0, %v7812
      %7814 = vmatmul.f32.gmra.mxu0 %v5798
      %v7815 = vpop.f32.mrf.mxu0
      %v7816 = vadd.f32 0.0, %v7815
      %7817 = vmatmul.f32.gmra.mxu0 %v5801
      %v7818 = vpop.f32.mrf.mxu0
      %v7819 = vadd.f32 0.0, %v7818
      %7820 = vmatmul.f32.gmra.mxu0 %v5804
      %v7821 = vpop.f32.mrf.mxu0
      %v7822 = vadd.f32 0.0, %v7821
      %7823 = vmatmul.f32.gmra.mxu0 %v5807
      %v7824 = vpop.f32.mrf.mxu0
      %v7825 = vadd.f32 0.0, %v7824
      %7826 = vmatmul.f32.gmra.mxu0 %v5810
      %v7827 = vpop.f32.mrf.mxu0
      %v7828 = vadd.f32 0.0, %v7827
      %7829 = vmatmul.f32.gmra.mxu0 %v5813
      %v7830 = vpop.f32.mrf.mxu0
      %v7831 = vadd.f32 0.0, %v7830
      %7832 = vmatmul.f32.gmra.mxu0 %v5816
      %v7833 = vpop.f32.mrf.mxu0
      %v7834 = vadd.f32 0.0, %v7833
      %7835 = vmatmul.f32.gmra.mxu0 %v5819
      %v7836 = vpop.f32.mrf.mxu0
      %v7837 = vadd.f32 0.0, %v7836
      %7838 = vmatmul.f32.gmra.mxu0 %v5822
      %v7839 = vpop.f32.mrf.mxu0
      %v7840 = vadd.f32 0.0, %v7839
      %7841 = vmatmul.f32.gmra.mxu0 %v5825
      %v7842 = vpop.f32.mrf.mxu0
      %v7843 = vadd.f32 0.0, %v7842
      %7844 = vmatmul.f32.gmra.mxu0 %v5828
      %v7845 = vpop.f32.mrf.mxu0
      %v7846 = vadd.f32 0.0, %v7845
      %7847 = vmatmul.f32.gmra.mxu0 %v5831
      %v7848 = vpop.f32.mrf.mxu0
      %v7849 = vadd.f32 0.0, %v7848
      %7850 = vmatmul.f32.gmra.mxu0 %v5834
      %v7851 = vpop.f32.mrf.mxu0
      %v7852 = vadd.f32 0.0, %v7851
      %7853 = vmatmul.f32.gmra.mxu0 %v5837
      %v7854 = vpop.f32.mrf.mxu0
      %v7855 = vadd.f32 0.0, %v7854
      %7856 = vmatmul.f32.gmra.mxu0 %v5840
      %v7857 = vpop.f32.mrf.mxu0
      %v7858 = vadd.f32 0.0, %v7857
      %7859 = vmatmul.f32.gmra.mxu0 %v5843
      %v7860 = vpop.f32.mrf.mxu0
      %v7861 = vadd.f32 0.0, %v7860
      %7862 = vmatmul.f32.gmra.mxu0 %v6917
      %v7863 = vpop.f32.mrf.mxu0
      %v7864 = vadd.f32 0.0, %v7863
      %7865 = vmatmul.f32.gmra.mxu0 %v6920
      %v7866 = vpop.f32.mrf.mxu0
      %v7867 = vadd.f32 0.0, %v7866
      %7868 = vmatmul.f32.gmra.mxu0 %v1857
      %v7869 = vpop.f32.mrf.mxu0
      %v7870 = vadd.f32 0.0, %v7869
      %7871 = vmatmul.f32.gmra.mxu0 %v1857
      %v7872 = vpop.f32.mrf.mxu0
      %v7873 = vadd.f32 0.0, %v7872
      %7874 = vdwg.mxu0
      %v7875 = vadd.f32 %v7721, %v7780
      %v7876 = vadd.f32 %v7722, %v7783
      %v7877 = vadd.f32 %v7723, %v7786
      %v7878 = vadd.f32 %v7724, %v7789
      %v7879 = vadd.f32 %v7725, %v7792
      %v7880 = vadd.f32 %v7726, %v7795
      %v7881 = vadd.f32 %v7727, %v7798
      %v7882 = vadd.f32 %v7728, %v7801
      %v7883 = vadd.f32 %v7729, %v7804
      %v7884 = vadd.f32 %v7730, %v7807
      %v7885 = vadd.f32 %v7731, %v7810
      %v7886 = vadd.f32 %v7732, %v7813
      %v7887 = vadd.f32 %v7733, %v7816
      %v7888 = vadd.f32 %v7734, %v7819
      %v7889 = vadd.f32 %v7735, %v7822
      %v7890 = vadd.f32 %v7736, %v7825
      %v7891 = vadd.f32 %v7737, %v7828
      %v7892 = vadd.f32 %v7738, %v7831
      %v7893 = vadd.f32 %v7739, %v7834
      %v7894 = vadd.f32 %v7740, %v7837
      %v7895 = vadd.f32 %v7741, %v7840
      %v7896 = vadd.f32 %v7742, %v7843
      %v7897 = vadd.f32 %v7743, %v7846
      %v7898 = vadd.f32 %v7744, %v7849
      %v7899 = vadd.f32 %v7745, %v7852
      %v7900 = vadd.f32 %v7746, %v7855
      %v7901 = vadd.f32 %v7747, %v7858
      %v7902 = vadd.f32 %v7748, %v7861
      %v7903 = vadd.f32 %v7749, %v7864
      %v7904 = vadd.f32 %v7750, %v7867
      %v7905 = vadd.f32 %v7751, %v7870
      %v7906 = vadd.f32 %v7752, %v7873
      %v7907 = vmul.f32 %v5677, %v2466
      %v7908 = vmul.f32 %v5678, %v2468
      %v7909 = vmul.f32 %v5679, %v2470
      %v7910 = vmul.f32 %v5680, %v2472
      %v7911 = vmul.f32 %v5681, %v2474
      %v7912 = vmul.f32 %v5682, %v2476
      %v7913 = vmul.f32 %v5683, %v2478
      %v7914 = vmul.f32 %v5684, %v2480
      %v7915 = vmul.f32 %v5685, %v2482
      %v7916 = vmul.f32 %v5686, %v2484
      %v7917 = vmul.f32 %v5687, %v2486
      %v7918 = vmul.f32 %v5688, %v2488
      %v7919 = vmul.f32 %v5689, %v2490
      %v7920 = vmul.f32 %v5690, %v2492
      %v7921 = vmul.f32 %v5691, %v2494
      %v7922 = vmul.f32 %v5692, %v2496
      %v7923 = vmul.f32 %v5693, %v2498
      %v7924 = vmul.f32 %v5694, %v2500
      %v7925 = vmul.f32 %v5695, %v2502
      %v7926 = vmul.f32 %v5696, %v2504
      %v7927 = vmul.f32 %v5697, %v2506
      %v7928 = vmul.f32 %v5698, %v2508
      %v7929 = vmul.f32 %v5699, %v2510
      %v7930 = vmul.f32 %v5700, %v2512
      %v7931 = vmul.f32 %v5701, %v2514
      %v7932 = vmul.f32 %v5702, %v2516
      %v7933 = vmul.f32 %v5703, %v2518
      %v7934 = vmul.f32 %v5704, %v2520
      %v7935 = vmul.f32 %v5705, %v2522
      %v7936 = vmul.f32 %v5706, %v2524
      %s7937 = scalar_lea.vmem %s10, 512
      %v7938 = vld [vmem:[%s7937] sm:$0xff]
      %v7939 = vld [vmem:[%s7937 + $0x8] sm:$0xff]
      %v7940 = vld [vmem:[%s7937 + $0x10] sm:$0xff]
      %v7941 = vld [vmem:[%s7937 + $0x18] sm:$0xff]
      %v7942 = vld [vmem:[%s7937 + $0x20] sm:$0xff]
      %v7943 = vld [vmem:[%s7937 + $0x28] sm:$0xff]
      %v7944 = vld [vmem:[%s7937 + $0x30] sm:$0xff]
      %v7945 = vld [vmem:[%s7937 + $0x38] sm:$0xff]
      %v7976 = vrot.slane %v7907, 1
      %v7977 = vrot.slane %v7908, 1
      %v7978 = vsel %vm1709, %v7976, %v7977
      %v7979 = vrot.slane %v7909, 1
      %v7980 = vsel %vm1709, %v7977, %v7979
      %v7981 = vrot.slane %v7910, 1
      %v7982 = vsel %vm1709, %v7979, %v7981
      %v7983 = vrot.slane %v7911, 1
      %v7984 = vsel %vm1709, %v7981, %v7983
      %v7985 = vrot.slane %v7912, 1
      %v7986 = vsel %vm1709, %v7983, %v7985
      %v7987 = vrot.slane %v7913, 1
      %v7988 = vsel %vm1709, %v7985, %v7987
      %v7989 = vrot.slane %v7914, 1
      %v7990 = vsel %vm1709, %v7987, %v7989
      %v7991 = vrot.slane %v7915, 1
      %v7992 = vsel %vm1709, %v7989, %v7991
      %v7993 = vrot.slane %v7916, 1
      %v7994 = vsel %vm1709, %v7991, %v7993
      %v7995 = vrot.slane %v7917, 1
      %v7996 = vsel %vm1709, %v7993, %v7995
      %v7997 = vrot.slane %v7918, 1
      %v7998 = vsel %vm1709, %v7995, %v7997
      %v7999 = vrot.slane %v7919, 1
      %v8000 = vsel %vm1709, %v7997, %v7999
      %v8001 = vrot.slane %v7920, 1
      %v8002 = vsel %vm1709, %v7999, %v8001
      %v8003 = vrot.slane %v7921, 1
      %v8004 = vsel %vm1709, %v8001, %v8003
      %v8005 = vrot.slane %v7922, 1
      %v8006 = vsel %vm1709, %v8003, %v8005
      %v8007 = vrot.slane %v7923, 1
      %v8008 = vsel %vm1709, %v8005, %v8007
      %v8009 = vrot.slane %v7924, 1
      %v8010 = vsel %vm1709, %v8007, %v8009
      %v8011 = vrot.slane %v7925, 1
      %v8012 = vsel %vm1709, %v8009, %v8011
      %v8013 = vrot.slane %v7926, 1
      %v8014 = vsel %vm1709, %v8011, %v8013
      %v8015 = vrot.slane %v7927, 1
      %v8016 = vsel %vm1709, %v8013, %v8015
      %v8017 = vrot.slane %v7928, 1
      %v8018 = vsel %vm1709, %v8015, %v8017
      %v8019 = vrot.slane %v7929, 1
      %v8020 = vsel %vm1709, %v8017, %v8019
      %v8021 = vrot.slane %v7930, 1
      %v8022 = vsel %vm1709, %v8019, %v8021
      %v8023 = vrot.slane %v7931, 1
      %v8024 = vsel %vm1709, %v8021, %v8023
      %v8025 = vrot.slane %v7932, 1
      %v8026 = vsel %vm1709, %v8023, %v8025
      %v8027 = vrot.slane %v7933, 1
      %v8028 = vsel %vm1709, %v8025, %v8027
      %v8029 = vrot.slane %v7934, 1
      %v8030 = vsel %vm1709, %v8027, %v8029
      %v8031 = vrot.slane %v7935, 1
      %v8032 = vsel %vm1709, %v8029, %v8031
      %v8033 = vrot.slane %v7936, 1
      %v8034 = vsel %vm1709, %v8031, %v8033
      %v8035 = vsel %vm1709, %v8033, %v4401
      %v8036 = vsel %vm535, %v7978, 0
      %v8038 = vsel %vm535, %v7980, 0
      %v8040 = vsel %vm535, %v7982, 0
      %v8042 = vsel %vm535, %v7984, 0
      %v8044 = vsel %vm535, %v7986, 0
      %v8046 = vsel %vm535, %v7988, 0
      %v8048 = vsel %vm535, %v7990, 0
      %v8050 = vsel %vm535, %v7992, 0
      %v8052 = vsel %vm535, %v7994, 0
      %v8054 = vsel %vm535, %v7996, 0
      %v8056 = vsel %vm535, %v7998, 0
      %v8058 = vsel %vm535, %v8000, 0
      %v8060 = vsel %vm535, %v8002, 0
      %v8062 = vsel %vm535, %v8004, 0
      %v8064 = vsel %vm535, %v8006, 0
      %v8066 = vsel %vm535, %v8008, 0
      %v8068 = vsel %vm535, %v8010, 0
      %v8070 = vsel %vm535, %v8012, 0
      %v8072 = vsel %vm535, %v8014, 0
      %v8074 = vsel %vm535, %v8016, 0
      %v8076 = vsel %vm535, %v8018, 0
      %v8078 = vsel %vm535, %v8020, 0
      %v8080 = vsel %vm535, %v8022, 0
      %v8082 = vsel %vm535, %v8024, 0
      %v8084 = vsel %vm535, %v8026, 0
      %v8086 = vsel %vm535, %v8028, 0
      %v8088 = vsel %vm535, %v8030, 0
      %v8090 = vsel %vm535, %v8032, 0
      %v8092 = vsel %vm535, %v8034, 0
      %v8094 = vsel %vm535, %v8035, 0
      %8096 = vmatpush.msra.mxu0 0.0
      %8097 = vmatpush.msra.mxu0 0.0
      %8098 = vmatpush.msra.mxu0 0.0
      %8099 = vmatpush.msra.mxu0 0.0
      %8100 = vmatpush.msra.mxu0 0.0
      %8101 = vmatpush.msra.mxu0 0.0
      %8102 = vmatpush.msra.mxu0 0.0
      %8103 = vmatpush.msra.mxu0 0.0
      %8104 = vmatpush.msra.mxu0 %v7945
      %8105 = vmatpush.msra.mxu0 %v7944
      %8106 = vmatpush.msra.mxu0 %v7943
      %8107 = vmatpush.msra.mxu0 %v7942
      %8108 = vmatpush.msra.mxu0 %v7941
      %8109 = vmatpush.msra.mxu0 %v7940
      %8110 = vmatpush.msra.mxu0 %v7939
      %8111 = vmatpush.msra.mxu0 %v7938
      %8112 = vmatmul.f32.gmra.mxu0 %v8036
      %v8113 = vpop.f32.mrf.mxu0
      %v8114 = vadd.f32 0.0, %v8113
      %8115 = vmatmul.f32.gmra.mxu0 %v8038
      %v8116 = vpop.f32.mrf.mxu0
      %v8117 = vadd.f32 0.0, %v8116
      %8118 = vmatmul.f32.gmra.mxu0 %v8040
      %v8119 = vpop.f32.mrf.mxu0
      %v8120 = vadd.f32 0.0, %v8119
      %8121 = vmatmul.f32.gmra.mxu0 %v8042
      %v8122 = vpop.f32.mrf.mxu0
      %v8123 = vadd.f32 0.0, %v8122
      %8124 = vmatmul.f32.gmra.mxu0 %v8044
      %v8125 = vpop.f32.mrf.mxu0
      %v8126 = vadd.f32 0.0, %v8125
      %8127 = vmatmul.f32.gmra.mxu0 %v8046
      %v8128 = vpop.f32.mrf.mxu0
      %v8129 = vadd.f32 0.0, %v8128
      %8130 = vmatmul.f32.gmra.mxu0 %v8048
      %v8131 = vpop.f32.mrf.mxu0
      %v8132 = vadd.f32 0.0, %v8131
      %8133 = vmatmul.f32.gmra.mxu0 %v8050
      %v8134 = vpop.f32.mrf.mxu0
      %v8135 = vadd.f32 0.0, %v8134
      %8136 = vmatmul.f32.gmra.mxu0 %v8052
      %v8137 = vpop.f32.mrf.mxu0
      %v8138 = vadd.f32 0.0, %v8137
      %8139 = vmatmul.f32.gmra.mxu0 %v8054
      %v8140 = vpop.f32.mrf.mxu0
      %v8141 = vadd.f32 0.0, %v8140
      %8142 = vmatmul.f32.gmra.mxu0 %v8056
      %v8143 = vpop.f32.mrf.mxu0
      %v8144 = vadd.f32 0.0, %v8143
      %8145 = vmatmul.f32.gmra.mxu0 %v8058
      %v8146 = vpop.f32.mrf.mxu0
      %v8147 = vadd.f32 0.0, %v8146
      %8148 = vmatmul.f32.gmra.mxu0 %v8060
      %v8149 = vpop.f32.mrf.mxu0
      %v8150 = vadd.f32 0.0, %v8149
      %8151 = vmatmul.f32.gmra.mxu0 %v8062
      %v8152 = vpop.f32.mrf.mxu0
      %v8153 = vadd.f32 0.0, %v8152
      %8154 = vmatmul.f32.gmra.mxu0 %v8064
      %v8155 = vpop.f32.mrf.mxu0
      %v8156 = vadd.f32 0.0, %v8155
      %8157 = vmatmul.f32.gmra.mxu0 %v8066
      %v8158 = vpop.f32.mrf.mxu0
      %v8159 = vadd.f32 0.0, %v8158
      %8160 = vmatmul.f32.gmra.mxu0 %v8068
      %v8161 = vpop.f32.mrf.mxu0
      %v8162 = vadd.f32 0.0, %v8161
      %8163 = vmatmul.f32.gmra.mxu0 %v8070
      %v8164 = vpop.f32.mrf.mxu0
      %v8165 = vadd.f32 0.0, %v8164
      %8166 = vmatmul.f32.gmra.mxu0 %v8072
      %v8167 = vpop.f32.mrf.mxu0
      %v8168 = vadd.f32 0.0, %v8167
      %8169 = vmatmul.f32.gmra.mxu0 %v8074
      %v8170 = vpop.f32.mrf.mxu0
      %v8171 = vadd.f32 0.0, %v8170
      %8172 = vmatmul.f32.gmra.mxu0 %v8076
      %v8173 = vpop.f32.mrf.mxu0
      %v8174 = vadd.f32 0.0, %v8173
      %8175 = vmatmul.f32.gmra.mxu0 %v8078
      %v8176 = vpop.f32.mrf.mxu0
      %v8177 = vadd.f32 0.0, %v8176
      %8178 = vmatmul.f32.gmra.mxu0 %v8080
      %v8179 = vpop.f32.mrf.mxu0
      %v8180 = vadd.f32 0.0, %v8179
      %8181 = vmatmul.f32.gmra.mxu0 %v8082
      %v8182 = vpop.f32.mrf.mxu0
      %v8183 = vadd.f32 0.0, %v8182
      %8184 = vmatmul.f32.gmra.mxu0 %v8084
      %v8185 = vpop.f32.mrf.mxu0
      %v8186 = vadd.f32 0.0, %v8185
      %8187 = vmatmul.f32.gmra.mxu0 %v8086
      %v8188 = vpop.f32.mrf.mxu0
      %v8189 = vadd.f32 0.0, %v8188
      %8190 = vmatmul.f32.gmra.mxu0 %v8088
      %v8191 = vpop.f32.mrf.mxu0
      %v8192 = vadd.f32 0.0, %v8191
      %8193 = vmatmul.f32.gmra.mxu0 %v8090
      %v8194 = vpop.f32.mrf.mxu0
      %v8195 = vadd.f32 0.0, %v8194
      %8196 = vmatmul.f32.gmra.mxu0 %v8092
      %v8197 = vpop.f32.mrf.mxu0
      %v8198 = vadd.f32 0.0, %v8197
      %8199 = vmatmul.f32.gmra.mxu0 %v8094
      %v8200 = vpop.f32.mrf.mxu0
      %v8201 = vadd.f32 0.0, %v8200
      %8202 = vmatmul.f32.gmra.mxu0 %v4466
      %v8203 = vpop.f32.mrf.mxu0
      %v8204 = vadd.f32 0.0, %v8203
      %8205 = vmatmul.f32.gmra.mxu0 %v4468
      %v8206 = vpop.f32.mrf.mxu0
      %v8207 = vadd.f32 0.0, %v8206
      %8208 = vdwg.mxu0
      %v8209 = vadd.f32 %v7875, %v8114
      %v8210 = vadd.f32 %v7876, %v8117
      %v8211 = vadd.f32 %v7877, %v8120
      %v8212 = vadd.f32 %v7878, %v8123
      %v8213 = vadd.f32 %v7879, %v8126
      %v8214 = vadd.f32 %v7880, %v8129
      %v8215 = vadd.f32 %v7881, %v8132
      %v8216 = vadd.f32 %v7882, %v8135
      %v8217 = vadd.f32 %v7883, %v8138
      %v8218 = vadd.f32 %v7884, %v8141
      %v8219 = vadd.f32 %v7885, %v8144
      %v8220 = vadd.f32 %v7886, %v8147
      %v8221 = vadd.f32 %v7887, %v8150
      %v8222 = vadd.f32 %v7888, %v8153
      %v8223 = vadd.f32 %v7889, %v8156
      %v8224 = vadd.f32 %v7890, %v8159
      %v8225 = vadd.f32 %v7891, %v8162
      %v8226 = vadd.f32 %v7892, %v8165
      %v8227 = vadd.f32 %v7893, %v8168
      %v8228 = vadd.f32 %v7894, %v8171
      %v8229 = vadd.f32 %v7895, %v8174
      %v8230 = vadd.f32 %v7896, %v8177
      %v8231 = vadd.f32 %v7897, %v8180
      %v8232 = vadd.f32 %v7898, %v8183
      %v8233 = vadd.f32 %v7899, %v8186
      %v8234 = vadd.f32 %v7900, %v8189
      %v8235 = vadd.f32 %v7901, %v8192
      %v8236 = vadd.f32 %v7902, %v8195
      %v8237 = vadd.f32 %v7903, %v8198
      %v8238 = vadd.f32 %v7904, %v8201
      %v8239 = vadd.f32 %v7905, %v8204
      %v8240 = vadd.f32 %v7906, %v8207
      %v8242 = vperm.slane %v5707, 0
      %v8244 = vadd.f32 %v8209, %v8242
      %v8245 = vadd.f32 %v8210, %v8242
      %v8246 = vadd.f32 %v8211, %v8242
      %v8247 = vadd.f32 %v8212, %v8242
      %v8248 = vadd.f32 %v8213, %v8242
      %v8249 = vadd.f32 %v8214, %v8242
      %v8250 = vadd.f32 %v8215, %v8242
      %v8251 = vadd.f32 %v8216, %v8242
      %v8252 = vadd.f32 %v8217, %v8242
      %v8253 = vadd.f32 %v8218, %v8242
      %v8254 = vadd.f32 %v8219, %v8242
      %v8255 = vadd.f32 %v8220, %v8242
      %v8256 = vadd.f32 %v8221, %v8242
      %v8257 = vadd.f32 %v8222, %v8242
      %v8258 = vadd.f32 %v8223, %v8242
      %v8259 = vadd.f32 %v8224, %v8242
      %v8260 = vadd.f32 %v8225, %v8242
      %v8261 = vadd.f32 %v8226, %v8242
      %v8262 = vadd.f32 %v8227, %v8242
      %v8263 = vadd.f32 %v8228, %v8242
      %v8264 = vadd.f32 %v8229, %v8242
      %v8265 = vadd.f32 %v8230, %v8242
      %v8266 = vadd.f32 %v8231, %v8242
      %v8267 = vadd.f32 %v8232, %v8242
      %v8268 = vadd.f32 %v8233, %v8242
      %v8269 = vadd.f32 %v8234, %v8242
      %v8270 = vadd.f32 %v8235, %v8242
      %v8271 = vadd.f32 %v8236, %v8242
      %v8272 = vadd.f32 %v8237, %v8242
      %v8273 = vadd.f32 %v8238, %v8242
      %v8274 = vadd.f32 %v8239, %v8242
      %v8275 = vadd.f32 %v8240, %v8242
      %v8276 = vadd.f32 %v428, %v8244
      %v8277 = vadd.f32 %v429, %v8245
      %v8278 = vadd.f32 %v430, %v8246
      %v8279 = vadd.f32 %v431, %v8247
      %v8280 = vadd.f32 %v432, %v8248
      %v8281 = vadd.f32 %v433, %v8249
      %v8282 = vadd.f32 %v434, %v8250
      %v8283 = vadd.f32 %v435, %v8251
      %v8284 = vadd.f32 %v436, %v8252
      %v8285 = vadd.f32 %v437, %v8253
      %v8286 = vadd.f32 %v438, %v8254
      %v8287 = vadd.f32 %v439, %v8255
      %v8288 = vadd.f32 %v440, %v8256
      %v8289 = vadd.f32 %v441, %v8257
      %v8290 = vadd.f32 %v442, %v8258
      %v8291 = vadd.f32 %v443, %v8259
      %v8292 = vadd.f32 %v444, %v8260
      %v8293 = vadd.f32 %v445, %v8261
      %v8294 = vadd.f32 %v446, %v8262
      %v8295 = vadd.f32 %v447, %v8263
      %v8296 = vadd.f32 %v448, %v8264
      %v8297 = vadd.f32 %v449, %v8265
      %v8298 = vadd.f32 %v450, %v8266
      %v8299 = vadd.f32 %v451, %v8267
      %v8300 = vadd.f32 %v452, %v8268
      %v8301 = vadd.f32 %v453, %v8269
      %v8302 = vadd.f32 %v454, %v8270
      %v8303 = vadd.f32 %v455, %v8271
      %v8304 = vadd.f32 %v456, %v8272
      %v8305 = vadd.f32 %v457, %v8273
      %v8306 = vadd.f32 %v458, %v8274
      %v8307 = vadd.f32 %v459, %v8275
      %8308 = vst.msk [vmem:[%s427] sm:$0xff] %vm535, %v8276
      %8309 = vst.msk [vmem:[%s427 + $0x8] sm:$0xff] %vm535, %v8277
      %8310 = vst.msk [vmem:[%s427 + $0x10] sm:$0xff] %vm535, %v8278
      %8311 = vst.msk [vmem:[%s427 + $0x18] sm:$0xff] %vm535, %v8279
      %8312 = vst.msk [vmem:[%s427 + $0x20] sm:$0xff] %vm535, %v8280
      %8313 = vst.msk [vmem:[%s427 + $0x28] sm:$0xff] %vm535, %v8281
      %8314 = vst.msk [vmem:[%s427 + $0x30] sm:$0xff] %vm535, %v8282
      %8315 = vst.msk [vmem:[%s427 + $0x38] sm:$0xff] %vm535, %v8283
      %8316 = vst.msk [vmem:[%s427 + $0x40] sm:$0xff] %vm535, %v8284
      %8317 = vst.msk [vmem:[%s427 + $0x48] sm:$0xff] %vm535, %v8285
      %8318 = vst.msk [vmem:[%s427 + $0x50] sm:$0xff] %vm535, %v8286
      %8319 = vst.msk [vmem:[%s427 + $0x58] sm:$0xff] %vm535, %v8287
      %8320 = vst.msk [vmem:[%s427 + $0x60] sm:$0xff] %vm535, %v8288
      %8321 = vst.msk [vmem:[%s427 + $0x68] sm:$0xff] %vm535, %v8289
      %8322 = vst.msk [vmem:[%s427 + $0x70] sm:$0xff] %vm535, %v8290
      %8323 = vst.msk [vmem:[%s427 + $0x78] sm:$0xff] %vm535, %v8291
      %8324 = vst.msk [vmem:[%s427 + $0x80] sm:$0xff] %vm535, %v8292
      %8325 = vst.msk [vmem:[%s427 + $0x88] sm:$0xff] %vm535, %v8293
      %8326 = vst.msk [vmem:[%s427 + $0x90] sm:$0xff] %vm535, %v8294
      %8327 = vst.msk [vmem:[%s427 + $0x98] sm:$0xff] %vm535, %v8295
      %8328 = vst.msk [vmem:[%s427 + $0xa0] sm:$0xff] %vm535, %v8296
      %8329 = vst.msk [vmem:[%s427 + $0xa8] sm:$0xff] %vm535, %v8297
      %8330 = vst.msk [vmem:[%s427 + $0xb0] sm:$0xff] %vm535, %v8298
      %8331 = vst.msk [vmem:[%s427 + $0xb8] sm:$0xff] %vm535, %v8299
      %8332 = vst.msk [vmem:[%s427 + $0xc0] sm:$0xff] %vm535, %v8300
      %8333 = vst.msk [vmem:[%s427 + $0xc8] sm:$0xff] %vm535, %v8301
      %8334 = vst.msk [vmem:[%s427 + $0xd0] sm:$0xff] %vm535, %v8302
      %8335 = vst.msk [vmem:[%s427 + $0xd8] sm:$0xff] %vm535, %v8303
      %8336 = vst.msk [vmem:[%s427 + $0xe0] sm:$0xff] %vm535, %v8304
      %8337 = vst.msk [vmem:[%s427 + $0xe8] sm:$0xff] %vm535, %v8305
      %8338 = vst.msk [vmem:[%s427 + $0xf0] sm:$0xff] %vm535, %v8306
      %8339 = vst.msk [vmem:[%s427 + $0xf8] sm:$0xff] %vm535, %v8307
      %p8340 = scmp.lt.s32.totalorder %s23, 1
      %s8341 = scalar_select %p8340, %s23, 1
      %s8342 = smul.addr %s8341, 32
      %s8343 = smul.addr %s8342, 8
      %s8344 = scalar_lea.vmem %s12, %s8343
      // Predicated region
      $region69: #{tpu_custom_call.1} parent=67 // pred_check
        %p8345 = pneg %p303
      $region70: #{tpu_custom_call.1} parent=67 // pred_check_branch
        %8347 = sbr.rel (%p8345) target = $region72
      $region71: #{tpu_custom_call.1} parent=67 // pred_region
        _
      $region72: #{tpu_custom_call.1} parent=67 // pred_fallthru
        _
    $region68: #{tpu_custom_call.1} parent=5 // pred_fallthru
      _
    %p8348 = scmp.le.s32.totalorder 2, %s18
    // Predicated region
    $region73: #{tpu_custom_call.1} parent=5 // pred_check
      %p8349 = pneg %p8348
    $region74: #{tpu_custom_call.1} parent=5 // pred_check_branch
      %8351 = sbr.rel (%p8349) target = $region76
    $region75: #{tpu_custom_call.1} parent=5 // pred_region
      %s8352 = ssub.s32 %s18, 2
      // Predicated region
      $region77: #{tpu_custom_call.1} parent=75 // pred_check
        %p8353 = pneg %p309
      $region78: #{tpu_custom_call.1} parent=75 // pred_check_branch
        %8355 = sbr.rel (%p8353) target = $region80
      $region79: #{tpu_custom_call.1} parent=75 // pred_region
        %p8356 = scmp.lt.s32.totalorder %s24, 1
        %s8357 = scalar_select %p8356, %s24, 1
        %s8358 = smul.addr %s8357, 32
        %s8359 = smul.addr %s8358, 8
        %s8360 = scalar_lea.vmem %s12, %s8359
      $region80: #{tpu_custom_call.1} parent=75 // pred_fallthru
        _
    $region76: #{tpu_custom_call.1} parent=5 // pred_fallthru
      _
  $region6: #{tpu_custom_call.1} parent=0 // loop_footer
    %s22 = sadd.s32 1, %s18
  $region7: #{tpu_custom_call.1} parent=0 // loop_footer_branch
    %17 = sbr.rel target = $region3
  $region8: #{tpu_custom_call.1} parent=0 // loop_exit
    _

</llo_original>
